<compile_context>
chip_gen: v5e
topology: v5e:2x2
jax: 0.10.0
libtpu: 0.0.40
codegen_flags: <defaults>
</compile_context>

<pallas_src>
import functools

import numpy as np
import jax
import jax.numpy as jnp
from jax.experimental import pallas as pl
from jax.experimental.pallas import tpu as pltpu

LEAKY_SLOPE = 0.1
ACT_DTYPE = jnp.bfloat16      # activation / weight storage + MXU dtype (f32 accumulate)
VMEM_LIMIT = 32 * 1024 * 1024 # safe on v5e / v6e / v7x


def _round8(c):
    return ((c + 7) // 8) * 8


def _canvas_dims(H, W):
    """Canvas geometry for the blind-spot shifted 3x3 conv: 2 top / 1 bottom / 1 left /
    1 right zero rows.  Pixel (i, j) lives at canvas (i+2, j+1)."""
    Wp, Hp = W + 2, H + 3
    L = Hp * Wp
    P0 = 2 * Wp + 1            # canvas offset of the first computed output position
    M = L - 2 * Wp - 2         # number of computed output positions per image
    return Hp, Wp, L, P0, M


def _conv_mask(H, W):
    """(1, M) f32 mask: 1 where output canvas position (P0 + m) is a valid pixel."""
    Hp, Wp, L, P0, M = _canvas_dims(H, W)
    pos = np.arange(M) + P0
    row, col = pos // Wp, pos % Wp
    valid = (row >= 2) & (row < 2 + H) & (col >= 1) & (col < 1 + W)
    return jnp.asarray(valid[None, :].astype(np.float32))


def _canvas_mask(H, W):
    """(1, L) f32 mask over the whole canvas: 1 on the valid interior, 0 on borders."""
    Hp, Wp, L, P0, M = _canvas_dims(H, W)
    pos = np.arange(L)
    row, col = pos // Wp, pos % Wp
    valid = (row >= 2) & (row < 2 + H) & (col >= 1) & (col < 1 + W)
    return jnp.asarray(valid[None, :].astype(np.float32))


# ----------------------------------------------------------------------------- kernels
def _conv_kernel(*refs, n_inputs, cins, tap_offsets, m, p0, apply_act):
    """Fused blind-spot shifted 3x3 conv over one (or two, for the skip concat) inputs.

    refs = (x_refs..., w_ref, b_ref, mask_ref, o_ref, patch_ref)
      x_ref_t  : (1, Cin_t, L)   per-image zero-bordered canvas (channels=sublanes)
      w_ref    : (Cout, K)       K = sum_t 9*Cin_t, columns ordered [input, tap, chan]
      b_ref    : (Cout, 1) f32
      mask_ref : (1, M)    f32   validity of output canvas position p0 + m
      o_ref    : (1, Cout, L)    output canvas (zero borders written in-kernel)
      patch_ref: (K, M)          VMEM scratch; taps are sublane-aligned row-block writes
    """
    x_refs = refs[:n_inputs]
    w_ref, b_ref, mask_ref, o_ref, patch_ref = refs[n_inputs:]

    row = 0
    for x_ref, cin in zip(x_refs, cins):
        xv = x_ref[0]                                   # (cin, L)
        for off in tap_offsets:
            patch_ref[row:row + cin, :] = xv[:, off:off + m]
            row += cin

    acc = jnp.dot(w_ref[...], patch_ref[...],
                  preferred_element_type=jnp.float32)    # (Cout, M) f32
    acc = acc + b_ref[...]
    if apply_act:
        acc = jnp.maximum(acc, LEAKY_SLOPE * acc)        # LeakyReLU(0.1)
    acc = acc * mask_ref[...]                            # zero invalid / border positions

    o_ref[...] = jnp.zeros_like(o_ref)                   # zero borders outside [p0, p0+m)
    o_ref[0, :, p0:p0 + m] = acc.astype(o_ref.dtype)


def _deconv_kernel(x_ref, w_ref, b_ref, mask_ref, o_ref):
    """ConvTranspose2d(k=2, s=2) as one lane-dense matmul on the low-res canvas.

    x_ref: (1, Cin, L_lo)  w_ref: (4*Cout, Cin)  b_ref: (4*Cout, 1) f32
    mask_ref: (1, L_lo)    o_ref: (1, 4*Cout, L_lo)
    Output row block t = 2*r + s corresponds to output pixel (2i+r, 2j+s).
    """
    y = jnp.dot(w_ref[...], x_ref[0], preferred_element_type=jnp.float32)
    y = (y + b_ref[...]) * mask_ref[...]
    o_ref[0] = y.astype(o_ref.dtype)


# ----------------------------------------------------------------------------- wrappers
def shifted_conv3x3(xs, w_fused, b, mask, hw, apply_act):
    """Blind-spot shifted 3x3 conv on canvases (split-Cin fusion of the skip concat).

    xs: list of (N, Cin_t, L) canvases at resolution hw=(H, W);
    w_fused: (Cout, sum_t 9*Cin_t); b: (Cout, 1) f32; mask: (1, M) f32.
    Returns the output canvas (N, Cout, L) with zero borders.
    Semantics: y[i, j] = sum_{r,s} W[r, s] . x[i-2+r, j-1+s] (zeros out of bounds).
    """
    H, W = hw
    Hp, Wp, L, P0, M = _canvas_dims(H, W)
    N = xs[0].shape[0]
    cins = tuple(int(x.shape[1]) for x in xs)
    Cout, Ktot = int(w_fused.shape[0]), int(w_fused.shape[1])
    assert Ktot == 9 * sum(cins), (Ktot, cins)
    tap_offsets = tuple(r * Wp + s for r in range(3) for s in range(3))

    kern = functools.partial(_conv_kernel, n_inputs=len(xs), cins=cins,
                             tap_offsets=tap_offsets, m=M, p0=P0, apply_act=apply_act)

    in_specs = ([pl.BlockSpec((1, c, L), lambda n: (n, 0, 0)) for c in cins]
                + [pl.BlockSpec((Cout, Ktot), lambda n: (0, 0)),   # weight: resident
                   pl.BlockSpec((Cout, 1), lambda n: (0, 0)),      # bias:   resident
                   pl.BlockSpec((1, M), lambda n: (0, 0))])        # mask:   resident

    itemsize = jnp.dtype(ACT_DTYPE).itemsize
    flops = 2 * N * Cout * Ktot * M
    bytes_acc = int(sum(int(x.size) for x in xs) * itemsize
                    + int(w_fused.size) * itemsize
                    + N * Cout * L * itemsize + 4 * (M + Cout))

    return pl.pallas_call(
        kern,
        out_shape=jax.ShapeDtypeStruct((N, Cout, L), ACT_DTYPE),
        grid=(N,),
        in_specs=in_specs,
        out_specs=pl.BlockSpec((1, Cout, L), lambda n: (n, 0, 0)),
        scratch_shapes=[pltpu.VMEM((Ktot, M), ACT_DTYPE)],
        compiler_params=pltpu.CompilerParams(
            dimension_semantics=("parallel",),
            vmem_limit_bytes=VMEM_LIMIT),
        cost_estimate=pl.CostEstimate(flops=flops, transcendentals=0,
                                      bytes_accessed=bytes_acc),
    )(*xs, w_fused, b, mask)


def conv_transpose2x2(x, w, b, mask_lo, hw_lo):
    """ConvTranspose2d(kernel=2, stride=2) on a low-res canvas.

    x: (N, Cin, L_lo); w: (4*Cout, Cin); b: (4*Cout, 1) f32; mask_lo: (1, L_lo) f32.
    Returns the high-resolution zero-bordered canvas (N, Cout, L_hi).
    """
    h, w_sz = hw_lo
    hp, wp, L_lo, _, _ = _canvas_dims(h, w_sz)
    N, Cin, _ = x.shape
    Cout4 = int(w.shape[0])
    Cout = Cout4 // 4
    itemsize = jnp.dtype(ACT_DTYPE).itemsize

    out = pl.pallas_call(
        _deconv_kernel,
        out_shape=jax.ShapeDtypeStruct((N, Cout4, L_lo), ACT_DTYPE),
        grid=(N,),
        in_specs=[pl.BlockSpec((1, Cin, L_lo), lambda n: (n, 0, 0)),
                  pl.BlockSpec((Cout4, Cin), lambda n: (0, 0)),
                  pl.BlockSpec((Cout4, 1), lambda n: (0, 0)),
                  pl.BlockSpec((1, L_lo), lambda n: (0, 0))],
        out_specs=pl.BlockSpec((1, Cout4, L_lo), lambda n: (n, 0, 0)),
        compiler_params=pltpu.CompilerParams(
            dimension_semantics=("parallel",),
            vmem_limit_bytes=VMEM_LIMIT),
        cost_estimate=pl.CostEstimate(
            flops=2 * N * Cout4 * Cin * L_lo, transcendentals=0,
            bytes_accessed=int((int(x.size) + int(w.size) + N * Cout4 * L_lo) * itemsize
                               + 4 * (L_lo + Cout4))),
    )(x, w, b, mask_lo)

    # TODO(synk): fuse this 2x2 pixel interleave (an HBM relayout of the largest tensor
    # at every decoder level) into the following split up-conv kernel.
    H2, W2 = 2 * h, 2 * w_sz
    Hp2, Wp2, L_hi, _, _ = _canvas_dims(H2, W2)
    y = out.reshape(N, 2, 2, Cout, hp, wp)
    y = y.transpose(0, 3, 4, 1, 5, 2).reshape(N, Cout, 2 * hp, 2 * wp)
    return y[:, :, 2:2 + Hp2, 1:1 + Wp2].reshape(N, Cout, L_hi)


def to_canvas(x):
    """(N, C, H, W) -> zero-bordered canvas (N, C, Hp*Wp)."""
    N, C, H, W = x.shape
    Hp, Wp, L, _, _ = _canvas_dims(H, W)
    return jnp.pad(x, ((0, 0), (0, 0), (2, 1), (1, 1))).reshape(N, C, L)


def from_canvas(x, hw):
    H, W = hw
    Hp, Wp, L, _, _ = _canvas_dims(H, W)
    N, C, _ = x.shape
    return x.reshape(N, C, Hp, Wp)[:, :, 2:2 + H, 1:1 + W]


def shifted_maxpool2_canvas(x, hw):
    """Shifted 2x2 max-pool (pool of [0-row ; y[:H-1]]) from canvas to half-res canvas.
    Canvas rows 1..H are exactly [zero row ; y[0:H-2+1]], so no extra padding is needed."""
    H, W = hw
    Hp, Wp, L, _, _ = _canvas_dims(H, W)
    N, C, _ = x.shape
    ys = x.reshape(N, C, Hp, Wp)[:, :, 1:1 + H, 1:1 + W]
    p = jnp.maximum(jnp.maximum(ys[:, :, 0::2, 0::2], ys[:, :, 0::2, 1::2]),
                    jnp.maximum(ys[:, :, 1::2, 0::2], ys[:, :, 1::2, 1::2]))
    return to_canvas(p)


# ----------------------------------------------------------------------------- params
def make_params(key, in_ch, n_depth, base_ch, dtype=ACT_DTYPE):
    """Deterministic synthetic parameters, created directly in the fused kernel layouts:
    conv weights (Cout, 9*Cin) [columns: input-major, tap-major, channel-minor],
    deconv weights (4*Cout, Cin) [row block t = 2*r + s], biases (C, 1) float32."""
    keys = iter(jax.random.split(key, 256))
    in_ch_p = _round8(in_ch)     # raw input is channel-padded with zeros to a multiple of 8

    def conv_p(cin, cout):
        bound = 1.0 / float(cin * 9) ** 0.5
        w = jax.random.uniform(next(keys), (cout, 9 * cin), jnp.float32,
                               -bound, bound).astype(dtype)
        b = jax.random.uniform(next(keys), (cout, 1), jnp.float32, -bound, bound)
        return {"w": w, "b": b}

    def deconv_p(cin, cout):
        bound = 1.0 / float(cin * 4) ** 0.5
        w = jax.random.uniform(next(keys), (4 * cout, cin), jnp.float32,
                               -bound, bound).astype(dtype)
        b = jax.random.uniform(next(keys), (cout, 1), jnp.float32, -bound, bound)
        return {"w": w, "b": jnp.tile(b, (4, 1))}

    b_ = base_ch
    up = []
    for l in range(n_depth):
        if l == 0:
            ca, cb = b_, b_                 # deconv-out channels, skip channels
        elif l == n_depth - 1:
            ca, cb = 2 * b_, in_ch_p
        else:
            ca, cb = 2 * b_, b_
        up.append([conv_p(ca + cb, 2 * b_), conv_p(2 * b_, 2 * b_)])

    return {
        "head": conv_p(in_ch_p, b_),
        "down": [conv_p(b_, b_) for _ in range(n_depth)],
        "middle": conv_p(b_, b_),
        "deconv": [deconv_p(b_, b_)]
                  + [deconv_p(2 * b_, 2 * b_) for _ in range(n_depth - 1)],
        "up": up,
    }


# ----------------------------------------------------------------------------- model
def bsn_unet_forward(params, x_nchw, *, n_depth):
    N, in_ch, H, W = x_nchw.shape
    in_ch_p = _round8(in_ch)

    conv_masks, canvas_masks = {}, {}

    def cmask(hw):
        if hw not in conv_masks:
            conv_masks[hw] = _conv_mask(*hw)
        return conv_masks[hw]

    def vmask(hw):
        if hw not in canvas_masks:
            canvas_masks[hw] = _canvas_mask(*hw)
        return canvas_masks[hw]

    # NCHW input -> channel-pad to a multiple of 8 -> bf16 -> zero-bordered canvas.
    x0 = jnp.pad(x_nchw, ((0, 0), (0, in_ch_p - in_ch), (0, 0), (0, 0))).astype(ACT_DTYPE)
    hw = (H, W)
    x = to_canvas(x0)

    skips, skip_hws = [x], [hw]
    p = params["head"]
    x = shifted_conv3x3([x], p["w"], p["b"], cmask(hw), hw, apply_act=True)
    for l in range(n_depth):
        p = params["down"][l]
        x = shifted_conv3x3([x], p["w"], p["b"], cmask(hw), hw, apply_act=True)
        x = shifted_maxpool2_canvas(x, hw)
        hw = (hw[0] // 2, hw[1] // 2)
        skips.append(x)
        skip_hws.append(hw)
    p = params["middle"]
    x = shifted_conv3x3([x], p["w"], p["b"], cmask(hw), hw, apply_act=True)

    use_skips = list(reversed(skips[:n_depth]))
    use_hws = list(reversed(skip_hws[:n_depth]))
    for l in range(n_depth):
        dp = params["deconv"][l]
        x = conv_transpose2x2(x, dp["w"], dp["b"], vmask(hw), hw)
        hw = (hw[0] * 2, hw[1] * 2)
        assert hw == use_hws[l]
        u0, u1 = params["up"][l]
        # torch.cat([x, skip], dim=1) is fused into the conv's patch scratch / weight K.
        x = shifted_conv3x3([x, use_skips[l]], u0["w"], u0["b"], cmask(hw), hw,
                            apply_act=True)
        x = shifted_conv3x3([x], u1["w"], u1["b"], cmask(hw), hw, apply_act=True)

    return from_canvas(x, hw).astype(jnp.float32)


# ----------------------------------------------------------------------------- main
if __name__ == "__main__":
    in_ch, n_depth, base_ch = 4, 3, 8
    N, H, W = 2, 16, 16          # H, W divisible by 2**n_depth

    key = jax.random.PRNGKey(0)
    kp, kx = jax.random.split(key)
    params = make_params(kp, in_ch, n_depth, base_ch)
    x = jax.random.normal(kx, (N, in_ch, H, W), jnp.float32)

    fwd = jax.jit(functools.partial(bsn_unet_forward, n_depth=n_depth))
    out = fwd(params, x)
    jax.block_until_ready(out)

    assert out.shape == (N, 2 * base_ch, H, W), out.shape
    assert bool(jnp.all(jnp.isfinite(out)))
    print("KERNEL_OK")
</pallas_src>

<mosaic_0001>
module attributes {stable_mosaic.version = 11 : i64} {
  func.func @_conv_kernel(%arg0: i32, %arg1: memref<1x8x342xbf16, #tpu.memory_space<vmem>>, %arg2: memref<8x72xbf16, #tpu.memory_space<vmem>>, %arg3: memref<8x1xf32, #tpu.memory_space<vmem>>, %arg4: memref<1x304xf32, #tpu.memory_space<vmem>>, %arg5: memref<1x8x342xbf16, #tpu.memory_space<vmem>>, %arg6: memref<72x304xbf16, #tpu.memory_space<vmem>>) attributes {dimension_semantics = [#tpu.dimension_semantics<parallel>], iteration_bounds = array<i64: 2>, scalar_prefetch = 0 : i64, scratch_operands = 1 : i64, tpu.core_type = #tpu.core_type<tc>, window_params = [{transform_indices = @transform_0, window_bounds = array<i64: 1, 8, 342>}, {pipeline_mode = #tpu.pipeline_mode<synchronous>, transform_indices = @transform_1, window_bounds = array<i64: 8, 72>}, {pipeline_mode = #tpu.pipeline_mode<synchronous>, transform_indices = @transform_2, window_bounds = array<i64: 8, 1>}, {pipeline_mode = #tpu.pipeline_mode<synchronous>, transform_indices = @transform_3, window_bounds = array<i64: 1, 304>}, {transform_indices = @transform_4, window_bounds = array<i64: 1, 8, 342>}]} {
    %c0 = arith.constant 0 : index
    %c0_0 = arith.constant 0 : index
    %c0_1 = arith.constant 0 : index
    %0 = vector.load %arg1[%c0, %c0_0, %c0_1] : memref<1x8x342xbf16, #tpu.memory_space<vmem>>, vector<1x8x342xbf16>
    %1 = vector.shape_cast %0 : vector<1x8x342xbf16> to vector<8x342xbf16>
    %2 = vector.extract_strided_slice %1 {offsets = [0, 0], sizes = [8, 304], strides = [1, 1]} : vector<8x342xbf16> to vector<8x304xbf16>
    %c0_2 = arith.constant 0 : index
    %c0_3 = arith.constant 0 : index
    %3 = vector.load %arg6[%c0_2, %c0_3] : memref<72x304xbf16, #tpu.memory_space<vmem>>, vector<8x304xbf16>
    tpu.vector_store %arg6[%c0_2, %c0_3], %2 {strides = array<i32>} : memref<72x304xbf16, #tpu.memory_space<vmem>>, vector<8x304xbf16>,
    %4 = vector.extract_strided_slice %1 {offsets = [0, 1], sizes = [8, 304], strides = [1, 1]} : vector<8x342xbf16> to vector<8x304xbf16>
    %c8 = arith.constant 8 : index
    %c0_4 = arith.constant 0 : index
    %5 = vector.load %arg6[%c8, %c0_4] : memref<72x304xbf16, #tpu.memory_space<vmem>>, vector<8x304xbf16>
    tpu.vector_store %arg6[%c8, %c0_4], %4 {strides = array<i32>} : memref<72x304xbf16, #tpu.memory_space<vmem>>, vector<8x304xbf16>,
    %6 = vector.extract_strided_slice %1 {offsets = [0, 2], sizes = [8, 304], strides = [1, 1]} : vector<8x342xbf16> to vector<8x304xbf16>
    %c16 = arith.constant 16 : index
    %c0_5 = arith.constant 0 : index
    %7 = vector.load %arg6[%c16, %c0_5] : memref<72x304xbf16, #tpu.memory_space<vmem>>, vector<8x304xbf16>
    tpu.vector_store %arg6[%c16, %c0_5], %6 {strides = array<i32>} : memref<72x304xbf16, #tpu.memory_space<vmem>>, vector<8x304xbf16>,
    %8 = vector.extract_strided_slice %1 {offsets = [0, 18], sizes = [8, 304], strides = [1, 1]} : vector<8x342xbf16> to vector<8x304xbf16>
    %c24 = arith.constant 24 : index
    %c0_6 = arith.constant 0 : index
    %9 = vector.load %arg6[%c24, %c0_6] : memref<72x304xbf16, #tpu.memory_space<vmem>>, vector<8x304xbf16>
    tpu.vector_store %arg6[%c24, %c0_6], %8 {strides = array<i32>} : memref<72x304xbf16, #tpu.memory_space<vmem>>, vector<8x304xbf16>,
    %10 = vector.extract_strided_slice %1 {offsets = [0, 19], sizes = [8, 304], strides = [1, 1]} : vector<8x342xbf16> to vector<8x304xbf16>
    %c32 = arith.constant 32 : index
    %c0_7 = arith.constant 0 : index
    %11 = vector.load %arg6[%c32, %c0_7] : memref<72x304xbf16, #tpu.memory_space<vmem>>, vector<8x304xbf16>
    tpu.vector_store %arg6[%c32, %c0_7], %10 {strides = array<i32>} : memref<72x304xbf16, #tpu.memory_space<vmem>>, vector<8x304xbf16>,
    %12 = vector.extract_strided_slice %1 {offsets = [0, 20], sizes = [8, 304], strides = [1, 1]} : vector<8x342xbf16> to vector<8x304xbf16>
    %c40 = arith.constant 40 : index
    %c0_8 = arith.constant 0 : index
    %13 = vector.load %arg6[%c40, %c0_8] : memref<72x304xbf16, #tpu.memory_space<vmem>>, vector<8x304xbf16>
    tpu.vector_store %arg6[%c40, %c0_8], %12 {strides = array<i32>} : memref<72x304xbf16, #tpu.memory_space<vmem>>, vector<8x304xbf16>,
    %14 = vector.extract_strided_slice %1 {offsets = [0, 36], sizes = [8, 304], strides = [1, 1]} : vector<8x342xbf16> to vector<8x304xbf16>
    %c48 = arith.constant 48 : index
    %c0_9 = arith.constant 0 : index
    %15 = vector.load %arg6[%c48, %c0_9] : memref<72x304xbf16, #tpu.memory_space<vmem>>, vector<8x304xbf16>
    tpu.vector_store %arg6[%c48, %c0_9], %14 {strides = array<i32>} : memref<72x304xbf16, #tpu.memory_space<vmem>>, vector<8x304xbf16>,
    %16 = vector.extract_strided_slice %1 {offsets = [0, 37], sizes = [8, 304], strides = [1, 1]} : vector<8x342xbf16> to vector<8x304xbf16>
    %c56 = arith.constant 56 : index
    %c0_10 = arith.constant 0 : index
    %17 = vector.load %arg6[%c56, %c0_10] : memref<72x304xbf16, #tpu.memory_space<vmem>>, vector<8x304xbf16>
    tpu.vector_store %arg6[%c56, %c0_10], %16 {strides = array<i32>} : memref<72x304xbf16, #tpu.memory_space<vmem>>, vector<8x304xbf16>,
    %18 = vector.extract_strided_slice %1 {offsets = [0, 38], sizes = [8, 304], strides = [1, 1]} : vector<8x342xbf16> to vector<8x304xbf16>
    %c64 = arith.constant 64 : index
    %c0_11 = arith.constant 0 : index
    %19 = vector.load %arg6[%c64, %c0_11] : memref<72x304xbf16, #tpu.memory_space<vmem>>, vector<8x304xbf16>
    tpu.vector_store %arg6[%c64, %c0_11], %18 {strides = array<i32>} : memref<72x304xbf16, #tpu.memory_space<vmem>>, vector<8x304xbf16>,
    %c0_12 = arith.constant 0 : index
    %c0_13 = arith.constant 0 : index
    %20 = vector.load %arg2[%c0_12, %c0_13] : memref<8x72xbf16, #tpu.memory_space<vmem>>, vector<8x72xbf16>
    %c0_14 = arith.constant 0 : index
    %c0_15 = arith.constant 0 : index
    %21 = vector.load %arg6[%c0_14, %c0_15] : memref<72x304xbf16, #tpu.memory_space<vmem>>, vector<72x304xbf16>
    %cst = arith.constant dense<0.000000e+00> : vector<8x304xf32>
    %22 = tpu.matmul %20, %21, %cst {dimension_numbers = #tpu.dot_dimension_numbers<[1], [0], [0], [1], [0, 0, 1, 1], [], []>} : vector<8x72xbf16>, vector<72x304xbf16>, vector<8x304xf32> -> vector<8x304xf32>
    %c0_16 = arith.constant 0 : index
    %c0_17 = arith.constant 0 : index
    %23 = vector.load %arg3[%c0_16, %c0_17] : memref<8x1xf32, #tpu.memory_space<vmem>>, vector<8x1xf32>
    %24 = vector.broadcast %23 : vector<8x1xf32> to vector<8x304xf32>
    %25 = arith.addf %22, %24 : vector<8x304xf32>
    %cst_18 = arith.constant 1.000000e-01 : f32
    %26 = vector.broadcast %cst_18 : f32 to vector<8x304xf32>
    %27 = arith.mulf %26, %25 : vector<8x304xf32>
    %28 = arith.maximumf %25, %27 : vector<8x304xf32>
    %c0_19 = arith.constant 0 : index
    %c0_20 = arith.constant 0 : index
    %29 = vector.load %arg4[%c0_19, %c0_20] : memref<1x304xf32, #tpu.memory_space<vmem>>, vector<1x304xf32>
    %30 = vector.broadcast %29 : vector<1x304xf32> to vector<8x304xf32>
    %31 = arith.mulf %28, %30 : vector<8x304xf32>
    %cst_21 = arith.constant 0.000000e+00 : bf16
    %32 = vector.broadcast %cst_21 : bf16 to vector<1x8x342xbf16>
    %c0_22 = arith.constant 0 : index
    %c0_23 = arith.constant 0 : index
    %c0_24 = arith.constant 0 : index
    %33 = vector.load %arg5[%c0_22, %c0_23, %c0_24] : memref<1x8x342xbf16, #tpu.memory_space<vmem>>, vector<1x8x342xbf16>
    tpu.vector_store %arg5[%c0_22, %c0_23, %c0_24], %32 {strides = array<i32>} : memref<1x8x342xbf16, #tpu.memory_space<vmem>>, vector<1x8x342xbf16>,
    %34 = arith.truncf %31 : vector<8x304xf32> to vector<8x304xbf16>
    %c0_25 = arith.constant 0 : index
    %c0_26 = arith.constant 0 : index
    %c37 = arith.constant 37 : index
    %35 = vector.load %arg5[%c0_25, %c0_26, %c37] : memref<1x8x342xbf16, #tpu.memory_space<vmem>>, vector<1x8x304xbf16>
    %36 = vector.shape_cast %35 : vector<1x8x304xbf16> to vector<8x304xbf16>
    %37 = vector.shape_cast %34 : vector<8x304xbf16> to vector<1x8x304xbf16>
    tpu.vector_store %arg5[%c0_25, %c0_26, %c37], %37 {strides = array<i32>} : memref<1x8x342xbf16, #tpu.memory_space<vmem>>, vector<1x8x304xbf16>,
    return
  }
  func.func @transform_0(%arg0: i32) -> (i32, i32, i32) {
    %c0_i32 = arith.constant 0 : i32
    %c0_i32_0 = arith.constant 0 : i32
    %c0_i32_1 = arith.constant 0 : i32
    return %arg0, %c0_i32, %c0_i32_0 : i32, i32, i32
  }
  func.func @transform_1(%arg0: i32) -> (i32, i32) {
    %c0_i32 = arith.constant 0 : i32
    %c0_i32_0 = arith.constant 0 : i32
    %c0_i32_1 = arith.constant 0 : i32
    return %c0_i32, %c0_i32_0 : i32, i32
  }
  func.func @transform_2(%arg0: i32) -> (i32, i32) {
    %c0_i32 = arith.constant 0 : i32
    %c0_i32_0 = arith.constant 0 : i32
    %c0_i32_1 = arith.constant 0 : i32
    return %c0_i32, %c0_i32_0 : i32, i32
  }
  func.func @transform_3(%arg0: i32) -> (i32, i32) {
    %c0_i32 = arith.constant 0 : i32
    %c0_i32_0 = arith.constant 0 : i32
    %c0_i32_1 = arith.constant 0 : i32
    return %c0_i32, %c0_i32_0 : i32, i32
  }
  func.func @transform_4(%arg0: i32) -> (i32, i32, i32) {
    %c0_i32 = arith.constant 0 : i32
    %c0_i32_0 = arith.constant 0 : i32
    %c0_i32_1 = arith.constant 0 : i32
    return %arg0, %c0_i32, %c0_i32_0 : i32, i32, i32
  }
}

module attributes {stable_mosaic.version = 11 : i64} {
  func.func @_conv_kernel(%arg0: i32, %arg1: memref<1x8x110xbf16, #tpu.memory_space<vmem>>, %arg2: memref<8x72xbf16, #tpu.memory_space<vmem>>, %arg3: memref<8x1xf32, #tpu.memory_space<vmem>>, %arg4: memref<1x88xf32, #tpu.memory_space<vmem>>, %arg5: memref<1x8x110xbf16, #tpu.memory_space<vmem>>, %arg6: memref<72x88xbf16, #tpu.memory_space<vmem>>) attributes {dimension_semantics = [#tpu.dimension_semantics<parallel>], iteration_bounds = array<i64: 2>, scalar_prefetch = 0 : i64, scratch_operands = 1 : i64, tpu.core_type = #tpu.core_type<tc>, window_params = [{transform_indices = @transform_0, window_bounds = array<i64: 1, 8, 110>}, {pipeline_mode = #tpu.pipeline_mode<synchronous>, transform_indices = @transform_1, window_bounds = array<i64: 8, 72>}, {pipeline_mode = #tpu.pipeline_mode<synchronous>, transform_indices = @transform_2, window_bounds = array<i64: 8, 1>}, {pipeline_mode = #tpu.pipeline_mode<synchronous>, transform_indices = @transform_3, window_bounds = array<i64: 1, 88>}, {transform_indices = @transform_4, window_bounds = array<i64: 1, 8, 110>}]} {
    %c0 = arith.constant 0 : index
    %c0_0 = arith.constant 0 : index
    %c0_1 = arith.constant 0 : index
    %0 = vector.load %arg1[%c0, %c0_0, %c0_1] : memref<1x8x110xbf16, #tpu.memory_space<vmem>>, vector<1x8x110xbf16>
    %1 = vector.shape_cast %0 : vector<1x8x110xbf16> to vector<8x110xbf16>
    %2 = vector.extract_strided_slice %1 {offsets = [0, 0], sizes = [8, 88], strides = [1, 1]} : vector<8x110xbf16> to vector<8x88xbf16>
    %c0_2 = arith.constant 0 : index
    %c0_3 = arith.constant 0 : index
    %3 = vector.load %arg6[%c0_2, %c0_3] : memref<72x88xbf16, #tpu.memory_space<vmem>>, vector<8x88xbf16>
    tpu.vector_store %arg6[%c0_2, %c0_3], %2 {strides = array<i32>} : memref<72x88xbf16, #tpu.memory_space<vmem>>, vector<8x88xbf16>,
    %4 = vector.extract_strided_slice %1 {offsets = [0, 1], sizes = [8, 88], strides = [1, 1]} : vector<8x110xbf16> to vector<8x88xbf16>
    %c8 = arith.constant 8 : index
    %c0_4 = arith.constant 0 : index
    %5 = vector.load %arg6[%c8, %c0_4] : memref<72x88xbf16, #tpu.memory_space<vmem>>, vector<8x88xbf16>
    tpu.vector_store %arg6[%c8, %c0_4], %4 {strides = array<i32>} : memref<72x88xbf16, #tpu.memory_space<vmem>>, vector<8x88xbf16>,
    %6 = vector.extract_strided_slice %1 {offsets = [0, 2], sizes = [8, 88], strides = [1, 1]} : vector<8x110xbf16> to vector<8x88xbf16>
    %c16 = arith.constant 16 : index
    %c0_5 = arith.constant 0 : index
    %7 = vector.load %arg6[%c16, %c0_5] : memref<72x88xbf16, #tpu.memory_space<vmem>>, vector<8x88xbf16>
    tpu.vector_store %arg6[%c16, %c0_5], %6 {strides = array<i32>} : memref<72x88xbf16, #tpu.memory_space<vmem>>, vector<8x88xbf16>,
    %8 = vector.extract_strided_slice %1 {offsets = [0, 10], sizes = [8, 88], strides = [1, 1]} : vector<8x110xbf16> to vector<8x88xbf16>
    %c24 = arith.constant 24 : index
    %c0_6 = arith.constant 0 : index
    %9 = vector.load %arg6[%c24, %c0_6] : memref<72x88xbf16, #tpu.memory_space<vmem>>, vector<8x88xbf16>
    tpu.vector_store %arg6[%c24, %c0_6], %8 {strides = array<i32>} : memref<72x88xbf16, #tpu.memory_space<vmem>>, vector<8x88xbf16>,
    %10 = vector.extract_strided_slice %1 {offsets = [0, 11], sizes = [8, 88], strides = [1, 1]} : vector<8x110xbf16> to vector<8x88xbf16>
    %c32 = arith.constant 32 : index
    %c0_7 = arith.constant 0 : index
    %11 = vector.load %arg6[%c32, %c0_7] : memref<72x88xbf16, #tpu.memory_space<vmem>>, vector<8x88xbf16>
    tpu.vector_store %arg6[%c32, %c0_7], %10 {strides = array<i32>} : memref<72x88xbf16, #tpu.memory_space<vmem>>, vector<8x88xbf16>,
    %12 = vector.extract_strided_slice %1 {offsets = [0, 12], sizes = [8, 88], strides = [1, 1]} : vector<8x110xbf16> to vector<8x88xbf16>
    %c40 = arith.constant 40 : index
    %c0_8 = arith.constant 0 : index
    %13 = vector.load %arg6[%c40, %c0_8] : memref<72x88xbf16, #tpu.memory_space<vmem>>, vector<8x88xbf16>
    tpu.vector_store %arg6[%c40, %c0_8], %12 {strides = array<i32>} : memref<72x88xbf16, #tpu.memory_space<vmem>>, vector<8x88xbf16>,
    %14 = vector.extract_strided_slice %1 {offsets = [0, 20], sizes = [8, 88], strides = [1, 1]} : vector<8x110xbf16> to vector<8x88xbf16>
    %c48 = arith.constant 48 : index
    %c0_9 = arith.constant 0 : index
    %15 = vector.load %arg6[%c48, %c0_9] : memref<72x88xbf16, #tpu.memory_space<vmem>>, vector<8x88xbf16>
    tpu.vector_store %arg6[%c48, %c0_9], %14 {strides = array<i32>} : memref<72x88xbf16, #tpu.memory_space<vmem>>, vector<8x88xbf16>,
    %16 = vector.extract_strided_slice %1 {offsets = [0, 21], sizes = [8, 88], strides = [1, 1]} : vector<8x110xbf16> to vector<8x88xbf16>
    %c56 = arith.constant 56 : index
    %c0_10 = arith.constant 0 : index
    %17 = vector.load %arg6[%c56, %c0_10] : memref<72x88xbf16, #tpu.memory_space<vmem>>, vector<8x88xbf16>
    tpu.vector_store %arg6[%c56, %c0_10], %16 {strides = array<i32>} : memref<72x88xbf16, #tpu.memory_space<vmem>>, vector<8x88xbf16>,
    %18 = vector.extract_strided_slice %1 {offsets = [0, 22], sizes = [8, 88], strides = [1, 1]} : vector<8x110xbf16> to vector<8x88xbf16>
    %c64 = arith.constant 64 : index
    %c0_11 = arith.constant 0 : index
    %19 = vector.load %arg6[%c64, %c0_11] : memref<72x88xbf16, #tpu.memory_space<vmem>>, vector<8x88xbf16>
    tpu.vector_store %arg6[%c64, %c0_11], %18 {strides = array<i32>} : memref<72x88xbf16, #tpu.memory_space<vmem>>, vector<8x88xbf16>,
    %c0_12 = arith.constant 0 : index
    %c0_13 = arith.constant 0 : index
    %20 = vector.load %arg2[%c0_12, %c0_13] : memref<8x72xbf16, #tpu.memory_space<vmem>>, vector<8x72xbf16>
    %c0_14 = arith.constant 0 : index
    %c0_15 = arith.constant 0 : index
    %21 = vector.load %arg6[%c0_14, %c0_15] : memref<72x88xbf16, #tpu.memory_space<vmem>>, vector<72x88xbf16>
    %cst = arith.constant dense<0.000000e+00> : vector<8x88xf32>
    %22 = tpu.matmul %20, %21, %cst {dimension_numbers = #tpu.dot_dimension_numbers<[1], [0], [0], [1], [0, 0, 1, 1], [], []>} : vector<8x72xbf16>, vector<72x88xbf16>, vector<8x88xf32> -> vector<8x88xf32>
    %c0_16 = arith.constant 0 : index
    %c0_17 = arith.constant 0 : index
    %23 = vector.load %arg3[%c0_16, %c0_17] : memref<8x1xf32, #tpu.memory_space<vmem>>, vector<8x1xf32>
    %24 = vector.broadcast %23 : vector<8x1xf32> to vector<8x88xf32>
    %25 = arith.addf %22, %24 : vector<8x88xf32>
    %cst_18 = arith.constant 1.000000e-01 : f32
    %26 = vector.broadcast %cst_18 : f32 to vector<8x88xf32>
    %27 = arith.mulf %26, %25 : vector<8x88xf32>
    %28 = arith.maximumf %25, %27 : vector<8x88xf32>
    %c0_19 = arith.constant 0 : index
    %c0_20 = arith.constant 0 : index
    %29 = vector.load %arg4[%c0_19, %c0_20] : memref<1x88xf32, #tpu.memory_space<vmem>>, vector<1x88xf32>
    %30 = vector.broadcast %29 : vector<1x88xf32> to vector<8x88xf32>
    %31 = arith.mulf %28, %30 : vector<8x88xf32>
    %cst_21 = arith.constant 0.000000e+00 : bf16
    %32 = vector.broadcast %cst_21 : bf16 to vector<1x8x110xbf16>
    %c0_22 = arith.constant 0 : index
    %c0_23 = arith.constant 0 : index
    %c0_24 = arith.constant 0 : index
    %33 = vector.load %arg5[%c0_22, %c0_23, %c0_24] : memref<1x8x110xbf16, #tpu.memory_space<vmem>>, vector<1x8x110xbf16>
    tpu.vector_store %arg5[%c0_22, %c0_23, %c0_24], %32 {strides = array<i32>} : memref<1x8x110xbf16, #tpu.memory_space<vmem>>, vector<1x8x110xbf16>,
    %34 = arith.truncf %31 : vector<8x88xf32> to vector<8x88xbf16>
    %c0_25 = arith.constant 0 : index
    %c0_26 = arith.constant 0 : index
    %c21 = arith.constant 21 : index
    %35 = vector.load %arg5[%c0_25, %c0_26, %c21] : memref<1x8x110xbf16, #tpu.memory_space<vmem>>, vector<1x8x88xbf16>
    %36 = vector.shape_cast %35 : vector<1x8x88xbf16> to vector<8x88xbf16>
    %37 = vector.shape_cast %34 : vector<8x88xbf16> to vector<1x8x88xbf16>
    tpu.vector_store %arg5[%c0_25, %c0_26, %c21], %37 {strides = array<i32>} : memref<1x8x110xbf16, #tpu.memory_space<vmem>>, vector<1x8x88xbf16>,
    return
  }
  func.func @transform_0(%arg0: i32) -> (i32, i32, i32) {
    %c0_i32 = arith.constant 0 : i32
    %c0_i32_0 = arith.constant 0 : i32
    %c0_i32_1 = arith.constant 0 : i32
    return %arg0, %c0_i32, %c0_i32_0 : i32, i32, i32
  }
  func.func @transform_1(%arg0: i32) -> (i32, i32) {
    %c0_i32 = arith.constant 0 : i32
    %c0_i32_0 = arith.constant 0 : i32
    %c0_i32_1 = arith.constant 0 : i32
    return %c0_i32, %c0_i32_0 : i32, i32
  }
  func.func @transform_2(%arg0: i32) -> (i32, i32) {
    %c0_i32 = arith.constant 0 : i32
    %c0_i32_0 = arith.constant 0 : i32
    %c0_i32_1 = arith.constant 0 : i32
    return %c0_i32, %c0_i32_0 : i32, i32
  }
  func.func @transform_3(%arg0: i32) -> (i32, i32) {
    %c0_i32 = arith.constant 0 : i32
    %c0_i32_0 = arith.constant 0 : i32
    %c0_i32_1 = arith.constant 0 : i32
    return %c0_i32, %c0_i32_0 : i32, i32
  }
  func.func @transform_4(%arg0: i32) -> (i32, i32, i32) {
    %c0_i32 = arith.constant 0 : i32
    %c0_i32_0 = arith.constant 0 : i32
    %c0_i32_1 = arith.constant 0 : i32
    return %arg0, %c0_i32, %c0_i32_0 : i32, i32, i32
  }
}

module attributes {stable_mosaic.version = 11 : i64} {
  func.func @_conv_kernel(%arg0: i32, %arg1: memref<1x8x42xbf16, #tpu.memory_space<vmem>>, %arg2: memref<8x72xbf16, #tpu.memory_space<vmem>>, %arg3: memref<8x1xf32, #tpu.memory_space<vmem>>, %arg4: memref<1x28xf32, #tpu.memory_space<vmem>>, %arg5: memref<1x8x42xbf16, #tpu.memory_space<vmem>>, %arg6: memref<72x28xbf16, #tpu.memory_space<vmem>>) attributes {dimension_semantics = [#tpu.dimension_semantics<parallel>], iteration_bounds = array<i64: 2>, scalar_prefetch = 0 : i64, scratch_operands = 1 : i64, tpu.core_type = #tpu.core_type<tc>, window_params = [{transform_indices = @transform_0, window_bounds = array<i64: 1, 8, 42>}, {pipeline_mode = #tpu.pipeline_mode<synchronous>, transform_indices = @transform_1, window_bounds = array<i64: 8, 72>}, {pipeline_mode = #tpu.pipeline_mode<synchronous>, transform_indices = @transform_2, window_bounds = array<i64: 8, 1>}, {pipeline_mode = #tpu.pipeline_mode<synchronous>, transform_indices = @transform_3, window_bounds = array<i64: 1, 28>}, {transform_indices = @transform_4, window_bounds = array<i64: 1, 8, 42>}]} {
    %c0 = arith.constant 0 : index
    %c0_0 = arith.constant 0 : index
    %c0_1 = arith.constant 0 : index
    %0 = vector.load %arg1[%c0, %c0_0, %c0_1] : memref<1x8x42xbf16, #tpu.memory_space<vmem>>, vector<1x8x42xbf16>
    %1 = vector.shape_cast %0 : vector<1x8x42xbf16> to vector<8x42xbf16>
    %2 = vector.extract_strided_slice %1 {offsets = [0, 0], sizes = [8, 28], strides = [1, 1]} : vector<8x42xbf16> to vector<8x28xbf16>
    %c0_2 = arith.constant 0 : index
    %c0_3 = arith.constant 0 : index
    %3 = vector.load %arg6[%c0_2, %c0_3] : memref<72x28xbf16, #tpu.memory_space<vmem>>, vector<8x28xbf16>
    tpu.vector_store %arg6[%c0_2, %c0_3], %2 {strides = array<i32>} : memref<72x28xbf16, #tpu.memory_space<vmem>>, vector<8x28xbf16>,
    %4 = vector.extract_strided_slice %1 {offsets = [0, 1], sizes = [8, 28], strides = [1, 1]} : vector<8x42xbf16> to vector<8x28xbf16>
    %c8 = arith.constant 8 : index
    %c0_4 = arith.constant 0 : index
    %5 = vector.load %arg6[%c8, %c0_4] : memref<72x28xbf16, #tpu.memory_space<vmem>>, vector<8x28xbf16>
    tpu.vector_store %arg6[%c8, %c0_4], %4 {strides = array<i32>} : memref<72x28xbf16, #tpu.memory_space<vmem>>, vector<8x28xbf16>,
    %6 = vector.extract_strided_slice %1 {offsets = [0, 2], sizes = [8, 28], strides = [1, 1]} : vector<8x42xbf16> to vector<8x28xbf16>
    %c16 = arith.constant 16 : index
    %c0_5 = arith.constant 0 : index
    %7 = vector.load %arg6[%c16, %c0_5] : memref<72x28xbf16, #tpu.memory_space<vmem>>, vector<8x28xbf16>
    tpu.vector_store %arg6[%c16, %c0_5], %6 {strides = array<i32>} : memref<72x28xbf16, #tpu.memory_space<vmem>>, vector<8x28xbf16>,
    %8 = vector.extract_strided_slice %1 {offsets = [0, 6], sizes = [8, 28], strides = [1, 1]} : vector<8x42xbf16> to vector<8x28xbf16>
    %c24 = arith.constant 24 : index
    %c0_6 = arith.constant 0 : index
    %9 = vector.load %arg6[%c24, %c0_6] : memref<72x28xbf16, #tpu.memory_space<vmem>>, vector<8x28xbf16>
    tpu.vector_store %arg6[%c24, %c0_6], %8 {strides = array<i32>} : memref<72x28xbf16, #tpu.memory_space<vmem>>, vector<8x28xbf16>,
    %10 = vector.extract_strided_slice %1 {offsets = [0, 7], sizes = [8, 28], strides = [1, 1]} : vector<8x42xbf16> to vector<8x28xbf16>
    %c32 = arith.constant 32 : index
    %c0_7 = arith.constant 0 : index
    %11 = vector.load %arg6[%c32, %c0_7] : memref<72x28xbf16, #tpu.memory_space<vmem>>, vector<8x28xbf16>
    tpu.vector_store %arg6[%c32, %c0_7], %10 {strides = array<i32>} : memref<72x28xbf16, #tpu.memory_space<vmem>>, vector<8x28xbf16>,
    %12 = vector.extract_strided_slice %1 {offsets = [0, 8], sizes = [8, 28], strides = [1, 1]} : vector<8x42xbf16> to vector<8x28xbf16>
    %c40 = arith.constant 40 : index
    %c0_8 = arith.constant 0 : index
    %13 = vector.load %arg6[%c40, %c0_8] : memref<72x28xbf16, #tpu.memory_space<vmem>>, vector<8x28xbf16>
    tpu.vector_store %arg6[%c40, %c0_8], %12 {strides = array<i32>} : memref<72x28xbf16, #tpu.memory_space<vmem>>, vector<8x28xbf16>,
    %14 = vector.extract_strided_slice %1 {offsets = [0, 12], sizes = [8, 28], strides = [1, 1]} : vector<8x42xbf16> to vector<8x28xbf16>
    %c48 = arith.constant 48 : index
    %c0_9 = arith.constant 0 : index
    %15 = vector.load %arg6[%c48, %c0_9] : memref<72x28xbf16, #tpu.memory_space<vmem>>, vector<8x28xbf16>
    tpu.vector_store %arg6[%c48, %c0_9], %14 {strides = array<i32>} : memref<72x28xbf16, #tpu.memory_space<vmem>>, vector<8x28xbf16>,
    %16 = vector.extract_strided_slice %1 {offsets = [0, 13], sizes = [8, 28], strides = [1, 1]} : vector<8x42xbf16> to vector<8x28xbf16>
    %c56 = arith.constant 56 : index
    %c0_10 = arith.constant 0 : index
    %17 = vector.load %arg6[%c56, %c0_10] : memref<72x28xbf16, #tpu.memory_space<vmem>>, vector<8x28xbf16>
    tpu.vector_store %arg6[%c56, %c0_10], %16 {strides = array<i32>} : memref<72x28xbf16, #tpu.memory_space<vmem>>, vector<8x28xbf16>,
    %18 = vector.extract_strided_slice %1 {offsets = [0, 14], sizes = [8, 28], strides = [1, 1]} : vector<8x42xbf16> to vector<8x28xbf16>
    %c64 = arith.constant 64 : index
    %c0_11 = arith.constant 0 : index
    %19 = vector.load %arg6[%c64, %c0_11] : memref<72x28xbf16, #tpu.memory_space<vmem>>, vector<8x28xbf16>
    tpu.vector_store %arg6[%c64, %c0_11], %18 {strides = array<i32>} : memref<72x28xbf16, #tpu.memory_space<vmem>>, vector<8x28xbf16>,
    %c0_12 = arith.constant 0 : index
    %c0_13 = arith.constant 0 : index
    %20 = vector.load %arg2[%c0_12, %c0_13] : memref<8x72xbf16, #tpu.memory_space<vmem>>, vector<8x72xbf16>
    %c0_14 = arith.constant 0 : index
    %c0_15 = arith.constant 0 : index
    %21 = vector.load %arg6[%c0_14, %c0_15] : memref<72x28xbf16, #tpu.memory_space<vmem>>, vector<72x28xbf16>
    %cst = arith.constant dense<0.000000e+00> : vector<8x28xf32>
    %22 = tpu.matmul %20, %21, %cst {dimension_numbers = #tpu.dot_dimension_numbers<[1], [0], [0], [1], [0, 0, 1, 1], [], []>} : vector<8x72xbf16>, vector<72x28xbf16>, vector<8x28xf32> -> vector<8x28xf32>
    %c0_16 = arith.constant 0 : index
    %c0_17 = arith.constant 0 : index
    %23 = vector.load %arg3[%c0_16, %c0_17] : memref<8x1xf32, #tpu.memory_space<vmem>>, vector<8x1xf32>
    %24 = vector.broadcast %23 : vector<8x1xf32> to vector<8x28xf32>
    %25 = arith.addf %22, %24 : vector<8x28xf32>
    %cst_18 = arith.constant 1.000000e-01 : f32
    %26 = vector.broadcast %cst_18 : f32 to vector<8x28xf32>
    %27 = arith.mulf %26, %25 : vector<8x28xf32>
    %28 = arith.maximumf %25, %27 : vector<8x28xf32>
    %c0_19 = arith.constant 0 : index
    %c0_20 = arith.constant 0 : index
    %29 = vector.load %arg4[%c0_19, %c0_20] : memref<1x28xf32, #tpu.memory_space<vmem>>, vector<1x28xf32>
    %30 = vector.broadcast %29 : vector<1x28xf32> to vector<8x28xf32>
    %31 = arith.mulf %28, %30 : vector<8x28xf32>
    %cst_21 = arith.constant 0.000000e+00 : bf16
    %32 = vector.broadcast %cst_21 : bf16 to vector<1x8x42xbf16>
    %c0_22 = arith.constant 0 : index
    %c0_23 = arith.constant 0 : index
    %c0_24 = arith.constant 0 : index
    %33 = vector.load %arg5[%c0_22, %c0_23, %c0_24] : memref<1x8x42xbf16, #tpu.memory_space<vmem>>, vector<1x8x42xbf16>
    tpu.vector_store %arg5[%c0_22, %c0_23, %c0_24], %32 {strides = array<i32>} : memref<1x8x42xbf16, #tpu.memory_space<vmem>>, vector<1x8x42xbf16>,
    %34 = arith.truncf %31 : vector<8x28xf32> to vector<8x28xbf16>
    %c0_25 = arith.constant 0 : index
    %c0_26 = arith.constant 0 : index
    %c13 = arith.constant 13 : index
    %35 = vector.load %arg5[%c0_25, %c0_26, %c13] : memref<1x8x42xbf16, #tpu.memory_space<vmem>>, vector<1x8x28xbf16>
    %36 = vector.shape_cast %35 : vector<1x8x28xbf16> to vector<8x28xbf16>
    %37 = vector.shape_cast %34 : vector<8x28xbf16> to vector<1x8x28xbf16>
    tpu.vector_store %arg5[%c0_25, %c0_26, %c13], %37 {strides = array<i32>} : memref<1x8x42xbf16, #tpu.memory_space<vmem>>, vector<1x8x28xbf16>,
    return
  }
  func.func @transform_0(%arg0: i32) -> (i32, i32, i32) {
    %c0_i32 = arith.constant 0 : i32
    %c0_i32_0 = arith.constant 0 : i32
    %c0_i32_1 = arith.constant 0 : i32
    return %arg0, %c0_i32, %c0_i32_0 : i32, i32, i32
  }
  func.func @transform_1(%arg0: i32) -> (i32, i32) {
    %c0_i32 = arith.constant 0 : i32
    %c0_i32_0 = arith.constant 0 : i32
    %c0_i32_1 = arith.constant 0 : i32
    return %c0_i32, %c0_i32_0 : i32, i32
  }
  func.func @transform_2(%arg0: i32) -> (i32, i32) {
    %c0_i32 = arith.constant 0 : i32
    %c0_i32_0 = arith.constant 0 : i32
    %c0_i32_1 = arith.constant 0 : i32
    return %c0_i32, %c0_i32_0 : i32, i32
  }
  func.func @transform_3(%arg0: i32) -> (i32, i32) {
    %c0_i32 = arith.constant 0 : i32
    %c0_i32_0 = arith.constant 0 : i32
    %c0_i32_1 = arith.constant 0 : i32
    return %c0_i32, %c0_i32_0 : i32, i32
  }
  func.func @transform_4(%arg0: i32) -> (i32, i32, i32) {
    %c0_i32 = arith.constant 0 : i32
    %c0_i32_0 = arith.constant 0 : i32
    %c0_i32_1 = arith.constant 0 : i32
    return %arg0, %c0_i32, %c0_i32_0 : i32, i32, i32
  }
}

module attributes {stable_mosaic.version = 11 : i64} {
  func.func @_deconv_kernel(%arg0: i32, %arg1: memref<1x8x20xbf16, #tpu.memory_space<vmem>>, %arg2: memref<32x8xbf16, #tpu.memory_space<vmem>>, %arg3: memref<32x1xf32, #tpu.memory_space<vmem>>, %arg4: memref<1x20xf32, #tpu.memory_space<vmem>>, %arg5: memref<1x32x20xbf16, #tpu.memory_space<vmem>>) attributes {dimension_semantics = [#tpu.dimension_semantics<parallel>], iteration_bounds = array<i64: 2>, scalar_prefetch = 0 : i64, scratch_operands = 0 : i64, tpu.core_type = #tpu.core_type<tc>, window_params = [{transform_indices = @transform_0, window_bounds = array<i64: 1, 8, 20>}, {pipeline_mode = #tpu.pipeline_mode<synchronous>, transform_indices = @transform_1, window_bounds = array<i64: 32, 8>}, {pipeline_mode = #tpu.pipeline_mode<synchronous>, transform_indices = @transform_2, window_bounds = array<i64: 32, 1>}, {pipeline_mode = #tpu.pipeline_mode<synchronous>, transform_indices = @transform_3, window_bounds = array<i64: 1, 20>}, {transform_indices = @transform_4, window_bounds = array<i64: 1, 32, 20>}]} {
    %c0 = arith.constant 0 : index
    %c0_0 = arith.constant 0 : index
    %0 = vector.load %arg2[%c0, %c0_0] : memref<32x8xbf16, #tpu.memory_space<vmem>>, vector<32x8xbf16>
    %c0_1 = arith.constant 0 : index
    %c0_2 = arith.constant 0 : index
    %c0_3 = arith.constant 0 : index
    %1 = vector.load %arg1[%c0_1, %c0_2, %c0_3] : memref<1x8x20xbf16, #tpu.memory_space<vmem>>, vector<1x8x20xbf16>
    %2 = vector.shape_cast %1 : vector<1x8x20xbf16> to vector<8x20xbf16>
    %cst = arith.constant dense<0.000000e+00> : vector<32x20xf32>
    %3 = tpu.matmul %0, %2, %cst {dimension_numbers = #tpu.dot_dimension_numbers<[1], [0], [0], [1], [0, 0, 1, 1], [], []>} : vector<32x8xbf16>, vector<8x20xbf16>, vector<32x20xf32> -> vector<32x20xf32>
    %c0_4 = arith.constant 0 : index
    %c0_5 = arith.constant 0 : index
    %4 = vector.load %arg3[%c0_4, %c0_5] : memref<32x1xf32, #tpu.memory_space<vmem>>, vector<32x1xf32>
    %5 = vector.broadcast %4 : vector<32x1xf32> to vector<32x20xf32>
    %6 = arith.addf %3, %5 : vector<32x20xf32>
    %c0_6 = arith.constant 0 : index
    %c0_7 = arith.constant 0 : index
    %7 = vector.load %arg4[%c0_6, %c0_7] : memref<1x20xf32, #tpu.memory_space<vmem>>, vector<1x20xf32>
    %8 = vector.broadcast %7 : vector<1x20xf32> to vector<32x20xf32>
    %9 = arith.mulf %6, %8 : vector<32x20xf32>
    %10 = arith.truncf %9 : vector<32x20xf32> to vector<32x20xbf16>
    %c0_8 = arith.constant 0 : index
    %c0_9 = arith.constant 0 : index
    %c0_10 = arith.constant 0 : index
    %11 = vector.load %arg5[%c0_8, %c0_9, %c0_10] : memref<1x32x20xbf16, #tpu.memory_space<vmem>>, vector<1x32x20xbf16>
    %12 = vector.shape_cast %11 : vector<1x32x20xbf16> to vector<32x20xbf16>
    %13 = vector.shape_cast %10 : vector<32x20xbf16> to vector<1x32x20xbf16>
    tpu.vector_store %arg5[%c0_8, %c0_9, %c0_10], %13 {strides = array<i32>} : memref<1x32x20xbf16, #tpu.memory_space<vmem>>, vector<1x32x20xbf16>,
    return
  }
  func.func @transform_0(%arg0: i32) -> (i32, i32, i32) {
    %c0_i32 = arith.constant 0 : i32
    %c0_i32_0 = arith.constant 0 : i32
    %c0_i32_1 = arith.constant 0 : i32
    return %arg0, %c0_i32, %c0_i32_0 : i32, i32, i32
  }
  func.func @transform_1(%arg0: i32) -> (i32, i32) {
    %c0_i32 = arith.constant 0 : i32
    %c0_i32_0 = arith.constant 0 : i32
    %c0_i32_1 = arith.constant 0 : i32
    return %c0_i32, %c0_i32_0 : i32, i32
  }
  func.func @transform_2(%arg0: i32) -> (i32, i32) {
    %c0_i32 = arith.constant 0 : i32
    %c0_i32_0 = arith.constant 0 : i32
    %c0_i32_1 = arith.constant 0 : i32
    return %c0_i32, %c0_i32_0 : i32, i32
  }
  func.func @transform_3(%arg0: i32) -> (i32, i32) {
    %c0_i32 = arith.constant 0 : i32
    %c0_i32_0 = arith.constant 0 : i32
    %c0_i32_1 = arith.constant 0 : i32
    return %c0_i32, %c0_i32_0 : i32, i32
  }
  func.func @transform_4(%arg0: i32) -> (i32, i32, i32) {
    %c0_i32 = arith.constant 0 : i32
    %c0_i32_0 = arith.constant 0 : i32
    %c0_i32_1 = arith.constant 0 : i32
    return %arg0, %c0_i32, %c0_i32_0 : i32, i32, i32
  }
}

module attributes {stable_mosaic.version = 11 : i64} {
  func.func @_conv_kernel(%arg0: i32, %arg1: memref<1x8x20xbf16, #tpu.memory_space<vmem>>, %arg2: memref<8x72xbf16, #tpu.memory_space<vmem>>, %arg3: memref<8x1xf32, #tpu.memory_space<vmem>>, %arg4: memref<1x10xf32, #tpu.memory_space<vmem>>, %arg5: memref<1x8x20xbf16, #tpu.memory_space<vmem>>, %arg6: memref<72x10xbf16, #tpu.memory_space<vmem>>) attributes {dimension_semantics = [#tpu.dimension_semantics<parallel>], iteration_bounds = array<i64: 2>, scalar_prefetch = 0 : i64, scratch_operands = 1 : i64, tpu.core_type = #tpu.core_type<tc>, window_params = [{transform_indices = @transform_0, window_bounds = array<i64: 1, 8, 20>}, {pipeline_mode = #tpu.pipeline_mode<synchronous>, transform_indices = @transform_1, window_bounds = array<i64: 8, 72>}, {pipeline_mode = #tpu.pipeline_mode<synchronous>, transform_indices = @transform_2, window_bounds = array<i64: 8, 1>}, {pipeline_mode = #tpu.pipeline_mode<synchronous>, transform_indices = @transform_3, window_bounds = array<i64: 1, 10>}, {transform_indices = @transform_4, window_bounds = array<i64: 1, 8, 20>}]} {
    %c0 = arith.constant 0 : index
    %c0_0 = arith.constant 0 : index
    %c0_1 = arith.constant 0 : index
    %0 = vector.load %arg1[%c0, %c0_0, %c0_1] : memref<1x8x20xbf16, #tpu.memory_space<vmem>>, vector<1x8x20xbf16>
    %1 = vector.shape_cast %0 : vector<1x8x20xbf16> to vector<8x20xbf16>
    %2 = vector.extract_strided_slice %1 {offsets = [0, 0], sizes = [8, 10], strides = [1, 1]} : vector<8x20xbf16> to vector<8x10xbf16>
    %c0_2 = arith.constant 0 : index
    %c0_3 = arith.constant 0 : index
    %3 = vector.load %arg6[%c0_2, %c0_3] : memref<72x10xbf16, #tpu.memory_space<vmem>>, vector<8x10xbf16>
    tpu.vector_store %arg6[%c0_2, %c0_3], %2 {strides = array<i32>} : memref<72x10xbf16, #tpu.memory_space<vmem>>, vector<8x10xbf16>,
    %4 = vector.extract_strided_slice %1 {offsets = [0, 1], sizes = [8, 10], strides = [1, 1]} : vector<8x20xbf16> to vector<8x10xbf16>
    %c8 = arith.constant 8 : index
    %c0_4 = arith.constant 0 : index
    %5 = vector.load %arg6[%c8, %c0_4] : memref<72x10xbf16, #tpu.memory_space<vmem>>, vector<8x10xbf16>
    tpu.vector_store %arg6[%c8, %c0_4], %4 {strides = array<i32>} : memref<72x10xbf16, #tpu.memory_space<vmem>>, vector<8x10xbf16>,
    %6 = vector.extract_strided_slice %1 {offsets = [0, 2], sizes = [8, 10], strides = [1, 1]} : vector<8x20xbf16> to vector<8x10xbf16>
    %c16 = arith.constant 16 : index
    %c0_5 = arith.constant 0 : index
    %7 = vector.load %arg6[%c16, %c0_5] : memref<72x10xbf16, #tpu.memory_space<vmem>>, vector<8x10xbf16>
    tpu.vector_store %arg6[%c16, %c0_5], %6 {strides = array<i32>} : memref<72x10xbf16, #tpu.memory_space<vmem>>, vector<8x10xbf16>,
    %8 = vector.extract_strided_slice %1 {offsets = [0, 4], sizes = [8, 10], strides = [1, 1]} : vector<8x20xbf16> to vector<8x10xbf16>
    %c24 = arith.constant 24 : index
    %c0_6 = arith.constant 0 : index
    %9 = vector.load %arg6[%c24, %c0_6] : memref<72x10xbf16, #tpu.memory_space<vmem>>, vector<8x10xbf16>
    tpu.vector_store %arg6[%c24, %c0_6], %8 {strides = array<i32>} : memref<72x10xbf16, #tpu.memory_space<vmem>>, vector<8x10xbf16>,
    %10 = vector.extract_strided_slice %1 {offsets = [0, 5], sizes = [8, 10], strides = [1, 1]} : vector<8x20xbf16> to vector<8x10xbf16>
    %c32 = arith.constant 32 : index
    %c0_7 = arith.constant 0 : index
    %11 = vector.load %arg6[%c32, %c0_7] : memref<72x10xbf16, #tpu.memory_space<vmem>>, vector<8x10xbf16>
    tpu.vector_store %arg6[%c32, %c0_7], %10 {strides = array<i32>} : memref<72x10xbf16, #tpu.memory_space<vmem>>, vector<8x10xbf16>,
    %12 = vector.extract_strided_slice %1 {offsets = [0, 6], sizes = [8, 10], strides = [1, 1]} : vector<8x20xbf16> to vector<8x10xbf16>
    %c40 = arith.constant 40 : index
    %c0_8 = arith.constant 0 : index
    %13 = vector.load %arg6[%c40, %c0_8] : memref<72x10xbf16, #tpu.memory_space<vmem>>, vector<8x10xbf16>
    tpu.vector_store %arg6[%c40, %c0_8], %12 {strides = array<i32>} : memref<72x10xbf16, #tpu.memory_space<vmem>>, vector<8x10xbf16>,
    %14 = vector.extract_strided_slice %1 {offsets = [0, 8], sizes = [8, 10], strides = [1, 1]} : vector<8x20xbf16> to vector<8x10xbf16>
    %c48 = arith.constant 48 : index
    %c0_9 = arith.constant 0 : index
    %15 = vector.load %arg6[%c48, %c0_9] : memref<72x10xbf16, #tpu.memory_space<vmem>>, vector<8x10xbf16>
    tpu.vector_store %arg6[%c48, %c0_9], %14 {strides = array<i32>} : memref<72x10xbf16, #tpu.memory_space<vmem>>, vector<8x10xbf16>,
    %16 = vector.extract_strided_slice %1 {offsets = [0, 9], sizes = [8, 10], strides = [1, 1]} : vector<8x20xbf16> to vector<8x10xbf16>
    %c56 = arith.constant 56 : index
    %c0_10 = arith.constant 0 : index
    %17 = vector.load %arg6[%c56, %c0_10] : memref<72x10xbf16, #tpu.memory_space<vmem>>, vector<8x10xbf16>
    tpu.vector_store %arg6[%c56, %c0_10], %16 {strides = array<i32>} : memref<72x10xbf16, #tpu.memory_space<vmem>>, vector<8x10xbf16>,
    %18 = vector.extract_strided_slice %1 {offsets = [0, 10], sizes = [8, 10], strides = [1, 1]} : vector<8x20xbf16> to vector<8x10xbf16>
    %c64 = arith.constant 64 : index
    %c0_11 = arith.constant 0 : index
    %19 = vector.load %arg6[%c64, %c0_11] : memref<72x10xbf16, #tpu.memory_space<vmem>>, vector<8x10xbf16>
    tpu.vector_store %arg6[%c64, %c0_11], %18 {strides = array<i32>} : memref<72x10xbf16, #tpu.memory_space<vmem>>, vector<8x10xbf16>,
    %c0_12 = arith.constant 0 : index
    %c0_13 = arith.constant 0 : index
    %20 = vector.load %arg2[%c0_12, %c0_13] : memref<8x72xbf16, #tpu.memory_space<vmem>>, vector<8x72xbf16>
    %c0_14 = arith.constant 0 : index
    %c0_15 = arith.constant 0 : index
    %21 = vector.load %arg6[%c0_14, %c0_15] : memref<72x10xbf16, #tpu.memory_space<vmem>>, vector<72x10xbf16>
    %cst = arith.constant dense<0.000000e+00> : vector<8x10xf32>
    %22 = tpu.matmul %20, %21, %cst {dimension_numbers = #tpu.dot_dimension_numbers<[1], [0], [0], [1], [0, 0, 1, 1], [], []>} : vector<8x72xbf16>, vector<72x10xbf16>, vector<8x10xf32> -> vector<8x10xf32>
    %c0_16 = arith.constant 0 : index
    %c0_17 = arith.constant 0 : index
    %23 = vector.load %arg3[%c0_16, %c0_17] : memref<8x1xf32, #tpu.memory_space<vmem>>, vector<8x1xf32>
    %24 = vector.broadcast %23 : vector<8x1xf32> to vector<8x10xf32>
    %25 = arith.addf %22, %24 : vector<8x10xf32>
    %cst_18 = arith.constant 1.000000e-01 : f32
    %26 = vector.broadcast %cst_18 : f32 to vector<8x10xf32>
    %27 = arith.mulf %26, %25 : vector<8x10xf32>
    %28 = arith.maximumf %25, %27 : vector<8x10xf32>
    %c0_19 = arith.constant 0 : index
    %c0_20 = arith.constant 0 : index
    %29 = vector.load %arg4[%c0_19, %c0_20] : memref<1x10xf32, #tpu.memory_space<vmem>>, vector<1x10xf32>
    %30 = vector.broadcast %29 : vector<1x10xf32> to vector<8x10xf32>
    %31 = arith.mulf %28, %30 : vector<8x10xf32>
    %cst_21 = arith.constant 0.000000e+00 : bf16
    %32 = vector.broadcast %cst_21 : bf16 to vector<1x8x20xbf16>
    %c0_22 = arith.constant 0 : index
    %c0_23 = arith.constant 0 : index
    %c0_24 = arith.constant 0 : index
    %33 = vector.load %arg5[%c0_22, %c0_23, %c0_24] : memref<1x8x20xbf16, #tpu.memory_space<vmem>>, vector<1x8x20xbf16>
    tpu.vector_store %arg5[%c0_22, %c0_23, %c0_24], %32 {strides = array<i32>} : memref<1x8x20xbf16, #tpu.memory_space<vmem>>, vector<1x8x20xbf16>,
    %34 = arith.truncf %31 : vector<8x10xf32> to vector<8x10xbf16>
    %c0_25 = arith.constant 0 : index
    %c0_26 = arith.constant 0 : index
    %c9 = arith.constant 9 : index
    %35 = vector.load %arg5[%c0_25, %c0_26, %c9] : memref<1x8x20xbf16, #tpu.memory_space<vmem>>, vector<1x8x10xbf16>
    %36 = vector.shape_cast %35 : vector<1x8x10xbf16> to vector<8x10xbf16>
    %37 = vector.shape_cast %34 : vector<8x10xbf16> to vector<1x8x10xbf16>
    tpu.vector_store %arg5[%c0_25, %c0_26, %c9], %37 {strides = array<i32>} : memref<1x8x20xbf16, #tpu.memory_space<vmem>>, vector<1x8x10xbf16>,
    return
  }
  func.func @transform_0(%arg0: i32) -> (i32, i32, i32) {
    %c0_i32 = arith.constant 0 : i32
    %c0_i32_0 = arith.constant 0 : i32
    %c0_i32_1 = arith.constant 0 : i32
    return %arg0, %c0_i32, %c0_i32_0 : i32, i32, i32
  }
  func.func @transform_1(%arg0: i32) -> (i32, i32) {
    %c0_i32 = arith.constant 0 : i32
    %c0_i32_0 = arith.constant 0 : i32
    %c0_i32_1 = arith.constant 0 : i32
    return %c0_i32, %c0_i32_0 : i32, i32
  }
  func.func @transform_2(%arg0: i32) -> (i32, i32) {
    %c0_i32 = arith.constant 0 : i32
    %c0_i32_0 = arith.constant 0 : i32
    %c0_i32_1 = arith.constant 0 : i32
    return %c0_i32, %c0_i32_0 : i32, i32
  }
  func.func @transform_3(%arg0: i32) -> (i32, i32) {
    %c0_i32 = arith.constant 0 : i32
    %c0_i32_0 = arith.constant 0 : i32
    %c0_i32_1 = arith.constant 0 : i32
    return %c0_i32, %c0_i32_0 : i32, i32
  }
  func.func @transform_4(%arg0: i32) -> (i32, i32, i32) {
    %c0_i32 = arith.constant 0 : i32
    %c0_i32_0 = arith.constant 0 : i32
    %c0_i32_1 = arith.constant 0 : i32
    return %arg0, %c0_i32, %c0_i32_0 : i32, i32, i32
  }
}

module attributes {stable_mosaic.version = 11 : i64} {
  func.func @_conv_kernel(%arg0: i32, %arg1: memref<1x8x42xbf16, #tpu.memory_space<vmem>>, %arg2: memref<1x8x42xbf16, #tpu.memory_space<vmem>>, %arg3: memref<16x144xbf16, #tpu.memory_space<vmem>>, %arg4: memref<16x1xf32, #tpu.memory_space<vmem>>, %arg5: memref<1x28xf32, #tpu.memory_space<vmem>>, %arg6: memref<1x16x42xbf16, #tpu.memory_space<vmem>>, %arg7: memref<144x28xbf16, #tpu.memory_space<vmem>>) attributes {dimension_semantics = [#tpu.dimension_semantics<parallel>], iteration_bounds = array<i64: 2>, scalar_prefetch = 0 : i64, scratch_operands = 1 : i64, tpu.core_type = #tpu.core_type<tc>, window_params = [{transform_indices = @transform_0, window_bounds = array<i64: 1, 8, 42>}, {transform_indices = @transform_1, window_bounds = array<i64: 1, 8, 42>}, {pipeline_mode = #tpu.pipeline_mode<synchronous>, transform_indices = @transform_2, window_bounds = array<i64: 16, 144>}, {pipeline_mode = #tpu.pipeline_mode<synchronous>, transform_indices = @transform_3, window_bounds = array<i64: 16, 1>}, {pipeline_mode = #tpu.pipeline_mode<synchronous>, transform_indices = @transform_4, window_bounds = array<i64: 1, 28>}, {transform_indices = @transform_5, window_bounds = array<i64: 1, 16, 42>}]} {
    %c0 = arith.constant 0 : index
    %c0_0 = arith.constant 0 : index
    %c0_1 = arith.constant 0 : index
    %0 = vector.load %arg1[%c0, %c0_0, %c0_1] : memref<1x8x42xbf16, #tpu.memory_space<vmem>>, vector<1x8x42xbf16>
    %1 = vector.shape_cast %0 : vector<1x8x42xbf16> to vector<8x42xbf16>
    %2 = vector.extract_strided_slice %1 {offsets = [0, 0], sizes = [8, 28], strides = [1, 1]} : vector<8x42xbf16> to vector<8x28xbf16>
    %c0_2 = arith.constant 0 : index
    %c0_3 = arith.constant 0 : index
    %3 = vector.load %arg7[%c0_2, %c0_3] : memref<144x28xbf16, #tpu.memory_space<vmem>>, vector<8x28xbf16>
    tpu.vector_store %arg7[%c0_2, %c0_3], %2 {strides = array<i32>} : memref<144x28xbf16, #tpu.memory_space<vmem>>, vector<8x28xbf16>,
    %4 = vector.extract_strided_slice %1 {offsets = [0, 1], sizes = [8, 28], strides = [1, 1]} : vector<8x42xbf16> to vector<8x28xbf16>
    %c8 = arith.constant 8 : index
    %c0_4 = arith.constant 0 : index
    %5 = vector.load %arg7[%c8, %c0_4] : memref<144x28xbf16, #tpu.memory_space<vmem>>, vector<8x28xbf16>
    tpu.vector_store %arg7[%c8, %c0_4], %4 {strides = array<i32>} : memref<144x28xbf16, #tpu.memory_space<vmem>>, vector<8x28xbf16>,
    %6 = vector.extract_strided_slice %1 {offsets = [0, 2], sizes = [8, 28], strides = [1, 1]} : vector<8x42xbf16> to vector<8x28xbf16>
    %c16 = arith.constant 16 : index
    %c0_5 = arith.constant 0 : index
    %7 = vector.load %arg7[%c16, %c0_5] : memref<144x28xbf16, #tpu.memory_space<vmem>>, vector<8x28xbf16>
    tpu.vector_store %arg7[%c16, %c0_5], %6 {strides = array<i32>} : memref<144x28xbf16, #tpu.memory_space<vmem>>, vector<8x28xbf16>,
    %8 = vector.extract_strided_slice %1 {offsets = [0, 6], sizes = [8, 28], strides = [1, 1]} : vector<8x42xbf16> to vector<8x28xbf16>
    %c24 = arith.constant 24 : index
    %c0_6 = arith.constant 0 : index
    %9 = vector.load %arg7[%c24, %c0_6] : memref<144x28xbf16, #tpu.memory_space<vmem>>, vector<8x28xbf16>
    tpu.vector_store %arg7[%c24, %c0_6], %8 {strides = array<i32>} : memref<144x28xbf16, #tpu.memory_space<vmem>>, vector<8x28xbf16>,
    %10 = vector.extract_strided_slice %1 {offsets = [0, 7], sizes = [8, 28], strides = [1, 1]} : vector<8x42xbf16> to vector<8x28xbf16>
    %c32 = arith.constant 32 : index
    %c0_7 = arith.constant 0 : index
    %11 = vector.load %arg7[%c32, %c0_7] : memref<144x28xbf16, #tpu.memory_space<vmem>>, vector<8x28xbf16>
    tpu.vector_store %arg7[%c32, %c0_7], %10 {strides = array<i32>} : memref<144x28xbf16, #tpu.memory_space<vmem>>, vector<8x28xbf16>,
    %12 = vector.extract_strided_slice %1 {offsets = [0, 8], sizes = [8, 28], strides = [1, 1]} : vector<8x42xbf16> to vector<8x28xbf16>
    %c40 = arith.constant 40 : index
    %c0_8 = arith.constant 0 : index
    %13 = vector.load %arg7[%c40, %c0_8] : memref<144x28xbf16, #tpu.memory_space<vmem>>, vector<8x28xbf16>
    tpu.vector_store %arg7[%c40, %c0_8], %12 {strides = array<i32>} : memref<144x28xbf16, #tpu.memory_space<vmem>>, vector<8x28xbf16>,
    %14 = vector.extract_strided_slice %1 {offsets = [0, 12], sizes = [8, 28], strides = [1, 1]} : vector<8x42xbf16> to vector<8x28xbf16>
    %c48 = arith.constant 48 : index
    %c0_9 = arith.constant 0 : index
    %15 = vector.load %arg7[%c48, %c0_9] : memref<144x28xbf16, #tpu.memory_space<vmem>>, vector<8x28xbf16>
    tpu.vector_store %arg7[%c48, %c0_9], %14 {strides = array<i32>} : memref<144x28xbf16, #tpu.memory_space<vmem>>, vector<8x28xbf16>,
    %16 = vector.extract_strided_slice %1 {offsets = [0, 13], sizes = [8, 28], strides = [1, 1]} : vector<8x42xbf16> to vector<8x28xbf16>
    %c56 = arith.constant 56 : index
    %c0_10 = arith.constant 0 : index
    %17 = vector.load %arg7[%c56, %c0_10] : memref<144x28xbf16, #tpu.memory_space<vmem>>, vector<8x28xbf16>
    tpu.vector_store %arg7[%c56, %c0_10], %16 {strides = array<i32>} : memref<144x28xbf16, #tpu.memory_space<vmem>>, vector<8x28xbf16>,
    %18 = vector.extract_strided_slice %1 {offsets = [0, 14], sizes = [8, 28], strides = [1, 1]} : vector<8x42xbf16> to vector<8x28xbf16>
    %c64 = arith.constant 64 : index
    %c0_11 = arith.constant 0 : index
    %19 = vector.load %arg7[%c64, %c0_11] : memref<144x28xbf16, #tpu.memory_space<vmem>>, vector<8x28xbf16>
    tpu.vector_store %arg7[%c64, %c0_11], %18 {strides = array<i32>} : memref<144x28xbf16, #tpu.memory_space<vmem>>, vector<8x28xbf16>,
    %c0_12 = arith.constant 0 : index
    %c0_13 = arith.constant 0 : index
    %c0_14 = arith.constant 0 : index
    %20 = vector.load %arg2[%c0_12, %c0_13, %c0_14] : memref<1x8x42xbf16, #tpu.memory_space<vmem>>, vector<1x8x42xbf16>
    %21 = vector.shape_cast %20 : vector<1x8x42xbf16> to vector<8x42xbf16>
    %22 = vector.extract_strided_slice %21 {offsets = [0, 0], sizes = [8, 28], strides = [1, 1]} : vector<8x42xbf16> to vector<8x28xbf16>
    %c72 = arith.constant 72 : index
    %c0_15 = arith.constant 0 : index
    %23 = vector.load %arg7[%c72, %c0_15] : memref<144x28xbf16, #tpu.memory_space<vmem>>, vector<8x28xbf16>
    tpu.vector_store %arg7[%c72, %c0_15], %22 {strides = array<i32>} : memref<144x28xbf16, #tpu.memory_space<vmem>>, vector<8x28xbf16>,
    %24 = vector.extract_strided_slice %21 {offsets = [0, 1], sizes = [8, 28], strides = [1, 1]} : vector<8x42xbf16> to vector<8x28xbf16>
    %c80 = arith.constant 80 : index
    %c0_16 = arith.constant 0 : index
    %25 = vector.load %arg7[%c80, %c0_16] : memref<144x28xbf16, #tpu.memory_space<vmem>>, vector<8x28xbf16>
    tpu.vector_store %arg7[%c80, %c0_16], %24 {strides = array<i32>} : memref<144x28xbf16, #tpu.memory_space<vmem>>, vector<8x28xbf16>,
    %26 = vector.extract_strided_slice %21 {offsets = [0, 2], sizes = [8, 28], strides = [1, 1]} : vector<8x42xbf16> to vector<8x28xbf16>
    %c88 = arith.constant 88 : index
    %c0_17 = arith.constant 0 : index
    %27 = vector.load %arg7[%c88, %c0_17] : memref<144x28xbf16, #tpu.memory_space<vmem>>, vector<8x28xbf16>
    tpu.vector_store %arg7[%c88, %c0_17], %26 {strides = array<i32>} : memref<144x28xbf16, #tpu.memory_space<vmem>>, vector<8x28xbf16>,
    %28 = vector.extract_strided_slice %21 {offsets = [0, 6], sizes = [8, 28], strides = [1, 1]} : vector<8x42xbf16> to vector<8x28xbf16>
    %c96 = arith.constant 96 : index
    %c0_18 = arith.constant 0 : index
    %29 = vector.load %arg7[%c96, %c0_18] : memref<144x28xbf16, #tpu.memory_space<vmem>>, vector<8x28xbf16>
    tpu.vector_store %arg7[%c96, %c0_18], %28 {strides = array<i32>} : memref<144x28xbf16, #tpu.memory_space<vmem>>, vector<8x28xbf16>,
    %30 = vector.extract_strided_slice %21 {offsets = [0, 7], sizes = [8, 28], strides = [1, 1]} : vector<8x42xbf16> to vector<8x28xbf16>
    %c104 = arith.constant 104 : index
    %c0_19 = arith.constant 0 : index
    %31 = vector.load %arg7[%c104, %c0_19] : memref<144x28xbf16, #tpu.memory_space<vmem>>, vector<8x28xbf16>
    tpu.vector_store %arg7[%c104, %c0_19], %30 {strides = array<i32>} : memref<144x28xbf16, #tpu.memory_space<vmem>>, vector<8x28xbf16>,
    %32 = vector.extract_strided_slice %21 {offsets = [0, 8], sizes = [8, 28], strides = [1, 1]} : vector<8x42xbf16> to vector<8x28xbf16>
    %c112 = arith.constant 112 : index
    %c0_20 = arith.constant 0 : index
    %33 = vector.load %arg7[%c112, %c0_20] : memref<144x28xbf16, #tpu.memory_space<vmem>>, vector<8x28xbf16>
    tpu.vector_store %arg7[%c112, %c0_20], %32 {strides = array<i32>} : memref<144x28xbf16, #tpu.memory_space<vmem>>, vector<8x28xbf16>,
    %34 = vector.extract_strided_slice %21 {offsets = [0, 12], sizes = [8, 28], strides = [1, 1]} : vector<8x42xbf16> to vector<8x28xbf16>
    %c120 = arith.constant 120 : index
    %c0_21 = arith.constant 0 : index
    %35 = vector.load %arg7[%c120, %c0_21] : memref<144x28xbf16, #tpu.memory_space<vmem>>, vector<8x28xbf16>
    tpu.vector_store %arg7[%c120, %c0_21], %34 {strides = array<i32>} : memref<144x28xbf16, #tpu.memory_space<vmem>>, vector<8x28xbf16>,
    %36 = vector.extract_strided_slice %21 {offsets = [0, 13], sizes = [8, 28], strides = [1, 1]} : vector<8x42xbf16> to vector<8x28xbf16>
    %c128 = arith.constant 128 : index
    %c0_22 = arith.constant 0 : index
    %37 = vector.load %arg7[%c128, %c0_22] : memref<144x28xbf16, #tpu.memory_space<vmem>>, vector<8x28xbf16>
    tpu.vector_store %arg7[%c128, %c0_22], %36 {strides = array<i32>} : memref<144x28xbf16, #tpu.memory_space<vmem>>, vector<8x28xbf16>,
    %38 = vector.extract_strided_slice %21 {offsets = [0, 14], sizes = [8, 28], strides = [1, 1]} : vector<8x42xbf16> to vector<8x28xbf16>
    %c136 = arith.constant 136 : index
    %c0_23 = arith.constant 0 : index
    %39 = vector.load %arg7[%c136, %c0_23] : memref<144x28xbf16, #tpu.memory_space<vmem>>, vector<8x28xbf16>
    tpu.vector_store %arg7[%c136, %c0_23], %38 {strides = array<i32>} : memref<144x28xbf16, #tpu.memory_space<vmem>>, vector<8x28xbf16>,
    %c0_24 = arith.constant 0 : index
    %c0_25 = arith.constant 0 : index
    %40 = vector.load %arg3[%c0_24, %c0_25] : memref<16x144xbf16, #tpu.memory_space<vmem>>, vector<16x144xbf16>
    %c0_26 = arith.constant 0 : index
    %c0_27 = arith.constant 0 : index
    %41 = vector.load %arg7[%c0_26, %c0_27] : memref<144x28xbf16, #tpu.memory_space<vmem>>, vector<144x28xbf16>
    %cst = arith.constant dense<0.000000e+00> : vector<16x28xf32>
    %42 = tpu.matmul %40, %41, %cst {dimension_numbers = #tpu.dot_dimension_numbers<[1], [0], [0], [1], [0, 0, 1, 1], [], []>} : vector<16x144xbf16>, vector<144x28xbf16>, vector<16x28xf32> -> vector<16x28xf32>
    %c0_28 = arith.constant 0 : index
    %c0_29 = arith.constant 0 : index
    %43 = vector.load %arg4[%c0_28, %c0_29] : memref<16x1xf32, #tpu.memory_space<vmem>>, vector<16x1xf32>
    %44 = vector.broadcast %43 : vector<16x1xf32> to vector<16x28xf32>
    %45 = arith.addf %42, %44 : vector<16x28xf32>
    %cst_30 = arith.constant 1.000000e-01 : f32
    %46 = vector.broadcast %cst_30 : f32 to vector<16x28xf32>
    %47 = arith.mulf %46, %45 : vector<16x28xf32>
    %48 = arith.maximumf %45, %47 : vector<16x28xf32>
    %c0_31 = arith.constant 0 : index
    %c0_32 = arith.constant 0 : index
    %49 = vector.load %arg5[%c0_31, %c0_32] : memref<1x28xf32, #tpu.memory_space<vmem>>, vector<1x28xf32>
    %50 = vector.broadcast %49 : vector<1x28xf32> to vector<16x28xf32>
    %51 = arith.mulf %48, %50 : vector<16x28xf32>
    %cst_33 = arith.constant 0.000000e+00 : bf16
    %52 = vector.broadcast %cst_33 : bf16 to vector<1x16x42xbf16>
    %c0_34 = arith.constant 0 : index
    %c0_35 = arith.constant 0 : index
    %c0_36 = arith.constant 0 : index
    %53 = vector.load %arg6[%c0_34, %c0_35, %c0_36] : memref<1x16x42xbf16, #tpu.memory_space<vmem>>, vector<1x16x42xbf16>
    tpu.vector_store %arg6[%c0_34, %c0_35, %c0_36], %52 {strides = array<i32>} : memref<1x16x42xbf16, #tpu.memory_space<vmem>>, vector<1x16x42xbf16>,
    %54 = arith.truncf %51 : vector<16x28xf32> to vector<16x28xbf16>
    %c0_37 = arith.constant 0 : index
    %c0_38 = arith.constant 0 : index
    %c13 = arith.constant 13 : index
    %55 = vector.load %arg6[%c0_37, %c0_38, %c13] : memref<1x16x42xbf16, #tpu.memory_space<vmem>>, vector<1x16x28xbf16>
    %56 = vector.shape_cast %55 : vector<1x16x28xbf16> to vector<16x28xbf16>
    %57 = vector.shape_cast %54 : vector<16x28xbf16> to vector<1x16x28xbf16>
    tpu.vector_store %arg6[%c0_37, %c0_38, %c13], %57 {strides = array<i32>} : memref<1x16x42xbf16, #tpu.memory_space<vmem>>, vector<1x16x28xbf16>,
    return
  }
  func.func @transform_0(%arg0: i32) -> (i32, i32, i32) {
    %c0_i32 = arith.constant 0 : i32
    %c0_i32_0 = arith.constant 0 : i32
    %c0_i32_1 = arith.constant 0 : i32
    return %arg0, %c0_i32, %c0_i32_0 : i32, i32, i32
  }
  func.func @transform_1(%arg0: i32) -> (i32, i32, i32) {
    %c0_i32 = arith.constant 0 : i32
    %c0_i32_0 = arith.constant 0 : i32
    %c0_i32_1 = arith.constant 0 : i32
    return %arg0, %c0_i32, %c0_i32_0 : i32, i32, i32
  }
  func.func @transform_2(%arg0: i32) -> (i32, i32) {
    %c0_i32 = arith.constant 0 : i32
    %c0_i32_0 = arith.constant 0 : i32
    %c0_i32_1 = arith.constant 0 : i32
    return %c0_i32, %c0_i32_0 : i32, i32
  }
  func.func @transform_3(%arg0: i32) -> (i32, i32) {
    %c0_i32 = arith.constant 0 : i32
    %c0_i32_0 = arith.constant 0 : i32
    %c0_i32_1 = arith.constant 0 : i32
    return %c0_i32, %c0_i32_0 : i32, i32
  }
  func.func @transform_4(%arg0: i32) -> (i32, i32) {
    %c0_i32 = arith.constant 0 : i32
    %c0_i32_0 = arith.constant 0 : i32
    %c0_i32_1 = arith.constant 0 : i32
    return %c0_i32, %c0_i32_0 : i32, i32
  }
  func.func @transform_5(%arg0: i32) -> (i32, i32, i32) {
    %c0_i32 = arith.constant 0 : i32
    %c0_i32_0 = arith.constant 0 : i32
    %c0_i32_1 = arith.constant 0 : i32
    return %arg0, %c0_i32, %c0_i32_0 : i32, i32, i32
  }
}

module attributes {stable_mosaic.version = 11 : i64} {
  func.func @_deconv_kernel(%arg0: i32, %arg1: memref<1x16x42xbf16, #tpu.memory_space<vmem>>, %arg2: memref<64x16xbf16, #tpu.memory_space<vmem>>, %arg3: memref<64x1xf32, #tpu.memory_space<vmem>>, %arg4: memref<1x42xf32, #tpu.memory_space<vmem>>, %arg5: memref<1x64x42xbf16, #tpu.memory_space<vmem>>) attributes {dimension_semantics = [#tpu.dimension_semantics<parallel>], iteration_bounds = array<i64: 2>, scalar_prefetch = 0 : i64, scratch_operands = 0 : i64, tpu.core_type = #tpu.core_type<tc>, window_params = [{transform_indices = @transform_0, window_bounds = array<i64: 1, 16, 42>}, {pipeline_mode = #tpu.pipeline_mode<synchronous>, transform_indices = @transform_1, window_bounds = array<i64: 64, 16>}, {pipeline_mode = #tpu.pipeline_mode<synchronous>, transform_indices = @transform_2, window_bounds = array<i64: 64, 1>}, {pipeline_mode = #tpu.pipeline_mode<synchronous>, transform_indices = @transform_3, window_bounds = array<i64: 1, 42>}, {transform_indices = @transform_4, window_bounds = array<i64: 1, 64, 42>}]} {
    %c0 = arith.constant 0 : index
    %c0_0 = arith.constant 0 : index
    %0 = vector.load %arg2[%c0, %c0_0] : memref<64x16xbf16, #tpu.memory_space<vmem>>, vector<64x16xbf16>
    %c0_1 = arith.constant 0 : index
    %c0_2 = arith.constant 0 : index
    %c0_3 = arith.constant 0 : index
    %1 = vector.load %arg1[%c0_1, %c0_2, %c0_3] : memref<1x16x42xbf16, #tpu.memory_space<vmem>>, vector<1x16x42xbf16>
    %2 = vector.shape_cast %1 : vector<1x16x42xbf16> to vector<16x42xbf16>
    %cst = arith.constant dense<0.000000e+00> : vector<64x42xf32>
    %3 = tpu.matmul %0, %2, %cst {dimension_numbers = #tpu.dot_dimension_numbers<[1], [0], [0], [1], [0, 0, 1, 1], [], []>} : vector<64x16xbf16>, vector<16x42xbf16>, vector<64x42xf32> -> vector<64x42xf32>
    %c0_4 = arith.constant 0 : index
    %c0_5 = arith.constant 0 : index
    %4 = vector.load %arg3[%c0_4, %c0_5] : memref<64x1xf32, #tpu.memory_space<vmem>>, vector<64x1xf32>
    %5 = vector.broadcast %4 : vector<64x1xf32> to vector<64x42xf32>
    %6 = arith.addf %3, %5 : vector<64x42xf32>
    %c0_6 = arith.constant 0 : index
    %c0_7 = arith.constant 0 : index
    %7 = vector.load %arg4[%c0_6, %c0_7] : memref<1x42xf32, #tpu.memory_space<vmem>>, vector<1x42xf32>
    %8 = vector.broadcast %7 : vector<1x42xf32> to vector<64x42xf32>
    %9 = arith.mulf %6, %8 : vector<64x42xf32>
    %10 = arith.truncf %9 : vector<64x42xf32> to vector<64x42xbf16>
    %c0_8 = arith.constant 0 : index
    %c0_9 = arith.constant 0 : index
    %c0_10 = arith.constant 0 : index
    %11 = vector.load %arg5[%c0_8, %c0_9, %c0_10] : memref<1x64x42xbf16, #tpu.memory_space<vmem>>, vector<1x64x42xbf16>
    %12 = vector.shape_cast %11 : vector<1x64x42xbf16> to vector<64x42xbf16>
    %13 = vector.shape_cast %10 : vector<64x42xbf16> to vector<1x64x42xbf16>
    tpu.vector_store %arg5[%c0_8, %c0_9, %c0_10], %13 {strides = array<i32>} : memref<1x64x42xbf16, #tpu.memory_space<vmem>>, vector<1x64x42xbf16>,
    return
  }
  func.func @transform_0(%arg0: i32) -> (i32, i32, i32) {
    %c0_i32 = arith.constant 0 : i32
    %c0_i32_0 = arith.constant 0 : i32
    %c0_i32_1 = arith.constant 0 : i32
    return %arg0, %c0_i32, %c0_i32_0 : i32, i32, i32
  }
  func.func @transform_1(%arg0: i32) -> (i32, i32) {
    %c0_i32 = arith.constant 0 : i32
    %c0_i32_0 = arith.constant 0 : i32
    %c0_i32_1 = arith.constant 0 : i32
    return %c0_i32, %c0_i32_0 : i32, i32
  }
  func.func @transform_2(%arg0: i32) -> (i32, i32) {
    %c0_i32 = arith.constant 0 : i32
    %c0_i32_0 = arith.constant 0 : i32
    %c0_i32_1 = arith.constant 0 : i32
    return %c0_i32, %c0_i32_0 : i32, i32
  }
  func.func @transform_3(%arg0: i32) -> (i32, i32) {
    %c0_i32 = arith.constant 0 : i32
    %c0_i32_0 = arith.constant 0 : i32
    %c0_i32_1 = arith.constant 0 : i32
    return %c0_i32, %c0_i32_0 : i32, i32
  }
  func.func @transform_4(%arg0: i32) -> (i32, i32, i32) {
    %c0_i32 = arith.constant 0 : i32
    %c0_i32_0 = arith.constant 0 : i32
    %c0_i32_1 = arith.constant 0 : i32
    return %arg0, %c0_i32, %c0_i32_0 : i32, i32, i32
  }
}

module attributes {stable_mosaic.version = 11 : i64} {
  func.func @_conv_kernel(%arg0: i32, %arg1: memref<1x16x42xbf16, #tpu.memory_space<vmem>>, %arg2: memref<16x144xbf16, #tpu.memory_space<vmem>>, %arg3: memref<16x1xf32, #tpu.memory_space<vmem>>, %arg4: memref<1x28xf32, #tpu.memory_space<vmem>>, %arg5: memref<1x16x42xbf16, #tpu.memory_space<vmem>>, %arg6: memref<144x28xbf16, #tpu.memory_space<vmem>>) attributes {dimension_semantics = [#tpu.dimension_semantics<parallel>], iteration_bounds = array<i64: 2>, scalar_prefetch = 0 : i64, scratch_operands = 1 : i64, tpu.core_type = #tpu.core_type<tc>, window_params = [{transform_indices = @transform_0, window_bounds = array<i64: 1, 16, 42>}, {pipeline_mode = #tpu.pipeline_mode<synchronous>, transform_indices = @transform_1, window_bounds = array<i64: 16, 144>}, {pipeline_mode = #tpu.pipeline_mode<synchronous>, transform_indices = @transform_2, window_bounds = array<i64: 16, 1>}, {pipeline_mode = #tpu.pipeline_mode<synchronous>, transform_indices = @transform_3, window_bounds = array<i64: 1, 28>}, {transform_indices = @transform_4, window_bounds = array<i64: 1, 16, 42>}]} {
    %c0 = arith.constant 0 : index
    %c0_0 = arith.constant 0 : index
    %c0_1 = arith.constant 0 : index
    %0 = vector.load %arg1[%c0, %c0_0, %c0_1] : memref<1x16x42xbf16, #tpu.memory_space<vmem>>, vector<1x16x42xbf16>
    %1 = vector.shape_cast %0 : vector<1x16x42xbf16> to vector<16x42xbf16>
    %2 = vector.extract_strided_slice %1 {offsets = [0, 0], sizes = [16, 28], strides = [1, 1]} : vector<16x42xbf16> to vector<16x28xbf16>
    %c0_2 = arith.constant 0 : index
    %c0_3 = arith.constant 0 : index
    %3 = vector.load %arg6[%c0_2, %c0_3] : memref<144x28xbf16, #tpu.memory_space<vmem>>, vector<16x28xbf16>
    tpu.vector_store %arg6[%c0_2, %c0_3], %2 {strides = array<i32>} : memref<144x28xbf16, #tpu.memory_space<vmem>>, vector<16x28xbf16>,
    %4 = vector.extract_strided_slice %1 {offsets = [0, 1], sizes = [16, 28], strides = [1, 1]} : vector<16x42xbf16> to vector<16x28xbf16>
    %c16 = arith.constant 16 : index
    %c0_4 = arith.constant 0 : index
    %5 = vector.load %arg6[%c16, %c0_4] : memref<144x28xbf16, #tpu.memory_space<vmem>>, vector<16x28xbf16>
    tpu.vector_store %arg6[%c16, %c0_4], %4 {strides = array<i32>} : memref<144x28xbf16, #tpu.memory_space<vmem>>, vector<16x28xbf16>,
    %6 = vector.extract_strided_slice %1 {offsets = [0, 2], sizes = [16, 28], strides = [1, 1]} : vector<16x42xbf16> to vector<16x28xbf16>
    %c32 = arith.constant 32 : index
    %c0_5 = arith.constant 0 : index
    %7 = vector.load %arg6[%c32, %c0_5] : memref<144x28xbf16, #tpu.memory_space<vmem>>, vector<16x28xbf16>
    tpu.vector_store %arg6[%c32, %c0_5], %6 {strides = array<i32>} : memref<144x28xbf16, #tpu.memory_space<vmem>>, vector<16x28xbf16>,
    %8 = vector.extract_strided_slice %1 {offsets = [0, 6], sizes = [16, 28], strides = [1, 1]} : vector<16x42xbf16> to vector<16x28xbf16>
    %c48 = arith.constant 48 : index
    %c0_6 = arith.constant 0 : index
    %9 = vector.load %arg6[%c48, %c0_6] : memref<144x28xbf16, #tpu.memory_space<vmem>>, vector<16x28xbf16>
    tpu.vector_store %arg6[%c48, %c0_6], %8 {strides = array<i32>} : memref<144x28xbf16, #tpu.memory_space<vmem>>, vector<16x28xbf16>,
    %10 = vector.extract_strided_slice %1 {offsets = [0, 7], sizes = [16, 28], strides = [1, 1]} : vector<16x42xbf16> to vector<16x28xbf16>
    %c64 = arith.constant 64 : index
    %c0_7 = arith.constant 0 : index
    %11 = vector.load %arg6[%c64, %c0_7] : memref<144x28xbf16, #tpu.memory_space<vmem>>, vector<16x28xbf16>
    tpu.vector_store %arg6[%c64, %c0_7], %10 {strides = array<i32>} : memref<144x28xbf16, #tpu.memory_space<vmem>>, vector<16x28xbf16>,
    %12 = vector.extract_strided_slice %1 {offsets = [0, 8], sizes = [16, 28], strides = [1, 1]} : vector<16x42xbf16> to vector<16x28xbf16>
    %c80 = arith.constant 80 : index
    %c0_8 = arith.constant 0 : index
    %13 = vector.load %arg6[%c80, %c0_8] : memref<144x28xbf16, #tpu.memory_space<vmem>>, vector<16x28xbf16>
    tpu.vector_store %arg6[%c80, %c0_8], %12 {strides = array<i32>} : memref<144x28xbf16, #tpu.memory_space<vmem>>, vector<16x28xbf16>,
    %14 = vector.extract_strided_slice %1 {offsets = [0, 12], sizes = [16, 28], strides = [1, 1]} : vector<16x42xbf16> to vector<16x28xbf16>
    %c96 = arith.constant 96 : index
    %c0_9 = arith.constant 0 : index
    %15 = vector.load %arg6[%c96, %c0_9] : memref<144x28xbf16, #tpu.memory_space<vmem>>, vector<16x28xbf16>
    tpu.vector_store %arg6[%c96, %c0_9], %14 {strides = array<i32>} : memref<144x28xbf16, #tpu.memory_space<vmem>>, vector<16x28xbf16>,
    %16 = vector.extract_strided_slice %1 {offsets = [0, 13], sizes = [16, 28], strides = [1, 1]} : vector<16x42xbf16> to vector<16x28xbf16>
    %c112 = arith.constant 112 : index
    %c0_10 = arith.constant 0 : index
    %17 = vector.load %arg6[%c112, %c0_10] : memref<144x28xbf16, #tpu.memory_space<vmem>>, vector<16x28xbf16>
    tpu.vector_store %arg6[%c112, %c0_10], %16 {strides = array<i32>} : memref<144x28xbf16, #tpu.memory_space<vmem>>, vector<16x28xbf16>,
    %18 = vector.extract_strided_slice %1 {offsets = [0, 14], sizes = [16, 28], strides = [1, 1]} : vector<16x42xbf16> to vector<16x28xbf16>
    %c128 = arith.constant 128 : index
    %c0_11 = arith.constant 0 : index
    %19 = vector.load %arg6[%c128, %c0_11] : memref<144x28xbf16, #tpu.memory_space<vmem>>, vector<16x28xbf16>
    tpu.vector_store %arg6[%c128, %c0_11], %18 {strides = array<i32>} : memref<144x28xbf16, #tpu.memory_space<vmem>>, vector<16x28xbf16>,
    %c0_12 = arith.constant 0 : index
    %c0_13 = arith.constant 0 : index
    %20 = vector.load %arg2[%c0_12, %c0_13] : memref<16x144xbf16, #tpu.memory_space<vmem>>, vector<16x144xbf16>
    %c0_14 = arith.constant 0 : index
    %c0_15 = arith.constant 0 : index
    %21 = vector.load %arg6[%c0_14, %c0_15] : memref<144x28xbf16, #tpu.memory_space<vmem>>, vector<144x28xbf16>
    %cst = arith.constant dense<0.000000e+00> : vector<16x28xf32>
    %22 = tpu.matmul %20, %21, %cst {dimension_numbers = #tpu.dot_dimension_numbers<[1], [0], [0], [1], [0, 0, 1, 1], [], []>} : vector<16x144xbf16>, vector<144x28xbf16>, vector<16x28xf32> -> vector<16x28xf32>
    %c0_16 = arith.constant 0 : index
    %c0_17 = arith.constant 0 : index
    %23 = vector.load %arg3[%c0_16, %c0_17] : memref<16x1xf32, #tpu.memory_space<vmem>>, vector<16x1xf32>
    %24 = vector.broadcast %23 : vector<16x1xf32> to vector<16x28xf32>
    %25 = arith.addf %22, %24 : vector<16x28xf32>
    %cst_18 = arith.constant 1.000000e-01 : f32
    %26 = vector.broadcast %cst_18 : f32 to vector<16x28xf32>
    %27 = arith.mulf %26, %25 : vector<16x28xf32>
    %28 = arith.maximumf %25, %27 : vector<16x28xf32>
    %c0_19 = arith.constant 0 : index
    %c0_20 = arith.constant 0 : index
    %29 = vector.load %arg4[%c0_19, %c0_20] : memref<1x28xf32, #tpu.memory_space<vmem>>, vector<1x28xf32>
    %30 = vector.broadcast %29 : vector<1x28xf32> to vector<16x28xf32>
    %31 = arith.mulf %28, %30 : vector<16x28xf32>
    %cst_21 = arith.constant 0.000000e+00 : bf16
    %32 = vector.broadcast %cst_21 : bf16 to vector<1x16x42xbf16>
    %c0_22 = arith.constant 0 : index
    %c0_23 = arith.constant 0 : index
    %c0_24 = arith.constant 0 : index
    %33 = vector.load %arg5[%c0_22, %c0_23, %c0_24] : memref<1x16x42xbf16, #tpu.memory_space<vmem>>, vector<1x16x42xbf16>
    tpu.vector_store %arg5[%c0_22, %c0_23, %c0_24], %32 {strides = array<i32>} : memref<1x16x42xbf16, #tpu.memory_space<vmem>>, vector<1x16x42xbf16>,
    %34 = arith.truncf %31 : vector<16x28xf32> to vector<16x28xbf16>
    %c0_25 = arith.constant 0 : index
    %c0_26 = arith.constant 0 : index
    %c13 = arith.constant 13 : index
    %35 = vector.load %arg5[%c0_25, %c0_26, %c13] : memref<1x16x42xbf16, #tpu.memory_space<vmem>>, vector<1x16x28xbf16>
    %36 = vector.shape_cast %35 : vector<1x16x28xbf16> to vector<16x28xbf16>
    %37 = vector.shape_cast %34 : vector<16x28xbf16> to vector<1x16x28xbf16>
    tpu.vector_store %arg5[%c0_25, %c0_26, %c13], %37 {strides = array<i32>} : memref<1x16x42xbf16, #tpu.memory_space<vmem>>, vector<1x16x28xbf16>,
    return
  }
  func.func @transform_0(%arg0: i32) -> (i32, i32, i32) {
    %c0_i32 = arith.constant 0 : i32
    %c0_i32_0 = arith.constant 0 : i32
    %c0_i32_1 = arith.constant 0 : i32
    return %arg0, %c0_i32, %c0_i32_0 : i32, i32, i32
  }
  func.func @transform_1(%arg0: i32) -> (i32, i32) {
    %c0_i32 = arith.constant 0 : i32
    %c0_i32_0 = arith.constant 0 : i32
    %c0_i32_1 = arith.constant 0 : i32
    return %c0_i32, %c0_i32_0 : i32, i32
  }
  func.func @transform_2(%arg0: i32) -> (i32, i32) {
    %c0_i32 = arith.constant 0 : i32
    %c0_i32_0 = arith.constant 0 : i32
    %c0_i32_1 = arith.constant 0 : i32
    return %c0_i32, %c0_i32_0 : i32, i32
  }
  func.func @transform_3(%arg0: i32) -> (i32, i32) {
    %c0_i32 = arith.constant 0 : i32
    %c0_i32_0 = arith.constant 0 : i32
    %c0_i32_1 = arith.constant 0 : i32
    return %c0_i32, %c0_i32_0 : i32, i32
  }
  func.func @transform_4(%arg0: i32) -> (i32, i32, i32) {
    %c0_i32 = arith.constant 0 : i32
    %c0_i32_0 = arith.constant 0 : i32
    %c0_i32_1 = arith.constant 0 : i32
    return %arg0, %c0_i32, %c0_i32_0 : i32, i32, i32
  }
}

module attributes {stable_mosaic.version = 11 : i64} {
  func.func @_conv_kernel(%arg0: i32, %arg1: memref<1x16x110xbf16, #tpu.memory_space<vmem>>, %arg2: memref<1x8x110xbf16, #tpu.memory_space<vmem>>, %arg3: memref<16x216xbf16, #tpu.memory_space<vmem>>, %arg4: memref<16x1xf32, #tpu.memory_space<vmem>>, %arg5: memref<1x88xf32, #tpu.memory_space<vmem>>, %arg6: memref<1x16x110xbf16, #tpu.memory_space<vmem>>, %arg7: memref<216x88xbf16, #tpu.memory_space<vmem>>) attributes {dimension_semantics = [#tpu.dimension_semantics<parallel>], iteration_bounds = array<i64: 2>, scalar_prefetch = 0 : i64, scratch_operands = 1 : i64, tpu.core_type = #tpu.core_type<tc>, window_params = [{transform_indices = @transform_0, window_bounds = array<i64: 1, 16, 110>}, {transform_indices = @transform_1, window_bounds = array<i64: 1, 8, 110>}, {pipeline_mode = #tpu.pipeline_mode<synchronous>, transform_indices = @transform_2, window_bounds = array<i64: 16, 216>}, {pipeline_mode = #tpu.pipeline_mode<synchronous>, transform_indices = @transform_3, window_bounds = array<i64: 16, 1>}, {pipeline_mode = #tpu.pipeline_mode<synchronous>, transform_indices = @transform_4, window_bounds = array<i64: 1, 88>}, {transform_indices = @transform_5, window_bounds = array<i64: 1, 16, 110>}]} {
    %c0 = arith.constant 0 : index
    %c0_0 = arith.constant 0 : index
    %c0_1 = arith.constant 0 : index
    %0 = vector.load %arg1[%c0, %c0_0, %c0_1] : memref<1x16x110xbf16, #tpu.memory_space<vmem>>, vector<1x16x110xbf16>
    %1 = vector.shape_cast %0 : vector<1x16x110xbf16> to vector<16x110xbf16>
    %2 = vector.extract_strided_slice %1 {offsets = [0, 0], sizes = [16, 88], strides = [1, 1]} : vector<16x110xbf16> to vector<16x88xbf16>
    %c0_2 = arith.constant 0 : index
    %c0_3 = arith.constant 0 : index
    %3 = vector.load %arg7[%c0_2, %c0_3] : memref<216x88xbf16, #tpu.memory_space<vmem>>, vector<16x88xbf16>
    tpu.vector_store %arg7[%c0_2, %c0_3], %2 {strides = array<i32>} : memref<216x88xbf16, #tpu.memory_space<vmem>>, vector<16x88xbf16>,
    %4 = vector.extract_strided_slice %1 {offsets = [0, 1], sizes = [16, 88], strides = [1, 1]} : vector<16x110xbf16> to vector<16x88xbf16>
    %c16 = arith.constant 16 : index
    %c0_4 = arith.constant 0 : index
    %5 = vector.load %arg7[%c16, %c0_4] : memref<216x88xbf16, #tpu.memory_space<vmem>>, vector<16x88xbf16>
    tpu.vector_store %arg7[%c16, %c0_4], %4 {strides = array<i32>} : memref<216x88xbf16, #tpu.memory_space<vmem>>, vector<16x88xbf16>,
    %6 = vector.extract_strided_slice %1 {offsets = [0, 2], sizes = [16, 88], strides = [1, 1]} : vector<16x110xbf16> to vector<16x88xbf16>
    %c32 = arith.constant 32 : index
    %c0_5 = arith.constant 0 : index
    %7 = vector.load %arg7[%c32, %c0_5] : memref<216x88xbf16, #tpu.memory_space<vmem>>, vector<16x88xbf16>
    tpu.vector_store %arg7[%c32, %c0_5], %6 {strides = array<i32>} : memref<216x88xbf16, #tpu.memory_space<vmem>>, vector<16x88xbf16>,
    %8 = vector.extract_strided_slice %1 {offsets = [0, 10], sizes = [16, 88], strides = [1, 1]} : vector<16x110xbf16> to vector<16x88xbf16>
    %c48 = arith.constant 48 : index
    %c0_6 = arith.constant 0 : index
    %9 = vector.load %arg7[%c48, %c0_6] : memref<216x88xbf16, #tpu.memory_space<vmem>>, vector<16x88xbf16>
    tpu.vector_store %arg7[%c48, %c0_6], %8 {strides = array<i32>} : memref<216x88xbf16, #tpu.memory_space<vmem>>, vector<16x88xbf16>,
    %10 = vector.extract_strided_slice %1 {offsets = [0, 11], sizes = [16, 88], strides = [1, 1]} : vector<16x110xbf16> to vector<16x88xbf16>
    %c64 = arith.constant 64 : index
    %c0_7 = arith.constant 0 : index
    %11 = vector.load %arg7[%c64, %c0_7] : memref<216x88xbf16, #tpu.memory_space<vmem>>, vector<16x88xbf16>
    tpu.vector_store %arg7[%c64, %c0_7], %10 {strides = array<i32>} : memref<216x88xbf16, #tpu.memory_space<vmem>>, vector<16x88xbf16>,
    %12 = vector.extract_strided_slice %1 {offsets = [0, 12], sizes = [16, 88], strides = [1, 1]} : vector<16x110xbf16> to vector<16x88xbf16>
    %c80 = arith.constant 80 : index
    %c0_8 = arith.constant 0 : index
    %13 = vector.load %arg7[%c80, %c0_8] : memref<216x88xbf16, #tpu.memory_space<vmem>>, vector<16x88xbf16>
    tpu.vector_store %arg7[%c80, %c0_8], %12 {strides = array<i32>} : memref<216x88xbf16, #tpu.memory_space<vmem>>, vector<16x88xbf16>,
    %14 = vector.extract_strided_slice %1 {offsets = [0, 20], sizes = [16, 88], strides = [1, 1]} : vector<16x110xbf16> to vector<16x88xbf16>
    %c96 = arith.constant 96 : index
    %c0_9 = arith.constant 0 : index
    %15 = vector.load %arg7[%c96, %c0_9] : memref<216x88xbf16, #tpu.memory_space<vmem>>, vector<16x88xbf16>
    tpu.vector_store %arg7[%c96, %c0_9], %14 {strides = array<i32>} : memref<216x88xbf16, #tpu.memory_space<vmem>>, vector<16x88xbf16>,
    %16 = vector.extract_strided_slice %1 {offsets = [0, 21], sizes = [16, 88], strides = [1, 1]} : vector<16x110xbf16> to vector<16x88xbf16>
    %c112 = arith.constant 112 : index
    %c0_10 = arith.constant 0 : index
    %17 = vector.load %arg7[%c112, %c0_10] : memref<216x88xbf16, #tpu.memory_space<vmem>>, vector<16x88xbf16>
    tpu.vector_store %arg7[%c112, %c0_10], %16 {strides = array<i32>} : memref<216x88xbf16, #tpu.memory_space<vmem>>, vector<16x88xbf16>,
    %18 = vector.extract_strided_slice %1 {offsets = [0, 22], sizes = [16, 88], strides = [1, 1]} : vector<16x110xbf16> to vector<16x88xbf16>
    %c128 = arith.constant 128 : index
    %c0_11 = arith.constant 0 : index
    %19 = vector.load %arg7[%c128, %c0_11] : memref<216x88xbf16, #tpu.memory_space<vmem>>, vector<16x88xbf16>
    tpu.vector_store %arg7[%c128, %c0_11], %18 {strides = array<i32>} : memref<216x88xbf16, #tpu.memory_space<vmem>>, vector<16x88xbf16>,
    %c0_12 = arith.constant 0 : index
    %c0_13 = arith.constant 0 : index
    %c0_14 = arith.constant 0 : index
    %20 = vector.load %arg2[%c0_12, %c0_13, %c0_14] : memref<1x8x110xbf16, #tpu.memory_space<vmem>>, vector<1x8x110xbf16>
    %21 = vector.shape_cast %20 : vector<1x8x110xbf16> to vector<8x110xbf16>
    %22 = vector.extract_strided_slice %21 {offsets = [0, 0], sizes = [8, 88], strides = [1, 1]} : vector<8x110xbf16> to vector<8x88xbf16>
    %c144 = arith.constant 144 : index
    %c0_15 = arith.constant 0 : index
    %23 = vector.load %arg7[%c144, %c0_15] : memref<216x88xbf16, #tpu.memory_space<vmem>>, vector<8x88xbf16>
    tpu.vector_store %arg7[%c144, %c0_15], %22 {strides = array<i32>} : memref<216x88xbf16, #tpu.memory_space<vmem>>, vector<8x88xbf16>,
    %24 = vector.extract_strided_slice %21 {offsets = [0, 1], sizes = [8, 88], strides = [1, 1]} : vector<8x110xbf16> to vector<8x88xbf16>
    %c152 = arith.constant 152 : index
    %c0_16 = arith.constant 0 : index
    %25 = vector.load %arg7[%c152, %c0_16] : memref<216x88xbf16, #tpu.memory_space<vmem>>, vector<8x88xbf16>
    tpu.vector_store %arg7[%c152, %c0_16], %24 {strides = array<i32>} : memref<216x88xbf16, #tpu.memory_space<vmem>>, vector<8x88xbf16>,
    %26 = vector.extract_strided_slice %21 {offsets = [0, 2], sizes = [8, 88], strides = [1, 1]} : vector<8x110xbf16> to vector<8x88xbf16>
    %c160 = arith.constant 160 : index
    %c0_17 = arith.constant 0 : index
    %27 = vector.load %arg7[%c160, %c0_17] : memref<216x88xbf16, #tpu.memory_space<vmem>>, vector<8x88xbf16>
    tpu.vector_store %arg7[%c160, %c0_17], %26 {strides = array<i32>} : memref<216x88xbf16, #tpu.memory_space<vmem>>, vector<8x88xbf16>,
    %28 = vector.extract_strided_slice %21 {offsets = [0, 10], sizes = [8, 88], strides = [1, 1]} : vector<8x110xbf16> to vector<8x88xbf16>
    %c168 = arith.constant 168 : index
    %c0_18 = arith.constant 0 : index
    %29 = vector.load %arg7[%c168, %c0_18] : memref<216x88xbf16, #tpu.memory_space<vmem>>, vector<8x88xbf16>
    tpu.vector_store %arg7[%c168, %c0_18], %28 {strides = array<i32>} : memref<216x88xbf16, #tpu.memory_space<vmem>>, vector<8x88xbf16>,
    %30 = vector.extract_strided_slice %21 {offsets = [0, 11], sizes = [8, 88], strides = [1, 1]} : vector<8x110xbf16> to vector<8x88xbf16>
    %c176 = arith.constant 176 : index
    %c0_19 = arith.constant 0 : index
    %31 = vector.load %arg7[%c176, %c0_19] : memref<216x88xbf16, #tpu.memory_space<vmem>>, vector<8x88xbf16>
    tpu.vector_store %arg7[%c176, %c0_19], %30 {strides = array<i32>} : memref<216x88xbf16, #tpu.memory_space<vmem>>, vector<8x88xbf16>,
    %32 = vector.extract_strided_slice %21 {offsets = [0, 12], sizes = [8, 88], strides = [1, 1]} : vector<8x110xbf16> to vector<8x88xbf16>
    %c184 = arith.constant 184 : index
    %c0_20 = arith.constant 0 : index
    %33 = vector.load %arg7[%c184, %c0_20] : memref<216x88xbf16, #tpu.memory_space<vmem>>, vector<8x88xbf16>
    tpu.vector_store %arg7[%c184, %c0_20], %32 {strides = array<i32>} : memref<216x88xbf16, #tpu.memory_space<vmem>>, vector<8x88xbf16>,
    %34 = vector.extract_strided_slice %21 {offsets = [0, 20], sizes = [8, 88], strides = [1, 1]} : vector<8x110xbf16> to vector<8x88xbf16>
    %c192 = arith.constant 192 : index
    %c0_21 = arith.constant 0 : index
    %35 = vector.load %arg7[%c192, %c0_21] : memref<216x88xbf16, #tpu.memory_space<vmem>>, vector<8x88xbf16>
    tpu.vector_store %arg7[%c192, %c0_21], %34 {strides = array<i32>} : memref<216x88xbf16, #tpu.memory_space<vmem>>, vector<8x88xbf16>,
    %36 = vector.extract_strided_slice %21 {offsets = [0, 21], sizes = [8, 88], strides = [1, 1]} : vector<8x110xbf16> to vector<8x88xbf16>
    %c200 = arith.constant 200 : index
    %c0_22 = arith.constant 0 : index
    %37 = vector.load %arg7[%c200, %c0_22] : memref<216x88xbf16, #tpu.memory_space<vmem>>, vector<8x88xbf16>
    tpu.vector_store %arg7[%c200, %c0_22], %36 {strides = array<i32>} : memref<216x88xbf16, #tpu.memory_space<vmem>>, vector<8x88xbf16>,
    %38 = vector.extract_strided_slice %21 {offsets = [0, 22], sizes = [8, 88], strides = [1, 1]} : vector<8x110xbf16> to vector<8x88xbf16>
    %c208 = arith.constant 208 : index
    %c0_23 = arith.constant 0 : index
    %39 = vector.load %arg7[%c208, %c0_23] : memref<216x88xbf16, #tpu.memory_space<vmem>>, vector<8x88xbf16>
    tpu.vector_store %arg7[%c208, %c0_23], %38 {strides = array<i32>} : memref<216x88xbf16, #tpu.memory_space<vmem>>, vector<8x88xbf16>,
    %c0_24 = arith.constant 0 : index
    %c0_25 = arith.constant 0 : index
    %40 = vector.load %arg3[%c0_24, %c0_25] : memref<16x216xbf16, #tpu.memory_space<vmem>>, vector<16x216xbf16>
    %c0_26 = arith.constant 0 : index
    %c0_27 = arith.constant 0 : index
    %41 = vector.load %arg7[%c0_26, %c0_27] : memref<216x88xbf16, #tpu.memory_space<vmem>>, vector<216x88xbf16>
    %cst = arith.constant dense<0.000000e+00> : vector<16x88xf32>
    %42 = tpu.matmul %40, %41, %cst {dimension_numbers = #tpu.dot_dimension_numbers<[1], [0], [0], [1], [0, 0, 1, 1], [], []>} : vector<16x216xbf16>, vector<216x88xbf16>, vector<16x88xf32> -> vector<16x88xf32>
    %c0_28 = arith.constant 0 : index
    %c0_29 = arith.constant 0 : index
    %43 = vector.load %arg4[%c0_28, %c0_29] : memref<16x1xf32, #tpu.memory_space<vmem>>, vector<16x1xf32>
    %44 = vector.broadcast %43 : vector<16x1xf32> to vector<16x88xf32>
    %45 = arith.addf %42, %44 : vector<16x88xf32>
    %cst_30 = arith.constant 1.000000e-01 : f32
    %46 = vector.broadcast %cst_30 : f32 to vector<16x88xf32>
    %47 = arith.mulf %46, %45 : vector<16x88xf32>
    %48 = arith.maximumf %45, %47 : vector<16x88xf32>
    %c0_31 = arith.constant 0 : index
    %c0_32 = arith.constant 0 : index
    %49 = vector.load %arg5[%c0_31, %c0_32] : memref<1x88xf32, #tpu.memory_space<vmem>>, vector<1x88xf32>
    %50 = vector.broadcast %49 : vector<1x88xf32> to vector<16x88xf32>
    %51 = arith.mulf %48, %50 : vector<16x88xf32>
    %cst_33 = arith.constant 0.000000e+00 : bf16
    %52 = vector.broadcast %cst_33 : bf16 to vector<1x16x110xbf16>
    %c0_34 = arith.constant 0 : index
    %c0_35 = arith.constant 0 : index
    %c0_36 = arith.constant 0 : index
    %53 = vector.load %arg6[%c0_34, %c0_35, %c0_36] : memref<1x16x110xbf16, #tpu.memory_space<vmem>>, vector<1x16x110xbf16>
    tpu.vector_store %arg6[%c0_34, %c0_35, %c0_36], %52 {strides = array<i32>} : memref<1x16x110xbf16, #tpu.memory_space<vmem>>, vector<1x16x110xbf16>,
    %54 = arith.truncf %51 : vector<16x88xf32> to vector<16x88xbf16>
    %c0_37 = arith.constant 0 : index
    %c0_38 = arith.constant 0 : index
    %c21 = arith.constant 21 : index
    %55 = vector.load %arg6[%c0_37, %c0_38, %c21] : memref<1x16x110xbf16, #tpu.memory_space<vmem>>, vector<1x16x88xbf16>
    %56 = vector.shape_cast %55 : vector<1x16x88xbf16> to vector<16x88xbf16>
    %57 = vector.shape_cast %54 : vector<16x88xbf16> to vector<1x16x88xbf16>
    tpu.vector_store %arg6[%c0_37, %c0_38, %c21], %57 {strides = array<i32>} : memref<1x16x110xbf16, #tpu.memory_space<vmem>>, vector<1x16x88xbf16>,
    return
  }
  func.func @transform_0(%arg0: i32) -> (i32, i32, i32) {
    %c0_i32 = arith.constant 0 : i32
    %c0_i32_0 = arith.constant 0 : i32
    %c0_i32_1 = arith.constant 0 : i32
    return %arg0, %c0_i32, %c0_i32_0 : i32, i32, i32
  }
  func.func @transform_1(%arg0: i32) -> (i32, i32, i32) {
    %c0_i32 = arith.constant 0 : i32
    %c0_i32_0 = arith.constant 0 : i32
    %c0_i32_1 = arith.constant 0 : i32
    return %arg0, %c0_i32, %c0_i32_0 : i32, i32, i32
  }
  func.func @transform_2(%arg0: i32) -> (i32, i32) {
    %c0_i32 = arith.constant 0 : i32
    %c0_i32_0 = arith.constant 0 : i32
    %c0_i32_1 = arith.constant 0 : i32
    return %c0_i32, %c0_i32_0 : i32, i32
  }
  func.func @transform_3(%arg0: i32) -> (i32, i32) {
    %c0_i32 = arith.constant 0 : i32
    %c0_i32_0 = arith.constant 0 : i32
    %c0_i32_1 = arith.constant 0 : i32
    return %c0_i32, %c0_i32_0 : i32, i32
  }
  func.func @transform_4(%arg0: i32) -> (i32, i32) {
    %c0_i32 = arith.constant 0 : i32
    %c0_i32_0 = arith.constant 0 : i32
    %c0_i32_1 = arith.constant 0 : i32
    return %c0_i32, %c0_i32_0 : i32, i32
  }
  func.func @transform_5(%arg0: i32) -> (i32, i32, i32) {
    %c0_i32 = arith.constant 0 : i32
    %c0_i32_0 = arith.constant 0 : i32
    %c0_i32_1 = arith.constant 0 : i32
    return %arg0, %c0_i32, %c0_i32_0 : i32, i32, i32
  }
}

module attributes {stable_mosaic.version = 11 : i64} {
  func.func @_conv_kernel(%arg0: i32, %arg1: memref<1x16x110xbf16, #tpu.memory_space<vmem>>, %arg2: memref<16x144xbf16, #tpu.memory_space<vmem>>, %arg3: memref<16x1xf32, #tpu.memory_space<vmem>>, %arg4: memref<1x88xf32, #tpu.memory_space<vmem>>, %arg5: memref<1x16x110xbf16, #tpu.memory_space<vmem>>, %arg6: memref<144x88xbf16, #tpu.memory_space<vmem>>) attributes {dimension_semantics = [#tpu.dimension_semantics<parallel>], iteration_bounds = array<i64: 2>, scalar_prefetch = 0 : i64, scratch_operands = 1 : i64, tpu.core_type = #tpu.core_type<tc>, window_params = [{transform_indices = @transform_0, window_bounds = array<i64: 1, 16, 110>}, {pipeline_mode = #tpu.pipeline_mode<synchronous>, transform_indices = @transform_1, window_bounds = array<i64: 16, 144>}, {pipeline_mode = #tpu.pipeline_mode<synchronous>, transform_indices = @transform_2, window_bounds = array<i64: 16, 1>}, {pipeline_mode = #tpu.pipeline_mode<synchronous>, transform_indices = @transform_3, window_bounds = array<i64: 1, 88>}, {transform_indices = @transform_4, window_bounds = array<i64: 1, 16, 110>}]} {
    %c0 = arith.constant 0 : index
    %c0_0 = arith.constant 0 : index
    %c0_1 = arith.constant 0 : index
    %0 = vector.load %arg1[%c0, %c0_0, %c0_1] : memref<1x16x110xbf16, #tpu.memory_space<vmem>>, vector<1x16x110xbf16>
    %1 = vector.shape_cast %0 : vector<1x16x110xbf16> to vector<16x110xbf16>
    %2 = vector.extract_strided_slice %1 {offsets = [0, 0], sizes = [16, 88], strides = [1, 1]} : vector<16x110xbf16> to vector<16x88xbf16>
    %c0_2 = arith.constant 0 : index
    %c0_3 = arith.constant 0 : index
    %3 = vector.load %arg6[%c0_2, %c0_3] : memref<144x88xbf16, #tpu.memory_space<vmem>>, vector<16x88xbf16>
    tpu.vector_store %arg6[%c0_2, %c0_3], %2 {strides = array<i32>} : memref<144x88xbf16, #tpu.memory_space<vmem>>, vector<16x88xbf16>,
    %4 = vector.extract_strided_slice %1 {offsets = [0, 1], sizes = [16, 88], strides = [1, 1]} : vector<16x110xbf16> to vector<16x88xbf16>
    %c16 = arith.constant 16 : index
    %c0_4 = arith.constant 0 : index
    %5 = vector.load %arg6[%c16, %c0_4] : memref<144x88xbf16, #tpu.memory_space<vmem>>, vector<16x88xbf16>
    tpu.vector_store %arg6[%c16, %c0_4], %4 {strides = array<i32>} : memref<144x88xbf16, #tpu.memory_space<vmem>>, vector<16x88xbf16>,
    %6 = vector.extract_strided_slice %1 {offsets = [0, 2], sizes = [16, 88], strides = [1, 1]} : vector<16x110xbf16> to vector<16x88xbf16>
    %c32 = arith.constant 32 : index
    %c0_5 = arith.constant 0 : index
    %7 = vector.load %arg6[%c32, %c0_5] : memref<144x88xbf16, #tpu.memory_space<vmem>>, vector<16x88xbf16>
    tpu.vector_store %arg6[%c32, %c0_5], %6 {strides = array<i32>} : memref<144x88xbf16, #tpu.memory_space<vmem>>, vector<16x88xbf16>,
    %8 = vector.extract_strided_slice %1 {offsets = [0, 10], sizes = [16, 88], strides = [1, 1]} : vector<16x110xbf16> to vector<16x88xbf16>
    %c48 = arith.constant 48 : index
    %c0_6 = arith.constant 0 : index
    %9 = vector.load %arg6[%c48, %c0_6] : memref<144x88xbf16, #tpu.memory_space<vmem>>, vector<16x88xbf16>
    tpu.vector_store %arg6[%c48, %c0_6], %8 {strides = array<i32>} : memref<144x88xbf16, #tpu.memory_space<vmem>>, vector<16x88xbf16>,
    %10 = vector.extract_strided_slice %1 {offsets = [0, 11], sizes = [16, 88], strides = [1, 1]} : vector<16x110xbf16> to vector<16x88xbf16>
    %c64 = arith.constant 64 : index
    %c0_7 = arith.constant 0 : index
    %11 = vector.load %arg6[%c64, %c0_7] : memref<144x88xbf16, #tpu.memory_space<vmem>>, vector<16x88xbf16>
    tpu.vector_store %arg6[%c64, %c0_7], %10 {strides = array<i32>} : memref<144x88xbf16, #tpu.memory_space<vmem>>, vector<16x88xbf16>,
    %12 = vector.extract_strided_slice %1 {offsets = [0, 12], sizes = [16, 88], strides = [1, 1]} : vector<16x110xbf16> to vector<16x88xbf16>
    %c80 = arith.constant 80 : index
    %c0_8 = arith.constant 0 : index
    %13 = vector.load %arg6[%c80, %c0_8] : memref<144x88xbf16, #tpu.memory_space<vmem>>, vector<16x88xbf16>
    tpu.vector_store %arg6[%c80, %c0_8], %12 {strides = array<i32>} : memref<144x88xbf16, #tpu.memory_space<vmem>>, vector<16x88xbf16>,
    %14 = vector.extract_strided_slice %1 {offsets = [0, 20], sizes = [16, 88], strides = [1, 1]} : vector<16x110xbf16> to vector<16x88xbf16>
    %c96 = arith.constant 96 : index
    %c0_9 = arith.constant 0 : index
    %15 = vector.load %arg6[%c96, %c0_9] : memref<144x88xbf16, #tpu.memory_space<vmem>>, vector<16x88xbf16>
    tpu.vector_store %arg6[%c96, %c0_9], %14 {strides = array<i32>} : memref<144x88xbf16, #tpu.memory_space<vmem>>, vector<16x88xbf16>,
    %16 = vector.extract_strided_slice %1 {offsets = [0, 21], sizes = [16, 88], strides = [1, 1]} : vector<16x110xbf16> to vector<16x88xbf16>
    %c112 = arith.constant 112 : index
    %c0_10 = arith.constant 0 : index
    %17 = vector.load %arg6[%c112, %c0_10] : memref<144x88xbf16, #tpu.memory_space<vmem>>, vector<16x88xbf16>
    tpu.vector_store %arg6[%c112, %c0_10], %16 {strides = array<i32>} : memref<144x88xbf16, #tpu.memory_space<vmem>>, vector<16x88xbf16>,
    %18 = vector.extract_strided_slice %1 {offsets = [0, 22], sizes = [16, 88], strides = [1, 1]} : vector<16x110xbf16> to vector<16x88xbf16>
    %c128 = arith.constant 128 : index
    %c0_11 = arith.constant 0 : index
    %19 = vector.load %arg6[%c128, %c0_11] : memref<144x88xbf16, #tpu.memory_space<vmem>>, vector<16x88xbf16>
    tpu.vector_store %arg6[%c128, %c0_11], %18 {strides = array<i32>} : memref<144x88xbf16, #tpu.memory_space<vmem>>, vector<16x88xbf16>,
    %c0_12 = arith.constant 0 : index
    %c0_13 = arith.constant 0 : index
    %20 = vector.load %arg2[%c0_12, %c0_13] : memref<16x144xbf16, #tpu.memory_space<vmem>>, vector<16x144xbf16>
    %c0_14 = arith.constant 0 : index
    %c0_15 = arith.constant 0 : index
    %21 = vector.load %arg6[%c0_14, %c0_15] : memref<144x88xbf16, #tpu.memory_space<vmem>>, vector<144x88xbf16>
    %cst = arith.constant dense<0.000000e+00> : vector<16x88xf32>
    %22 = tpu.matmul %20, %21, %cst {dimension_numbers = #tpu.dot_dimension_numbers<[1], [0], [0], [1], [0, 0, 1, 1], [], []>} : vector<16x144xbf16>, vector<144x88xbf16>, vector<16x88xf32> -> vector<16x88xf32>
    %c0_16 = arith.constant 0 : index
    %c0_17 = arith.constant 0 : index
    %23 = vector.load %arg3[%c0_16, %c0_17] : memref<16x1xf32, #tpu.memory_space<vmem>>, vector<16x1xf32>
    %24 = vector.broadcast %23 : vector<16x1xf32> to vector<16x88xf32>
    %25 = arith.addf %22, %24 : vector<16x88xf32>
    %cst_18 = arith.constant 1.000000e-01 : f32
    %26 = vector.broadcast %cst_18 : f32 to vector<16x88xf32>
    %27 = arith.mulf %26, %25 : vector<16x88xf32>
    %28 = arith.maximumf %25, %27 : vector<16x88xf32>
    %c0_19 = arith.constant 0 : index
    %c0_20 = arith.constant 0 : index
    %29 = vector.load %arg4[%c0_19, %c0_20] : memref<1x88xf32, #tpu.memory_space<vmem>>, vector<1x88xf32>
    %30 = vector.broadcast %29 : vector<1x88xf32> to vector<16x88xf32>
    %31 = arith.mulf %28, %30 : vector<16x88xf32>
    %cst_21 = arith.constant 0.000000e+00 : bf16
    %32 = vector.broadcast %cst_21 : bf16 to vector<1x16x110xbf16>
    %c0_22 = arith.constant 0 : index
    %c0_23 = arith.constant 0 : index
    %c0_24 = arith.constant 0 : index
    %33 = vector.load %arg5[%c0_22, %c0_23, %c0_24] : memref<1x16x110xbf16, #tpu.memory_space<vmem>>, vector<1x16x110xbf16>
    tpu.vector_store %arg5[%c0_22, %c0_23, %c0_24], %32 {strides = array<i32>} : memref<1x16x110xbf16, #tpu.memory_space<vmem>>, vector<1x16x110xbf16>,
    %34 = arith.truncf %31 : vector<16x88xf32> to vector<16x88xbf16>
    %c0_25 = arith.constant 0 : index
    %c0_26 = arith.constant 0 : index
    %c21 = arith.constant 21 : index
    %35 = vector.load %arg5[%c0_25, %c0_26, %c21] : memref<1x16x110xbf16, #tpu.memory_space<vmem>>, vector<1x16x88xbf16>
    %36 = vector.shape_cast %35 : vector<1x16x88xbf16> to vector<16x88xbf16>
    %37 = vector.shape_cast %34 : vector<16x88xbf16> to vector<1x16x88xbf16>
    tpu.vector_store %arg5[%c0_25, %c0_26, %c21], %37 {strides = array<i32>} : memref<1x16x110xbf16, #tpu.memory_space<vmem>>, vector<1x16x88xbf16>,
    return
  }
  func.func @transform_0(%arg0: i32) -> (i32, i32, i32) {
    %c0_i32 = arith.constant 0 : i32
    %c0_i32_0 = arith.constant 0 : i32
    %c0_i32_1 = arith.constant 0 : i32
    return %arg0, %c0_i32, %c0_i32_0 : i32, i32, i32
  }
  func.func @transform_1(%arg0: i32) -> (i32, i32) {
    %c0_i32 = arith.constant 0 : i32
    %c0_i32_0 = arith.constant 0 : i32
    %c0_i32_1 = arith.constant 0 : i32
    return %c0_i32, %c0_i32_0 : i32, i32
  }
  func.func @transform_2(%arg0: i32) -> (i32, i32) {
    %c0_i32 = arith.constant 0 : i32
    %c0_i32_0 = arith.constant 0 : i32
    %c0_i32_1 = arith.constant 0 : i32
    return %c0_i32, %c0_i32_0 : i32, i32
  }
  func.func @transform_3(%arg0: i32) -> (i32, i32) {
    %c0_i32 = arith.constant 0 : i32
    %c0_i32_0 = arith.constant 0 : i32
    %c0_i32_1 = arith.constant 0 : i32
    return %c0_i32, %c0_i32_0 : i32, i32
  }
  func.func @transform_4(%arg0: i32) -> (i32, i32, i32) {
    %c0_i32 = arith.constant 0 : i32
    %c0_i32_0 = arith.constant 0 : i32
    %c0_i32_1 = arith.constant 0 : i32
    return %arg0, %c0_i32, %c0_i32_0 : i32, i32, i32
  }
}

module attributes {stable_mosaic.version = 11 : i64} {
  func.func @_deconv_kernel(%arg0: i32, %arg1: memref<1x16x110xbf16, #tpu.memory_space<vmem>>, %arg2: memref<64x16xbf16, #tpu.memory_space<vmem>>, %arg3: memref<64x1xf32, #tpu.memory_space<vmem>>, %arg4: memref<1x110xf32, #tpu.memory_space<vmem>>, %arg5: memref<1x64x110xbf16, #tpu.memory_space<vmem>>) attributes {dimension_semantics = [#tpu.dimension_semantics<parallel>], iteration_bounds = array<i64: 2>, scalar_prefetch = 0 : i64, scratch_operands = 0 : i64, tpu.core_type = #tpu.core_type<tc>, window_params = [{transform_indices = @transform_0, window_bounds = array<i64: 1, 16, 110>}, {pipeline_mode = #tpu.pipeline_mode<synchronous>, transform_indices = @transform_1, window_bounds = array<i64: 64, 16>}, {pipeline_mode = #tpu.pipeline_mode<synchronous>, transform_indices = @transform_2, window_bounds = array<i64: 64, 1>}, {pipeline_mode = #tpu.pipeline_mode<synchronous>, transform_indices = @transform_3, window_bounds = array<i64: 1, 110>}, {transform_indices = @transform_4, window_bounds = array<i64: 1, 64, 110>}]} {
    %c0 = arith.constant 0 : index
    %c0_0 = arith.constant 0 : index
    %0 = vector.load %arg2[%c0, %c0_0] : memref<64x16xbf16, #tpu.memory_space<vmem>>, vector<64x16xbf16>
    %c0_1 = arith.constant 0 : index
    %c0_2 = arith.constant 0 : index
    %c0_3 = arith.constant 0 : index
    %1 = vector.load %arg1[%c0_1, %c0_2, %c0_3] : memref<1x16x110xbf16, #tpu.memory_space<vmem>>, vector<1x16x110xbf16>
    %2 = vector.shape_cast %1 : vector<1x16x110xbf16> to vector<16x110xbf16>
    %cst = arith.constant dense<0.000000e+00> : vector<64x110xf32>
    %3 = tpu.matmul %0, %2, %cst {dimension_numbers = #tpu.dot_dimension_numbers<[1], [0], [0], [1], [0, 0, 1, 1], [], []>} : vector<64x16xbf16>, vector<16x110xbf16>, vector<64x110xf32> -> vector<64x110xf32>
    %c0_4 = arith.constant 0 : index
    %c0_5 = arith.constant 0 : index
    %4 = vector.load %arg3[%c0_4, %c0_5] : memref<64x1xf32, #tpu.memory_space<vmem>>, vector<64x1xf32>
    %5 = vector.broadcast %4 : vector<64x1xf32> to vector<64x110xf32>
    %6 = arith.addf %3, %5 : vector<64x110xf32>
    %c0_6 = arith.constant 0 : index
    %c0_7 = arith.constant 0 : index
    %7 = vector.load %arg4[%c0_6, %c0_7] : memref<1x110xf32, #tpu.memory_space<vmem>>, vector<1x110xf32>
    %8 = vector.broadcast %7 : vector<1x110xf32> to vector<64x110xf32>
    %9 = arith.mulf %6, %8 : vector<64x110xf32>
    %10 = arith.truncf %9 : vector<64x110xf32> to vector<64x110xbf16>
    %c0_8 = arith.constant 0 : index
    %c0_9 = arith.constant 0 : index
    %c0_10 = arith.constant 0 : index
    %11 = vector.load %arg5[%c0_8, %c0_9, %c0_10] : memref<1x64x110xbf16, #tpu.memory_space<vmem>>, vector<1x64x110xbf16>
    %12 = vector.shape_cast %11 : vector<1x64x110xbf16> to vector<64x110xbf16>
    %13 = vector.shape_cast %10 : vector<64x110xbf16> to vector<1x64x110xbf16>
    tpu.vector_store %arg5[%c0_8, %c0_9, %c0_10], %13 {strides = array<i32>} : memref<1x64x110xbf16, #tpu.memory_space<vmem>>, vector<1x64x110xbf16>,
    return
  }
  func.func @transform_0(%arg0: i32) -> (i32, i32, i32) {
    %c0_i32 = arith.constant 0 : i32
    %c0_i32_0 = arith.constant 0 : i32
    %c0_i32_1 = arith.constant 0 : i32
    return %arg0, %c0_i32, %c0_i32_0 : i32, i32, i32
  }
  func.func @transform_1(%arg0: i32) -> (i32, i32) {
    %c0_i32 = arith.constant 0 : i32
    %c0_i32_0 = arith.constant 0 : i32
    %c0_i32_1 = arith.constant 0 : i32
    return %c0_i32, %c0_i32_0 : i32, i32
  }
  func.func @transform_2(%arg0: i32) -> (i32, i32) {
    %c0_i32 = arith.constant 0 : i32
    %c0_i32_0 = arith.constant 0 : i32
    %c0_i32_1 = arith.constant 0 : i32
    return %c0_i32, %c0_i32_0 : i32, i32
  }
  func.func @transform_3(%arg0: i32) -> (i32, i32) {
    %c0_i32 = arith.constant 0 : i32
    %c0_i32_0 = arith.constant 0 : i32
    %c0_i32_1 = arith.constant 0 : i32
    return %c0_i32, %c0_i32_0 : i32, i32
  }
  func.func @transform_4(%arg0: i32) -> (i32, i32, i32) {
    %c0_i32 = arith.constant 0 : i32
    %c0_i32_0 = arith.constant 0 : i32
    %c0_i32_1 = arith.constant 0 : i32
    return %arg0, %c0_i32, %c0_i32_0 : i32, i32, i32
  }
}

module attributes {stable_mosaic.version = 11 : i64} {
  func.func @_conv_kernel(%arg0: i32, %arg1: memref<1x16x342xbf16, #tpu.memory_space<vmem>>, %arg2: memref<16x144xbf16, #tpu.memory_space<vmem>>, %arg3: memref<16x1xf32, #tpu.memory_space<vmem>>, %arg4: memref<1x304xf32, #tpu.memory_space<vmem>>, %arg5: memref<1x16x342xbf16, #tpu.memory_space<vmem>>, %arg6: memref<144x304xbf16, #tpu.memory_space<vmem>>) attributes {dimension_semantics = [#tpu.dimension_semantics<parallel>], iteration_bounds = array<i64: 2>, scalar_prefetch = 0 : i64, scratch_operands = 1 : i64, tpu.core_type = #tpu.core_type<tc>, window_params = [{transform_indices = @transform_0, window_bounds = array<i64: 1, 16, 342>}, {pipeline_mode = #tpu.pipeline_mode<synchronous>, transform_indices = @transform_1, window_bounds = array<i64: 16, 144>}, {pipeline_mode = #tpu.pipeline_mode<synchronous>, transform_indices = @transform_2, window_bounds = array<i64: 16, 1>}, {pipeline_mode = #tpu.pipeline_mode<synchronous>, transform_indices = @transform_3, window_bounds = array<i64: 1, 304>}, {transform_indices = @transform_4, window_bounds = array<i64: 1, 16, 342>}]} {
    %c0 = arith.constant 0 : index
    %c0_0 = arith.constant 0 : index
    %c0_1 = arith.constant 0 : index
    %0 = vector.load %arg1[%c0, %c0_0, %c0_1] : memref<1x16x342xbf16, #tpu.memory_space<vmem>>, vector<1x16x342xbf16>
    %1 = vector.shape_cast %0 : vector<1x16x342xbf16> to vector<16x342xbf16>
    %2 = vector.extract_strided_slice %1 {offsets = [0, 0], sizes = [16, 304], strides = [1, 1]} : vector<16x342xbf16> to vector<16x304xbf16>
    %c0_2 = arith.constant 0 : index
    %c0_3 = arith.constant 0 : index
    %3 = vector.load %arg6[%c0_2, %c0_3] : memref<144x304xbf16, #tpu.memory_space<vmem>>, vector<16x304xbf16>
    tpu.vector_store %arg6[%c0_2, %c0_3], %2 {strides = array<i32>} : memref<144x304xbf16, #tpu.memory_space<vmem>>, vector<16x304xbf16>,
    %4 = vector.extract_strided_slice %1 {offsets = [0, 1], sizes = [16, 304], strides = [1, 1]} : vector<16x342xbf16> to vector<16x304xbf16>
    %c16 = arith.constant 16 : index
    %c0_4 = arith.constant 0 : index
    %5 = vector.load %arg6[%c16, %c0_4] : memref<144x304xbf16, #tpu.memory_space<vmem>>, vector<16x304xbf16>
    tpu.vector_store %arg6[%c16, %c0_4], %4 {strides = array<i32>} : memref<144x304xbf16, #tpu.memory_space<vmem>>, vector<16x304xbf16>,
    %6 = vector.extract_strided_slice %1 {offsets = [0, 2], sizes = [16, 304], strides = [1, 1]} : vector<16x342xbf16> to vector<16x304xbf16>
    %c32 = arith.constant 32 : index
    %c0_5 = arith.constant 0 : index
    %7 = vector.load %arg6[%c32, %c0_5] : memref<144x304xbf16, #tpu.memory_space<vmem>>, vector<16x304xbf16>
    tpu.vector_store %arg6[%c32, %c0_5], %6 {strides = array<i32>} : memref<144x304xbf16, #tpu.memory_space<vmem>>, vector<16x304xbf16>,
    %8 = vector.extract_strided_slice %1 {offsets = [0, 18], sizes = [16, 304], strides = [1, 1]} : vector<16x342xbf16> to vector<16x304xbf16>
    %c48 = arith.constant 48 : index
    %c0_6 = arith.constant 0 : index
    %9 = vector.load %arg6[%c48, %c0_6] : memref<144x304xbf16, #tpu.memory_space<vmem>>, vector<16x304xbf16>
    tpu.vector_store %arg6[%c48, %c0_6], %8 {strides = array<i32>} : memref<144x304xbf16, #tpu.memory_space<vmem>>, vector<16x304xbf16>,
    %10 = vector.extract_strided_slice %1 {offsets = [0, 19], sizes = [16, 304], strides = [1, 1]} : vector<16x342xbf16> to vector<16x304xbf16>
    %c64 = arith.constant 64 : index
    %c0_7 = arith.constant 0 : index
    %11 = vector.load %arg6[%c64, %c0_7] : memref<144x304xbf16, #tpu.memory_space<vmem>>, vector<16x304xbf16>
    tpu.vector_store %arg6[%c64, %c0_7], %10 {strides = array<i32>} : memref<144x304xbf16, #tpu.memory_space<vmem>>, vector<16x304xbf16>,
    %12 = vector.extract_strided_slice %1 {offsets = [0, 20], sizes = [16, 304], strides = [1, 1]} : vector<16x342xbf16> to vector<16x304xbf16>
    %c80 = arith.constant 80 : index
    %c0_8 = arith.constant 0 : index
    %13 = vector.load %arg6[%c80, %c0_8] : memref<144x304xbf16, #tpu.memory_space<vmem>>, vector<16x304xbf16>
    tpu.vector_store %arg6[%c80, %c0_8], %12 {strides = array<i32>} : memref<144x304xbf16, #tpu.memory_space<vmem>>, vector<16x304xbf16>,
    %14 = vector.extract_strided_slice %1 {offsets = [0, 36], sizes = [16, 304], strides = [1, 1]} : vector<16x342xbf16> to vector<16x304xbf16>
    %c96 = arith.constant 96 : index
    %c0_9 = arith.constant 0 : index
    %15 = vector.load %arg6[%c96, %c0_9] : memref<144x304xbf16, #tpu.memory_space<vmem>>, vector<16x304xbf16>
    tpu.vector_store %arg6[%c96, %c0_9], %14 {strides = array<i32>} : memref<144x304xbf16, #tpu.memory_space<vmem>>, vector<16x304xbf16>,
    %16 = vector.extract_strided_slice %1 {offsets = [0, 37], sizes = [16, 304], strides = [1, 1]} : vector<16x342xbf16> to vector<16x304xbf16>
    %c112 = arith.constant 112 : index
    %c0_10 = arith.constant 0 : index
    %17 = vector.load %arg6[%c112, %c0_10] : memref<144x304xbf16, #tpu.memory_space<vmem>>, vector<16x304xbf16>
    tpu.vector_store %arg6[%c112, %c0_10], %16 {strides = array<i32>} : memref<144x304xbf16, #tpu.memory_space<vmem>>, vector<16x304xbf16>,
    %18 = vector.extract_strided_slice %1 {offsets = [0, 38], sizes = [16, 304], strides = [1, 1]} : vector<16x342xbf16> to vector<16x304xbf16>
    %c128 = arith.constant 128 : index
    %c0_11 = arith.constant 0 : index
    %19 = vector.load %arg6[%c128, %c0_11] : memref<144x304xbf16, #tpu.memory_space<vmem>>, vector<16x304xbf16>
    tpu.vector_store %arg6[%c128, %c0_11], %18 {strides = array<i32>} : memref<144x304xbf16, #tpu.memory_space<vmem>>, vector<16x304xbf16>,
    %c0_12 = arith.constant 0 : index
    %c0_13 = arith.constant 0 : index
    %20 = vector.load %arg2[%c0_12, %c0_13] : memref<16x144xbf16, #tpu.memory_space<vmem>>, vector<16x144xbf16>
    %c0_14 = arith.constant 0 : index
    %c0_15 = arith.constant 0 : index
    %21 = vector.load %arg6[%c0_14, %c0_15] : memref<144x304xbf16, #tpu.memory_space<vmem>>, vector<144x304xbf16>
    %cst = arith.constant dense<0.000000e+00> : vector<16x304xf32>
    %22 = tpu.matmul %20, %21, %cst {dimension_numbers = #tpu.dot_dimension_numbers<[1], [0], [0], [1], [0, 0, 1, 1], [], []>} : vector<16x144xbf16>, vector<144x304xbf16>, vector<16x304xf32> -> vector<16x304xf32>
    %c0_16 = arith.constant 0 : index
    %c0_17 = arith.constant 0 : index
    %23 = vector.load %arg3[%c0_16, %c0_17] : memref<16x1xf32, #tpu.memory_space<vmem>>, vector<16x1xf32>
    %24 = vector.broadcast %23 : vector<16x1xf32> to vector<16x304xf32>
    %25 = arith.addf %22, %24 : vector<16x304xf32>
    %cst_18 = arith.constant 1.000000e-01 : f32
    %26 = vector.broadcast %cst_18 : f32 to vector<16x304xf32>
    %27 = arith.mulf %26, %25 : vector<16x304xf32>
    %28 = arith.maximumf %25, %27 : vector<16x304xf32>
    %c0_19 = arith.constant 0 : index
    %c0_20 = arith.constant 0 : index
    %29 = vector.load %arg4[%c0_19, %c0_20] : memref<1x304xf32, #tpu.memory_space<vmem>>, vector<1x304xf32>
    %30 = vector.broadcast %29 : vector<1x304xf32> to vector<16x304xf32>
    %31 = arith.mulf %28, %30 : vector<16x304xf32>
    %cst_21 = arith.constant 0.000000e+00 : bf16
    %32 = vector.broadcast %cst_21 : bf16 to vector<1x16x342xbf16>
    %c0_22 = arith.constant 0 : index
    %c0_23 = arith.constant 0 : index
    %c0_24 = arith.constant 0 : index
    %33 = vector.load %arg5[%c0_22, %c0_23, %c0_24] : memref<1x16x342xbf16, #tpu.memory_space<vmem>>, vector<1x16x342xbf16>
    tpu.vector_store %arg5[%c0_22, %c0_23, %c0_24], %32 {strides = array<i32>} : memref<1x16x342xbf16, #tpu.memory_space<vmem>>, vector<1x16x342xbf16>,
    %34 = arith.truncf %31 : vector<16x304xf32> to vector<16x304xbf16>
    %c0_25 = arith.constant 0 : index
    %c0_26 = arith.constant 0 : index
    %c37 = arith.constant 37 : index
    %35 = vector.load %arg5[%c0_25, %c0_26, %c37] : memref<1x16x342xbf16, #tpu.memory_space<vmem>>, vector<1x16x304xbf16>
    %36 = vector.shape_cast %35 : vector<1x16x304xbf16> to vector<16x304xbf16>
    %37 = vector.shape_cast %34 : vector<16x304xbf16> to vector<1x16x304xbf16>
    tpu.vector_store %arg5[%c0_25, %c0_26, %c37], %37 {strides = array<i32>} : memref<1x16x342xbf16, #tpu.memory_space<vmem>>, vector<1x16x304xbf16>,
    return
  }
  func.func @transform_0(%arg0: i32) -> (i32, i32, i32) {
    %c0_i32 = arith.constant 0 : i32
    %c0_i32_0 = arith.constant 0 : i32
    %c0_i32_1 = arith.constant 0 : i32
    return %arg0, %c0_i32, %c0_i32_0 : i32, i32, i32
  }
  func.func @transform_1(%arg0: i32) -> (i32, i32) {
    %c0_i32 = arith.constant 0 : i32
    %c0_i32_0 = arith.constant 0 : i32
    %c0_i32_1 = arith.constant 0 : i32
    return %c0_i32, %c0_i32_0 : i32, i32
  }
  func.func @transform_2(%arg0: i32) -> (i32, i32) {
    %c0_i32 = arith.constant 0 : i32
    %c0_i32_0 = arith.constant 0 : i32
    %c0_i32_1 = arith.constant 0 : i32
    return %c0_i32, %c0_i32_0 : i32, i32
  }
  func.func @transform_3(%arg0: i32) -> (i32, i32) {
    %c0_i32 = arith.constant 0 : i32
    %c0_i32_0 = arith.constant 0 : i32
    %c0_i32_1 = arith.constant 0 : i32
    return %c0_i32, %c0_i32_0 : i32, i32
  }
  func.func @transform_4(%arg0: i32) -> (i32, i32, i32) {
    %c0_i32 = arith.constant 0 : i32
    %c0_i32_0 = arith.constant 0 : i32
    %c0_i32_1 = arith.constant 0 : i32
    return %arg0, %c0_i32, %c0_i32_0 : i32, i32, i32
  }
}

module attributes {stable_mosaic.version = 11 : i64} {
  func.func @_conv_kernel(%arg0: i32, %arg1: memref<1x16x342xbf16, #tpu.memory_space<vmem>>, %arg2: memref<1x8x342xbf16, #tpu.memory_space<vmem>>, %arg3: memref<16x216xbf16, #tpu.memory_space<vmem>>, %arg4: memref<16x1xf32, #tpu.memory_space<vmem>>, %arg5: memref<1x304xf32, #tpu.memory_space<vmem>>, %arg6: memref<1x16x342xbf16, #tpu.memory_space<vmem>>, %arg7: memref<216x304xbf16, #tpu.memory_space<vmem>>) attributes {dimension_semantics = [#tpu.dimension_semantics<parallel>], iteration_bounds = array<i64: 2>, scalar_prefetch = 0 : i64, scratch_operands = 1 : i64, tpu.core_type = #tpu.core_type<tc>, window_params = [{transform_indices = @transform_0, window_bounds = array<i64: 1, 16, 342>}, {transform_indices = @transform_1, window_bounds = array<i64: 1, 8, 342>}, {pipeline_mode = #tpu.pipeline_mode<synchronous>, transform_indices = @transform_2, window_bounds = array<i64: 16, 216>}, {pipeline_mode = #tpu.pipeline_mode<synchronous>, transform_indices = @transform_3, window_bounds = array<i64: 16, 1>}, {pipeline_mode = #tpu.pipeline_mode<synchronous>, transform_indices = @transform_4, window_bounds = array<i64: 1, 304>}, {transform_indices = @transform_5, window_bounds = array<i64: 1, 16, 342>}]} {
    %c0 = arith.constant 0 : index
    %c0_0 = arith.constant 0 : index
    %c0_1 = arith.constant 0 : index
    %0 = vector.load %arg1[%c0, %c0_0, %c0_1] : memref<1x16x342xbf16, #tpu.memory_space<vmem>>, vector<1x16x342xbf16>
    %1 = vector.shape_cast %0 : vector<1x16x342xbf16> to vector<16x342xbf16>
    %2 = vector.extract_strided_slice %1 {offsets = [0, 0], sizes = [16, 304], strides = [1, 1]} : vector<16x342xbf16> to vector<16x304xbf16>
    %c0_2 = arith.constant 0 : index
    %c0_3 = arith.constant 0 : index
    %3 = vector.load %arg7[%c0_2, %c0_3] : memref<216x304xbf16, #tpu.memory_space<vmem>>, vector<16x304xbf16>
    tpu.vector_store %arg7[%c0_2, %c0_3], %2 {strides = array<i32>} : memref<216x304xbf16, #tpu.memory_space<vmem>>, vector<16x304xbf16>,
    %4 = vector.extract_strided_slice %1 {offsets = [0, 1], sizes = [16, 304], strides = [1, 1]} : vector<16x342xbf16> to vector<16x304xbf16>
    %c16 = arith.constant 16 : index
    %c0_4 = arith.constant 0 : index
    %5 = vector.load %arg7[%c16, %c0_4] : memref<216x304xbf16, #tpu.memory_space<vmem>>, vector<16x304xbf16>
    tpu.vector_store %arg7[%c16, %c0_4], %4 {strides = array<i32>} : memref<216x304xbf16, #tpu.memory_space<vmem>>, vector<16x304xbf16>,
    %6 = vector.extract_strided_slice %1 {offsets = [0, 2], sizes = [16, 304], strides = [1, 1]} : vector<16x342xbf16> to vector<16x304xbf16>
    %c32 = arith.constant 32 : index
    %c0_5 = arith.constant 0 : index
    %7 = vector.load %arg7[%c32, %c0_5] : memref<216x304xbf16, #tpu.memory_space<vmem>>, vector<16x304xbf16>
    tpu.vector_store %arg7[%c32, %c0_5], %6 {strides = array<i32>} : memref<216x304xbf16, #tpu.memory_space<vmem>>, vector<16x304xbf16>,
    %8 = vector.extract_strided_slice %1 {offsets = [0, 18], sizes = [16, 304], strides = [1, 1]} : vector<16x342xbf16> to vector<16x304xbf16>
    %c48 = arith.constant 48 : index
    %c0_6 = arith.constant 0 : index
    %9 = vector.load %arg7[%c48, %c0_6] : memref<216x304xbf16, #tpu.memory_space<vmem>>, vector<16x304xbf16>
    tpu.vector_store %arg7[%c48, %c0_6], %8 {strides = array<i32>} : memref<216x304xbf16, #tpu.memory_space<vmem>>, vector<16x304xbf16>,
    %10 = vector.extract_strided_slice %1 {offsets = [0, 19], sizes = [16, 304], strides = [1, 1]} : vector<16x342xbf16> to vector<16x304xbf16>
    %c64 = arith.constant 64 : index
    %c0_7 = arith.constant 0 : index
    %11 = vector.load %arg7[%c64, %c0_7] : memref<216x304xbf16, #tpu.memory_space<vmem>>, vector<16x304xbf16>
    tpu.vector_store %arg7[%c64, %c0_7], %10 {strides = array<i32>} : memref<216x304xbf16, #tpu.memory_space<vmem>>, vector<16x304xbf16>,
    %12 = vector.extract_strided_slice %1 {offsets = [0, 20], sizes = [16, 304], strides = [1, 1]} : vector<16x342xbf16> to vector<16x304xbf16>
    %c80 = arith.constant 80 : index
    %c0_8 = arith.constant 0 : index
    %13 = vector.load %arg7[%c80, %c0_8] : memref<216x304xbf16, #tpu.memory_space<vmem>>, vector<16x304xbf16>
    tpu.vector_store %arg7[%c80, %c0_8], %12 {strides = array<i32>} : memref<216x304xbf16, #tpu.memory_space<vmem>>, vector<16x304xbf16>,
    %14 = vector.extract_strided_slice %1 {offsets = [0, 36], sizes = [16, 304], strides = [1, 1]} : vector<16x342xbf16> to vector<16x304xbf16>
    %c96 = arith.constant 96 : index
    %c0_9 = arith.constant 0 : index
    %15 = vector.load %arg7[%c96, %c0_9] : memref<216x304xbf16, #tpu.memory_space<vmem>>, vector<16x304xbf16>
    tpu.vector_store %arg7[%c96, %c0_9], %14 {strides = array<i32>} : memref<216x304xbf16, #tpu.memory_space<vmem>>, vector<16x304xbf16>,
    %16 = vector.extract_strided_slice %1 {offsets = [0, 37], sizes = [16, 304], strides = [1, 1]} : vector<16x342xbf16> to vector<16x304xbf16>
    %c112 = arith.constant 112 : index
    %c0_10 = arith.constant 0 : index
    %17 = vector.load %arg7[%c112, %c0_10] : memref<216x304xbf16, #tpu.memory_space<vmem>>, vector<16x304xbf16>
    tpu.vector_store %arg7[%c112, %c0_10], %16 {strides = array<i32>} : memref<216x304xbf16, #tpu.memory_space<vmem>>, vector<16x304xbf16>,
    %18 = vector.extract_strided_slice %1 {offsets = [0, 38], sizes = [16, 304], strides = [1, 1]} : vector<16x342xbf16> to vector<16x304xbf16>
    %c128 = arith.constant 128 : index
    %c0_11 = arith.constant 0 : index
    %19 = vector.load %arg7[%c128, %c0_11] : memref<216x304xbf16, #tpu.memory_space<vmem>>, vector<16x304xbf16>
    tpu.vector_store %arg7[%c128, %c0_11], %18 {strides = array<i32>} : memref<216x304xbf16, #tpu.memory_space<vmem>>, vector<16x304xbf16>,
    %c0_12 = arith.constant 0 : index
    %c0_13 = arith.constant 0 : index
    %c0_14 = arith.constant 0 : index
    %20 = vector.load %arg2[%c0_12, %c0_13, %c0_14] : memref<1x8x342xbf16, #tpu.memory_space<vmem>>, vector<1x8x342xbf16>
    %21 = vector.shape_cast %20 : vector<1x8x342xbf16> to vector<8x342xbf16>
    %22 = vector.extract_strided_slice %21 {offsets = [0, 0], sizes = [8, 304], strides = [1, 1]} : vector<8x342xbf16> to vector<8x304xbf16>
    %c144 = arith.constant 144 : index
    %c0_15 = arith.constant 0 : index
    %23 = vector.load %arg7[%c144, %c0_15] : memref<216x304xbf16, #tpu.memory_space<vmem>>, vector<8x304xbf16>
    tpu.vector_store %arg7[%c144, %c0_15], %22 {strides = array<i32>} : memref<216x304xbf16, #tpu.memory_space<vmem>>, vector<8x304xbf16>,
    %24 = vector.extract_strided_slice %21 {offsets = [0, 1], sizes = [8, 304], strides = [1, 1]} : vector<8x342xbf16> to vector<8x304xbf16>
    %c152 = arith.constant 152 : index
    %c0_16 = arith.constant 0 : index
    %25 = vector.load %arg7[%c152, %c0_16] : memref<216x304xbf16, #tpu.memory_space<vmem>>, vector<8x304xbf16>
    tpu.vector_store %arg7[%c152, %c0_16], %24 {strides = array<i32>} : memref<216x304xbf16, #tpu.memory_space<vmem>>, vector<8x304xbf16>,
    %26 = vector.extract_strided_slice %21 {offsets = [0, 2], sizes = [8, 304], strides = [1, 1]} : vector<8x342xbf16> to vector<8x304xbf16>
    %c160 = arith.constant 160 : index
    %c0_17 = arith.constant 0 : index
    %27 = vector.load %arg7[%c160, %c0_17] : memref<216x304xbf16, #tpu.memory_space<vmem>>, vector<8x304xbf16>
    tpu.vector_store %arg7[%c160, %c0_17], %26 {strides = array<i32>} : memref<216x304xbf16, #tpu.memory_space<vmem>>, vector<8x304xbf16>,
    %28 = vector.extract_strided_slice %21 {offsets = [0, 18], sizes = [8, 304], strides = [1, 1]} : vector<8x342xbf16> to vector<8x304xbf16>
    %c168 = arith.constant 168 : index
    %c0_18 = arith.constant 0 : index
    %29 = vector.load %arg7[%c168, %c0_18] : memref<216x304xbf16, #tpu.memory_space<vmem>>, vector<8x304xbf16>
    tpu.vector_store %arg7[%c168, %c0_18], %28 {strides = array<i32>} : memref<216x304xbf16, #tpu.memory_space<vmem>>, vector<8x304xbf16>,
    %30 = vector.extract_strided_slice %21 {offsets = [0, 19], sizes = [8, 304], strides = [1, 1]} : vector<8x342xbf16> to vector<8x304xbf16>
    %c176 = arith.constant 176 : index
    %c0_19 = arith.constant 0 : index
    %31 = vector.load %arg7[%c176, %c0_19] : memref<216x304xbf16, #tpu.memory_space<vmem>>, vector<8x304xbf16>
    tpu.vector_store %arg7[%c176, %c0_19], %30 {strides = array<i32>} : memref<216x304xbf16, #tpu.memory_space<vmem>>, vector<8x304xbf16>,
    %32 = vector.extract_strided_slice %21 {offsets = [0, 20], sizes = [8, 304], strides = [1, 1]} : vector<8x342xbf16> to vector<8x304xbf16>
    %c184 = arith.constant 184 : index
    %c0_20 = arith.constant 0 : index
    %33 = vector.load %arg7[%c184, %c0_20] : memref<216x304xbf16, #tpu.memory_space<vmem>>, vector<8x304xbf16>
    tpu.vector_store %arg7[%c184, %c0_20], %32 {strides = array<i32>} : memref<216x304xbf16, #tpu.memory_space<vmem>>, vector<8x304xbf16>,
    %34 = vector.extract_strided_slice %21 {offsets = [0, 36], sizes = [8, 304], strides = [1, 1]} : vector<8x342xbf16> to vector<8x304xbf16>
    %c192 = arith.constant 192 : index
    %c0_21 = arith.constant 0 : index
    %35 = vector.load %arg7[%c192, %c0_21] : memref<216x304xbf16, #tpu.memory_space<vmem>>, vector<8x304xbf16>
    tpu.vector_store %arg7[%c192, %c0_21], %34 {strides = array<i32>} : memref<216x304xbf16, #tpu.memory_space<vmem>>, vector<8x304xbf16>,
    %36 = vector.extract_strided_slice %21 {offsets = [0, 37], sizes = [8, 304], strides = [1, 1]} : vector<8x342xbf16> to vector<8x304xbf16>
    %c200 = arith.constant 200 : index
    %c0_22 = arith.constant 0 : index
    %37 = vector.load %arg7[%c200, %c0_22] : memref<216x304xbf16, #tpu.memory_space<vmem>>, vector<8x304xbf16>
    tpu.vector_store %arg7[%c200, %c0_22], %36 {strides = array<i32>} : memref<216x304xbf16, #tpu.memory_space<vmem>>, vector<8x304xbf16>,
    %38 = vector.extract_strided_slice %21 {offsets = [0, 38], sizes = [8, 304], strides = [1, 1]} : vector<8x342xbf16> to vector<8x304xbf16>
    %c208 = arith.constant 208 : index
    %c0_23 = arith.constant 0 : index
    %39 = vector.load %arg7[%c208, %c0_23] : memref<216x304xbf16, #tpu.memory_space<vmem>>, vector<8x304xbf16>
    tpu.vector_store %arg7[%c208, %c0_23], %38 {strides = array<i32>} : memref<216x304xbf16, #tpu.memory_space<vmem>>, vector<8x304xbf16>,
    %c0_24 = arith.constant 0 : index
    %c0_25 = arith.constant 0 : index
    %40 = vector.load %arg3[%c0_24, %c0_25] : memref<16x216xbf16, #tpu.memory_space<vmem>>, vector<16x216xbf16>
    %c0_26 = arith.constant 0 : index
    %c0_27 = arith.constant 0 : index
    %41 = vector.load %arg7[%c0_26, %c0_27] : memref<216x304xbf16, #tpu.memory_space<vmem>>, vector<216x304xbf16>
    %cst = arith.constant dense<0.000000e+00> : vector<16x304xf32>
    %42 = tpu.matmul %40, %41, %cst {dimension_numbers = #tpu.dot_dimension_numbers<[1], [0], [0], [1], [0, 0, 1, 1], [], []>} : vector<16x216xbf16>, vector<216x304xbf16>, vector<16x304xf32> -> vector<16x304xf32>
    %c0_28 = arith.constant 0 : index
    %c0_29 = arith.constant 0 : index
    %43 = vector.load %arg4[%c0_28, %c0_29] : memref<16x1xf32, #tpu.memory_space<vmem>>, vector<16x1xf32>
    %44 = vector.broadcast %43 : vector<16x1xf32> to vector<16x304xf32>
    %45 = arith.addf %42, %44 : vector<16x304xf32>
    %cst_30 = arith.constant 1.000000e-01 : f32
    %46 = vector.broadcast %cst_30 : f32 to vector<16x304xf32>
    %47 = arith.mulf %46, %45 : vector<16x304xf32>
    %48 = arith.maximumf %45, %47 : vector<16x304xf32>
    %c0_31 = arith.constant 0 : index
    %c0_32 = arith.constant 0 : index
    %49 = vector.load %arg5[%c0_31, %c0_32] : memref<1x304xf32, #tpu.memory_space<vmem>>, vector<1x304xf32>
    %50 = vector.broadcast %49 : vector<1x304xf32> to vector<16x304xf32>
    %51 = arith.mulf %48, %50 : vector<16x304xf32>
    %cst_33 = arith.constant 0.000000e+00 : bf16
    %52 = vector.broadcast %cst_33 : bf16 to vector<1x16x342xbf16>
    %c0_34 = arith.constant 0 : index
    %c0_35 = arith.constant 0 : index
    %c0_36 = arith.constant 0 : index
    %53 = vector.load %arg6[%c0_34, %c0_35, %c0_36] : memref<1x16x342xbf16, #tpu.memory_space<vmem>>, vector<1x16x342xbf16>
    tpu.vector_store %arg6[%c0_34, %c0_35, %c0_36], %52 {strides = array<i32>} : memref<1x16x342xbf16, #tpu.memory_space<vmem>>, vector<1x16x342xbf16>,
    %54 = arith.truncf %51 : vector<16x304xf32> to vector<16x304xbf16>
    %c0_37 = arith.constant 0 : index
    %c0_38 = arith.constant 0 : index
    %c37 = arith.constant 37 : index
    %55 = vector.load %arg6[%c0_37, %c0_38, %c37] : memref<1x16x342xbf16, #tpu.memory_space<vmem>>, vector<1x16x304xbf16>
    %56 = vector.shape_cast %55 : vector<1x16x304xbf16> to vector<16x304xbf16>
    %57 = vector.shape_cast %54 : vector<16x304xbf16> to vector<1x16x304xbf16>
    tpu.vector_store %arg6[%c0_37, %c0_38, %c37], %57 {strides = array<i32>} : memref<1x16x342xbf16, #tpu.memory_space<vmem>>, vector<1x16x304xbf16>,
    return
  }
  func.func @transform_0(%arg0: i32) -> (i32, i32, i32) {
    %c0_i32 = arith.constant 0 : i32
    %c0_i32_0 = arith.constant 0 : i32
    %c0_i32_1 = arith.constant 0 : i32
    return %arg0, %c0_i32, %c0_i32_0 : i32, i32, i32
  }
  func.func @transform_1(%arg0: i32) -> (i32, i32, i32) {
    %c0_i32 = arith.constant 0 : i32
    %c0_i32_0 = arith.constant 0 : i32
    %c0_i32_1 = arith.constant 0 : i32
    return %arg0, %c0_i32, %c0_i32_0 : i32, i32, i32
  }
  func.func @transform_2(%arg0: i32) -> (i32, i32) {
    %c0_i32 = arith.constant 0 : i32
    %c0_i32_0 = arith.constant 0 : i32
    %c0_i32_1 = arith.constant 0 : i32
    return %c0_i32, %c0_i32_0 : i32, i32
  }
  func.func @transform_3(%arg0: i32) -> (i32, i32) {
    %c0_i32 = arith.constant 0 : i32
    %c0_i32_0 = arith.constant 0 : i32
    %c0_i32_1 = arith.constant 0 : i32
    return %c0_i32, %c0_i32_0 : i32, i32
  }
  func.func @transform_4(%arg0: i32) -> (i32, i32) {
    %c0_i32 = arith.constant 0 : i32
    %c0_i32_0 = arith.constant 0 : i32
    %c0_i32_1 = arith.constant 0 : i32
    return %c0_i32, %c0_i32_0 : i32, i32
  }
  func.func @transform_5(%arg0: i32) -> (i32, i32, i32) {
    %c0_i32 = arith.constant 0 : i32
    %c0_i32_0 = arith.constant 0 : i32
    %c0_i32_1 = arith.constant 0 : i32
    return %arg0, %c0_i32, %c0_i32_0 : i32, i32, i32
  }
}

</mosaic_0001>

<llo_original>
// kernel: bsn_unet_forward.16
$region0: #{bsn_unet_forward.16}
  #allocation0 [shape = 'u32[]', space=smem, size = 0x4, offset = 0x4, fixed_abs, tag = 'smem constant byte address 0x4 - core index']
  #allocation1 [shape = 'u32[72,128]{1,0:T(1,128)}', space=vmem, size = 0x9000, scoped, tag = 'internal scratch']
  #allocation2 [shape = 'bf16[72,88]{1,0:T(8,128)(2,1)}', space=vmem, size = 0x4800, scoped, tag = 'scratch operand']
  %s0 = inlined_call_operand.vmem [shape: bf16[2,8,110], index: 0, kind: input, shape index: {}]
  %s1 = inlined_call_operand.vmem [shape: bf16[8,72], index: 1, kind: input, shape index: {}]
  %s2 = inlined_call_operand.vmem [shape: f32[8,1], index: 2, kind: input, shape index: {}]
  %s3 = inlined_call_operand.vmem [shape: f32[1,88], index: 3, kind: input, shape index: {}]
  %s4 = inlined_call_operand.vmem [shape: bf16[2,8,110], index: 4, kind: output, shape index: {}]
  %s5 = sld [smem:[#allocation0]]
  $region49: #{bsn_unet_forward.16} parent=0
    _
  %s7 = ssub.s32 1, %s5
  %s8 = scalar_select 0, %s7, %s5
  loop: start=0, step=1, limit=4
  $region2: #{bsn_unet_forward.16} parent=0 // loop_pre_header
    _
  $region3: #{bsn_unet_forward.16} parent=0 // loop_header
    %s10 = sphi 0, %s14
    %p11 = scmp.ge.s32.totalorder %s10, 4
    %s20 = sphi 0, %s22
    %s23 = sphi 0, %s20
    %s24 = sphi 0, %s23
    %s40 = sphi 0, %s24
    %s44 = sphi 0, %s44
    %s46 = sphi 0, %s44
    %s47 = sphi 0, %s46
    %s61 = sphi 0, %s47
    %s65 = sphi 0, %s65
    %s67 = sphi 0, %s65
    %s68 = sphi 0, %s67
    %s82 = sphi 0, %s68
    %s86 = sphi 0, %s86
    %s88 = sphi 0, %s86
    %s89 = sphi 0, %s88
    %s103 = sphi 0, %s89
    %s109 = sphi 0, %s111
    %s112 = sphi 0, %s109
    %s113 = sphi 0, %s112
    %s129 = sphi 0, %s113
  $region4: #{bsn_unet_forward.16} parent=0 // loop_header_branch
    %13 = sbr.rel (%p11) target = $region8
  $region5: #{bsn_unet_forward.16} parent=0 // loop_body
    %s15 = ssub.s32 %s10, 1
    %s16 = ssub.s32 %s10, 2
    %s17 = sadd.s32 %s10, 1
    %s18 = ssub.s32 %s10, %s17
    %p19 = scmp.eq.s32.totalorder %s18, 0
    %s21 = sadd.s32 %s20, 1
    %s22 = scalar_select %p19, %s20, %s21
    %p25 = pneg %p19
    %p26 = scmp.eq.s32.totalorder %s10, 1
    %p27 = por %p25, %p26
    %p28 = scmp.ne.s32.totalorder %s20, %s23
    %p29 = scmp.eq.s32.totalorder %s10, 0
    %p30 = por %p28, %p29
    %p31 = scmp.ne.s32.totalorder %s20, %s23
    %p32 = scmp.eq.s32.totalorder %s15, 1
    %p33 = por %p31, %p32
    %p34 = scmp.ne.s32.totalorder %s23, %s24
    %p35 = scmp.eq.s32.totalorder %s15, 0
    %p36 = por %p34, %p35
    %p37 = scmp.ne.s32.totalorder %s23, %s24
    %p38 = scmp.eq.s32.totalorder %s16, 1
    %p39 = por %p37, %p38
    %p41 = scmp.ne.s32.totalorder %s24, %s40
    %p42 = scmp.eq.s32.totalorder %s16, 0
    %p43 = por %p41, %p42
    %s45 = sadd.s32 %s44, 1
    %p48 = scmp.eq.s32.totalorder %s10, 1
    %p49 = scmp.ne.s32.totalorder %s44, %s46
    %p50 = scmp.eq.s32.totalorder %s10, 0
    %p51 = por %p49, %p50
    %p52 = scmp.ne.s32.totalorder %s44, %s46
    %p53 = scmp.eq.s32.totalorder %s15, 1
    %p54 = por %p52, %p53
    %p55 = scmp.ne.s32.totalorder %s46, %s47
    %p56 = scmp.eq.s32.totalorder %s15, 0
    %p57 = por %p55, %p56
    %p58 = scmp.ne.s32.totalorder %s46, %s47
    %p59 = scmp.eq.s32.totalorder %s16, 1
    %p60 = por %p58, %p59
    %p62 = scmp.ne.s32.totalorder %s47, %s61
    %p63 = scmp.eq.s32.totalorder %s16, 0
    %p64 = por %p62, %p63
    %s66 = sadd.s32 %s65, 1
    %p69 = scmp.eq.s32.totalorder %s10, 1
    %p70 = scmp.ne.s32.totalorder %s65, %s67
    %p71 = scmp.eq.s32.totalorder %s10, 0
    %p72 = por %p70, %p71
    %p73 = scmp.ne.s32.totalorder %s65, %s67
    %p74 = scmp.eq.s32.totalorder %s15, 1
    %p75 = por %p73, %p74
    %p76 = scmp.ne.s32.totalorder %s67, %s68
    %p77 = scmp.eq.s32.totalorder %s15, 0
    %p78 = por %p76, %p77
    %p79 = scmp.ne.s32.totalorder %s67, %s68
    %p80 = scmp.eq.s32.totalorder %s16, 1
    %p81 = por %p79, %p80
    %p83 = scmp.ne.s32.totalorder %s68, %s82
    %p84 = scmp.eq.s32.totalorder %s16, 0
    %p85 = por %p83, %p84
    %s87 = sadd.s32 %s86, 1
    %p90 = scmp.eq.s32.totalorder %s10, 1
    %p91 = scmp.ne.s32.totalorder %s86, %s88
    %p92 = scmp.eq.s32.totalorder %s10, 0
    %p93 = por %p91, %p92
    %p94 = scmp.ne.s32.totalorder %s86, %s88
    %p95 = scmp.eq.s32.totalorder %s15, 1
    %p96 = por %p94, %p95
    %p97 = scmp.ne.s32.totalorder %s88, %s89
    %p98 = scmp.eq.s32.totalorder %s15, 0
    %p99 = por %p97, %p98
    %p100 = scmp.ne.s32.totalorder %s88, %s89
    %p101 = scmp.eq.s32.totalorder %s16, 1
    %p102 = por %p100, %p101
    %p104 = scmp.ne.s32.totalorder %s89, %s103
    %p105 = scmp.eq.s32.totalorder %s16, 0
    %p106 = por %p104, %p105
    %s107 = ssub.s32 %s10, %s17
    %p108 = scmp.eq.s32.totalorder %s107, 0
    %s110 = sadd.s32 %s109, 1
    %s111 = scalar_select %p108, %s109, %s110
    %p114 = pneg %p108
    %p115 = scmp.eq.s32.totalorder %s10, 1
    %p116 = por %p114, %p115
    %p117 = scmp.ne.s32.totalorder %s109, %s112
    %p118 = scmp.eq.s32.totalorder %s10, 0
    %p119 = por %p117, %p118
    %p120 = scmp.ne.s32.totalorder %s109, %s112
    %p121 = scmp.eq.s32.totalorder %s15, 1
    %p122 = por %p120, %p121
    %p123 = scmp.ne.s32.totalorder %s112, %s113
    %p124 = scmp.eq.s32.totalorder %s15, 0
    %p125 = por %p123, %p124
    %p126 = scmp.ne.s32.totalorder %s112, %s113
    %p127 = scmp.eq.s32.totalorder %s16, 1
    %p128 = por %p126, %p127
    %p130 = scmp.ne.s32.totalorder %s113, %s129
    %p131 = scmp.eq.s32.totalorder %s16, 0
    %p132 = por %p130, %p131
    %p133 = scmp.le.s32.totalorder 1, %s10
    %p134 = scmp.lt.s32.totalorder %s10, 3
    %p135 = pnand %p133, %p134
    %p136 = pneg %p135
    // Predicated region
    $region9: #{bsn_unet_forward.16} parent=5 // pred_check
      _
    $region10: #{bsn_unet_forward.16} parent=5 // pred_check_branch
      %138 = sbr.rel (%p135) target = $region12
    $region11: #{bsn_unet_forward.16} parent=5 // pred_region
      %s139 = ssub.s32 %s10, 1
      // Predicated region
      $region13: #{bsn_unet_forward.16} parent=11 // pred_check
        %p140 = pneg %p57
      $region14: #{bsn_unet_forward.16} parent=11 // pred_check_branch
        %142 = sbr.rel (%p140) target = $region16
      $region15: #{bsn_unet_forward.16} parent=11 // pred_region
        _
      $region16: #{bsn_unet_forward.16} parent=11 // pred_fallthru
        _
      // Predicated region
      $region17: #{bsn_unet_forward.16} parent=11 // pred_check
        %p143 = pneg %p78
      $region18: #{bsn_unet_forward.16} parent=11 // pred_check_branch
        %145 = sbr.rel (%p143) target = $region20
      $region19: #{bsn_unet_forward.16} parent=11 // pred_region
        _
      $region20: #{bsn_unet_forward.16} parent=11 // pred_fallthru
        _
      // Predicated region
      $region21: #{bsn_unet_forward.16} parent=11 // pred_check
        %p146 = pneg %p99
      $region22: #{bsn_unet_forward.16} parent=11 // pred_check_branch
        %148 = sbr.rel (%p146) target = $region24
      $region23: #{bsn_unet_forward.16} parent=11 // pred_region
        _
      $region24: #{bsn_unet_forward.16} parent=11 // pred_fallthru
        _
    $region12: #{bsn_unet_forward.16} parent=5 // pred_fallthru
      _
    %p149 = scmp.lt.s32.totalorder %s10, 2
    // Predicated region
    $region25: #{bsn_unet_forward.16} parent=5 // pred_check
      %p150 = pneg %p149
    $region26: #{bsn_unet_forward.16} parent=5 // pred_check_branch
      %152 = sbr.rel (%p150) target = $region28
    $region27: #{bsn_unet_forward.16} parent=5 // pred_region
      // Predicated region
      $region29: #{bsn_unet_forward.16} parent=27 // pred_check
        %p153 = pneg %p30
      $region30: #{bsn_unet_forward.16} parent=27 // pred_check_branch
        %155 = sbr.rel (%p153) target = $region32
      $region31: #{bsn_unet_forward.16} parent=27 // pred_region
        %p156 = scmp.lt.s32.totalorder %s10, 1
        %s157 = scalar_select %p156, %s10, 1
        %s158 = smul.addr %s157, 4
        %s159 = scalar_lea.vmem %s0, %s158
      $region32: #{bsn_unet_forward.16} parent=27 // pred_fallthru
        _
    $region28: #{bsn_unet_forward.16} parent=5 // pred_fallthru
      _
    %p160 = scmp.le.s32.totalorder 1, %s10
    %p161 = scmp.lt.s32.totalorder %s10, 3
    %p162 = pnand %p160, %p161
    %p163 = pneg %p162
    // Predicated region
    $region33: #{bsn_unet_forward.16} parent=5 // pred_check
      _
    $region34: #{bsn_unet_forward.16} parent=5 // pred_check_branch
      %165 = sbr.rel (%p162) target = $region36
    $region35: #{bsn_unet_forward.16} parent=5 // pred_region
      %s166 = ssub.s32 %s10, 1
      %p167 = scmp.lt.s32.totalorder %s15, 1
      %s168 = scalar_select %p167, %s15, 1
      %s169 = smul.addr %s168, 4
      %s170 = scalar_lea.vmem %s0, %s169
      %p171 = pneg %p36
      %p172 = pneg %p33
      %p173 = pneg %p57
      %p174 = pneg %p54
      %p175 = pneg %p78
      %p176 = pneg %p75
      %p177 = pneg %p99
      %p178 = pneg %p96
      %p179 = pneg %p125
      %p180 = pneg %p122
      %p181 = scmp.lt.s32.totalorder %s15, 1
      %s182 = scalar_select %p181, %s15, 1
      %s183 = smul.addr %s182, 4
      %s184 = scalar_lea.vmem %s4, %s183
      %p185 = scmp.lt.s32.totalorder %s15, 1
      %s186 = scalar_select %p185, %s15, 1
      %s187 = smul.addr %s186, 4
      %s188 = scalar_lea.vmem %s0, %s187
      %p189 = scmp.lt.s32.totalorder %s15, 1
      %s190 = scalar_select %p189, %s15, 1
      %s191 = smul.addr %s190, 4
      %s192 = scalar_lea.vmem %s4, %s191
      %v194 = vld [vmem:[%s188] sm:$0xf]
      %vm195 = vcmask 715776
      %196 = vst.msk [vmem:[#allocation2] sm:$0xf] %vm195, %v194
      %198 = vrot.lane.b32.xlu0 %v194, 127
      %v199 = vpop.permute.xlu0 %198
      %201 = vst.msk [vmem:[#allocation2 + $0x4] sm:$0xf] %vm195, %v199
      %202 = vrot.lane.b32.xlu0 %v194, 126
      %v203 = vpop.permute.xlu0 %202
      %205 = vst.msk [vmem:[#allocation2 + $0x8] sm:$0xf] %vm195, %v203
      %206 = vrot.lane.b32.xlu0 %v194, 118
      %v207 = vpop.permute.xlu0 %206
      %209 = vst.msk [vmem:[#allocation2 + $0xc] sm:$0xf] %vm195, %v207
      %210 = vrot.lane.b32.xlu0 %v194, 117
      %v211 = vpop.permute.xlu0 %210
      %213 = vst.msk [vmem:[#allocation2 + $0x10] sm:$0xf] %vm195, %v211
      %214 = vrot.lane.b32.xlu0 %v194, 116
      %v215 = vpop.permute.xlu0 %214
      %217 = vst.msk [vmem:[#allocation2 + $0x14] sm:$0xf] %vm195, %v215
      %218 = vrot.lane.b32.xlu0 %v194, 108
      %v219 = vpop.permute.xlu0 %218
      %221 = vst.msk [vmem:[#allocation2 + $0x18] sm:$0xf] %vm195, %v219
      %222 = vrot.lane.b32.xlu0 %v194, 107
      %v223 = vpop.permute.xlu0 %222
      %225 = vst.msk [vmem:[#allocation2 + $0x1c] sm:$0xf] %vm195, %v223
      %226 = vrot.lane.b32.xlu0 %v194, 106
      %v227 = vpop.permute.xlu0 %226
      %229 = vst.msk [vmem:[#allocation2 + $0x20] sm:$0xf] %vm195, %v227
      %v230 = vld [vmem:[%s1] sm:$0xf]
      %v231 = vld [vmem:[#allocation2] sm:$0xf]
      %v232 = vld [vmem:[#allocation2 + $0x4] sm:$0xf]
      %v233 = vld [vmem:[#allocation2 + $0x8] sm:$0xf]
      %v234 = vld [vmem:[#allocation2 + $0xc] sm:$0xf]
      %v235 = vld [vmem:[#allocation2 + $0x10] sm:$0xf]
      %v236 = vld [vmem:[#allocation2 + $0x14] sm:$0xf]
      %v237 = vld [vmem:[#allocation2 + $0x18] sm:$0xf]
      %v238 = vld [vmem:[#allocation2 + $0x1c] sm:$0xf]
      %v239 = vld [vmem:[#allocation2 + $0x20] sm:$0xf]
      %v240 = vld [vmem:[%s2] sm:$0xff]
      %242 = vset.pattern.permute.xlu0 0
      %243 = vperm.xlu0 %242, %v240
      %v244 = vpop.permute.xlu0 %243
      %v255 = vunpack.c.l.b16 %v231
      %v256 = vunpack.c.l.b16 %v232
      %v257 = vunpack.c.l.b16 %v233
      %v258 = vunpack.c.l.b16 %v234
      %v259 = vunpack.c.l.b16 %v235
      %v260 = vunpack.c.l.b16 %v236
      %v261 = vunpack.c.l.b16 %v237
      %v262 = vunpack.c.l.b16 %v238
      %v263 = vunpack.c.l.b16 %v239
      %v264 = vpack.c.b16 %v256, %v255
      %v265 = vpack.c.b16 %v258, %v257
      %v266 = vpack.c.b16 %v260, %v259
      %v267 = vpack.c.b16 %v262, %v261
      %v268 = vpack.c.b16 %v263, %v263
      %vm273 = vcmask 588800
      %v275 = vsel %vm273, %v230, 0
      %vm277 = vcmask 1043456
      %v279 = vsel %vm277, %v268, 0
      %281 = vmatpush.bf16.msra.mxu0 0
      %282 = vmatpush.bf16.msra.mxu0 0
      %283 = vmatpush.bf16.msra.mxu0 0
      %284 = vmatpush.bf16.msra.mxu0 %v279
      %285 = vmatpush.bf16.msra.mxu0 %v267
      %286 = vmatpush.bf16.msra.mxu0 %v266
      %287 = vmatpush.bf16.msra.mxu0 %v265
      %288 = vmatpush.bf16.msra.mxu0 %v264
      %289 = vmatmul.bf16.gmra.mxu0 %v275
      %v290 = vpop.f32.mrf.mxu0
      %v291 = vadd.f32 %v244, %v290
      %v292 = vpop.f32.mrf.mxu0
      %293 = vdwg.mxu0
      %v294 = vmul.f32 %v291, 0.1
      %v295 = vmax.f32 %v291, %v294
      %v296 = vld [vmem:[%s3] sm:$0x1]
      %v298 = vperm.slane %v296, 0
      %v300 = vmul.f32 %v295, %v298
      %vm301 = vcmask 896000
      %302 = vst.msk [vmem:[%s192] sm:$0xf] %vm301, 0
      %v303 = vpack.c.bf16 %v300, %v300
      %305 = vrot.lane.b32.xlu0 %v303, 21
      %v306 = vpop.permute.xlu0 %305
      %vm308 = vcmask 887976
      %309 = vst.msk [vmem:[%s192] sm:$0xf] %vm308, %v306
      %p310 = scmp.lt.s32.totalorder %s15, 1
      %s311 = scalar_select %p310, %s15, 1
      %s312 = smul.addr %s311, 4
      %s313 = scalar_lea.vmem %s4, %s312
      // Predicated region
      $region37: #{bsn_unet_forward.16} parent=35 // pred_check
        %p314 = pneg %p122
      $region38: #{bsn_unet_forward.16} parent=35 // pred_check_branch
        %316 = sbr.rel (%p314) target = $region40
      $region39: #{bsn_unet_forward.16} parent=35 // pred_region
        _
      $region40: #{bsn_unet_forward.16} parent=35 // pred_fallthru
        _
    $region36: #{bsn_unet_forward.16} parent=5 // pred_fallthru
      _
    %p317 = scmp.le.s32.totalorder 2, %s10
    // Predicated region
    $region41: #{bsn_unet_forward.16} parent=5 // pred_check
      %p318 = pneg %p317
    $region42: #{bsn_unet_forward.16} parent=5 // pred_check_branch
      %320 = sbr.rel (%p318) target = $region44
    $region43: #{bsn_unet_forward.16} parent=5 // pred_region
      %s321 = ssub.s32 %s10, 2
      // Predicated region
      $region45: #{bsn_unet_forward.16} parent=43 // pred_check
        %p322 = pneg %p128
      $region46: #{bsn_unet_forward.16} parent=43 // pred_check_branch
        %324 = sbr.rel (%p322) target = $region48
      $region47: #{bsn_unet_forward.16} parent=43 // pred_region
        %p325 = scmp.lt.s32.totalorder %s16, 1
        %s326 = scalar_select %p325, %s16, 1
        %s327 = smul.addr %s326, 4
        %s328 = scalar_lea.vmem %s4, %s327
      $region48: #{bsn_unet_forward.16} parent=43 // pred_fallthru
        _
    $region44: #{bsn_unet_forward.16} parent=5 // pred_fallthru
      _
  $region6: #{bsn_unet_forward.16} parent=0 // loop_footer
    %s14 = sadd.s32 1, %s10
  $region7: #{bsn_unet_forward.16} parent=0 // loop_footer_branch
    %9 = sbr.rel target = $region3
  $region8: #{bsn_unet_forward.16} parent=0 // loop_exit
    _

// kernel: bsn_unet_forward.14
$region0: #{bsn_unet_forward.14}
  #allocation0 [shape = 'u32[]', space=smem, size = 0x4, offset = 0x4, fixed_abs, tag = 'smem constant byte address 0x4 - core index']
  #allocation1 [shape = 'u32[72,128]{1,0:T(1,128)}', space=vmem, size = 0x9000, scoped, tag = 'internal scratch']
  #allocation2 [shape = 'bf16[72,304]{1,0:T(8,128)(2,1)}', space=vmem, size = 0xd800, scoped, tag = 'scratch operand']
  %s0 = inlined_call_operand.vmem [shape: bf16[2,8,342], index: 0, kind: input, shape index: {}]
  %s1 = inlined_call_operand.vmem [shape: bf16[8,72], index: 1, kind: input, shape index: {}]
  %s2 = inlined_call_operand.vmem [shape: f32[8,1], index: 2, kind: input, shape index: {}]
  %s3 = inlined_call_operand.vmem [shape: f32[1,304], index: 3, kind: input, shape index: {}]
  %s4 = inlined_call_operand.vmem [shape: bf16[2,8,342], index: 4, kind: output, shape index: {}]
  %s5 = sld [smem:[#allocation0]]
  $region49: #{bsn_unet_forward.14} parent=0
    _
  %s7 = ssub.s32 1, %s5
  %s8 = scalar_select 0, %s7, %s5
  loop: start=0, step=1, limit=4
  $region2: #{bsn_unet_forward.14} parent=0 // loop_pre_header
    _
  $region3: #{bsn_unet_forward.14} parent=0 // loop_header
    %s10 = sphi 0, %s14
    %p11 = scmp.ge.s32.totalorder %s10, 4
    %s20 = sphi 0, %s22
    %s23 = sphi 0, %s20
    %s24 = sphi 0, %s23
    %s40 = sphi 0, %s24
    %s44 = sphi 0, %s44
    %s46 = sphi 0, %s44
    %s47 = sphi 0, %s46
    %s61 = sphi 0, %s47
    %s65 = sphi 0, %s65
    %s67 = sphi 0, %s65
    %s68 = sphi 0, %s67
    %s82 = sphi 0, %s68
    %s86 = sphi 0, %s86
    %s88 = sphi 0, %s86
    %s89 = sphi 0, %s88
    %s103 = sphi 0, %s89
    %s109 = sphi 0, %s111
    %s112 = sphi 0, %s109
    %s113 = sphi 0, %s112
    %s129 = sphi 0, %s113
  $region4: #{bsn_unet_forward.14} parent=0 // loop_header_branch
    %13 = sbr.rel (%p11) target = $region8
  $region5: #{bsn_unet_forward.14} parent=0 // loop_body
    %s15 = ssub.s32 %s10, 1
    %s16 = ssub.s32 %s10, 2
    %s17 = sadd.s32 %s10, 1
    %s18 = ssub.s32 %s10, %s17
    %p19 = scmp.eq.s32.totalorder %s18, 0
    %s21 = sadd.s32 %s20, 1
    %s22 = scalar_select %p19, %s20, %s21
    %p25 = pneg %p19
    %p26 = scmp.eq.s32.totalorder %s10, 1
    %p27 = por %p25, %p26
    %p28 = scmp.ne.s32.totalorder %s20, %s23
    %p29 = scmp.eq.s32.totalorder %s10, 0
    %p30 = por %p28, %p29
    %p31 = scmp.ne.s32.totalorder %s20, %s23
    %p32 = scmp.eq.s32.totalorder %s15, 1
    %p33 = por %p31, %p32
    %p34 = scmp.ne.s32.totalorder %s23, %s24
    %p35 = scmp.eq.s32.totalorder %s15, 0
    %p36 = por %p34, %p35
    %p37 = scmp.ne.s32.totalorder %s23, %s24
    %p38 = scmp.eq.s32.totalorder %s16, 1
    %p39 = por %p37, %p38
    %p41 = scmp.ne.s32.totalorder %s24, %s40
    %p42 = scmp.eq.s32.totalorder %s16, 0
    %p43 = por %p41, %p42
    %s45 = sadd.s32 %s44, 1
    %p48 = scmp.eq.s32.totalorder %s10, 1
    %p49 = scmp.ne.s32.totalorder %s44, %s46
    %p50 = scmp.eq.s32.totalorder %s10, 0
    %p51 = por %p49, %p50
    %p52 = scmp.ne.s32.totalorder %s44, %s46
    %p53 = scmp.eq.s32.totalorder %s15, 1
    %p54 = por %p52, %p53
    %p55 = scmp.ne.s32.totalorder %s46, %s47
    %p56 = scmp.eq.s32.totalorder %s15, 0
    %p57 = por %p55, %p56
    %p58 = scmp.ne.s32.totalorder %s46, %s47
    %p59 = scmp.eq.s32.totalorder %s16, 1
    %p60 = por %p58, %p59
    %p62 = scmp.ne.s32.totalorder %s47, %s61
    %p63 = scmp.eq.s32.totalorder %s16, 0
    %p64 = por %p62, %p63
    %s66 = sadd.s32 %s65, 1
    %p69 = scmp.eq.s32.totalorder %s10, 1
    %p70 = scmp.ne.s32.totalorder %s65, %s67
    %p71 = scmp.eq.s32.totalorder %s10, 0
    %p72 = por %p70, %p71
    %p73 = scmp.ne.s32.totalorder %s65, %s67
    %p74 = scmp.eq.s32.totalorder %s15, 1
    %p75 = por %p73, %p74
    %p76 = scmp.ne.s32.totalorder %s67, %s68
    %p77 = scmp.eq.s32.totalorder %s15, 0
    %p78 = por %p76, %p77
    %p79 = scmp.ne.s32.totalorder %s67, %s68
    %p80 = scmp.eq.s32.totalorder %s16, 1
    %p81 = por %p79, %p80
    %p83 = scmp.ne.s32.totalorder %s68, %s82
    %p84 = scmp.eq.s32.totalorder %s16, 0
    %p85 = por %p83, %p84
    %s87 = sadd.s32 %s86, 1
    %p90 = scmp.eq.s32.totalorder %s10, 1
    %p91 = scmp.ne.s32.totalorder %s86, %s88
    %p92 = scmp.eq.s32.totalorder %s10, 0
    %p93 = por %p91, %p92
    %p94 = scmp.ne.s32.totalorder %s86, %s88
    %p95 = scmp.eq.s32.totalorder %s15, 1
    %p96 = por %p94, %p95
    %p97 = scmp.ne.s32.totalorder %s88, %s89
    %p98 = scmp.eq.s32.totalorder %s15, 0
    %p99 = por %p97, %p98
    %p100 = scmp.ne.s32.totalorder %s88, %s89
    %p101 = scmp.eq.s32.totalorder %s16, 1
    %p102 = por %p100, %p101
    %p104 = scmp.ne.s32.totalorder %s89, %s103
    %p105 = scmp.eq.s32.totalorder %s16, 0
    %p106 = por %p104, %p105
    %s107 = ssub.s32 %s10, %s17
    %p108 = scmp.eq.s32.totalorder %s107, 0
    %s110 = sadd.s32 %s109, 1
    %s111 = scalar_select %p108, %s109, %s110
    %p114 = pneg %p108
    %p115 = scmp.eq.s32.totalorder %s10, 1
    %p116 = por %p114, %p115
    %p117 = scmp.ne.s32.totalorder %s109, %s112
    %p118 = scmp.eq.s32.totalorder %s10, 0
    %p119 = por %p117, %p118
    %p120 = scmp.ne.s32.totalorder %s109, %s112
    %p121 = scmp.eq.s32.totalorder %s15, 1
    %p122 = por %p120, %p121
    %p123 = scmp.ne.s32.totalorder %s112, %s113
    %p124 = scmp.eq.s32.totalorder %s15, 0
    %p125 = por %p123, %p124
    %p126 = scmp.ne.s32.totalorder %s112, %s113
    %p127 = scmp.eq.s32.totalorder %s16, 1
    %p128 = por %p126, %p127
    %p130 = scmp.ne.s32.totalorder %s113, %s129
    %p131 = scmp.eq.s32.totalorder %s16, 0
    %p132 = por %p130, %p131
    %p133 = scmp.le.s32.totalorder 1, %s10
    %p134 = scmp.lt.s32.totalorder %s10, 3
    %p135 = pnand %p133, %p134
    %p136 = pneg %p135
    // Predicated region
    $region9: #{bsn_unet_forward.14} parent=5 // pred_check
      _
    $region10: #{bsn_unet_forward.14} parent=5 // pred_check_branch
      %138 = sbr.rel (%p135) target = $region12
    $region11: #{bsn_unet_forward.14} parent=5 // pred_region
      %s139 = ssub.s32 %s10, 1
      // Predicated region
      $region13: #{bsn_unet_forward.14} parent=11 // pred_check
        %p140 = pneg %p57
      $region14: #{bsn_unet_forward.14} parent=11 // pred_check_branch
        %142 = sbr.rel (%p140) target = $region16
      $region15: #{bsn_unet_forward.14} parent=11 // pred_region
        _
      $region16: #{bsn_unet_forward.14} parent=11 // pred_fallthru
        _
      // Predicated region
      $region17: #{bsn_unet_forward.14} parent=11 // pred_check
        %p143 = pneg %p78
      $region18: #{bsn_unet_forward.14} parent=11 // pred_check_branch
        %145 = sbr.rel (%p143) target = $region20
      $region19: #{bsn_unet_forward.14} parent=11 // pred_region
        _
      $region20: #{bsn_unet_forward.14} parent=11 // pred_fallthru
        _
      // Predicated region
      $region21: #{bsn_unet_forward.14} parent=11 // pred_check
        %p146 = pneg %p99
      $region22: #{bsn_unet_forward.14} parent=11 // pred_check_branch
        %148 = sbr.rel (%p146) target = $region24
      $region23: #{bsn_unet_forward.14} parent=11 // pred_region
        _
      $region24: #{bsn_unet_forward.14} parent=11 // pred_fallthru
        _
    $region12: #{bsn_unet_forward.14} parent=5 // pred_fallthru
      _
    %p149 = scmp.lt.s32.totalorder %s10, 2
    // Predicated region
    $region25: #{bsn_unet_forward.14} parent=5 // pred_check
      %p150 = pneg %p149
    $region26: #{bsn_unet_forward.14} parent=5 // pred_check_branch
      %152 = sbr.rel (%p150) target = $region28
    $region27: #{bsn_unet_forward.14} parent=5 // pred_region
      // Predicated region
      $region29: #{bsn_unet_forward.14} parent=27 // pred_check
        %p153 = pneg %p30
      $region30: #{bsn_unet_forward.14} parent=27 // pred_check_branch
        %155 = sbr.rel (%p153) target = $region32
      $region31: #{bsn_unet_forward.14} parent=27 // pred_region
        %p156 = scmp.lt.s32.totalorder %s10, 1
        %s157 = scalar_select %p156, %s10, 1
        %s158 = smul.addr %s157, 3
        %s159 = smul.addr %s158, 4
        %s160 = scalar_lea.vmem %s0, %s159
      $region32: #{bsn_unet_forward.14} parent=27 // pred_fallthru
        _
    $region28: #{bsn_unet_forward.14} parent=5 // pred_fallthru
      _
    %p161 = scmp.le.s32.totalorder 1, %s10
    %p162 = scmp.lt.s32.totalorder %s10, 3
    %p163 = pnand %p161, %p162
    %p164 = pneg %p163
    // Predicated region
    $region33: #{bsn_unet_forward.14} parent=5 // pred_check
      _
    $region34: #{bsn_unet_forward.14} parent=5 // pred_check_branch
      %166 = sbr.rel (%p163) target = $region36
    $region35: #{bsn_unet_forward.14} parent=5 // pred_region
      %s167 = ssub.s32 %s10, 1
      %p168 = scmp.lt.s32.totalorder %s15, 1
      %s169 = scalar_select %p168, %s15, 1
      %s170 = smul.addr %s169, 3
      %s171 = smul.addr %s170, 4
      %s172 = scalar_lea.vmem %s0, %s171
      %p173 = pneg %p36
      %p174 = pneg %p33
      %p175 = pneg %p57
      %p176 = pneg %p54
      %p177 = pneg %p78
      %p178 = pneg %p75
      %p179 = pneg %p99
      %p180 = pneg %p96
      %p181 = pneg %p125
      %p182 = pneg %p122
      %p183 = scmp.lt.s32.totalorder %s15, 1
      %s184 = scalar_select %p183, %s15, 1
      %s185 = smul.addr %s184, 3
      %s186 = smul.addr %s185, 4
      %s187 = scalar_lea.vmem %s4, %s186
      %p188 = scmp.lt.s32.totalorder %s15, 1
      %s189 = scalar_select %p188, %s15, 1
      %s190 = smul.addr %s189, 3
      %s191 = smul.addr %s190, 4
      %s192 = scalar_lea.vmem %s0, %s191
      %p193 = scmp.lt.s32.totalorder %s15, 1
      %s194 = scalar_select %p193, %s15, 1
      %s195 = smul.addr %s194, 3
      %s196 = smul.addr %s195, 4
      %s197 = scalar_lea.vmem %s4, %s196
      %v199 = vld [vmem:[%s192] sm:$0xff]
      %v200 = vld [vmem:[%s192 + $0x8] sm:$0xf]
      %201 = vst [vmem:[#allocation2] sm:$0xff] %v199
      %vm202 = vcmask 388096
      %203 = vst.msk [vmem:[#allocation2 + $0x8] sm:$0xf] %vm202, %v200
      %206 = vrot.lane.b32.xlu0 %v199, 127
      %v207 = vpop.permute.xlu0 %206
      %208 = vrot.lane.b32.xlu0 %v200, 127
      %v209 = vpop.permute.xlu0 %208
      %v210 = vrot.slane %v207, 4
      %v211 = vrot.slane %v209, 4
      %vm212 = vcmask 1043456
      %v213 = vsel %vm212, %v210, %v211
      %vm214 = vcmask 1039360
      %v215 = vsel %vm214, %v207, %v213
      %218 = vst [vmem:[#allocation2 + $0xc] sm:$0xff] %v215
      %219 = vst.msk [vmem:[#allocation2 + $0x14] sm:$0xf] %vm202, %v209
      %220 = vrot.lane.b32.xlu0 %v199, 126
      %v221 = vpop.permute.xlu0 %220
      %222 = vrot.lane.b32.xlu0 %v200, 126
      %v223 = vpop.permute.xlu0 %222
      %v224 = vrot.slane %v221, 4
      %v225 = vrot.slane %v223, 4
      %v226 = vsel %vm212, %v224, %v225
      %vm227 = vcmask 1031168
      %v228 = vsel %vm227, %v221, %v226
      %231 = vst [vmem:[#allocation2 + $0x18] sm:$0xff] %v228
      %232 = vst.msk [vmem:[#allocation2 + $0x20] sm:$0xf] %vm202, %v223
      %233 = vrot.lane.b32.xlu0 %v199, 110
      %v234 = vpop.permute.xlu0 %233
      %235 = vrot.lane.b32.xlu0 %v200, 110
      %v236 = vpop.permute.xlu0 %235
      %v237 = vrot.slane %v234, 4
      %v238 = vrot.slane %v236, 4
      %v239 = vsel %vm212, %v237, %v238
      %vm240 = vcmask 900096
      %v241 = vsel %vm240, %v234, %v239
      %244 = vst [vmem:[#allocation2 + $0x24] sm:$0xff] %v241
      %245 = vst.msk [vmem:[#allocation2 + $0x2c] sm:$0xf] %vm202, %v236
      %246 = vrot.lane.b32.xlu0 %v199, 109
      %v247 = vpop.permute.xlu0 %246
      %248 = vrot.lane.b32.xlu0 %v200, 109
      %v249 = vpop.permute.xlu0 %248
      %v250 = vrot.slane %v247, 4
      %v251 = vrot.slane %v249, 4
      %v252 = vsel %vm212, %v250, %v251
      %vm253 = vcmask 891904
      %v254 = vsel %vm253, %v247, %v252
      %257 = vst [vmem:[#allocation2 + $0x30] sm:$0xff] %v254
      %258 = vst.msk [vmem:[#allocation2 + $0x38] sm:$0xf] %vm202, %v249
      %259 = vrot.lane.b32.xlu0 %v199, 108
      %v260 = vpop.permute.xlu0 %259
      %261 = vrot.lane.b32.xlu0 %v200, 108
      %v262 = vpop.permute.xlu0 %261
      %v263 = vrot.slane %v260, 4
      %v264 = vrot.slane %v262, 4
      %v265 = vsel %vm212, %v263, %v264
      %vm266 = vcmask 883712
      %v267 = vsel %vm266, %v260, %v265
      %270 = vst [vmem:[#allocation2 + $0x3c] sm:$0xff] %v267
      %271 = vst.msk [vmem:[#allocation2 + $0x44] sm:$0xf] %vm202, %v262
      %272 = vrot.lane.b32.xlu0 %v199, 92
      %v273 = vpop.permute.xlu0 %272
      %274 = vrot.lane.b32.xlu0 %v200, 92
      %v275 = vpop.permute.xlu0 %274
      %v276 = vrot.slane %v273, 4
      %v277 = vrot.slane %v275, 4
      %v278 = vsel %vm212, %v276, %v277
      %vm279 = vcmask 752640
      %v280 = vsel %vm279, %v273, %v278
      %283 = vst [vmem:[#allocation2 + $0x48] sm:$0xff] %v280
      %284 = vst.msk [vmem:[#allocation2 + $0x50] sm:$0xf] %vm202, %v275
      %285 = vrot.lane.b32.xlu0 %v199, 91
      %v286 = vpop.permute.xlu0 %285
      %287 = vrot.lane.b32.xlu0 %v200, 91
      %v288 = vpop.permute.xlu0 %287
      %v289 = vrot.slane %v286, 4
      %v290 = vrot.slane %v288, 4
      %v291 = vsel %vm212, %v289, %v290
      %vm292 = vcmask 744448
      %v293 = vsel %vm292, %v286, %v291
      %296 = vst [vmem:[#allocation2 + $0x54] sm:$0xff] %v293
      %297 = vst.msk [vmem:[#allocation2 + $0x5c] sm:$0xf] %vm202, %v288
      %298 = vrot.lane.b32.xlu0 %v199, 90
      %v299 = vpop.permute.xlu0 %298
      %300 = vrot.lane.b32.xlu0 %v200, 90
      %v301 = vpop.permute.xlu0 %300
      %v302 = vrot.slane %v299, 4
      %v303 = vrot.slane %v301, 4
      %v304 = vsel %vm212, %v302, %v303
      %vm305 = vcmask 736256
      %v306 = vsel %vm305, %v299, %v304
      %309 = vst [vmem:[#allocation2 + $0x60] sm:$0xff] %v306
      %310 = vst.msk [vmem:[#allocation2 + $0x68] sm:$0xf] %vm202, %v301
      %v311 = vld [vmem:[%s1] sm:$0xf]
      %v312 = vld [vmem:[#allocation2] sm:$0xff]
      %v313 = vld [vmem:[#allocation2 + $0x8] sm:$0xf]
      %v314 = vld [vmem:[#allocation2 + $0xc] sm:$0xff]
      %v315 = vld [vmem:[#allocation2 + $0x14] sm:$0xf]
      %v316 = vld [vmem:[#allocation2 + $0x18] sm:$0xff]
      %v317 = vld [vmem:[#allocation2 + $0x20] sm:$0xf]
      %v318 = vld [vmem:[#allocation2 + $0x24] sm:$0xff]
      %v319 = vld [vmem:[#allocation2 + $0x2c] sm:$0xf]
      %v320 = vld [vmem:[#allocation2 + $0x30] sm:$0xff]
      %v321 = vld [vmem:[#allocation2 + $0x38] sm:$0xf]
      %v322 = vld [vmem:[#allocation2 + $0x3c] sm:$0xff]
      %v323 = vld [vmem:[#allocation2 + $0x44] sm:$0xf]
      %v324 = vld [vmem:[#allocation2 + $0x48] sm:$0xff]
      %v325 = vld [vmem:[#allocation2 + $0x50] sm:$0xf]
      %v326 = vld [vmem:[#allocation2 + $0x54] sm:$0xff]
      %v327 = vld [vmem:[#allocation2 + $0x5c] sm:$0xf]
      %v328 = vld [vmem:[#allocation2 + $0x60] sm:$0xff]
      %v329 = vld [vmem:[#allocation2 + $0x68] sm:$0xf]
      %v330 = vld [vmem:[%s2] sm:$0xff]
      %332 = vset.pattern.permute.xlu0 0
      %333 = vperm.xlu0 %332, %v330
      %v334 = vpop.permute.xlu0 %333
      %v354 = vunpack.c.l.b16 %v312
      %v355 = vunpack.c.h.b16 %v312
      %v356 = vunpack.c.l.b16 %v313
      %v357 = vunpack.c.l.b16 %v314
      %v358 = vunpack.c.h.b16 %v314
      %v359 = vunpack.c.l.b16 %v315
      %v360 = vunpack.c.l.b16 %v316
      %v361 = vunpack.c.h.b16 %v316
      %v362 = vunpack.c.l.b16 %v317
      %v363 = vunpack.c.l.b16 %v318
      %v364 = vunpack.c.h.b16 %v318
      %v365 = vunpack.c.l.b16 %v319
      %v366 = vunpack.c.l.b16 %v320
      %v367 = vunpack.c.h.b16 %v320
      %v368 = vunpack.c.l.b16 %v321
      %v369 = vunpack.c.l.b16 %v322
      %v370 = vunpack.c.h.b16 %v322
      %v371 = vunpack.c.l.b16 %v323
      %v372 = vunpack.c.l.b16 %v324
      %v373 = vunpack.c.h.b16 %v324
      %v374 = vunpack.c.l.b16 %v325
      %v375 = vunpack.c.l.b16 %v326
      %v376 = vunpack.c.h.b16 %v326
      %v377 = vunpack.c.l.b16 %v327
      %v378 = vunpack.c.l.b16 %v328
      %v379 = vunpack.c.h.b16 %v328
      %v380 = vunpack.c.l.b16 %v329
      %v381 = vpack.c.b16 %v357, %v354
      %v382 = vpack.c.b16 %v358, %v355
      %v383 = vpack.c.b16 %v359, %v356
      %v384 = vpack.c.b16 %v363, %v360
      %v385 = vpack.c.b16 %v364, %v361
      %v386 = vpack.c.b16 %v365, %v362
      %v387 = vpack.c.b16 %v369, %v366
      %v388 = vpack.c.b16 %v370, %v367
      %v389 = vpack.c.b16 %v371, %v368
      %v390 = vpack.c.b16 %v375, %v372
      %v391 = vpack.c.b16 %v376, %v373
      %v392 = vpack.c.b16 %v377, %v374
      %v393 = vpack.c.b16 %v378, %v378
      %v394 = vpack.c.b16 %v379, %v379
      %v395 = vpack.c.b16 %v380, %v380
      %vm408 = vcmask 588800
      %v410 = vsel %vm408, %v311, 0
      %vm412 = vcmask 1043456
      %v414 = vsel %vm412, %v393, 0
      %v417 = vsel %vm412, %v394, 0
      %v420 = vsel %vm412, %v395, 0
      %422 = vmatpush.bf16.msra.mxu0 0
      %423 = vmatpush.bf16.msra.mxu0 0
      %424 = vmatpush.bf16.msra.mxu0 0
      %425 = vmatpush.bf16.msra.mxu0 %v414
      %426 = vmatpush.bf16.msra.mxu0 %v390
      %427 = vmatpush.bf16.msra.mxu0 %v387
      %428 = vmatpush.bf16.msra.mxu0 %v384
      %429 = vmatpush.bf16.msra.mxu0 %v381
      %430 = vmatmul.bf16.gmra.mxu0 %v410
      %v431 = vpop.f32.mrf.mxu0
      %v432 = vadd.f32 %v334, %v431
      %v433 = vpop.f32.mrf.mxu0
      %434 = vdwg.mxu0
      %435 = vmatpush.bf16.msra.mxu0 0
      %436 = vmatpush.bf16.msra.mxu0 0
      %437 = vmatpush.bf16.msra.mxu0 0
      %438 = vmatpush.bf16.msra.mxu0 %v417
      %439 = vmatpush.bf16.msra.mxu0 %v391
      %440 = vmatpush.bf16.msra.mxu0 %v388
      %441 = vmatpush.bf16.msra.mxu0 %v385
      %442 = vmatpush.bf16.msra.mxu0 %v382
      %443 = vmatmul.bf16.gmra.mxu0 %v410
      %v444 = vpop.f32.mrf.mxu0
      %v445 = vadd.f32 %v334, %v444
      %v446 = vpop.f32.mrf.mxu0
      %447 = vdwg.mxu0
      %448 = vmatpush.bf16.msra.mxu0 0
      %449 = vmatpush.bf16.msra.mxu0 0
      %450 = vmatpush.bf16.msra.mxu0 0
      %451 = vmatpush.bf16.msra.mxu0 %v420
      %452 = vmatpush.bf16.msra.mxu0 %v392
      %453 = vmatpush.bf16.msra.mxu0 %v389
      %454 = vmatpush.bf16.msra.mxu0 %v386
      %455 = vmatpush.bf16.msra.mxu0 %v383
      %456 = vmatmul.bf16.gmra.mxu0 %v410
      %v457 = vpop.f32.mrf.mxu0
      %v458 = vadd.f32 %v334, %v457
      %v459 = vpop.f32.mrf.mxu0
      %460 = vdwg.mxu0
      %v461 = vmul.f32 %v432, 0.1
      %v462 = vmul.f32 %v445, 0.1
      %v463 = vmul.f32 %v458, 0.1
      %v464 = vmax.f32 %v432, %v461
      %v465 = vmax.f32 %v445, %v462
      %v466 = vmax.f32 %v458, %v463
      %v467 = vld [vmem:[%s3] sm:$0x7]
      %v469 = vperm.slane %v467, 0
      %v470 = vperm.slane %v467, 1
      %v471 = vperm.slane %v467, 2
      %v475 = vmul.f32 %v464, %v469
      %v476 = vmul.f32 %v465, %v470
      %v477 = vmul.f32 %v466, %v471
      %478 = vst [vmem:[%s197] sm:$0xff] 0
      %vm479 = vcmask 699392
      %480 = vst.msk [vmem:[%s197 + $0x8] sm:$0xf] %vm479, 0
      %v481 = vpack.c.bf16 %v476, %v475
      %v482 = vpack.c.bf16 %v477, %v477
      %485 = vrot.lane.b32.xlu0 %v481, 37
      %v486 = vpop.permute.xlu0 %485
      %487 = vrot.lane.b32.xlu0 %v482, 37
      %v488 = vpop.permute.xlu0 %487
      %v489 = vrot.slane %v486, 4
      %vm490 = vcmask 302080
      %v491 = vsel %vm490, %v489, %v486
      %v492 = vsel %vm490, %v489, %v488
      %vm495 = vcmask 1043752
      %vm496 = vcmask 1047556
      %vm497 = vmor %vm496, %vm495
      %498 = vst.msk [vmem:[%s197] sm:$0xff] %vm497, %v491
      %vm499 = vcmask 691200
      %500 = vst.msk [vmem:[%s197 + $0x8] sm:$0xf] %vm499, %v492
      %p501 = scmp.lt.s32.totalorder %s15, 1
      %s502 = scalar_select %p501, %s15, 1
      %s503 = smul.addr %s502, 3
      %s504 = smul.addr %s503, 4
      %s505 = scalar_lea.vmem %s4, %s504
      // Predicated region
      $region37: #{bsn_unet_forward.14} parent=35 // pred_check
        %p506 = pneg %p122
      $region38: #{bsn_unet_forward.14} parent=35 // pred_check_branch
        %508 = sbr.rel (%p506) target = $region40
      $region39: #{bsn_unet_forward.14} parent=35 // pred_region
        _
      $region40: #{bsn_unet_forward.14} parent=35 // pred_fallthru
        _
    $region36: #{bsn_unet_forward.14} parent=5 // pred_fallthru
      _
    %p509 = scmp.le.s32.totalorder 2, %s10
    // Predicated region
    $region41: #{bsn_unet_forward.14} parent=5 // pred_check
      %p510 = pneg %p509
    $region42: #{bsn_unet_forward.14} parent=5 // pred_check_branch
      %512 = sbr.rel (%p510) target = $region44
    $region43: #{bsn_unet_forward.14} parent=5 // pred_region
      %s513 = ssub.s32 %s10, 2
      // Predicated region
      $region45: #{bsn_unet_forward.14} parent=43 // pred_check
        %p514 = pneg %p128
      $region46: #{bsn_unet_forward.14} parent=43 // pred_check_branch
        %516 = sbr.rel (%p514) target = $region48
      $region47: #{bsn_unet_forward.14} parent=43 // pred_region
        %p517 = scmp.lt.s32.totalorder %s16, 1
        %s518 = scalar_select %p517, %s16, 1
        %s519 = smul.addr %s518, 3
        %s520 = smul.addr %s519, 4
        %s521 = scalar_lea.vmem %s4, %s520
      $region48: #{bsn_unet_forward.14} parent=43 // pred_fallthru
        _
    $region44: #{bsn_unet_forward.14} parent=5 // pred_fallthru
      _
  $region6: #{bsn_unet_forward.14} parent=0 // loop_footer
    %s14 = sadd.s32 1, %s10
  $region7: #{bsn_unet_forward.14} parent=0 // loop_footer_branch
    %9 = sbr.rel target = $region3
  $region8: #{bsn_unet_forward.14} parent=0 // loop_exit
    _

// kernel: bsn_unet_forward.17
$region0: #{bsn_unet_forward.17}
  #allocation0 [shape = 'u32[]', space=smem, size = 0x4, offset = 0x4, fixed_abs, tag = 'smem constant byte address 0x4 - core index']
  #allocation1 [shape = 'u32[72,128]{1,0:T(1,128)}', space=vmem, size = 0x9000, scoped, tag = 'internal scratch']
  #allocation2 [shape = 'bf16[72,28]{1,0:T(8,128)(2,1)}', space=vmem, size = 0x4800, scoped, tag = 'scratch operand']
  %s0 = inlined_call_operand.vmem [shape: bf16[2,8,42], index: 0, kind: input, shape index: {}]
  %s1 = inlined_call_operand.vmem [shape: bf16[8,72], index: 1, kind: input, shape index: {}]
  %s2 = inlined_call_operand.vmem [shape: f32[8,1], index: 2, kind: input, shape index: {}]
  %s3 = inlined_call_operand.vmem [shape: f32[1,28], index: 3, kind: input, shape index: {}]
  %s4 = inlined_call_operand.vmem [shape: bf16[2,8,42], index: 4, kind: output, shape index: {}]
  %s5 = sld [smem:[#allocation0]]
  $region49: #{bsn_unet_forward.17} parent=0
    _
  %s7 = ssub.s32 1, %s5
  %s8 = scalar_select 0, %s7, %s5
  loop: start=0, step=1, limit=4
  $region2: #{bsn_unet_forward.17} parent=0 // loop_pre_header
    _
  $region3: #{bsn_unet_forward.17} parent=0 // loop_header
    %s10 = sphi 0, %s14
    %p11 = scmp.ge.s32.totalorder %s10, 4
    %s20 = sphi 0, %s22
    %s23 = sphi 0, %s20
    %s24 = sphi 0, %s23
    %s40 = sphi 0, %s24
    %s44 = sphi 0, %s44
    %s46 = sphi 0, %s44
    %s47 = sphi 0, %s46
    %s61 = sphi 0, %s47
    %s65 = sphi 0, %s65
    %s67 = sphi 0, %s65
    %s68 = sphi 0, %s67
    %s82 = sphi 0, %s68
    %s86 = sphi 0, %s86
    %s88 = sphi 0, %s86
    %s89 = sphi 0, %s88
    %s103 = sphi 0, %s89
    %s109 = sphi 0, %s111
    %s112 = sphi 0, %s109
    %s113 = sphi 0, %s112
    %s129 = sphi 0, %s113
  $region4: #{bsn_unet_forward.17} parent=0 // loop_header_branch
    %13 = sbr.rel (%p11) target = $region8
  $region5: #{bsn_unet_forward.17} parent=0 // loop_body
    %s15 = ssub.s32 %s10, 1
    %s16 = ssub.s32 %s10, 2
    %s17 = sadd.s32 %s10, 1
    %s18 = ssub.s32 %s10, %s17
    %p19 = scmp.eq.s32.totalorder %s18, 0
    %s21 = sadd.s32 %s20, 1
    %s22 = scalar_select %p19, %s20, %s21
    %p25 = pneg %p19
    %p26 = scmp.eq.s32.totalorder %s10, 1
    %p27 = por %p25, %p26
    %p28 = scmp.ne.s32.totalorder %s20, %s23
    %p29 = scmp.eq.s32.totalorder %s10, 0
    %p30 = por %p28, %p29
    %p31 = scmp.ne.s32.totalorder %s20, %s23
    %p32 = scmp.eq.s32.totalorder %s15, 1
    %p33 = por %p31, %p32
    %p34 = scmp.ne.s32.totalorder %s23, %s24
    %p35 = scmp.eq.s32.totalorder %s15, 0
    %p36 = por %p34, %p35
    %p37 = scmp.ne.s32.totalorder %s23, %s24
    %p38 = scmp.eq.s32.totalorder %s16, 1
    %p39 = por %p37, %p38
    %p41 = scmp.ne.s32.totalorder %s24, %s40
    %p42 = scmp.eq.s32.totalorder %s16, 0
    %p43 = por %p41, %p42
    %s45 = sadd.s32 %s44, 1
    %p48 = scmp.eq.s32.totalorder %s10, 1
    %p49 = scmp.ne.s32.totalorder %s44, %s46
    %p50 = scmp.eq.s32.totalorder %s10, 0
    %p51 = por %p49, %p50
    %p52 = scmp.ne.s32.totalorder %s44, %s46
    %p53 = scmp.eq.s32.totalorder %s15, 1
    %p54 = por %p52, %p53
    %p55 = scmp.ne.s32.totalorder %s46, %s47
    %p56 = scmp.eq.s32.totalorder %s15, 0
    %p57 = por %p55, %p56
    %p58 = scmp.ne.s32.totalorder %s46, %s47
    %p59 = scmp.eq.s32.totalorder %s16, 1
    %p60 = por %p58, %p59
    %p62 = scmp.ne.s32.totalorder %s47, %s61
    %p63 = scmp.eq.s32.totalorder %s16, 0
    %p64 = por %p62, %p63
    %s66 = sadd.s32 %s65, 1
    %p69 = scmp.eq.s32.totalorder %s10, 1
    %p70 = scmp.ne.s32.totalorder %s65, %s67
    %p71 = scmp.eq.s32.totalorder %s10, 0
    %p72 = por %p70, %p71
    %p73 = scmp.ne.s32.totalorder %s65, %s67
    %p74 = scmp.eq.s32.totalorder %s15, 1
    %p75 = por %p73, %p74
    %p76 = scmp.ne.s32.totalorder %s67, %s68
    %p77 = scmp.eq.s32.totalorder %s15, 0
    %p78 = por %p76, %p77
    %p79 = scmp.ne.s32.totalorder %s67, %s68
    %p80 = scmp.eq.s32.totalorder %s16, 1
    %p81 = por %p79, %p80
    %p83 = scmp.ne.s32.totalorder %s68, %s82
    %p84 = scmp.eq.s32.totalorder %s16, 0
    %p85 = por %p83, %p84
    %s87 = sadd.s32 %s86, 1
    %p90 = scmp.eq.s32.totalorder %s10, 1
    %p91 = scmp.ne.s32.totalorder %s86, %s88
    %p92 = scmp.eq.s32.totalorder %s10, 0
    %p93 = por %p91, %p92
    %p94 = scmp.ne.s32.totalorder %s86, %s88
    %p95 = scmp.eq.s32.totalorder %s15, 1
    %p96 = por %p94, %p95
    %p97 = scmp.ne.s32.totalorder %s88, %s89
    %p98 = scmp.eq.s32.totalorder %s15, 0
    %p99 = por %p97, %p98
    %p100 = scmp.ne.s32.totalorder %s88, %s89
    %p101 = scmp.eq.s32.totalorder %s16, 1
    %p102 = por %p100, %p101
    %p104 = scmp.ne.s32.totalorder %s89, %s103
    %p105 = scmp.eq.s32.totalorder %s16, 0
    %p106 = por %p104, %p105
    %s107 = ssub.s32 %s10, %s17
    %p108 = scmp.eq.s32.totalorder %s107, 0
    %s110 = sadd.s32 %s109, 1
    %s111 = scalar_select %p108, %s109, %s110
    %p114 = pneg %p108
    %p115 = scmp.eq.s32.totalorder %s10, 1
    %p116 = por %p114, %p115
    %p117 = scmp.ne.s32.totalorder %s109, %s112
    %p118 = scmp.eq.s32.totalorder %s10, 0
    %p119 = por %p117, %p118
    %p120 = scmp.ne.s32.totalorder %s109, %s112
    %p121 = scmp.eq.s32.totalorder %s15, 1
    %p122 = por %p120, %p121
    %p123 = scmp.ne.s32.totalorder %s112, %s113
    %p124 = scmp.eq.s32.totalorder %s15, 0
    %p125 = por %p123, %p124
    %p126 = scmp.ne.s32.totalorder %s112, %s113
    %p127 = scmp.eq.s32.totalorder %s16, 1
    %p128 = por %p126, %p127
    %p130 = scmp.ne.s32.totalorder %s113, %s129
    %p131 = scmp.eq.s32.totalorder %s16, 0
    %p132 = por %p130, %p131
    %p133 = scmp.le.s32.totalorder 1, %s10
    %p134 = scmp.lt.s32.totalorder %s10, 3
    %p135 = pnand %p133, %p134
    %p136 = pneg %p135
    // Predicated region
    $region9: #{bsn_unet_forward.17} parent=5 // pred_check
      _
    $region10: #{bsn_unet_forward.17} parent=5 // pred_check_branch
      %138 = sbr.rel (%p135) target = $region12
    $region11: #{bsn_unet_forward.17} parent=5 // pred_region
      %s139 = ssub.s32 %s10, 1
      // Predicated region
      $region13: #{bsn_unet_forward.17} parent=11 // pred_check
        %p140 = pneg %p57
      $region14: #{bsn_unet_forward.17} parent=11 // pred_check_branch
        %142 = sbr.rel (%p140) target = $region16
      $region15: #{bsn_unet_forward.17} parent=11 // pred_region
        _
      $region16: #{bsn_unet_forward.17} parent=11 // pred_fallthru
        _
      // Predicated region
      $region17: #{bsn_unet_forward.17} parent=11 // pred_check
        %p143 = pneg %p78
      $region18: #{bsn_unet_forward.17} parent=11 // pred_check_branch
        %145 = sbr.rel (%p143) target = $region20
      $region19: #{bsn_unet_forward.17} parent=11 // pred_region
        _
      $region20: #{bsn_unet_forward.17} parent=11 // pred_fallthru
        _
      // Predicated region
      $region21: #{bsn_unet_forward.17} parent=11 // pred_check
        %p146 = pneg %p99
      $region22: #{bsn_unet_forward.17} parent=11 // pred_check_branch
        %148 = sbr.rel (%p146) target = $region24
      $region23: #{bsn_unet_forward.17} parent=11 // pred_region
        _
      $region24: #{bsn_unet_forward.17} parent=11 // pred_fallthru
        _
    $region12: #{bsn_unet_forward.17} parent=5 // pred_fallthru
      _
    %p149 = scmp.lt.s32.totalorder %s10, 2
    // Predicated region
    $region25: #{bsn_unet_forward.17} parent=5 // pred_check
      %p150 = pneg %p149
    $region26: #{bsn_unet_forward.17} parent=5 // pred_check_branch
      %152 = sbr.rel (%p150) target = $region28
    $region27: #{bsn_unet_forward.17} parent=5 // pred_region
      // Predicated region
      $region29: #{bsn_unet_forward.17} parent=27 // pred_check
        %p153 = pneg %p30
      $region30: #{bsn_unet_forward.17} parent=27 // pred_check_branch
        %155 = sbr.rel (%p153) target = $region32
      $region31: #{bsn_unet_forward.17} parent=27 // pred_region
        %p156 = scmp.lt.s32.totalorder %s10, 1
        %s157 = scalar_select %p156, %s10, 1
        %s158 = smul.addr %s157, 4
        %s159 = scalar_lea.vmem %s0, %s158
      $region32: #{bsn_unet_forward.17} parent=27 // pred_fallthru
        _
    $region28: #{bsn_unet_forward.17} parent=5 // pred_fallthru
      _
    %p160 = scmp.le.s32.totalorder 1, %s10
    %p161 = scmp.lt.s32.totalorder %s10, 3
    %p162 = pnand %p160, %p161
    %p163 = pneg %p162
    // Predicated region
    $region33: #{bsn_unet_forward.17} parent=5 // pred_check
      _
    $region34: #{bsn_unet_forward.17} parent=5 // pred_check_branch
      %165 = sbr.rel (%p162) target = $region36
    $region35: #{bsn_unet_forward.17} parent=5 // pred_region
      %s166 = ssub.s32 %s10, 1
      %p167 = scmp.lt.s32.totalorder %s15, 1
      %s168 = scalar_select %p167, %s15, 1
      %s169 = smul.addr %s168, 4
      %s170 = scalar_lea.vmem %s0, %s169
      %p171 = pneg %p36
      %p172 = pneg %p33
      %p173 = pneg %p57
      %p174 = pneg %p54
      %p175 = pneg %p78
      %p176 = pneg %p75
      %p177 = pneg %p99
      %p178 = pneg %p96
      %p179 = pneg %p125
      %p180 = pneg %p122
      %p181 = scmp.lt.s32.totalorder %s15, 1
      %s182 = scalar_select %p181, %s15, 1
      %s183 = smul.addr %s182, 4
      %s184 = scalar_lea.vmem %s4, %s183
      %p185 = scmp.lt.s32.totalorder %s15, 1
      %s186 = scalar_select %p185, %s15, 1
      %s187 = smul.addr %s186, 4
      %s188 = scalar_lea.vmem %s0, %s187
      %p189 = scmp.lt.s32.totalorder %s15, 1
      %s190 = scalar_select %p189, %s15, 1
      %s191 = smul.addr %s190, 4
      %s192 = scalar_lea.vmem %s4, %s191
      %v194 = vld [vmem:[%s188] sm:$0xf]
      %vm195 = vcmask 224256
      %196 = vst.msk [vmem:[#allocation2] sm:$0xf] %vm195, %v194
      %198 = vrot.lane.b32.xlu0 %v194, 127
      %v199 = vpop.permute.xlu0 %198
      %201 = vst.msk [vmem:[#allocation2 + $0x4] sm:$0xf] %vm195, %v199
      %202 = vrot.lane.b32.xlu0 %v194, 126
      %v203 = vpop.permute.xlu0 %202
      %205 = vst.msk [vmem:[#allocation2 + $0x8] sm:$0xf] %vm195, %v203
      %206 = vrot.lane.b32.xlu0 %v194, 122
      %v207 = vpop.permute.xlu0 %206
      %209 = vst.msk [vmem:[#allocation2 + $0xc] sm:$0xf] %vm195, %v207
      %210 = vrot.lane.b32.xlu0 %v194, 121
      %v211 = vpop.permute.xlu0 %210
      %213 = vst.msk [vmem:[#allocation2 + $0x10] sm:$0xf] %vm195, %v211
      %214 = vrot.lane.b32.xlu0 %v194, 120
      %v215 = vpop.permute.xlu0 %214
      %217 = vst.msk [vmem:[#allocation2 + $0x14] sm:$0xf] %vm195, %v215
      %218 = vrot.lane.b32.xlu0 %v194, 116
      %v219 = vpop.permute.xlu0 %218
      %221 = vst.msk [vmem:[#allocation2 + $0x18] sm:$0xf] %vm195, %v219
      %222 = vrot.lane.b32.xlu0 %v194, 115
      %v223 = vpop.permute.xlu0 %222
      %225 = vst.msk [vmem:[#allocation2 + $0x1c] sm:$0xf] %vm195, %v223
      %226 = vrot.lane.b32.xlu0 %v194, 114
      %v227 = vpop.permute.xlu0 %226
      %229 = vst.msk [vmem:[#allocation2 + $0x20] sm:$0xf] %vm195, %v227
      %v230 = vld [vmem:[%s1] sm:$0xf]
      %v231 = vld [vmem:[#allocation2] sm:$0xf]
      %v232 = vld [vmem:[#allocation2 + $0x4] sm:$0xf]
      %v233 = vld [vmem:[#allocation2 + $0x8] sm:$0xf]
      %v234 = vld [vmem:[#allocation2 + $0xc] sm:$0xf]
      %v235 = vld [vmem:[#allocation2 + $0x10] sm:$0xf]
      %v236 = vld [vmem:[#allocation2 + $0x14] sm:$0xf]
      %v237 = vld [vmem:[#allocation2 + $0x18] sm:$0xf]
      %v238 = vld [vmem:[#allocation2 + $0x1c] sm:$0xf]
      %v239 = vld [vmem:[#allocation2 + $0x20] sm:$0xf]
      %v240 = vld [vmem:[%s2] sm:$0xff]
      %242 = vset.pattern.permute.xlu0 0
      %243 = vperm.xlu0 %242, %v240
      %v244 = vpop.permute.xlu0 %243
      %v255 = vunpack.c.l.b16 %v231
      %v256 = vunpack.c.l.b16 %v232
      %v257 = vunpack.c.l.b16 %v233
      %v258 = vunpack.c.l.b16 %v234
      %v259 = vunpack.c.l.b16 %v235
      %v260 = vunpack.c.l.b16 %v236
      %v261 = vunpack.c.l.b16 %v237
      %v262 = vunpack.c.l.b16 %v238
      %v263 = vunpack.c.l.b16 %v239
      %v264 = vpack.c.b16 %v256, %v255
      %v265 = vpack.c.b16 %v258, %v257
      %v266 = vpack.c.b16 %v260, %v259
      %v267 = vpack.c.b16 %v262, %v261
      %v268 = vpack.c.b16 %v263, %v263
      %vm273 = vcmask 588800
      %v275 = vsel %vm273, %v230, 0
      %vm277 = vcmask 1043456
      %v279 = vsel %vm277, %v268, 0
      %281 = vmatpush.bf16.msra.mxu0 0
      %282 = vmatpush.bf16.msra.mxu0 0
      %283 = vmatpush.bf16.msra.mxu0 0
      %284 = vmatpush.bf16.msra.mxu0 %v279
      %285 = vmatpush.bf16.msra.mxu0 %v267
      %286 = vmatpush.bf16.msra.mxu0 %v266
      %287 = vmatpush.bf16.msra.mxu0 %v265
      %288 = vmatpush.bf16.msra.mxu0 %v264
      %289 = vmatmul.bf16.gmra.mxu0 %v275
      %v290 = vpop.f32.mrf.mxu0
      %v291 = vadd.f32 %v244, %v290
      %v292 = vpop.f32.mrf.mxu0
      %293 = vdwg.mxu0
      %v294 = vmul.f32 %v291, 0.1
      %v295 = vmax.f32 %v291, %v294
      %v296 = vld [vmem:[%s3] sm:$0x1]
      %v298 = vperm.slane %v296, 0
      %v300 = vmul.f32 %v295, %v298
      %vm301 = vcmask 338944
      %302 = vst.msk [vmem:[%s192] sm:$0xf] %vm301, 0
      %v303 = vpack.c.bf16 %v300, %v300
      %305 = vrot.lane.b32.xlu0 %v303, 13
      %v306 = vpop.permute.xlu0 %305
      %vm308 = vcmask 330856
      %309 = vst.msk [vmem:[%s192] sm:$0xf] %vm308, %v306
      %p310 = scmp.lt.s32.totalorder %s15, 1
      %s311 = scalar_select %p310, %s15, 1
      %s312 = smul.addr %s311, 4
      %s313 = scalar_lea.vmem %s4, %s312
      // Predicated region
      $region37: #{bsn_unet_forward.17} parent=35 // pred_check
        %p314 = pneg %p122
      $region38: #{bsn_unet_forward.17} parent=35 // pred_check_branch
        %316 = sbr.rel (%p314) target = $region40
      $region39: #{bsn_unet_forward.17} parent=35 // pred_region
        _
      $region40: #{bsn_unet_forward.17} parent=35 // pred_fallthru
        _
    $region36: #{bsn_unet_forward.17} parent=5 // pred_fallthru
      _
    %p317 = scmp.le.s32.totalorder 2, %s10
    // Predicated region
    $region41: #{bsn_unet_forward.17} parent=5 // pred_check
      %p318 = pneg %p317
    $region42: #{bsn_unet_forward.17} parent=5 // pred_check_branch
      %320 = sbr.rel (%p318) target = $region44
    $region43: #{bsn_unet_forward.17} parent=5 // pred_region
      %s321 = ssub.s32 %s10, 2
      // Predicated region
      $region45: #{bsn_unet_forward.17} parent=43 // pred_check
        %p322 = pneg %p128
      $region46: #{bsn_unet_forward.17} parent=43 // pred_check_branch
        %324 = sbr.rel (%p322) target = $region48
      $region47: #{bsn_unet_forward.17} parent=43 // pred_region
        %p325 = scmp.lt.s32.totalorder %s16, 1
        %s326 = scalar_select %p325, %s16, 1
        %s327 = smul.addr %s326, 4
        %s328 = scalar_lea.vmem %s4, %s327
      $region48: #{bsn_unet_forward.17} parent=43 // pred_fallthru
        _
    $region44: #{bsn_unet_forward.17} parent=5 // pred_fallthru
      _
  $region6: #{bsn_unet_forward.17} parent=0 // loop_footer
    %s14 = sadd.s32 1, %s10
  $region7: #{bsn_unet_forward.17} parent=0 // loop_footer_branch
    %9 = sbr.rel target = $region3
  $region8: #{bsn_unet_forward.17} parent=0 // loop_exit
    _

// kernel: bsn_unet_forward.19
$region0: #{bsn_unet_forward.19}
  #allocation0 [shape = 'u32[]', space=smem, size = 0x4, offset = 0x4, fixed_abs, tag = 'smem constant byte address 0x4 - core index']
  #allocation1 [shape = 'u32[72,128]{1,0:T(1,128)}', space=vmem, size = 0x9000, scoped, tag = 'internal scratch']
  %s0 = inlined_call_operand.vmem [shape: bf16[2,8,20], index: 0, kind: input, shape index: {}]
  %s1 = inlined_call_operand.vmem [shape: bf16[32,8], index: 1, kind: input, shape index: {}]
  %s2 = inlined_call_operand.vmem [shape: f32[32,1], index: 2, kind: input, shape index: {}]
  %s3 = inlined_call_operand.vmem [shape: f32[1,20], index: 3, kind: input, shape index: {}]
  %s4 = inlined_call_operand.vmem [shape: bf16[2,32,20], index: 4, kind: output, shape index: {}]
  %s5 = sld [smem:[#allocation0]]
  $region49: #{bsn_unet_forward.19} parent=0
    _
  %s7 = ssub.s32 1, %s5
  %s8 = scalar_select 0, %s7, %s5
  loop: start=0, step=1, limit=4
  $region2: #{bsn_unet_forward.19} parent=0 // loop_pre_header
    _
  $region3: #{bsn_unet_forward.19} parent=0 // loop_header
    %s10 = sphi 0, %s14
    %p11 = scmp.ge.s32.totalorder %s10, 4
    %s20 = sphi 0, %s22
    %s23 = sphi 0, %s20
    %s24 = sphi 0, %s23
    %s40 = sphi 0, %s24
    %s44 = sphi 0, %s44
    %s46 = sphi 0, %s44
    %s47 = sphi 0, %s46
    %s61 = sphi 0, %s47
    %s65 = sphi 0, %s65
    %s67 = sphi 0, %s65
    %s68 = sphi 0, %s67
    %s82 = sphi 0, %s68
    %s86 = sphi 0, %s86
    %s88 = sphi 0, %s86
    %s89 = sphi 0, %s88
    %s103 = sphi 0, %s89
    %s109 = sphi 0, %s111
    %s112 = sphi 0, %s109
    %s113 = sphi 0, %s112
    %s129 = sphi 0, %s113
  $region4: #{bsn_unet_forward.19} parent=0 // loop_header_branch
    %13 = sbr.rel (%p11) target = $region8
  $region5: #{bsn_unet_forward.19} parent=0 // loop_body
    %s15 = ssub.s32 %s10, 1
    %s16 = ssub.s32 %s10, 2
    %s17 = sadd.s32 %s10, 1
    %s18 = ssub.s32 %s10, %s17
    %p19 = scmp.eq.s32.totalorder %s18, 0
    %s21 = sadd.s32 %s20, 1
    %s22 = scalar_select %p19, %s20, %s21
    %p25 = pneg %p19
    %p26 = scmp.eq.s32.totalorder %s10, 1
    %p27 = por %p25, %p26
    %p28 = scmp.ne.s32.totalorder %s20, %s23
    %p29 = scmp.eq.s32.totalorder %s10, 0
    %p30 = por %p28, %p29
    %p31 = scmp.ne.s32.totalorder %s20, %s23
    %p32 = scmp.eq.s32.totalorder %s15, 1
    %p33 = por %p31, %p32
    %p34 = scmp.ne.s32.totalorder %s23, %s24
    %p35 = scmp.eq.s32.totalorder %s15, 0
    %p36 = por %p34, %p35
    %p37 = scmp.ne.s32.totalorder %s23, %s24
    %p38 = scmp.eq.s32.totalorder %s16, 1
    %p39 = por %p37, %p38
    %p41 = scmp.ne.s32.totalorder %s24, %s40
    %p42 = scmp.eq.s32.totalorder %s16, 0
    %p43 = por %p41, %p42
    %s45 = sadd.s32 %s44, 1
    %p48 = scmp.eq.s32.totalorder %s10, 1
    %p49 = scmp.ne.s32.totalorder %s44, %s46
    %p50 = scmp.eq.s32.totalorder %s10, 0
    %p51 = por %p49, %p50
    %p52 = scmp.ne.s32.totalorder %s44, %s46
    %p53 = scmp.eq.s32.totalorder %s15, 1
    %p54 = por %p52, %p53
    %p55 = scmp.ne.s32.totalorder %s46, %s47
    %p56 = scmp.eq.s32.totalorder %s15, 0
    %p57 = por %p55, %p56
    %p58 = scmp.ne.s32.totalorder %s46, %s47
    %p59 = scmp.eq.s32.totalorder %s16, 1
    %p60 = por %p58, %p59
    %p62 = scmp.ne.s32.totalorder %s47, %s61
    %p63 = scmp.eq.s32.totalorder %s16, 0
    %p64 = por %p62, %p63
    %s66 = sadd.s32 %s65, 1
    %p69 = scmp.eq.s32.totalorder %s10, 1
    %p70 = scmp.ne.s32.totalorder %s65, %s67
    %p71 = scmp.eq.s32.totalorder %s10, 0
    %p72 = por %p70, %p71
    %p73 = scmp.ne.s32.totalorder %s65, %s67
    %p74 = scmp.eq.s32.totalorder %s15, 1
    %p75 = por %p73, %p74
    %p76 = scmp.ne.s32.totalorder %s67, %s68
    %p77 = scmp.eq.s32.totalorder %s15, 0
    %p78 = por %p76, %p77
    %p79 = scmp.ne.s32.totalorder %s67, %s68
    %p80 = scmp.eq.s32.totalorder %s16, 1
    %p81 = por %p79, %p80
    %p83 = scmp.ne.s32.totalorder %s68, %s82
    %p84 = scmp.eq.s32.totalorder %s16, 0
    %p85 = por %p83, %p84
    %s87 = sadd.s32 %s86, 1
    %p90 = scmp.eq.s32.totalorder %s10, 1
    %p91 = scmp.ne.s32.totalorder %s86, %s88
    %p92 = scmp.eq.s32.totalorder %s10, 0
    %p93 = por %p91, %p92
    %p94 = scmp.ne.s32.totalorder %s86, %s88
    %p95 = scmp.eq.s32.totalorder %s15, 1
    %p96 = por %p94, %p95
    %p97 = scmp.ne.s32.totalorder %s88, %s89
    %p98 = scmp.eq.s32.totalorder %s15, 0
    %p99 = por %p97, %p98
    %p100 = scmp.ne.s32.totalorder %s88, %s89
    %p101 = scmp.eq.s32.totalorder %s16, 1
    %p102 = por %p100, %p101
    %p104 = scmp.ne.s32.totalorder %s89, %s103
    %p105 = scmp.eq.s32.totalorder %s16, 0
    %p106 = por %p104, %p105
    %s107 = ssub.s32 %s10, %s17
    %p108 = scmp.eq.s32.totalorder %s107, 0
    %s110 = sadd.s32 %s109, 1
    %s111 = scalar_select %p108, %s109, %s110
    %p114 = pneg %p108
    %p115 = scmp.eq.s32.totalorder %s10, 1
    %p116 = por %p114, %p115
    %p117 = scmp.ne.s32.totalorder %s109, %s112
    %p118 = scmp.eq.s32.totalorder %s10, 0
    %p119 = por %p117, %p118
    %p120 = scmp.ne.s32.totalorder %s109, %s112
    %p121 = scmp.eq.s32.totalorder %s15, 1
    %p122 = por %p120, %p121
    %p123 = scmp.ne.s32.totalorder %s112, %s113
    %p124 = scmp.eq.s32.totalorder %s15, 0
    %p125 = por %p123, %p124
    %p126 = scmp.ne.s32.totalorder %s112, %s113
    %p127 = scmp.eq.s32.totalorder %s16, 1
    %p128 = por %p126, %p127
    %p130 = scmp.ne.s32.totalorder %s113, %s129
    %p131 = scmp.eq.s32.totalorder %s16, 0
    %p132 = por %p130, %p131
    %p133 = scmp.le.s32.totalorder 1, %s10
    %p134 = scmp.lt.s32.totalorder %s10, 3
    %p135 = pnand %p133, %p134
    %p136 = pneg %p135
    // Predicated region
    $region9: #{bsn_unet_forward.19} parent=5 // pred_check
      _
    $region10: #{bsn_unet_forward.19} parent=5 // pred_check_branch
      %138 = sbr.rel (%p135) target = $region12
    $region11: #{bsn_unet_forward.19} parent=5 // pred_region
      %s139 = ssub.s32 %s10, 1
      // Predicated region
      $region13: #{bsn_unet_forward.19} parent=11 // pred_check
        %p140 = pneg %p57
      $region14: #{bsn_unet_forward.19} parent=11 // pred_check_branch
        %142 = sbr.rel (%p140) target = $region16
      $region15: #{bsn_unet_forward.19} parent=11 // pred_region
        _
      $region16: #{bsn_unet_forward.19} parent=11 // pred_fallthru
        _
      // Predicated region
      $region17: #{bsn_unet_forward.19} parent=11 // pred_check
        %p143 = pneg %p78
      $region18: #{bsn_unet_forward.19} parent=11 // pred_check_branch
        %145 = sbr.rel (%p143) target = $region20
      $region19: #{bsn_unet_forward.19} parent=11 // pred_region
        _
      $region20: #{bsn_unet_forward.19} parent=11 // pred_fallthru
        _
      // Predicated region
      $region21: #{bsn_unet_forward.19} parent=11 // pred_check
        %p146 = pneg %p99
      $region22: #{bsn_unet_forward.19} parent=11 // pred_check_branch
        %148 = sbr.rel (%p146) target = $region24
      $region23: #{bsn_unet_forward.19} parent=11 // pred_region
        _
      $region24: #{bsn_unet_forward.19} parent=11 // pred_fallthru
        _
    $region12: #{bsn_unet_forward.19} parent=5 // pred_fallthru
      _
    %p149 = scmp.lt.s32.totalorder %s10, 2
    // Predicated region
    $region25: #{bsn_unet_forward.19} parent=5 // pred_check
      %p150 = pneg %p149
    $region26: #{bsn_unet_forward.19} parent=5 // pred_check_branch
      %152 = sbr.rel (%p150) target = $region28
    $region27: #{bsn_unet_forward.19} parent=5 // pred_region
      // Predicated region
      $region29: #{bsn_unet_forward.19} parent=27 // pred_check
        %p153 = pneg %p30
      $region30: #{bsn_unet_forward.19} parent=27 // pred_check_branch
        %155 = sbr.rel (%p153) target = $region32
      $region31: #{bsn_unet_forward.19} parent=27 // pred_region
        %p156 = scmp.lt.s32.totalorder %s10, 1
        %s157 = scalar_select %p156, %s10, 1
        %s158 = smul.addr %s157, 4
        %s159 = scalar_lea.vmem %s0, %s158
      $region32: #{bsn_unet_forward.19} parent=27 // pred_fallthru
        _
    $region28: #{bsn_unet_forward.19} parent=5 // pred_fallthru
      _
    %p160 = scmp.le.s32.totalorder 1, %s10
    %p161 = scmp.lt.s32.totalorder %s10, 3
    %p162 = pnand %p160, %p161
    %p163 = pneg %p162
    // Predicated region
    $region33: #{bsn_unet_forward.19} parent=5 // pred_check
      _
    $region34: #{bsn_unet_forward.19} parent=5 // pred_check_branch
      %165 = sbr.rel (%p162) target = $region36
    $region35: #{bsn_unet_forward.19} parent=5 // pred_region
      %s166 = ssub.s32 %s10, 1
      %p167 = scmp.lt.s32.totalorder %s15, 1
      %s168 = scalar_select %p167, %s15, 1
      %s169 = smul.addr %s168, 4
      %s170 = scalar_lea.vmem %s0, %s169
      %p171 = pneg %p36
      %p172 = pneg %p33
      %p173 = pneg %p57
      %p174 = pneg %p54
      %p175 = pneg %p78
      %p176 = pneg %p75
      %p177 = pneg %p99
      %p178 = pneg %p96
      %p179 = pneg %p125
      %p180 = pneg %p122
      %p181 = scmp.lt.s32.totalorder %s15, 1
      %s182 = scalar_select %p181, %s15, 1
      %s183 = smul.addr %s182, 4
      %s184 = smul.addr %s183, 4
      %s185 = scalar_lea.vmem %s4, %s184
      %p186 = scmp.lt.s32.totalorder %s15, 1
      %s187 = scalar_select %p186, %s15, 1
      %s188 = smul.addr %s187, 4
      %s189 = scalar_lea.vmem %s0, %s188
      %p190 = scmp.lt.s32.totalorder %s15, 1
      %s191 = scalar_select %p190, %s15, 1
      %s192 = smul.addr %s191, 4
      %s193 = smul.addr %s192, 4
      %s194 = scalar_lea.vmem %s4, %s193
      %v196 = vld [vmem:[%s1] sm:$0xf]
      %v197 = vld [vmem:[%s1 + $0x4] sm:$0xf]
      %v198 = vld [vmem:[%s1 + $0x8] sm:$0xf]
      %v199 = vld [vmem:[%s1 + $0xc] sm:$0xf]
      %v200 = vld [vmem:[%s189] sm:$0xf]
      %v201 = vld [vmem:[%s2] sm:$0xff]
      %v202 = vld [vmem:[%s2 + $0x8] sm:$0xff]
      %v203 = vld [vmem:[%s2 + $0x10] sm:$0xff]
      %v204 = vld [vmem:[%s2 + $0x18] sm:$0xff]
      %206 = vset.pattern.permute.xlu0 0
      %207 = vperm.xlu0 %206, %v201
      %v208 = vpop.permute.xlu0 %207
      %211 = vset.pattern.permute.xlu0 0
      %212 = vperm.xlu0 %211, %v202
      %v213 = vpop.permute.xlu0 %212
      %216 = vset.pattern.permute.xlu0 0
      %217 = vperm.xlu0 %216, %v203
      %v218 = vpop.permute.xlu0 %217
      %221 = vset.pattern.permute.xlu0 0
      %222 = vperm.xlu0 %221, %v204
      %v223 = vpop.permute.xlu0 %222
      %v229 = vunpack.c.l.b16 %v196
      %v230 = vunpack.c.l.b16 %v197
      %v231 = vunpack.c.l.b16 %v198
      %v232 = vunpack.c.l.b16 %v199
      %v233 = vpack.c.b16 %v230, %v229
      %v234 = vpack.c.b16 %v232, %v231
      %vm235 = vcmask 64512
      %v237 = vsel %vm235, %v233, 0
      %v240 = vsel %vm235, %v234, 0
      %vm242 = vcmask 1043456
      %v244 = vsel %vm242, %v200, 0
      %246 = vmatpush.bf16.msra.mxu0 0
      %247 = vmatpush.bf16.msra.mxu0 0
      %248 = vmatpush.bf16.msra.mxu0 0
      %249 = vmatpush.bf16.msra.mxu0 0
      %250 = vmatpush.bf16.msra.mxu0 0
      %251 = vmatpush.bf16.msra.mxu0 0
      %252 = vmatpush.bf16.msra.mxu0 0
      %253 = vmatpush.bf16.msra.mxu0 %v244
      %254 = vmatmul.bf16.gmra.mxu0 %v237
      %v255 = vpop.f32.mrf.mxu0
      %v256 = vadd.f32 %v208, %v255
      %v257 = vpop.f32.mrf.mxu0
      %v258 = vadd.f32 %v213, %v257
      %259 = vmatmul.bf16.gmra.mxu0 %v240
      %v260 = vpop.f32.mrf.mxu0
      %v261 = vadd.f32 %v218, %v260
      %v262 = vpop.f32.mrf.mxu0
      %v263 = vadd.f32 %v223, %v262
      %264 = vdwg.mxu0
      %v265 = vld [vmem:[%s3] sm:$0x1]
      %v267 = vperm.slane %v265, 0
      %v269 = vmul.f32 %v256, %v267
      %v270 = vmul.f32 %v258, %v267
      %v271 = vmul.f32 %v261, %v267
      %v272 = vmul.f32 %v263, %v267
      %v273 = vpack.c.bf16 %v269, %v269
      %v274 = vpack.c.bf16 %v270, %v270
      %v275 = vpack.c.bf16 %v271, %v271
      %v276 = vpack.c.bf16 %v272, %v272
      %vm277 = vcmask 158720
      %278 = vst.msk [vmem:[%s194] sm:$0xf] %vm277, %v273
      %279 = vst.msk [vmem:[%s194 + $0x4] sm:$0xf] %vm277, %v274
      %280 = vst.msk [vmem:[%s194 + $0x8] sm:$0xf] %vm277, %v275
      %281 = vst.msk [vmem:[%s194 + $0xc] sm:$0xf] %vm277, %v276
      %p282 = scmp.lt.s32.totalorder %s15, 1
      %s283 = scalar_select %p282, %s15, 1
      %s284 = smul.addr %s283, 4
      %s285 = smul.addr %s284, 4
      %s286 = scalar_lea.vmem %s4, %s285
      // Predicated region
      $region37: #{bsn_unet_forward.19} parent=35 // pred_check
        %p287 = pneg %p122
      $region38: #{bsn_unet_forward.19} parent=35 // pred_check_branch
        %289 = sbr.rel (%p287) target = $region40
      $region39: #{bsn_unet_forward.19} parent=35 // pred_region
        _
      $region40: #{bsn_unet_forward.19} parent=35 // pred_fallthru
        _
    $region36: #{bsn_unet_forward.19} parent=5 // pred_fallthru
      _
    %p290 = scmp.le.s32.totalorder 2, %s10
    // Predicated region
    $region41: #{bsn_unet_forward.19} parent=5 // pred_check
      %p291 = pneg %p290
    $region42: #{bsn_unet_forward.19} parent=5 // pred_check_branch
      %293 = sbr.rel (%p291) target = $region44
    $region43: #{bsn_unet_forward.19} parent=5 // pred_region
      %s294 = ssub.s32 %s10, 2
      // Predicated region
      $region45: #{bsn_unet_forward.19} parent=43 // pred_check
        %p295 = pneg %p128
      $region46: #{bsn_unet_forward.19} parent=43 // pred_check_branch
        %297 = sbr.rel (%p295) target = $region48
      $region47: #{bsn_unet_forward.19} parent=43 // pred_region
        %p298 = scmp.lt.s32.totalorder %s16, 1
        %s299 = scalar_select %p298, %s16, 1
        %s300 = smul.addr %s299, 4
        %s301 = smul.addr %s300, 4
        %s302 = scalar_lea.vmem %s4, %s301
      $region48: #{bsn_unet_forward.19} parent=43 // pred_fallthru
        _
    $region44: #{bsn_unet_forward.19} parent=5 // pred_fallthru
      _
  $region6: #{bsn_unet_forward.19} parent=0 // loop_footer
    %s14 = sadd.s32 1, %s10
  $region7: #{bsn_unet_forward.19} parent=0 // loop_footer_branch
    %9 = sbr.rel target = $region3
  $region8: #{bsn_unet_forward.19} parent=0 // loop_exit
    _

// kernel: bsn_unet_forward.18
$region0: #{bsn_unet_forward.18}
  #allocation0 [shape = 'u32[]', space=smem, size = 0x4, offset = 0x4, fixed_abs, tag = 'smem constant byte address 0x4 - core index']
  #allocation1 [shape = 'u32[72,128]{1,0:T(1,128)}', space=vmem, size = 0x9000, scoped, tag = 'internal scratch']
  #allocation2 [shape = 'bf16[72,10]{1,0:T(8,128)(2,1)}', space=vmem, size = 0x4800, scoped, tag = 'scratch operand']
  %s0 = inlined_call_operand.vmem [shape: bf16[2,8,20], index: 0, kind: input, shape index: {}]
  %s1 = inlined_call_operand.vmem [shape: bf16[8,72], index: 1, kind: input, shape index: {}]
  %s2 = inlined_call_operand.vmem [shape: f32[8,1], index: 2, kind: input, shape index: {}]
  %s3 = inlined_call_operand.vmem [shape: f32[1,10], index: 3, kind: input, shape index: {}]
  %s4 = inlined_call_operand.vmem [shape: bf16[2,8,20], index: 4, kind: output, shape index: {}]
  %s5 = sld [smem:[#allocation0]]
  $region49: #{bsn_unet_forward.18} parent=0
    _
  %s7 = ssub.s32 1, %s5
  %s8 = scalar_select 0, %s7, %s5
  loop: start=0, step=1, limit=4
  $region2: #{bsn_unet_forward.18} parent=0 // loop_pre_header
    _
  $region3: #{bsn_unet_forward.18} parent=0 // loop_header
    %s10 = sphi 0, %s14
    %p11 = scmp.ge.s32.totalorder %s10, 4
    %s20 = sphi 0, %s22
    %s23 = sphi 0, %s20
    %s24 = sphi 0, %s23
    %s40 = sphi 0, %s24
    %s44 = sphi 0, %s44
    %s46 = sphi 0, %s44
    %s47 = sphi 0, %s46
    %s61 = sphi 0, %s47
    %s65 = sphi 0, %s65
    %s67 = sphi 0, %s65
    %s68 = sphi 0, %s67
    %s82 = sphi 0, %s68
    %s86 = sphi 0, %s86
    %s88 = sphi 0, %s86
    %s89 = sphi 0, %s88
    %s103 = sphi 0, %s89
    %s109 = sphi 0, %s111
    %s112 = sphi 0, %s109
    %s113 = sphi 0, %s112
    %s129 = sphi 0, %s113
  $region4: #{bsn_unet_forward.18} parent=0 // loop_header_branch
    %13 = sbr.rel (%p11) target = $region8
  $region5: #{bsn_unet_forward.18} parent=0 // loop_body
    %s15 = ssub.s32 %s10, 1
    %s16 = ssub.s32 %s10, 2
    %s17 = sadd.s32 %s10, 1
    %s18 = ssub.s32 %s10, %s17
    %p19 = scmp.eq.s32.totalorder %s18, 0
    %s21 = sadd.s32 %s20, 1
    %s22 = scalar_select %p19, %s20, %s21
    %p25 = pneg %p19
    %p26 = scmp.eq.s32.totalorder %s10, 1
    %p27 = por %p25, %p26
    %p28 = scmp.ne.s32.totalorder %s20, %s23
    %p29 = scmp.eq.s32.totalorder %s10, 0
    %p30 = por %p28, %p29
    %p31 = scmp.ne.s32.totalorder %s20, %s23
    %p32 = scmp.eq.s32.totalorder %s15, 1
    %p33 = por %p31, %p32
    %p34 = scmp.ne.s32.totalorder %s23, %s24
    %p35 = scmp.eq.s32.totalorder %s15, 0
    %p36 = por %p34, %p35
    %p37 = scmp.ne.s32.totalorder %s23, %s24
    %p38 = scmp.eq.s32.totalorder %s16, 1
    %p39 = por %p37, %p38
    %p41 = scmp.ne.s32.totalorder %s24, %s40
    %p42 = scmp.eq.s32.totalorder %s16, 0
    %p43 = por %p41, %p42
    %s45 = sadd.s32 %s44, 1
    %p48 = scmp.eq.s32.totalorder %s10, 1
    %p49 = scmp.ne.s32.totalorder %s44, %s46
    %p50 = scmp.eq.s32.totalorder %s10, 0
    %p51 = por %p49, %p50
    %p52 = scmp.ne.s32.totalorder %s44, %s46
    %p53 = scmp.eq.s32.totalorder %s15, 1
    %p54 = por %p52, %p53
    %p55 = scmp.ne.s32.totalorder %s46, %s47
    %p56 = scmp.eq.s32.totalorder %s15, 0
    %p57 = por %p55, %p56
    %p58 = scmp.ne.s32.totalorder %s46, %s47
    %p59 = scmp.eq.s32.totalorder %s16, 1
    %p60 = por %p58, %p59
    %p62 = scmp.ne.s32.totalorder %s47, %s61
    %p63 = scmp.eq.s32.totalorder %s16, 0
    %p64 = por %p62, %p63
    %s66 = sadd.s32 %s65, 1
    %p69 = scmp.eq.s32.totalorder %s10, 1
    %p70 = scmp.ne.s32.totalorder %s65, %s67
    %p71 = scmp.eq.s32.totalorder %s10, 0
    %p72 = por %p70, %p71
    %p73 = scmp.ne.s32.totalorder %s65, %s67
    %p74 = scmp.eq.s32.totalorder %s15, 1
    %p75 = por %p73, %p74
    %p76 = scmp.ne.s32.totalorder %s67, %s68
    %p77 = scmp.eq.s32.totalorder %s15, 0
    %p78 = por %p76, %p77
    %p79 = scmp.ne.s32.totalorder %s67, %s68
    %p80 = scmp.eq.s32.totalorder %s16, 1
    %p81 = por %p79, %p80
    %p83 = scmp.ne.s32.totalorder %s68, %s82
    %p84 = scmp.eq.s32.totalorder %s16, 0
    %p85 = por %p83, %p84
    %s87 = sadd.s32 %s86, 1
    %p90 = scmp.eq.s32.totalorder %s10, 1
    %p91 = scmp.ne.s32.totalorder %s86, %s88
    %p92 = scmp.eq.s32.totalorder %s10, 0
    %p93 = por %p91, %p92
    %p94 = scmp.ne.s32.totalorder %s86, %s88
    %p95 = scmp.eq.s32.totalorder %s15, 1
    %p96 = por %p94, %p95
    %p97 = scmp.ne.s32.totalorder %s88, %s89
    %p98 = scmp.eq.s32.totalorder %s15, 0
    %p99 = por %p97, %p98
    %p100 = scmp.ne.s32.totalorder %s88, %s89
    %p101 = scmp.eq.s32.totalorder %s16, 1
    %p102 = por %p100, %p101
    %p104 = scmp.ne.s32.totalorder %s89, %s103
    %p105 = scmp.eq.s32.totalorder %s16, 0
    %p106 = por %p104, %p105
    %s107 = ssub.s32 %s10, %s17
    %p108 = scmp.eq.s32.totalorder %s107, 0
    %s110 = sadd.s32 %s109, 1
    %s111 = scalar_select %p108, %s109, %s110
    %p114 = pneg %p108
    %p115 = scmp.eq.s32.totalorder %s10, 1
    %p116 = por %p114, %p115
    %p117 = scmp.ne.s32.totalorder %s109, %s112
    %p118 = scmp.eq.s32.totalorder %s10, 0
    %p119 = por %p117, %p118
    %p120 = scmp.ne.s32.totalorder %s109, %s112
    %p121 = scmp.eq.s32.totalorder %s15, 1
    %p122 = por %p120, %p121
    %p123 = scmp.ne.s32.totalorder %s112, %s113
    %p124 = scmp.eq.s32.totalorder %s15, 0
    %p125 = por %p123, %p124
    %p126 = scmp.ne.s32.totalorder %s112, %s113
    %p127 = scmp.eq.s32.totalorder %s16, 1
    %p128 = por %p126, %p127
    %p130 = scmp.ne.s32.totalorder %s113, %s129
    %p131 = scmp.eq.s32.totalorder %s16, 0
    %p132 = por %p130, %p131
    %p133 = scmp.le.s32.totalorder 1, %s10
    %p134 = scmp.lt.s32.totalorder %s10, 3
    %p135 = pnand %p133, %p134
    %p136 = pneg %p135
    // Predicated region
    $region9: #{bsn_unet_forward.18} parent=5 // pred_check
      _
    $region10: #{bsn_unet_forward.18} parent=5 // pred_check_branch
      %138 = sbr.rel (%p135) target = $region12
    $region11: #{bsn_unet_forward.18} parent=5 // pred_region
      %s139 = ssub.s32 %s10, 1
      // Predicated region
      $region13: #{bsn_unet_forward.18} parent=11 // pred_check
        %p140 = pneg %p57
      $region14: #{bsn_unet_forward.18} parent=11 // pred_check_branch
        %142 = sbr.rel (%p140) target = $region16
      $region15: #{bsn_unet_forward.18} parent=11 // pred_region
        _
      $region16: #{bsn_unet_forward.18} parent=11 // pred_fallthru
        _
      // Predicated region
      $region17: #{bsn_unet_forward.18} parent=11 // pred_check
        %p143 = pneg %p78
      $region18: #{bsn_unet_forward.18} parent=11 // pred_check_branch
        %145 = sbr.rel (%p143) target = $region20
      $region19: #{bsn_unet_forward.18} parent=11 // pred_region
        _
      $region20: #{bsn_unet_forward.18} parent=11 // pred_fallthru
        _
      // Predicated region
      $region21: #{bsn_unet_forward.18} parent=11 // pred_check
        %p146 = pneg %p99
      $region22: #{bsn_unet_forward.18} parent=11 // pred_check_branch
        %148 = sbr.rel (%p146) target = $region24
      $region23: #{bsn_unet_forward.18} parent=11 // pred_region
        _
      $region24: #{bsn_unet_forward.18} parent=11 // pred_fallthru
        _
    $region12: #{bsn_unet_forward.18} parent=5 // pred_fallthru
      _
    %p149 = scmp.lt.s32.totalorder %s10, 2
    // Predicated region
    $region25: #{bsn_unet_forward.18} parent=5 // pred_check
      %p150 = pneg %p149
    $region26: #{bsn_unet_forward.18} parent=5 // pred_check_branch
      %152 = sbr.rel (%p150) target = $region28
    $region27: #{bsn_unet_forward.18} parent=5 // pred_region
      // Predicated region
      $region29: #{bsn_unet_forward.18} parent=27 // pred_check
        %p153 = pneg %p30
      $region30: #{bsn_unet_forward.18} parent=27 // pred_check_branch
        %155 = sbr.rel (%p153) target = $region32
      $region31: #{bsn_unet_forward.18} parent=27 // pred_region
        %p156 = scmp.lt.s32.totalorder %s10, 1
        %s157 = scalar_select %p156, %s10, 1
        %s158 = smul.addr %s157, 4
        %s159 = scalar_lea.vmem %s0, %s158
      $region32: #{bsn_unet_forward.18} parent=27 // pred_fallthru
        _
    $region28: #{bsn_unet_forward.18} parent=5 // pred_fallthru
      _
    %p160 = scmp.le.s32.totalorder 1, %s10
    %p161 = scmp.lt.s32.totalorder %s10, 3
    %p162 = pnand %p160, %p161
    %p163 = pneg %p162
    // Predicated region
    $region33: #{bsn_unet_forward.18} parent=5 // pred_check
      _
    $region34: #{bsn_unet_forward.18} parent=5 // pred_check_branch
      %165 = sbr.rel (%p162) target = $region36
    $region35: #{bsn_unet_forward.18} parent=5 // pred_region
      %s166 = ssub.s32 %s10, 1
      %p167 = scmp.lt.s32.totalorder %s15, 1
      %s168 = scalar_select %p167, %s15, 1
      %s169 = smul.addr %s168, 4
      %s170 = scalar_lea.vmem %s0, %s169
      %p171 = pneg %p36
      %p172 = pneg %p33
      %p173 = pneg %p57
      %p174 = pneg %p54
      %p175 = pneg %p78
      %p176 = pneg %p75
      %p177 = pneg %p99
      %p178 = pneg %p96
      %p179 = pneg %p125
      %p180 = pneg %p122
      %p181 = scmp.lt.s32.totalorder %s15, 1
      %s182 = scalar_select %p181, %s15, 1
      %s183 = smul.addr %s182, 4
      %s184 = scalar_lea.vmem %s4, %s183
      %p185 = scmp.lt.s32.totalorder %s15, 1
      %s186 = scalar_select %p185, %s15, 1
      %s187 = smul.addr %s186, 4
      %s188 = scalar_lea.vmem %s0, %s187
      %p189 = scmp.lt.s32.totalorder %s15, 1
      %s190 = scalar_select %p189, %s15, 1
      %s191 = smul.addr %s190, 4
      %s192 = scalar_lea.vmem %s4, %s191
      %v194 = vld [vmem:[%s188] sm:$0xf]
      %vm195 = vcmask 76800
      %196 = vst.msk [vmem:[#allocation2] sm:$0xf] %vm195, %v194
      %198 = vrot.lane.b32.xlu0 %v194, 127
      %v199 = vpop.permute.xlu0 %198
      %201 = vst.msk [vmem:[#allocation2 + $0x4] sm:$0xf] %vm195, %v199
      %202 = vrot.lane.b32.xlu0 %v194, 126
      %v203 = vpop.permute.xlu0 %202
      %205 = vst.msk [vmem:[#allocation2 + $0x8] sm:$0xf] %vm195, %v203
      %206 = vrot.lane.b32.xlu0 %v194, 124
      %v207 = vpop.permute.xlu0 %206
      %209 = vst.msk [vmem:[#allocation2 + $0xc] sm:$0xf] %vm195, %v207
      %210 = vrot.lane.b32.xlu0 %v194, 123
      %v211 = vpop.permute.xlu0 %210
      %213 = vst.msk [vmem:[#allocation2 + $0x10] sm:$0xf] %vm195, %v211
      %214 = vrot.lane.b32.xlu0 %v194, 122
      %v215 = vpop.permute.xlu0 %214
      %217 = vst.msk [vmem:[#allocation2 + $0x14] sm:$0xf] %vm195, %v215
      %218 = vrot.lane.b32.xlu0 %v194, 120
      %v219 = vpop.permute.xlu0 %218
      %221 = vst.msk [vmem:[#allocation2 + $0x18] sm:$0xf] %vm195, %v219
      %222 = vrot.lane.b32.xlu0 %v194, 119
      %v223 = vpop.permute.xlu0 %222
      %225 = vst.msk [vmem:[#allocation2 + $0x1c] sm:$0xf] %vm195, %v223
      %226 = vrot.lane.b32.xlu0 %v194, 118
      %v227 = vpop.permute.xlu0 %226
      %229 = vst.msk [vmem:[#allocation2 + $0x20] sm:$0xf] %vm195, %v227
      %v230 = vld [vmem:[%s1] sm:$0xf]
      %v231 = vld [vmem:[#allocation2] sm:$0xf]
      %v232 = vld [vmem:[#allocation2 + $0x4] sm:$0xf]
      %v233 = vld [vmem:[#allocation2 + $0x8] sm:$0xf]
      %v234 = vld [vmem:[#allocation2 + $0xc] sm:$0xf]
      %v235 = vld [vmem:[#allocation2 + $0x10] sm:$0xf]
      %v236 = vld [vmem:[#allocation2 + $0x14] sm:$0xf]
      %v237 = vld [vmem:[#allocation2 + $0x18] sm:$0xf]
      %v238 = vld [vmem:[#allocation2 + $0x1c] sm:$0xf]
      %v239 = vld [vmem:[#allocation2 + $0x20] sm:$0xf]
      %v240 = vld [vmem:[%s2] sm:$0xff]
      %242 = vset.pattern.permute.xlu0 0
      %243 = vperm.xlu0 %242, %v240
      %v244 = vpop.permute.xlu0 %243
      %v255 = vunpack.c.l.b16 %v231
      %v256 = vunpack.c.l.b16 %v232
      %v257 = vunpack.c.l.b16 %v233
      %v258 = vunpack.c.l.b16 %v234
      %v259 = vunpack.c.l.b16 %v235
      %v260 = vunpack.c.l.b16 %v236
      %v261 = vunpack.c.l.b16 %v237
      %v262 = vunpack.c.l.b16 %v238
      %v263 = vunpack.c.l.b16 %v239
      %v264 = vpack.c.b16 %v256, %v255
      %v265 = vpack.c.b16 %v258, %v257
      %v266 = vpack.c.b16 %v260, %v259
      %v267 = vpack.c.b16 %v262, %v261
      %v268 = vpack.c.b16 %v263, %v263
      %vm273 = vcmask 588800
      %v275 = vsel %vm273, %v230, 0
      %vm277 = vcmask 1043456
      %v279 = vsel %vm277, %v268, 0
      %281 = vmatpush.bf16.msra.mxu0 0
      %282 = vmatpush.bf16.msra.mxu0 0
      %283 = vmatpush.bf16.msra.mxu0 0
      %284 = vmatpush.bf16.msra.mxu0 %v279
      %285 = vmatpush.bf16.msra.mxu0 %v267
      %286 = vmatpush.bf16.msra.mxu0 %v266
      %287 = vmatpush.bf16.msra.mxu0 %v265
      %288 = vmatpush.bf16.msra.mxu0 %v264
      %289 = vmatmul.bf16.gmra.mxu0 %v275
      %v290 = vpop.f32.mrf.mxu0
      %v291 = vadd.f32 %v244, %v290
      %v292 = vpop.f32.mrf.mxu0
      %293 = vdwg.mxu0
      %v294 = vmul.f32 %v291, 0.1
      %v295 = vmax.f32 %v291, %v294
      %v296 = vld [vmem:[%s3] sm:$0x1]
      %v298 = vperm.slane %v296, 0
      %v300 = vmul.f32 %v295, %v298
      %vm301 = vcmask 158720
      %302 = vst.msk [vmem:[%s192] sm:$0xf] %vm301, 0
      %v303 = vpack.c.bf16 %v300, %v300
      %305 = vrot.lane.b32.xlu0 %v303, 9
      %v306 = vpop.permute.xlu0 %305
      %vm308 = vcmask 150600
      %309 = vst.msk [vmem:[%s192] sm:$0xf] %vm308, %v306
      %p310 = scmp.lt.s32.totalorder %s15, 1
      %s311 = scalar_select %p310, %s15, 1
      %s312 = smul.addr %s311, 4
      %s313 = scalar_lea.vmem %s4, %s312
      // Predicated region
      $region37: #{bsn_unet_forward.18} parent=35 // pred_check
        %p314 = pneg %p122
      $region38: #{bsn_unet_forward.18} parent=35 // pred_check_branch
        %316 = sbr.rel (%p314) target = $region40
      $region39: #{bsn_unet_forward.18} parent=35 // pred_region
        _
      $region40: #{bsn_unet_forward.18} parent=35 // pred_fallthru
        _
    $region36: #{bsn_unet_forward.18} parent=5 // pred_fallthru
      _
    %p317 = scmp.le.s32.totalorder 2, %s10
    // Predicated region
    $region41: #{bsn_unet_forward.18} parent=5 // pred_check
      %p318 = pneg %p317
    $region42: #{bsn_unet_forward.18} parent=5 // pred_check_branch
      %320 = sbr.rel (%p318) target = $region44
    $region43: #{bsn_unet_forward.18} parent=5 // pred_region
      %s321 = ssub.s32 %s10, 2
      // Predicated region
      $region45: #{bsn_unet_forward.18} parent=43 // pred_check
        %p322 = pneg %p128
      $region46: #{bsn_unet_forward.18} parent=43 // pred_check_branch
        %324 = sbr.rel (%p322) target = $region48
      $region47: #{bsn_unet_forward.18} parent=43 // pred_region
        %p325 = scmp.lt.s32.totalorder %s16, 1
        %s326 = scalar_select %p325, %s16, 1
        %s327 = smul.addr %s326, 4
        %s328 = scalar_lea.vmem %s4, %s327
      $region48: #{bsn_unet_forward.18} parent=43 // pred_fallthru
        _
    $region44: #{bsn_unet_forward.18} parent=5 // pred_fallthru
      _
  $region6: #{bsn_unet_forward.18} parent=0 // loop_footer
    %s14 = sadd.s32 1, %s10
  $region7: #{bsn_unet_forward.18} parent=0 // loop_footer_branch
    %9 = sbr.rel target = $region3
  $region8: #{bsn_unet_forward.18} parent=0 // loop_exit
    _

// kernel: bsn_unet_forward.20
$region0: #{bsn_unet_forward.20}
  #allocation0 [shape = 'u32[]', space=smem, size = 0x4, offset = 0x4, fixed_abs, tag = 'smem constant byte address 0x4 - core index']
  #allocation1 [shape = 'u32[72,128]{1,0:T(1,128)}', space=vmem, size = 0x9000, scoped, tag = 'internal scratch']
  #allocation2 [shape = 'bf16[144,28]{1,0:T(8,128)(2,1)}', space=vmem, size = 0x9000, scoped, tag = 'scratch operand']
  %s0 = inlined_call_operand.vmem [shape: bf16[2,8,42], index: 0, kind: input, shape index: {}]
  %s1 = inlined_call_operand.vmem [shape: bf16[2,8,42], index: 1, kind: input, shape index: {}]
  %s2 = inlined_call_operand.vmem [shape: bf16[16,144], index: 2, kind: input, shape index: {}]
  %s3 = inlined_call_operand.vmem [shape: f32[16,1], index: 3, kind: input, shape index: {}]
  %s4 = inlined_call_operand.vmem [shape: f32[1,28], index: 4, kind: input, shape index: {}]
  %s5 = inlined_call_operand.vmem [shape: bf16[2,16,42], index: 5, kind: output, shape index: {}]
  %s6 = sld [smem:[#allocation0]]
  $region53: #{bsn_unet_forward.20} parent=0
    _
  %s8 = ssub.s32 1, %s6
  %s9 = scalar_select 0, %s8, %s6
  loop: start=0, step=1, limit=4
  $region2: #{bsn_unet_forward.20} parent=0 // loop_pre_header
    _
  $region3: #{bsn_unet_forward.20} parent=0 // loop_header
    %s11 = sphi 0, %s15
    %p12 = scmp.ge.s32.totalorder %s11, 4
    %s21 = sphi 0, %s23
    %s24 = sphi 0, %s21
    %s25 = sphi 0, %s24
    %s41 = sphi 0, %s25
    %s47 = sphi 0, %s49
    %s50 = sphi 0, %s47
    %s51 = sphi 0, %s50
    %s67 = sphi 0, %s51
    %s71 = sphi 0, %s71
    %s73 = sphi 0, %s71
    %s74 = sphi 0, %s73
    %s88 = sphi 0, %s74
    %s92 = sphi 0, %s92
    %s94 = sphi 0, %s92
    %s95 = sphi 0, %s94
    %s109 = sphi 0, %s95
    %s113 = sphi 0, %s113
    %s115 = sphi 0, %s113
    %s116 = sphi 0, %s115
    %s130 = sphi 0, %s116
    %s136 = sphi 0, %s138
    %s139 = sphi 0, %s136
    %s140 = sphi 0, %s139
    %s156 = sphi 0, %s140
  $region4: #{bsn_unet_forward.20} parent=0 // loop_header_branch
    %14 = sbr.rel (%p12) target = $region8
  $region5: #{bsn_unet_forward.20} parent=0 // loop_body
    %s16 = ssub.s32 %s11, 1
    %s17 = ssub.s32 %s11, 2
    %s18 = sadd.s32 %s11, 1
    %s19 = ssub.s32 %s11, %s18
    %p20 = scmp.eq.s32.totalorder %s19, 0
    %s22 = sadd.s32 %s21, 1
    %s23 = scalar_select %p20, %s21, %s22
    %p26 = pneg %p20
    %p27 = scmp.eq.s32.totalorder %s11, 1
    %p28 = por %p26, %p27
    %p29 = scmp.ne.s32.totalorder %s21, %s24
    %p30 = scmp.eq.s32.totalorder %s11, 0
    %p31 = por %p29, %p30
    %p32 = scmp.ne.s32.totalorder %s21, %s24
    %p33 = scmp.eq.s32.totalorder %s16, 1
    %p34 = por %p32, %p33
    %p35 = scmp.ne.s32.totalorder %s24, %s25
    %p36 = scmp.eq.s32.totalorder %s16, 0
    %p37 = por %p35, %p36
    %p38 = scmp.ne.s32.totalorder %s24, %s25
    %p39 = scmp.eq.s32.totalorder %s17, 1
    %p40 = por %p38, %p39
    %p42 = scmp.ne.s32.totalorder %s25, %s41
    %p43 = scmp.eq.s32.totalorder %s17, 0
    %p44 = por %p42, %p43
    %s45 = ssub.s32 %s11, %s18
    %p46 = scmp.eq.s32.totalorder %s45, 0
    %s48 = sadd.s32 %s47, 1
    %s49 = scalar_select %p46, %s47, %s48
    %p52 = pneg %p46
    %p53 = scmp.eq.s32.totalorder %s11, 1
    %p54 = por %p52, %p53
    %p55 = scmp.ne.s32.totalorder %s47, %s50
    %p56 = scmp.eq.s32.totalorder %s11, 0
    %p57 = por %p55, %p56
    %p58 = scmp.ne.s32.totalorder %s47, %s50
    %p59 = scmp.eq.s32.totalorder %s16, 1
    %p60 = por %p58, %p59
    %p61 = scmp.ne.s32.totalorder %s50, %s51
    %p62 = scmp.eq.s32.totalorder %s16, 0
    %p63 = por %p61, %p62
    %p64 = scmp.ne.s32.totalorder %s50, %s51
    %p65 = scmp.eq.s32.totalorder %s17, 1
    %p66 = por %p64, %p65
    %p68 = scmp.ne.s32.totalorder %s51, %s67
    %p69 = scmp.eq.s32.totalorder %s17, 0
    %p70 = por %p68, %p69
    %s72 = sadd.s32 %s71, 1
    %p75 = scmp.eq.s32.totalorder %s11, 1
    %p76 = scmp.ne.s32.totalorder %s71, %s73
    %p77 = scmp.eq.s32.totalorder %s11, 0
    %p78 = por %p76, %p77
    %p79 = scmp.ne.s32.totalorder %s71, %s73
    %p80 = scmp.eq.s32.totalorder %s16, 1
    %p81 = por %p79, %p80
    %p82 = scmp.ne.s32.totalorder %s73, %s74
    %p83 = scmp.eq.s32.totalorder %s16, 0
    %p84 = por %p82, %p83
    %p85 = scmp.ne.s32.totalorder %s73, %s74
    %p86 = scmp.eq.s32.totalorder %s17, 1
    %p87 = por %p85, %p86
    %p89 = scmp.ne.s32.totalorder %s74, %s88
    %p90 = scmp.eq.s32.totalorder %s17, 0
    %p91 = por %p89, %p90
    %s93 = sadd.s32 %s92, 1
    %p96 = scmp.eq.s32.totalorder %s11, 1
    %p97 = scmp.ne.s32.totalorder %s92, %s94
    %p98 = scmp.eq.s32.totalorder %s11, 0
    %p99 = por %p97, %p98
    %p100 = scmp.ne.s32.totalorder %s92, %s94
    %p101 = scmp.eq.s32.totalorder %s16, 1
    %p102 = por %p100, %p101
    %p103 = scmp.ne.s32.totalorder %s94, %s95
    %p104 = scmp.eq.s32.totalorder %s16, 0
    %p105 = por %p103, %p104
    %p106 = scmp.ne.s32.totalorder %s94, %s95
    %p107 = scmp.eq.s32.totalorder %s17, 1
    %p108 = por %p106, %p107
    %p110 = scmp.ne.s32.totalorder %s95, %s109
    %p111 = scmp.eq.s32.totalorder %s17, 0
    %p112 = por %p110, %p111
    %s114 = sadd.s32 %s113, 1
    %p117 = scmp.eq.s32.totalorder %s11, 1
    %p118 = scmp.ne.s32.totalorder %s113, %s115
    %p119 = scmp.eq.s32.totalorder %s11, 0
    %p120 = por %p118, %p119
    %p121 = scmp.ne.s32.totalorder %s113, %s115
    %p122 = scmp.eq.s32.totalorder %s16, 1
    %p123 = por %p121, %p122
    %p124 = scmp.ne.s32.totalorder %s115, %s116
    %p125 = scmp.eq.s32.totalorder %s16, 0
    %p126 = por %p124, %p125
    %p127 = scmp.ne.s32.totalorder %s115, %s116
    %p128 = scmp.eq.s32.totalorder %s17, 1
    %p129 = por %p127, %p128
    %p131 = scmp.ne.s32.totalorder %s116, %s130
    %p132 = scmp.eq.s32.totalorder %s17, 0
    %p133 = por %p131, %p132
    %s134 = ssub.s32 %s11, %s18
    %p135 = scmp.eq.s32.totalorder %s134, 0
    %s137 = sadd.s32 %s136, 1
    %s138 = scalar_select %p135, %s136, %s137
    %p141 = pneg %p135
    %p142 = scmp.eq.s32.totalorder %s11, 1
    %p143 = por %p141, %p142
    %p144 = scmp.ne.s32.totalorder %s136, %s139
    %p145 = scmp.eq.s32.totalorder %s11, 0
    %p146 = por %p144, %p145
    %p147 = scmp.ne.s32.totalorder %s136, %s139
    %p148 = scmp.eq.s32.totalorder %s16, 1
    %p149 = por %p147, %p148
    %p150 = scmp.ne.s32.totalorder %s139, %s140
    %p151 = scmp.eq.s32.totalorder %s16, 0
    %p152 = por %p150, %p151
    %p153 = scmp.ne.s32.totalorder %s139, %s140
    %p154 = scmp.eq.s32.totalorder %s17, 1
    %p155 = por %p153, %p154
    %p157 = scmp.ne.s32.totalorder %s140, %s156
    %p158 = scmp.eq.s32.totalorder %s17, 0
    %p159 = por %p157, %p158
    %p160 = scmp.le.s32.totalorder 1, %s11
    %p161 = scmp.lt.s32.totalorder %s11, 3
    %p162 = pnand %p160, %p161
    %p163 = pneg %p162
    // Predicated region
    $region9: #{bsn_unet_forward.20} parent=5 // pred_check
      _
    $region10: #{bsn_unet_forward.20} parent=5 // pred_check_branch
      %165 = sbr.rel (%p162) target = $region12
    $region11: #{bsn_unet_forward.20} parent=5 // pred_region
      %s166 = ssub.s32 %s11, 1
      // Predicated region
      $region13: #{bsn_unet_forward.20} parent=11 // pred_check
        %p167 = pneg %p84
      $region14: #{bsn_unet_forward.20} parent=11 // pred_check_branch
        %169 = sbr.rel (%p167) target = $region16
      $region15: #{bsn_unet_forward.20} parent=11 // pred_region
        _
      $region16: #{bsn_unet_forward.20} parent=11 // pred_fallthru
        _
      // Predicated region
      $region17: #{bsn_unet_forward.20} parent=11 // pred_check
        %p170 = pneg %p105
      $region18: #{bsn_unet_forward.20} parent=11 // pred_check_branch
        %172 = sbr.rel (%p170) target = $region20
      $region19: #{bsn_unet_forward.20} parent=11 // pred_region
        _
      $region20: #{bsn_unet_forward.20} parent=11 // pred_fallthru
        _
      // Predicated region
      $region21: #{bsn_unet_forward.20} parent=11 // pred_check
        %p173 = pneg %p126
      $region22: #{bsn_unet_forward.20} parent=11 // pred_check_branch
        %175 = sbr.rel (%p173) target = $region24
      $region23: #{bsn_unet_forward.20} parent=11 // pred_region
        _
      $region24: #{bsn_unet_forward.20} parent=11 // pred_fallthru
        _
    $region12: #{bsn_unet_forward.20} parent=5 // pred_fallthru
      _
    %p176 = scmp.lt.s32.totalorder %s11, 2
    // Predicated region
    $region25: #{bsn_unet_forward.20} parent=5 // pred_check
      %p177 = pneg %p176
    $region26: #{bsn_unet_forward.20} parent=5 // pred_check_branch
      %179 = sbr.rel (%p177) target = $region28
    $region27: #{bsn_unet_forward.20} parent=5 // pred_region
      // Predicated region
      $region29: #{bsn_unet_forward.20} parent=27 // pred_check
        %p180 = pneg %p31
      $region30: #{bsn_unet_forward.20} parent=27 // pred_check_branch
        %182 = sbr.rel (%p180) target = $region32
      $region31: #{bsn_unet_forward.20} parent=27 // pred_region
        %p183 = scmp.lt.s32.totalorder %s11, 1
        %s184 = scalar_select %p183, %s11, 1
        %s185 = smul.addr %s184, 4
        %s186 = scalar_lea.vmem %s0, %s185
      $region32: #{bsn_unet_forward.20} parent=27 // pred_fallthru
        _
      // Predicated region
      $region33: #{bsn_unet_forward.20} parent=27 // pred_check
        %p187 = pneg %p57
      $region34: #{bsn_unet_forward.20} parent=27 // pred_check_branch
        %189 = sbr.rel (%p187) target = $region36
      $region35: #{bsn_unet_forward.20} parent=27 // pred_region
        %p190 = scmp.lt.s32.totalorder %s11, 1
        %s191 = scalar_select %p190, %s11, 1
        %s192 = smul.addr %s191, 4
        %s193 = scalar_lea.vmem %s1, %s192
      $region36: #{bsn_unet_forward.20} parent=27 // pred_fallthru
        _
    $region28: #{bsn_unet_forward.20} parent=5 // pred_fallthru
      _
    %p194 = scmp.le.s32.totalorder 1, %s11
    %p195 = scmp.lt.s32.totalorder %s11, 3
    %p196 = pnand %p194, %p195
    %p197 = pneg %p196
    // Predicated region
    $region37: #{bsn_unet_forward.20} parent=5 // pred_check
      _
    $region38: #{bsn_unet_forward.20} parent=5 // pred_check_branch
      %199 = sbr.rel (%p196) target = $region40
    $region39: #{bsn_unet_forward.20} parent=5 // pred_region
      %s200 = ssub.s32 %s11, 1
      %p201 = scmp.lt.s32.totalorder %s16, 1
      %s202 = scalar_select %p201, %s16, 1
      %s203 = smul.addr %s202, 4
      %s204 = scalar_lea.vmem %s0, %s203
      %p205 = pneg %p37
      %p206 = pneg %p34
      %p207 = scmp.lt.s32.totalorder %s16, 1
      %s208 = scalar_select %p207, %s16, 1
      %s209 = smul.addr %s208, 4
      %s210 = scalar_lea.vmem %s1, %s209
      %p211 = pneg %p63
      %p212 = pneg %p60
      %p213 = pneg %p84
      %p214 = pneg %p81
      %p215 = pneg %p105
      %p216 = pneg %p102
      %p217 = pneg %p126
      %p218 = pneg %p123
      %p219 = pneg %p152
      %p220 = pneg %p149
      %p221 = scmp.lt.s32.totalorder %s16, 1
      %s222 = scalar_select %p221, %s16, 1
      %s223 = smul.addr %s222, 2
      %s224 = smul.addr %s223, 4
      %s225 = scalar_lea.vmem %s5, %s224
      %p226 = scmp.lt.s32.totalorder %s16, 1
      %s227 = scalar_select %p226, %s16, 1
      %s228 = smul.addr %s227, 4
      %s229 = scalar_lea.vmem %s0, %s228
      %p230 = scmp.lt.s32.totalorder %s16, 1
      %s231 = scalar_select %p230, %s16, 1
      %s232 = smul.addr %s231, 4
      %s233 = scalar_lea.vmem %s1, %s232
      %p234 = scmp.lt.s32.totalorder %s16, 1
      %s235 = scalar_select %p234, %s16, 1
      %s236 = smul.addr %s235, 2
      %s237 = smul.addr %s236, 4
      %s238 = scalar_lea.vmem %s5, %s237
      %v240 = vld [vmem:[%s229] sm:$0xf]
      %vm241 = vcmask 224256
      %242 = vst.msk [vmem:[#allocation2] sm:$0xf] %vm241, %v240
      %244 = vrot.lane.b32.xlu0 %v240, 127
      %v245 = vpop.permute.xlu0 %244
      %247 = vst.msk [vmem:[#allocation2 + $0x4] sm:$0xf] %vm241, %v245
      %248 = vrot.lane.b32.xlu0 %v240, 126
      %v249 = vpop.permute.xlu0 %248
      %251 = vst.msk [vmem:[#allocation2 + $0x8] sm:$0xf] %vm241, %v249
      %252 = vrot.lane.b32.xlu0 %v240, 122
      %v253 = vpop.permute.xlu0 %252
      %255 = vst.msk [vmem:[#allocation2 + $0xc] sm:$0xf] %vm241, %v253
      %256 = vrot.lane.b32.xlu0 %v240, 121
      %v257 = vpop.permute.xlu0 %256
      %259 = vst.msk [vmem:[#allocation2 + $0x10] sm:$0xf] %vm241, %v257
      %260 = vrot.lane.b32.xlu0 %v240, 120
      %v261 = vpop.permute.xlu0 %260
      %263 = vst.msk [vmem:[#allocation2 + $0x14] sm:$0xf] %vm241, %v261
      %264 = vrot.lane.b32.xlu0 %v240, 116
      %v265 = vpop.permute.xlu0 %264
      %267 = vst.msk [vmem:[#allocation2 + $0x18] sm:$0xf] %vm241, %v265
      %268 = vrot.lane.b32.xlu0 %v240, 115
      %v269 = vpop.permute.xlu0 %268
      %271 = vst.msk [vmem:[#allocation2 + $0x1c] sm:$0xf] %vm241, %v269
      %272 = vrot.lane.b32.xlu0 %v240, 114
      %v273 = vpop.permute.xlu0 %272
      %275 = vst.msk [vmem:[#allocation2 + $0x20] sm:$0xf] %vm241, %v273
      %v276 = vld [vmem:[%s233] sm:$0xf]
      %277 = vst.msk [vmem:[#allocation2 + $0x24] sm:$0xf] %vm241, %v276
      %279 = vrot.lane.b32.xlu0 %v276, 127
      %v280 = vpop.permute.xlu0 %279
      %282 = vst.msk [vmem:[#allocation2 + $0x28] sm:$0xf] %vm241, %v280
      %283 = vrot.lane.b32.xlu0 %v276, 126
      %v284 = vpop.permute.xlu0 %283
      %286 = vst.msk [vmem:[#allocation2 + $0x2c] sm:$0xf] %vm241, %v284
      %287 = vrot.lane.b32.xlu0 %v276, 122
      %v288 = vpop.permute.xlu0 %287
      %290 = vst.msk [vmem:[#allocation2 + $0x30] sm:$0xf] %vm241, %v288
      %291 = vrot.lane.b32.xlu0 %v276, 121
      %v292 = vpop.permute.xlu0 %291
      %294 = vst.msk [vmem:[#allocation2 + $0x34] sm:$0xf] %vm241, %v292
      %295 = vrot.lane.b32.xlu0 %v276, 120
      %v296 = vpop.permute.xlu0 %295
      %298 = vst.msk [vmem:[#allocation2 + $0x38] sm:$0xf] %vm241, %v296
      %299 = vrot.lane.b32.xlu0 %v276, 116
      %v300 = vpop.permute.xlu0 %299
      %302 = vst.msk [vmem:[#allocation2 + $0x3c] sm:$0xf] %vm241, %v300
      %303 = vrot.lane.b32.xlu0 %v276, 115
      %v304 = vpop.permute.xlu0 %303
      %306 = vst.msk [vmem:[#allocation2 + $0x40] sm:$0xf] %vm241, %v304
      %307 = vrot.lane.b32.xlu0 %v276, 114
      %v308 = vpop.permute.xlu0 %307
      %310 = vst.msk [vmem:[#allocation2 + $0x44] sm:$0xf] %vm241, %v308
      %v311 = vld [vmem:[%s2] sm:$0xff]
      %v312 = vld [vmem:[%s2 + $0x8] sm:$0xff]
      %v313 = vld [vmem:[#allocation2] sm:$0xf]
      %v314 = vld [vmem:[#allocation2 + $0x4] sm:$0xf]
      %v315 = vld [vmem:[#allocation2 + $0x8] sm:$0xf]
      %v316 = vld [vmem:[#allocation2 + $0xc] sm:$0xf]
      %v317 = vld [vmem:[#allocation2 + $0x10] sm:$0xf]
      %v318 = vld [vmem:[#allocation2 + $0x14] sm:$0xf]
      %v319 = vld [vmem:[#allocation2 + $0x18] sm:$0xf]
      %v320 = vld [vmem:[#allocation2 + $0x1c] sm:$0xf]
      %v321 = vld [vmem:[#allocation2 + $0x20] sm:$0xf]
      %v322 = vld [vmem:[#allocation2 + $0x24] sm:$0xf]
      %v323 = vld [vmem:[#allocation2 + $0x28] sm:$0xf]
      %v324 = vld [vmem:[#allocation2 + $0x2c] sm:$0xf]
      %v325 = vld [vmem:[#allocation2 + $0x30] sm:$0xf]
      %v326 = vld [vmem:[#allocation2 + $0x34] sm:$0xf]
      %v327 = vld [vmem:[#allocation2 + $0x38] sm:$0xf]
      %v328 = vld [vmem:[#allocation2 + $0x3c] sm:$0xf]
      %v329 = vld [vmem:[#allocation2 + $0x40] sm:$0xf]
      %v330 = vld [vmem:[#allocation2 + $0x44] sm:$0xf]
      %v331 = vld [vmem:[%s3] sm:$0xff]
      %v332 = vld [vmem:[%s3 + $0x8] sm:$0xff]
      %334 = vset.pattern.permute.xlu0 0
      %335 = vperm.xlu0 %334, %v331
      %v336 = vpop.permute.xlu0 %335
      %339 = vset.pattern.permute.xlu0 0
      %340 = vperm.xlu0 %339, %v332
      %v341 = vpop.permute.xlu0 %340
      %v345 = vunpack.c.l.b16 %v311
      %v346 = vunpack.c.h.b16 %v311
      %v347 = vunpack.c.l.b16 %v312
      %v348 = vunpack.c.h.b16 %v312
      %v349 = vpack.c.b16 %v347, %v345
      %v350 = vpack.c.b16 %v348, %v346
      %v370 = vunpack.c.l.b16 %v313
      %v371 = vunpack.c.l.b16 %v314
      %v372 = vunpack.c.l.b16 %v315
      %v373 = vunpack.c.l.b16 %v316
      %v374 = vunpack.c.l.b16 %v317
      %v375 = vunpack.c.l.b16 %v318
      %v376 = vunpack.c.l.b16 %v319
      %v377 = vunpack.c.l.b16 %v320
      %v378 = vunpack.c.l.b16 %v321
      %v379 = vunpack.c.l.b16 %v322
      %v380 = vunpack.c.l.b16 %v323
      %v381 = vunpack.c.l.b16 %v324
      %v382 = vunpack.c.l.b16 %v325
      %v383 = vunpack.c.l.b16 %v326
      %v384 = vunpack.c.l.b16 %v327
      %v385 = vunpack.c.l.b16 %v328
      %v386 = vunpack.c.l.b16 %v329
      %v387 = vunpack.c.l.b16 %v330
      %v388 = vpack.c.b16 %v371, %v370
      %v389 = vpack.c.b16 %v373, %v372
      %v390 = vpack.c.b16 %v375, %v374
      %v391 = vpack.c.b16 %v377, %v376
      %v392 = vpack.c.b16 %v379, %v378
      %v393 = vpack.c.b16 %v381, %v380
      %v394 = vpack.c.b16 %v383, %v382
      %v395 = vpack.c.b16 %v385, %v384
      %v396 = vpack.c.b16 %v387, %v386
      %vm406 = vcmask 130048
      %v408 = vsel %vm406, %v350, 0
      %410 = vmatpush.bf16.msra.mxu0 %v395
      %411 = vmatpush.bf16.msra.mxu0 %v394
      %412 = vmatpush.bf16.msra.mxu0 %v393
      %413 = vmatpush.bf16.msra.mxu0 %v392
      %414 = vmatpush.bf16.msra.mxu0 %v391
      %415 = vmatpush.bf16.msra.mxu0 %v390
      %416 = vmatpush.bf16.msra.mxu0 %v389
      %417 = vmatpush.bf16.msra.mxu0 %v388
      %418 = vmatmul.bf16.gmra.mxu0 %v349
      %v419 = vpop.f32.mrf.mxu0
      %v420 = vadd.f32 %v336, %v419
      %v421 = vpop.f32.mrf.mxu0
      %v422 = vadd.f32 %v341, %v421
      %423 = vdwg.mxu0
      %424 = vmatpush.bf16.msra.mxu0 0
      %425 = vmatpush.bf16.msra.mxu0 0
      %426 = vmatpush.bf16.msra.mxu0 0
      %427 = vmatpush.bf16.msra.mxu0 0
      %428 = vmatpush.bf16.msra.mxu0 0
      %429 = vmatpush.bf16.msra.mxu0 0
      %430 = vmatpush.bf16.msra.mxu0 0
      %431 = vmatpush.bf16.msra.mxu0 %v396
      %432 = vmatmul.bf16.gmra.mxu0 %v408
      %v433 = vpop.f32.mrf.mxu0
      %v434 = vadd.f32 %v420, %v433
      %v435 = vpop.f32.mrf.mxu0
      %v436 = vadd.f32 %v422, %v435
      %437 = vdwg.mxu0
      %v438 = vmul.f32 %v434, 0.1
      %v439 = vmul.f32 %v436, 0.1
      %v440 = vmax.f32 %v434, %v438
      %v441 = vmax.f32 %v436, %v439
      %v442 = vld [vmem:[%s4] sm:$0x1]
      %v444 = vperm.slane %v442, 0
      %v446 = vmul.f32 %v440, %v444
      %v447 = vmul.f32 %v441, %v444
      %vm448 = vcmask 338944
      %449 = vst.msk [vmem:[%s238] sm:$0xf] %vm448, 0
      %450 = vst.msk [vmem:[%s238 + $0x4] sm:$0xf] %vm448, 0
      %v451 = vpack.c.bf16 %v446, %v446
      %v452 = vpack.c.bf16 %v447, %v447
      %455 = vrot.lane.b32.xlu0 %v451, 13
      %v456 = vpop.permute.xlu0 %455
      %457 = vrot.lane.b32.xlu0 %v452, 13
      %v458 = vpop.permute.xlu0 %457
      %vm461 = vcmask 330856
      %462 = vst.msk [vmem:[%s238] sm:$0xf] %vm461, %v456
      %463 = vst.msk [vmem:[%s238 + $0x4] sm:$0xf] %vm461, %v458
      %p464 = scmp.lt.s32.totalorder %s16, 1
      %s465 = scalar_select %p464, %s16, 1
      %s466 = smul.addr %s465, 2
      %s467 = smul.addr %s466, 4
      %s468 = scalar_lea.vmem %s5, %s467
      // Predicated region
      $region41: #{bsn_unet_forward.20} parent=39 // pred_check
        %p469 = pneg %p149
      $region42: #{bsn_unet_forward.20} parent=39 // pred_check_branch
        %471 = sbr.rel (%p469) target = $region44
      $region43: #{bsn_unet_forward.20} parent=39 // pred_region
        _
      $region44: #{bsn_unet_forward.20} parent=39 // pred_fallthru
        _
    $region40: #{bsn_unet_forward.20} parent=5 // pred_fallthru
      _
    %p472 = scmp.le.s32.totalorder 2, %s11
    // Predicated region
    $region45: #{bsn_unet_forward.20} parent=5 // pred_check
      %p473 = pneg %p472
    $region46: #{bsn_unet_forward.20} parent=5 // pred_check_branch
      %475 = sbr.rel (%p473) target = $region48
    $region47: #{bsn_unet_forward.20} parent=5 // pred_region
      %s476 = ssub.s32 %s11, 2
      // Predicated region
      $region49: #{bsn_unet_forward.20} parent=47 // pred_check
        %p477 = pneg %p155
      $region50: #{bsn_unet_forward.20} parent=47 // pred_check_branch
        %479 = sbr.rel (%p477) target = $region52
      $region51: #{bsn_unet_forward.20} parent=47 // pred_region
        %p480 = scmp.lt.s32.totalorder %s17, 1
        %s481 = scalar_select %p480, %s17, 1
        %s482 = smul.addr %s481, 2
        %s483 = smul.addr %s482, 4
        %s484 = scalar_lea.vmem %s5, %s483
      $region52: #{bsn_unet_forward.20} parent=47 // pred_fallthru
        _
    $region48: #{bsn_unet_forward.20} parent=5 // pred_fallthru
      _
  $region6: #{bsn_unet_forward.20} parent=0 // loop_footer
    %s15 = sadd.s32 1, %s11
  $region7: #{bsn_unet_forward.20} parent=0 // loop_footer_branch
    %10 = sbr.rel target = $region3
  $region8: #{bsn_unet_forward.20} parent=0 // loop_exit
    _

// kernel: bsn_unet_forward.22
$region0: #{bsn_unet_forward.22}
  #allocation0 [shape = 'u32[]', space=smem, size = 0x4, offset = 0x4, fixed_abs, tag = 'smem constant byte address 0x4 - core index']
  #allocation1 [shape = 'u32[72,128]{1,0:T(1,128)}', space=vmem, size = 0x9000, scoped, tag = 'internal scratch']
  %s0 = inlined_call_operand.vmem [shape: bf16[2,16,42], index: 0, kind: input, shape index: {}]
  %s1 = inlined_call_operand.vmem [shape: bf16[64,16], index: 1, kind: input, shape index: {}]
  %s2 = inlined_call_operand.vmem [shape: f32[64,1], index: 2, kind: input, shape index: {}]
  %s3 = inlined_call_operand.vmem [shape: f32[1,42], index: 3, kind: input, shape index: {}]
  %s4 = inlined_call_operand.vmem [shape: bf16[2,64,42], index: 4, kind: output, shape index: {}]
  %s5 = sld [smem:[#allocation0]]
  $region49: #{bsn_unet_forward.22} parent=0
    _
  %s7 = ssub.s32 1, %s5
  %s8 = scalar_select 0, %s7, %s5
  loop: start=0, step=1, limit=4
  $region2: #{bsn_unet_forward.22} parent=0 // loop_pre_header
    _
  $region3: #{bsn_unet_forward.22} parent=0 // loop_header
    %s10 = sphi 0, %s14
    %p11 = scmp.ge.s32.totalorder %s10, 4
    %s20 = sphi 0, %s22
    %s23 = sphi 0, %s20
    %s24 = sphi 0, %s23
    %s40 = sphi 0, %s24
    %s44 = sphi 0, %s44
    %s46 = sphi 0, %s44
    %s47 = sphi 0, %s46
    %s61 = sphi 0, %s47
    %s65 = sphi 0, %s65
    %s67 = sphi 0, %s65
    %s68 = sphi 0, %s67
    %s82 = sphi 0, %s68
    %s86 = sphi 0, %s86
    %s88 = sphi 0, %s86
    %s89 = sphi 0, %s88
    %s103 = sphi 0, %s89
    %s109 = sphi 0, %s111
    %s112 = sphi 0, %s109
    %s113 = sphi 0, %s112
    %s129 = sphi 0, %s113
  $region4: #{bsn_unet_forward.22} parent=0 // loop_header_branch
    %13 = sbr.rel (%p11) target = $region8
  $region5: #{bsn_unet_forward.22} parent=0 // loop_body
    %s15 = ssub.s32 %s10, 1
    %s16 = ssub.s32 %s10, 2
    %s17 = sadd.s32 %s10, 1
    %s18 = ssub.s32 %s10, %s17
    %p19 = scmp.eq.s32.totalorder %s18, 0
    %s21 = sadd.s32 %s20, 1
    %s22 = scalar_select %p19, %s20, %s21
    %p25 = pneg %p19
    %p26 = scmp.eq.s32.totalorder %s10, 1
    %p27 = por %p25, %p26
    %p28 = scmp.ne.s32.totalorder %s20, %s23
    %p29 = scmp.eq.s32.totalorder %s10, 0
    %p30 = por %p28, %p29
    %p31 = scmp.ne.s32.totalorder %s20, %s23
    %p32 = scmp.eq.s32.totalorder %s15, 1
    %p33 = por %p31, %p32
    %p34 = scmp.ne.s32.totalorder %s23, %s24
    %p35 = scmp.eq.s32.totalorder %s15, 0
    %p36 = por %p34, %p35
    %p37 = scmp.ne.s32.totalorder %s23, %s24
    %p38 = scmp.eq.s32.totalorder %s16, 1
    %p39 = por %p37, %p38
    %p41 = scmp.ne.s32.totalorder %s24, %s40
    %p42 = scmp.eq.s32.totalorder %s16, 0
    %p43 = por %p41, %p42
    %s45 = sadd.s32 %s44, 1
    %p48 = scmp.eq.s32.totalorder %s10, 1
    %p49 = scmp.ne.s32.totalorder %s44, %s46
    %p50 = scmp.eq.s32.totalorder %s10, 0
    %p51 = por %p49, %p50
    %p52 = scmp.ne.s32.totalorder %s44, %s46
    %p53 = scmp.eq.s32.totalorder %s15, 1
    %p54 = por %p52, %p53
    %p55 = scmp.ne.s32.totalorder %s46, %s47
    %p56 = scmp.eq.s32.totalorder %s15, 0
    %p57 = por %p55, %p56
    %p58 = scmp.ne.s32.totalorder %s46, %s47
    %p59 = scmp.eq.s32.totalorder %s16, 1
    %p60 = por %p58, %p59
    %p62 = scmp.ne.s32.totalorder %s47, %s61
    %p63 = scmp.eq.s32.totalorder %s16, 0
    %p64 = por %p62, %p63
    %s66 = sadd.s32 %s65, 1
    %p69 = scmp.eq.s32.totalorder %s10, 1
    %p70 = scmp.ne.s32.totalorder %s65, %s67
    %p71 = scmp.eq.s32.totalorder %s10, 0
    %p72 = por %p70, %p71
    %p73 = scmp.ne.s32.totalorder %s65, %s67
    %p74 = scmp.eq.s32.totalorder %s15, 1
    %p75 = por %p73, %p74
    %p76 = scmp.ne.s32.totalorder %s67, %s68
    %p77 = scmp.eq.s32.totalorder %s15, 0
    %p78 = por %p76, %p77
    %p79 = scmp.ne.s32.totalorder %s67, %s68
    %p80 = scmp.eq.s32.totalorder %s16, 1
    %p81 = por %p79, %p80
    %p83 = scmp.ne.s32.totalorder %s68, %s82
    %p84 = scmp.eq.s32.totalorder %s16, 0
    %p85 = por %p83, %p84
    %s87 = sadd.s32 %s86, 1
    %p90 = scmp.eq.s32.totalorder %s10, 1
    %p91 = scmp.ne.s32.totalorder %s86, %s88
    %p92 = scmp.eq.s32.totalorder %s10, 0
    %p93 = por %p91, %p92
    %p94 = scmp.ne.s32.totalorder %s86, %s88
    %p95 = scmp.eq.s32.totalorder %s15, 1
    %p96 = por %p94, %p95
    %p97 = scmp.ne.s32.totalorder %s88, %s89
    %p98 = scmp.eq.s32.totalorder %s15, 0
    %p99 = por %p97, %p98
    %p100 = scmp.ne.s32.totalorder %s88, %s89
    %p101 = scmp.eq.s32.totalorder %s16, 1
    %p102 = por %p100, %p101
    %p104 = scmp.ne.s32.totalorder %s89, %s103
    %p105 = scmp.eq.s32.totalorder %s16, 0
    %p106 = por %p104, %p105
    %s107 = ssub.s32 %s10, %s17
    %p108 = scmp.eq.s32.totalorder %s107, 0
    %s110 = sadd.s32 %s109, 1
    %s111 = scalar_select %p108, %s109, %s110
    %p114 = pneg %p108
    %p115 = scmp.eq.s32.totalorder %s10, 1
    %p116 = por %p114, %p115
    %p117 = scmp.ne.s32.totalorder %s109, %s112
    %p118 = scmp.eq.s32.totalorder %s10, 0
    %p119 = por %p117, %p118
    %p120 = scmp.ne.s32.totalorder %s109, %s112
    %p121 = scmp.eq.s32.totalorder %s15, 1
    %p122 = por %p120, %p121
    %p123 = scmp.ne.s32.totalorder %s112, %s113
    %p124 = scmp.eq.s32.totalorder %s15, 0
    %p125 = por %p123, %p124
    %p126 = scmp.ne.s32.totalorder %s112, %s113
    %p127 = scmp.eq.s32.totalorder %s16, 1
    %p128 = por %p126, %p127
    %p130 = scmp.ne.s32.totalorder %s113, %s129
    %p131 = scmp.eq.s32.totalorder %s16, 0
    %p132 = por %p130, %p131
    %p133 = scmp.le.s32.totalorder 1, %s10
    %p134 = scmp.lt.s32.totalorder %s10, 3
    %p135 = pnand %p133, %p134
    %p136 = pneg %p135
    // Predicated region
    $region9: #{bsn_unet_forward.22} parent=5 // pred_check
      _
    $region10: #{bsn_unet_forward.22} parent=5 // pred_check_branch
      %138 = sbr.rel (%p135) target = $region12
    $region11: #{bsn_unet_forward.22} parent=5 // pred_region
      %s139 = ssub.s32 %s10, 1
      // Predicated region
      $region13: #{bsn_unet_forward.22} parent=11 // pred_check
        %p140 = pneg %p57
      $region14: #{bsn_unet_forward.22} parent=11 // pred_check_branch
        %142 = sbr.rel (%p140) target = $region16
      $region15: #{bsn_unet_forward.22} parent=11 // pred_region
        _
      $region16: #{bsn_unet_forward.22} parent=11 // pred_fallthru
        _
      // Predicated region
      $region17: #{bsn_unet_forward.22} parent=11 // pred_check
        %p143 = pneg %p78
      $region18: #{bsn_unet_forward.22} parent=11 // pred_check_branch
        %145 = sbr.rel (%p143) target = $region20
      $region19: #{bsn_unet_forward.22} parent=11 // pred_region
        _
      $region20: #{bsn_unet_forward.22} parent=11 // pred_fallthru
        _
      // Predicated region
      $region21: #{bsn_unet_forward.22} parent=11 // pred_check
        %p146 = pneg %p99
      $region22: #{bsn_unet_forward.22} parent=11 // pred_check_branch
        %148 = sbr.rel (%p146) target = $region24
      $region23: #{bsn_unet_forward.22} parent=11 // pred_region
        _
      $region24: #{bsn_unet_forward.22} parent=11 // pred_fallthru
        _
    $region12: #{bsn_unet_forward.22} parent=5 // pred_fallthru
      _
    %p149 = scmp.lt.s32.totalorder %s10, 2
    // Predicated region
    $region25: #{bsn_unet_forward.22} parent=5 // pred_check
      %p150 = pneg %p149
    $region26: #{bsn_unet_forward.22} parent=5 // pred_check_branch
      %152 = sbr.rel (%p150) target = $region28
    $region27: #{bsn_unet_forward.22} parent=5 // pred_region
      // Predicated region
      $region29: #{bsn_unet_forward.22} parent=27 // pred_check
        %p153 = pneg %p30
      $region30: #{bsn_unet_forward.22} parent=27 // pred_check_branch
        %155 = sbr.rel (%p153) target = $region32
      $region31: #{bsn_unet_forward.22} parent=27 // pred_region
        %p156 = scmp.lt.s32.totalorder %s10, 1
        %s157 = scalar_select %p156, %s10, 1
        %s158 = smul.addr %s157, 2
        %s159 = smul.addr %s158, 4
        %s160 = scalar_lea.vmem %s0, %s159
      $region32: #{bsn_unet_forward.22} parent=27 // pred_fallthru
        _
    $region28: #{bsn_unet_forward.22} parent=5 // pred_fallthru
      _
    %p161 = scmp.le.s32.totalorder 1, %s10
    %p162 = scmp.lt.s32.totalorder %s10, 3
    %p163 = pnand %p161, %p162
    %p164 = pneg %p163
    // Predicated region
    $region33: #{bsn_unet_forward.22} parent=5 // pred_check
      _
    $region34: #{bsn_unet_forward.22} parent=5 // pred_check_branch
      %166 = sbr.rel (%p163) target = $region36
    $region35: #{bsn_unet_forward.22} parent=5 // pred_region
      %s167 = ssub.s32 %s10, 1
      %p168 = scmp.lt.s32.totalorder %s15, 1
      %s169 = scalar_select %p168, %s15, 1
      %s170 = smul.addr %s169, 2
      %s171 = smul.addr %s170, 4
      %s172 = scalar_lea.vmem %s0, %s171
      %p173 = pneg %p36
      %p174 = pneg %p33
      %p175 = pneg %p57
      %p176 = pneg %p54
      %p177 = pneg %p78
      %p178 = pneg %p75
      %p179 = pneg %p99
      %p180 = pneg %p96
      %p181 = pneg %p125
      %p182 = pneg %p122
      %p183 = scmp.lt.s32.totalorder %s15, 1
      %s184 = scalar_select %p183, %s15, 1
      %s185 = smul.addr %s184, 8
      %s186 = smul.addr %s185, 4
      %s187 = scalar_lea.vmem %s4, %s186
      %p188 = scmp.lt.s32.totalorder %s15, 1
      %s189 = scalar_select %p188, %s15, 1
      %s190 = smul.addr %s189, 2
      %s191 = smul.addr %s190, 4
      %s192 = scalar_lea.vmem %s0, %s191
      %p193 = scmp.lt.s32.totalorder %s15, 1
      %s194 = scalar_select %p193, %s15, 1
      %s195 = smul.addr %s194, 8
      %s196 = smul.addr %s195, 4
      %s197 = scalar_lea.vmem %s4, %s196
      %v199 = vld [vmem:[%s1] sm:$0xf]
      %v200 = vld [vmem:[%s1 + $0x4] sm:$0xf]
      %v201 = vld [vmem:[%s1 + $0x8] sm:$0xf]
      %v202 = vld [vmem:[%s1 + $0xc] sm:$0xf]
      %v203 = vld [vmem:[%s1 + $0x10] sm:$0xf]
      %v204 = vld [vmem:[%s1 + $0x14] sm:$0xf]
      %v205 = vld [vmem:[%s1 + $0x18] sm:$0xf]
      %v206 = vld [vmem:[%s1 + $0x1c] sm:$0xf]
      %v207 = vld [vmem:[%s192] sm:$0xf]
      %v208 = vld [vmem:[%s192 + $0x4] sm:$0xf]
      %v209 = vld [vmem:[%s2] sm:$0xff]
      %v210 = vld [vmem:[%s2 + $0x8] sm:$0xff]
      %v211 = vld [vmem:[%s2 + $0x10] sm:$0xff]
      %v212 = vld [vmem:[%s2 + $0x18] sm:$0xff]
      %v213 = vld [vmem:[%s2 + $0x20] sm:$0xff]
      %v214 = vld [vmem:[%s2 + $0x28] sm:$0xff]
      %v215 = vld [vmem:[%s2 + $0x30] sm:$0xff]
      %v216 = vld [vmem:[%s2 + $0x38] sm:$0xff]
      %218 = vset.pattern.permute.xlu0 0
      %219 = vperm.xlu0 %218, %v209
      %v220 = vpop.permute.xlu0 %219
      %223 = vset.pattern.permute.xlu0 0
      %224 = vperm.xlu0 %223, %v210
      %v225 = vpop.permute.xlu0 %224
      %228 = vset.pattern.permute.xlu0 0
      %229 = vperm.xlu0 %228, %v211
      %v230 = vpop.permute.xlu0 %229
      %233 = vset.pattern.permute.xlu0 0
      %234 = vperm.xlu0 %233, %v212
      %v235 = vpop.permute.xlu0 %234
      %238 = vset.pattern.permute.xlu0 0
      %239 = vperm.xlu0 %238, %v213
      %v240 = vpop.permute.xlu0 %239
      %243 = vset.pattern.permute.xlu0 0
      %244 = vperm.xlu0 %243, %v214
      %v245 = vpop.permute.xlu0 %244
      %248 = vset.pattern.permute.xlu0 0
      %249 = vperm.xlu0 %248, %v215
      %v250 = vpop.permute.xlu0 %249
      %253 = vset.pattern.permute.xlu0 0
      %254 = vperm.xlu0 %253, %v216
      %v255 = vpop.permute.xlu0 %254
      %v265 = vunpack.c.l.b16 %v199
      %v266 = vunpack.c.l.b16 %v200
      %v267 = vunpack.c.l.b16 %v201
      %v268 = vunpack.c.l.b16 %v202
      %v269 = vunpack.c.l.b16 %v203
      %v270 = vunpack.c.l.b16 %v204
      %v271 = vunpack.c.l.b16 %v205
      %v272 = vunpack.c.l.b16 %v206
      %v273 = vpack.c.b16 %v266, %v265
      %v274 = vpack.c.b16 %v268, %v267
      %v275 = vpack.c.b16 %v270, %v269
      %v276 = vpack.c.b16 %v272, %v271
      %v279 = vunpack.c.l.b16 %v207
      %v280 = vunpack.c.l.b16 %v208
      %v281 = vpack.c.b16 %v280, %v279
      %vm283 = vcmask 130048
      %v285 = vsel %vm283, %v273, 0
      %v288 = vsel %vm283, %v274, 0
      %v291 = vsel %vm283, %v275, 0
      %v294 = vsel %vm283, %v276, 0
      %296 = vmatpush.bf16.msra.mxu0 0
      %297 = vmatpush.bf16.msra.mxu0 0
      %298 = vmatpush.bf16.msra.mxu0 0
      %299 = vmatpush.bf16.msra.mxu0 0
      %300 = vmatpush.bf16.msra.mxu0 0
      %301 = vmatpush.bf16.msra.mxu0 0
      %302 = vmatpush.bf16.msra.mxu0 0
      %303 = vmatpush.bf16.msra.mxu0 %v281
      %304 = vmatmul.bf16.gmra.mxu0 %v285
      %v305 = vpop.f32.mrf.mxu0
      %v306 = vadd.f32 %v220, %v305
      %v307 = vpop.f32.mrf.mxu0
      %v308 = vadd.f32 %v225, %v307
      %309 = vmatmul.bf16.gmra.mxu0 %v288
      %v310 = vpop.f32.mrf.mxu0
      %v311 = vadd.f32 %v230, %v310
      %v312 = vpop.f32.mrf.mxu0
      %v313 = vadd.f32 %v235, %v312
      %314 = vmatmul.bf16.gmra.mxu0 %v291
      %v315 = vpop.f32.mrf.mxu0
      %v316 = vadd.f32 %v240, %v315
      %v317 = vpop.f32.mrf.mxu0
      %v318 = vadd.f32 %v245, %v317
      %319 = vmatmul.bf16.gmra.mxu0 %v294
      %v320 = vpop.f32.mrf.mxu0
      %v321 = vadd.f32 %v250, %v320
      %v322 = vpop.f32.mrf.mxu0
      %v323 = vadd.f32 %v255, %v322
      %324 = vdwg.mxu0
      %v325 = vld [vmem:[%s3] sm:$0x1]
      %v327 = vperm.slane %v325, 0
      %v329 = vmul.f32 %v306, %v327
      %v330 = vmul.f32 %v308, %v327
      %v331 = vmul.f32 %v311, %v327
      %v332 = vmul.f32 %v313, %v327
      %v333 = vmul.f32 %v316, %v327
      %v334 = vmul.f32 %v318, %v327
      %v335 = vmul.f32 %v321, %v327
      %v336 = vmul.f32 %v323, %v327
      %v337 = vpack.c.bf16 %v329, %v329
      %v338 = vpack.c.bf16 %v330, %v330
      %v339 = vpack.c.bf16 %v331, %v331
      %v340 = vpack.c.bf16 %v332, %v332
      %v341 = vpack.c.bf16 %v333, %v333
      %v342 = vpack.c.bf16 %v334, %v334
      %v343 = vpack.c.bf16 %v335, %v335
      %v344 = vpack.c.bf16 %v336, %v336
      %vm345 = vcmask 338944
      %346 = vst.msk [vmem:[%s197] sm:$0xf] %vm345, %v337
      %347 = vst.msk [vmem:[%s197 + $0x4] sm:$0xf] %vm345, %v338
      %348 = vst.msk [vmem:[%s197 + $0x8] sm:$0xf] %vm345, %v339
      %349 = vst.msk [vmem:[%s197 + $0xc] sm:$0xf] %vm345, %v340
      %350 = vst.msk [vmem:[%s197 + $0x10] sm:$0xf] %vm345, %v341
      %351 = vst.msk [vmem:[%s197 + $0x14] sm:$0xf] %vm345, %v342
      %352 = vst.msk [vmem:[%s197 + $0x18] sm:$0xf] %vm345, %v343
      %353 = vst.msk [vmem:[%s197 + $0x1c] sm:$0xf] %vm345, %v344
      %p354 = scmp.lt.s32.totalorder %s15, 1
      %s355 = scalar_select %p354, %s15, 1
      %s356 = smul.addr %s355, 8
      %s357 = smul.addr %s356, 4
      %s358 = scalar_lea.vmem %s4, %s357
      // Predicated region
      $region37: #{bsn_unet_forward.22} parent=35 // pred_check
        %p359 = pneg %p122
      $region38: #{bsn_unet_forward.22} parent=35 // pred_check_branch
        %361 = sbr.rel (%p359) target = $region40
      $region39: #{bsn_unet_forward.22} parent=35 // pred_region
        _
      $region40: #{bsn_unet_forward.22} parent=35 // pred_fallthru
        _
    $region36: #{bsn_unet_forward.22} parent=5 // pred_fallthru
      _
    %p362 = scmp.le.s32.totalorder 2, %s10
    // Predicated region
    $region41: #{bsn_unet_forward.22} parent=5 // pred_check
      %p363 = pneg %p362
    $region42: #{bsn_unet_forward.22} parent=5 // pred_check_branch
      %365 = sbr.rel (%p363) target = $region44
    $region43: #{bsn_unet_forward.22} parent=5 // pred_region
      %s366 = ssub.s32 %s10, 2
      // Predicated region
      $region45: #{bsn_unet_forward.22} parent=43 // pred_check
        %p367 = pneg %p128
      $region46: #{bsn_unet_forward.22} parent=43 // pred_check_branch
        %369 = sbr.rel (%p367) target = $region48
      $region47: #{bsn_unet_forward.22} parent=43 // pred_region
        %p370 = scmp.lt.s32.totalorder %s16, 1
        %s371 = scalar_select %p370, %s16, 1
        %s372 = smul.addr %s371, 8
        %s373 = smul.addr %s372, 4
        %s374 = scalar_lea.vmem %s4, %s373
      $region48: #{bsn_unet_forward.22} parent=43 // pred_fallthru
        _
    $region44: #{bsn_unet_forward.22} parent=5 // pred_fallthru
      _
  $region6: #{bsn_unet_forward.22} parent=0 // loop_footer
    %s14 = sadd.s32 1, %s10
  $region7: #{bsn_unet_forward.22} parent=0 // loop_footer_branch
    %9 = sbr.rel target = $region3
  $region8: #{bsn_unet_forward.22} parent=0 // loop_exit
    _

// kernel: bsn_unet_forward.21
$region0: #{bsn_unet_forward.21}
  #allocation0 [shape = 'u32[]', space=smem, size = 0x4, offset = 0x4, fixed_abs, tag = 'smem constant byte address 0x4 - core index']
  #allocation1 [shape = 'u32[72,128]{1,0:T(1,128)}', space=vmem, size = 0x9000, scoped, tag = 'internal scratch']
  #allocation2 [shape = 'bf16[144,28]{1,0:T(8,128)(2,1)}', space=vmem, size = 0x9000, scoped, tag = 'scratch operand']
  %s0 = inlined_call_operand.vmem [shape: bf16[2,16,42], index: 0, kind: input, shape index: {}]
  %s1 = inlined_call_operand.vmem [shape: bf16[16,144], index: 1, kind: input, shape index: {}]
  %s2 = inlined_call_operand.vmem [shape: f32[16,1], index: 2, kind: input, shape index: {}]
  %s3 = inlined_call_operand.vmem [shape: f32[1,28], index: 3, kind: input, shape index: {}]
  %s4 = inlined_call_operand.vmem [shape: bf16[2,16,42], index: 4, kind: output, shape index: {}]
  %s5 = sld [smem:[#allocation0]]
  $region49: #{bsn_unet_forward.21} parent=0
    _
  %s7 = ssub.s32 1, %s5
  %s8 = scalar_select 0, %s7, %s5
  loop: start=0, step=1, limit=4
  $region2: #{bsn_unet_forward.21} parent=0 // loop_pre_header
    _
  $region3: #{bsn_unet_forward.21} parent=0 // loop_header
    %s10 = sphi 0, %s14
    %p11 = scmp.ge.s32.totalorder %s10, 4
    %s20 = sphi 0, %s22
    %s23 = sphi 0, %s20
    %s24 = sphi 0, %s23
    %s40 = sphi 0, %s24
    %s44 = sphi 0, %s44
    %s46 = sphi 0, %s44
    %s47 = sphi 0, %s46
    %s61 = sphi 0, %s47
    %s65 = sphi 0, %s65
    %s67 = sphi 0, %s65
    %s68 = sphi 0, %s67
    %s82 = sphi 0, %s68
    %s86 = sphi 0, %s86
    %s88 = sphi 0, %s86
    %s89 = sphi 0, %s88
    %s103 = sphi 0, %s89
    %s109 = sphi 0, %s111
    %s112 = sphi 0, %s109
    %s113 = sphi 0, %s112
    %s129 = sphi 0, %s113
  $region4: #{bsn_unet_forward.21} parent=0 // loop_header_branch
    %13 = sbr.rel (%p11) target = $region8
  $region5: #{bsn_unet_forward.21} parent=0 // loop_body
    %s15 = ssub.s32 %s10, 1
    %s16 = ssub.s32 %s10, 2
    %s17 = sadd.s32 %s10, 1
    %s18 = ssub.s32 %s10, %s17
    %p19 = scmp.eq.s32.totalorder %s18, 0
    %s21 = sadd.s32 %s20, 1
    %s22 = scalar_select %p19, %s20, %s21
    %p25 = pneg %p19
    %p26 = scmp.eq.s32.totalorder %s10, 1
    %p27 = por %p25, %p26
    %p28 = scmp.ne.s32.totalorder %s20, %s23
    %p29 = scmp.eq.s32.totalorder %s10, 0
    %p30 = por %p28, %p29
    %p31 = scmp.ne.s32.totalorder %s20, %s23
    %p32 = scmp.eq.s32.totalorder %s15, 1
    %p33 = por %p31, %p32
    %p34 = scmp.ne.s32.totalorder %s23, %s24
    %p35 = scmp.eq.s32.totalorder %s15, 0
    %p36 = por %p34, %p35
    %p37 = scmp.ne.s32.totalorder %s23, %s24
    %p38 = scmp.eq.s32.totalorder %s16, 1
    %p39 = por %p37, %p38
    %p41 = scmp.ne.s32.totalorder %s24, %s40
    %p42 = scmp.eq.s32.totalorder %s16, 0
    %p43 = por %p41, %p42
    %s45 = sadd.s32 %s44, 1
    %p48 = scmp.eq.s32.totalorder %s10, 1
    %p49 = scmp.ne.s32.totalorder %s44, %s46
    %p50 = scmp.eq.s32.totalorder %s10, 0
    %p51 = por %p49, %p50
    %p52 = scmp.ne.s32.totalorder %s44, %s46
    %p53 = scmp.eq.s32.totalorder %s15, 1
    %p54 = por %p52, %p53
    %p55 = scmp.ne.s32.totalorder %s46, %s47
    %p56 = scmp.eq.s32.totalorder %s15, 0
    %p57 = por %p55, %p56
    %p58 = scmp.ne.s32.totalorder %s46, %s47
    %p59 = scmp.eq.s32.totalorder %s16, 1
    %p60 = por %p58, %p59
    %p62 = scmp.ne.s32.totalorder %s47, %s61
    %p63 = scmp.eq.s32.totalorder %s16, 0
    %p64 = por %p62, %p63
    %s66 = sadd.s32 %s65, 1
    %p69 = scmp.eq.s32.totalorder %s10, 1
    %p70 = scmp.ne.s32.totalorder %s65, %s67
    %p71 = scmp.eq.s32.totalorder %s10, 0
    %p72 = por %p70, %p71
    %p73 = scmp.ne.s32.totalorder %s65, %s67
    %p74 = scmp.eq.s32.totalorder %s15, 1
    %p75 = por %p73, %p74
    %p76 = scmp.ne.s32.totalorder %s67, %s68
    %p77 = scmp.eq.s32.totalorder %s15, 0
    %p78 = por %p76, %p77
    %p79 = scmp.ne.s32.totalorder %s67, %s68
    %p80 = scmp.eq.s32.totalorder %s16, 1
    %p81 = por %p79, %p80
    %p83 = scmp.ne.s32.totalorder %s68, %s82
    %p84 = scmp.eq.s32.totalorder %s16, 0
    %p85 = por %p83, %p84
    %s87 = sadd.s32 %s86, 1
    %p90 = scmp.eq.s32.totalorder %s10, 1
    %p91 = scmp.ne.s32.totalorder %s86, %s88
    %p92 = scmp.eq.s32.totalorder %s10, 0
    %p93 = por %p91, %p92
    %p94 = scmp.ne.s32.totalorder %s86, %s88
    %p95 = scmp.eq.s32.totalorder %s15, 1
    %p96 = por %p94, %p95
    %p97 = scmp.ne.s32.totalorder %s88, %s89
    %p98 = scmp.eq.s32.totalorder %s15, 0
    %p99 = por %p97, %p98
    %p100 = scmp.ne.s32.totalorder %s88, %s89
    %p101 = scmp.eq.s32.totalorder %s16, 1
    %p102 = por %p100, %p101
    %p104 = scmp.ne.s32.totalorder %s89, %s103
    %p105 = scmp.eq.s32.totalorder %s16, 0
    %p106 = por %p104, %p105
    %s107 = ssub.s32 %s10, %s17
    %p108 = scmp.eq.s32.totalorder %s107, 0
    %s110 = sadd.s32 %s109, 1
    %s111 = scalar_select %p108, %s109, %s110
    %p114 = pneg %p108
    %p115 = scmp.eq.s32.totalorder %s10, 1
    %p116 = por %p114, %p115
    %p117 = scmp.ne.s32.totalorder %s109, %s112
    %p118 = scmp.eq.s32.totalorder %s10, 0
    %p119 = por %p117, %p118
    %p120 = scmp.ne.s32.totalorder %s109, %s112
    %p121 = scmp.eq.s32.totalorder %s15, 1
    %p122 = por %p120, %p121
    %p123 = scmp.ne.s32.totalorder %s112, %s113
    %p124 = scmp.eq.s32.totalorder %s15, 0
    %p125 = por %p123, %p124
    %p126 = scmp.ne.s32.totalorder %s112, %s113
    %p127 = scmp.eq.s32.totalorder %s16, 1
    %p128 = por %p126, %p127
    %p130 = scmp.ne.s32.totalorder %s113, %s129
    %p131 = scmp.eq.s32.totalorder %s16, 0
    %p132 = por %p130, %p131
    %p133 = scmp.le.s32.totalorder 1, %s10
    %p134 = scmp.lt.s32.totalorder %s10, 3
    %p135 = pnand %p133, %p134
    %p136 = pneg %p135
    // Predicated region
    $region9: #{bsn_unet_forward.21} parent=5 // pred_check
      _
    $region10: #{bsn_unet_forward.21} parent=5 // pred_check_branch
      %138 = sbr.rel (%p135) target = $region12
    $region11: #{bsn_unet_forward.21} parent=5 // pred_region
      %s139 = ssub.s32 %s10, 1
      // Predicated region
      $region13: #{bsn_unet_forward.21} parent=11 // pred_check
        %p140 = pneg %p57
      $region14: #{bsn_unet_forward.21} parent=11 // pred_check_branch
        %142 = sbr.rel (%p140) target = $region16
      $region15: #{bsn_unet_forward.21} parent=11 // pred_region
        _
      $region16: #{bsn_unet_forward.21} parent=11 // pred_fallthru
        _
      // Predicated region
      $region17: #{bsn_unet_forward.21} parent=11 // pred_check
        %p143 = pneg %p78
      $region18: #{bsn_unet_forward.21} parent=11 // pred_check_branch
        %145 = sbr.rel (%p143) target = $region20
      $region19: #{bsn_unet_forward.21} parent=11 // pred_region
        _
      $region20: #{bsn_unet_forward.21} parent=11 // pred_fallthru
        _
      // Predicated region
      $region21: #{bsn_unet_forward.21} parent=11 // pred_check
        %p146 = pneg %p99
      $region22: #{bsn_unet_forward.21} parent=11 // pred_check_branch
        %148 = sbr.rel (%p146) target = $region24
      $region23: #{bsn_unet_forward.21} parent=11 // pred_region
        _
      $region24: #{bsn_unet_forward.21} parent=11 // pred_fallthru
        _
    $region12: #{bsn_unet_forward.21} parent=5 // pred_fallthru
      _
    %p149 = scmp.lt.s32.totalorder %s10, 2
    // Predicated region
    $region25: #{bsn_unet_forward.21} parent=5 // pred_check
      %p150 = pneg %p149
    $region26: #{bsn_unet_forward.21} parent=5 // pred_check_branch
      %152 = sbr.rel (%p150) target = $region28
    $region27: #{bsn_unet_forward.21} parent=5 // pred_region
      // Predicated region
      $region29: #{bsn_unet_forward.21} parent=27 // pred_check
        %p153 = pneg %p30
      $region30: #{bsn_unet_forward.21} parent=27 // pred_check_branch
        %155 = sbr.rel (%p153) target = $region32
      $region31: #{bsn_unet_forward.21} parent=27 // pred_region
        %p156 = scmp.lt.s32.totalorder %s10, 1
        %s157 = scalar_select %p156, %s10, 1
        %s158 = smul.addr %s157, 2
        %s159 = smul.addr %s158, 4
        %s160 = scalar_lea.vmem %s0, %s159
      $region32: #{bsn_unet_forward.21} parent=27 // pred_fallthru
        _
    $region28: #{bsn_unet_forward.21} parent=5 // pred_fallthru
      _
    %p161 = scmp.le.s32.totalorder 1, %s10
    %p162 = scmp.lt.s32.totalorder %s10, 3
    %p163 = pnand %p161, %p162
    %p164 = pneg %p163
    // Predicated region
    $region33: #{bsn_unet_forward.21} parent=5 // pred_check
      _
    $region34: #{bsn_unet_forward.21} parent=5 // pred_check_branch
      %166 = sbr.rel (%p163) target = $region36
    $region35: #{bsn_unet_forward.21} parent=5 // pred_region
      %s167 = ssub.s32 %s10, 1
      %p168 = scmp.lt.s32.totalorder %s15, 1
      %s169 = scalar_select %p168, %s15, 1
      %s170 = smul.addr %s169, 2
      %s171 = smul.addr %s170, 4
      %s172 = scalar_lea.vmem %s0, %s171
      %p173 = pneg %p36
      %p174 = pneg %p33
      %p175 = pneg %p57
      %p176 = pneg %p54
      %p177 = pneg %p78
      %p178 = pneg %p75
      %p179 = pneg %p99
      %p180 = pneg %p96
      %p181 = pneg %p125
      %p182 = pneg %p122
      %p183 = scmp.lt.s32.totalorder %s15, 1
      %s184 = scalar_select %p183, %s15, 1
      %s185 = smul.addr %s184, 2
      %s186 = smul.addr %s185, 4
      %s187 = scalar_lea.vmem %s4, %s186
      %p188 = scmp.lt.s32.totalorder %s15, 1
      %s189 = scalar_select %p188, %s15, 1
      %s190 = smul.addr %s189, 2
      %s191 = smul.addr %s190, 4
      %s192 = scalar_lea.vmem %s0, %s191
      %p193 = scmp.lt.s32.totalorder %s15, 1
      %s194 = scalar_select %p193, %s15, 1
      %s195 = smul.addr %s194, 2
      %s196 = smul.addr %s195, 4
      %s197 = scalar_lea.vmem %s4, %s196
      %v199 = vld [vmem:[%s192] sm:$0xf]
      %v200 = vld [vmem:[%s192 + $0x4] sm:$0xf]
      %vm201 = vcmask 224256
      %202 = vst.msk [vmem:[#allocation2] sm:$0xf] %vm201, %v199
      %203 = vst.msk [vmem:[#allocation2 + $0x4] sm:$0xf] %vm201, %v200
      %206 = vrot.lane.b32.xlu0 %v199, 127
      %v207 = vpop.permute.xlu0 %206
      %208 = vrot.lane.b32.xlu0 %v200, 127
      %v209 = vpop.permute.xlu0 %208
      %212 = vst.msk [vmem:[#allocation2 + $0x8] sm:$0xf] %vm201, %v207
      %213 = vst.msk [vmem:[#allocation2 + $0xc] sm:$0xf] %vm201, %v209
      %214 = vrot.lane.b32.xlu0 %v199, 126
      %v215 = vpop.permute.xlu0 %214
      %216 = vrot.lane.b32.xlu0 %v200, 126
      %v217 = vpop.permute.xlu0 %216
      %220 = vst.msk [vmem:[#allocation2 + $0x10] sm:$0xf] %vm201, %v215
      %221 = vst.msk [vmem:[#allocation2 + $0x14] sm:$0xf] %vm201, %v217
      %222 = vrot.lane.b32.xlu0 %v199, 122
      %v223 = vpop.permute.xlu0 %222
      %224 = vrot.lane.b32.xlu0 %v200, 122
      %v225 = vpop.permute.xlu0 %224
      %228 = vst.msk [vmem:[#allocation2 + $0x18] sm:$0xf] %vm201, %v223
      %229 = vst.msk [vmem:[#allocation2 + $0x1c] sm:$0xf] %vm201, %v225
      %230 = vrot.lane.b32.xlu0 %v199, 121
      %v231 = vpop.permute.xlu0 %230
      %232 = vrot.lane.b32.xlu0 %v200, 121
      %v233 = vpop.permute.xlu0 %232
      %236 = vst.msk [vmem:[#allocation2 + $0x20] sm:$0xf] %vm201, %v231
      %237 = vst.msk [vmem:[#allocation2 + $0x24] sm:$0xf] %vm201, %v233
      %238 = vrot.lane.b32.xlu0 %v199, 120
      %v239 = vpop.permute.xlu0 %238
      %240 = vrot.lane.b32.xlu0 %v200, 120
      %v241 = vpop.permute.xlu0 %240
      %244 = vst.msk [vmem:[#allocation2 + $0x28] sm:$0xf] %vm201, %v239
      %245 = vst.msk [vmem:[#allocation2 + $0x2c] sm:$0xf] %vm201, %v241
      %246 = vrot.lane.b32.xlu0 %v199, 116
      %v247 = vpop.permute.xlu0 %246
      %248 = vrot.lane.b32.xlu0 %v200, 116
      %v249 = vpop.permute.xlu0 %248
      %252 = vst.msk [vmem:[#allocation2 + $0x30] sm:$0xf] %vm201, %v247
      %253 = vst.msk [vmem:[#allocation2 + $0x34] sm:$0xf] %vm201, %v249
      %254 = vrot.lane.b32.xlu0 %v199, 115
      %v255 = vpop.permute.xlu0 %254
      %256 = vrot.lane.b32.xlu0 %v200, 115
      %v257 = vpop.permute.xlu0 %256
      %260 = vst.msk [vmem:[#allocation2 + $0x38] sm:$0xf] %vm201, %v255
      %261 = vst.msk [vmem:[#allocation2 + $0x3c] sm:$0xf] %vm201, %v257
      %262 = vrot.lane.b32.xlu0 %v199, 114
      %v263 = vpop.permute.xlu0 %262
      %264 = vrot.lane.b32.xlu0 %v200, 114
      %v265 = vpop.permute.xlu0 %264
      %268 = vst.msk [vmem:[#allocation2 + $0x40] sm:$0xf] %vm201, %v263
      %269 = vst.msk [vmem:[#allocation2 + $0x44] sm:$0xf] %vm201, %v265
      %v270 = vld [vmem:[%s1] sm:$0xff]
      %v271 = vld [vmem:[%s1 + $0x8] sm:$0xff]
      %v272 = vld [vmem:[#allocation2] sm:$0xf]
      %v273 = vld [vmem:[#allocation2 + $0x4] sm:$0xf]
      %v274 = vld [vmem:[#allocation2 + $0x8] sm:$0xf]
      %v275 = vld [vmem:[#allocation2 + $0xc] sm:$0xf]
      %v276 = vld [vmem:[#allocation2 + $0x10] sm:$0xf]
      %v277 = vld [vmem:[#allocation2 + $0x14] sm:$0xf]
      %v278 = vld [vmem:[#allocation2 + $0x18] sm:$0xf]
      %v279 = vld [vmem:[#allocation2 + $0x1c] sm:$0xf]
      %v280 = vld [vmem:[#allocation2 + $0x20] sm:$0xf]
      %v281 = vld [vmem:[#allocation2 + $0x24] sm:$0xf]
      %v282 = vld [vmem:[#allocation2 + $0x28] sm:$0xf]
      %v283 = vld [vmem:[#allocation2 + $0x2c] sm:$0xf]
      %v284 = vld [vmem:[#allocation2 + $0x30] sm:$0xf]
      %v285 = vld [vmem:[#allocation2 + $0x34] sm:$0xf]
      %v286 = vld [vmem:[#allocation2 + $0x38] sm:$0xf]
      %v287 = vld [vmem:[#allocation2 + $0x3c] sm:$0xf]
      %v288 = vld [vmem:[#allocation2 + $0x40] sm:$0xf]
      %v289 = vld [vmem:[#allocation2 + $0x44] sm:$0xf]
      %v290 = vld [vmem:[%s2] sm:$0xff]
      %v291 = vld [vmem:[%s2 + $0x8] sm:$0xff]
      %293 = vset.pattern.permute.xlu0 0
      %294 = vperm.xlu0 %293, %v290
      %v295 = vpop.permute.xlu0 %294
      %298 = vset.pattern.permute.xlu0 0
      %299 = vperm.xlu0 %298, %v291
      %v300 = vpop.permute.xlu0 %299
      %v304 = vunpack.c.l.b16 %v270
      %v305 = vunpack.c.h.b16 %v270
      %v306 = vunpack.c.l.b16 %v271
      %v307 = vunpack.c.h.b16 %v271
      %v308 = vpack.c.b16 %v306, %v304
      %v309 = vpack.c.b16 %v307, %v305
      %v329 = vunpack.c.l.b16 %v272
      %v330 = vunpack.c.l.b16 %v273
      %v331 = vunpack.c.l.b16 %v274
      %v332 = vunpack.c.l.b16 %v275
      %v333 = vunpack.c.l.b16 %v276
      %v334 = vunpack.c.l.b16 %v277
      %v335 = vunpack.c.l.b16 %v278
      %v336 = vunpack.c.l.b16 %v279
      %v337 = vunpack.c.l.b16 %v280
      %v338 = vunpack.c.l.b16 %v281
      %v339 = vunpack.c.l.b16 %v282
      %v340 = vunpack.c.l.b16 %v283
      %v341 = vunpack.c.l.b16 %v284
      %v342 = vunpack.c.l.b16 %v285
      %v343 = vunpack.c.l.b16 %v286
      %v344 = vunpack.c.l.b16 %v287
      %v345 = vunpack.c.l.b16 %v288
      %v346 = vunpack.c.l.b16 %v289
      %v347 = vpack.c.b16 %v330, %v329
      %v348 = vpack.c.b16 %v332, %v331
      %v349 = vpack.c.b16 %v334, %v333
      %v350 = vpack.c.b16 %v336, %v335
      %v351 = vpack.c.b16 %v338, %v337
      %v352 = vpack.c.b16 %v340, %v339
      %v353 = vpack.c.b16 %v342, %v341
      %v354 = vpack.c.b16 %v344, %v343
      %v355 = vpack.c.b16 %v346, %v345
      %vm365 = vcmask 130048
      %v367 = vsel %vm365, %v309, 0
      %369 = vmatpush.bf16.msra.mxu0 %v354
      %370 = vmatpush.bf16.msra.mxu0 %v353
      %371 = vmatpush.bf16.msra.mxu0 %v352
      %372 = vmatpush.bf16.msra.mxu0 %v351
      %373 = vmatpush.bf16.msra.mxu0 %v350
      %374 = vmatpush.bf16.msra.mxu0 %v349
      %375 = vmatpush.bf16.msra.mxu0 %v348
      %376 = vmatpush.bf16.msra.mxu0 %v347
      %377 = vmatmul.bf16.gmra.mxu0 %v308
      %v378 = vpop.f32.mrf.mxu0
      %v379 = vadd.f32 %v295, %v378
      %v380 = vpop.f32.mrf.mxu0
      %v381 = vadd.f32 %v300, %v380
      %382 = vdwg.mxu0
      %383 = vmatpush.bf16.msra.mxu0 0
      %384 = vmatpush.bf16.msra.mxu0 0
      %385 = vmatpush.bf16.msra.mxu0 0
      %386 = vmatpush.bf16.msra.mxu0 0
      %387 = vmatpush.bf16.msra.mxu0 0
      %388 = vmatpush.bf16.msra.mxu0 0
      %389 = vmatpush.bf16.msra.mxu0 0
      %390 = vmatpush.bf16.msra.mxu0 %v355
      %391 = vmatmul.bf16.gmra.mxu0 %v367
      %v392 = vpop.f32.mrf.mxu0
      %v393 = vadd.f32 %v379, %v392
      %v394 = vpop.f32.mrf.mxu0
      %v395 = vadd.f32 %v381, %v394
      %396 = vdwg.mxu0
      %v397 = vmul.f32 %v393, 0.1
      %v398 = vmul.f32 %v395, 0.1
      %v399 = vmax.f32 %v393, %v397
      %v400 = vmax.f32 %v395, %v398
      %v401 = vld [vmem:[%s3] sm:$0x1]
      %v403 = vperm.slane %v401, 0
      %v405 = vmul.f32 %v399, %v403
      %v406 = vmul.f32 %v400, %v403
      %vm407 = vcmask 338944
      %408 = vst.msk [vmem:[%s197] sm:$0xf] %vm407, 0
      %409 = vst.msk [vmem:[%s197 + $0x4] sm:$0xf] %vm407, 0
      %v410 = vpack.c.bf16 %v405, %v405
      %v411 = vpack.c.bf16 %v406, %v406
      %414 = vrot.lane.b32.xlu0 %v410, 13
      %v415 = vpop.permute.xlu0 %414
      %416 = vrot.lane.b32.xlu0 %v411, 13
      %v417 = vpop.permute.xlu0 %416
      %vm420 = vcmask 330856
      %421 = vst.msk [vmem:[%s197] sm:$0xf] %vm420, %v415
      %422 = vst.msk [vmem:[%s197 + $0x4] sm:$0xf] %vm420, %v417
      %p423 = scmp.lt.s32.totalorder %s15, 1
      %s424 = scalar_select %p423, %s15, 1
      %s425 = smul.addr %s424, 2
      %s426 = smul.addr %s425, 4
      %s427 = scalar_lea.vmem %s4, %s426
      // Predicated region
      $region37: #{bsn_unet_forward.21} parent=35 // pred_check
        %p428 = pneg %p122
      $region38: #{bsn_unet_forward.21} parent=35 // pred_check_branch
        %430 = sbr.rel (%p428) target = $region40
      $region39: #{bsn_unet_forward.21} parent=35 // pred_region
        _
      $region40: #{bsn_unet_forward.21} parent=35 // pred_fallthru
        _
    $region36: #{bsn_unet_forward.21} parent=5 // pred_fallthru
      _
    %p431 = scmp.le.s32.totalorder 2, %s10
    // Predicated region
    $region41: #{bsn_unet_forward.21} parent=5 // pred_check
      %p432 = pneg %p431
    $region42: #{bsn_unet_forward.21} parent=5 // pred_check_branch
      %434 = sbr.rel (%p432) target = $region44
    $region43: #{bsn_unet_forward.21} parent=5 // pred_region
      %s435 = ssub.s32 %s10, 2
      // Predicated region
      $region45: #{bsn_unet_forward.21} parent=43 // pred_check
        %p436 = pneg %p128
      $region46: #{bsn_unet_forward.21} parent=43 // pred_check_branch
        %438 = sbr.rel (%p436) target = $region48
      $region47: #{bsn_unet_forward.21} parent=43 // pred_region
        %p439 = scmp.lt.s32.totalorder %s16, 1
        %s440 = scalar_select %p439, %s16, 1
        %s441 = smul.addr %s440, 2
        %s442 = smul.addr %s441, 4
        %s443 = scalar_lea.vmem %s4, %s442
      $region48: #{bsn_unet_forward.21} parent=43 // pred_fallthru
        _
    $region44: #{bsn_unet_forward.21} parent=5 // pred_fallthru
      _
  $region6: #{bsn_unet_forward.21} parent=0 // loop_footer
    %s14 = sadd.s32 1, %s10
  $region7: #{bsn_unet_forward.21} parent=0 // loop_footer_branch
    %9 = sbr.rel target = $region3
  $region8: #{bsn_unet_forward.21} parent=0 // loop_exit
    _

// kernel: bsn_unet_forward.25
$region0: #{bsn_unet_forward.25}
  #allocation0 [shape = 'u32[]', space=smem, size = 0x4, offset = 0x4, fixed_abs, tag = 'smem constant byte address 0x4 - core index']
  #allocation1 [shape = 'u32[72,128]{1,0:T(1,128)}', space=vmem, size = 0x9000, scoped, tag = 'internal scratch']
  %s0 = inlined_call_operand.vmem [shape: bf16[2,16,110], index: 0, kind: input, shape index: {}]
  %s1 = inlined_call_operand.vmem [shape: bf16[64,16], index: 1, kind: input, shape index: {}]
  %s2 = inlined_call_operand.vmem [shape: f32[64,1], index: 2, kind: input, shape index: {}]
  %s3 = inlined_call_operand.vmem [shape: f32[1,110], index: 3, kind: input, shape index: {}]
  %s4 = inlined_call_operand.vmem [shape: bf16[2,64,110], index: 4, kind: output, shape index: {}]
  %s5 = sld [smem:[#allocation0]]
  $region49: #{bsn_unet_forward.25} parent=0
    _
  %s7 = ssub.s32 1, %s5
  %s8 = scalar_select 0, %s7, %s5
  loop: start=0, step=1, limit=4
  $region2: #{bsn_unet_forward.25} parent=0 // loop_pre_header
    _
  $region3: #{bsn_unet_forward.25} parent=0 // loop_header
    %s10 = sphi 0, %s14
    %p11 = scmp.ge.s32.totalorder %s10, 4
    %s20 = sphi 0, %s22
    %s23 = sphi 0, %s20
    %s24 = sphi 0, %s23
    %s40 = sphi 0, %s24
    %s44 = sphi 0, %s44
    %s46 = sphi 0, %s44
    %s47 = sphi 0, %s46
    %s61 = sphi 0, %s47
    %s65 = sphi 0, %s65
    %s67 = sphi 0, %s65
    %s68 = sphi 0, %s67
    %s82 = sphi 0, %s68
    %s86 = sphi 0, %s86
    %s88 = sphi 0, %s86
    %s89 = sphi 0, %s88
    %s103 = sphi 0, %s89
    %s109 = sphi 0, %s111
    %s112 = sphi 0, %s109
    %s113 = sphi 0, %s112
    %s129 = sphi 0, %s113
  $region4: #{bsn_unet_forward.25} parent=0 // loop_header_branch
    %13 = sbr.rel (%p11) target = $region8
  $region5: #{bsn_unet_forward.25} parent=0 // loop_body
    %s15 = ssub.s32 %s10, 1
    %s16 = ssub.s32 %s10, 2
    %s17 = sadd.s32 %s10, 1
    %s18 = ssub.s32 %s10, %s17
    %p19 = scmp.eq.s32.totalorder %s18, 0
    %s21 = sadd.s32 %s20, 1
    %s22 = scalar_select %p19, %s20, %s21
    %p25 = pneg %p19
    %p26 = scmp.eq.s32.totalorder %s10, 1
    %p27 = por %p25, %p26
    %p28 = scmp.ne.s32.totalorder %s20, %s23
    %p29 = scmp.eq.s32.totalorder %s10, 0
    %p30 = por %p28, %p29
    %p31 = scmp.ne.s32.totalorder %s20, %s23
    %p32 = scmp.eq.s32.totalorder %s15, 1
    %p33 = por %p31, %p32
    %p34 = scmp.ne.s32.totalorder %s23, %s24
    %p35 = scmp.eq.s32.totalorder %s15, 0
    %p36 = por %p34, %p35
    %p37 = scmp.ne.s32.totalorder %s23, %s24
    %p38 = scmp.eq.s32.totalorder %s16, 1
    %p39 = por %p37, %p38
    %p41 = scmp.ne.s32.totalorder %s24, %s40
    %p42 = scmp.eq.s32.totalorder %s16, 0
    %p43 = por %p41, %p42
    %s45 = sadd.s32 %s44, 1
    %p48 = scmp.eq.s32.totalorder %s10, 1
    %p49 = scmp.ne.s32.totalorder %s44, %s46
    %p50 = scmp.eq.s32.totalorder %s10, 0
    %p51 = por %p49, %p50
    %p52 = scmp.ne.s32.totalorder %s44, %s46
    %p53 = scmp.eq.s32.totalorder %s15, 1
    %p54 = por %p52, %p53
    %p55 = scmp.ne.s32.totalorder %s46, %s47
    %p56 = scmp.eq.s32.totalorder %s15, 0
    %p57 = por %p55, %p56
    %p58 = scmp.ne.s32.totalorder %s46, %s47
    %p59 = scmp.eq.s32.totalorder %s16, 1
    %p60 = por %p58, %p59
    %p62 = scmp.ne.s32.totalorder %s47, %s61
    %p63 = scmp.eq.s32.totalorder %s16, 0
    %p64 = por %p62, %p63
    %s66 = sadd.s32 %s65, 1
    %p69 = scmp.eq.s32.totalorder %s10, 1
    %p70 = scmp.ne.s32.totalorder %s65, %s67
    %p71 = scmp.eq.s32.totalorder %s10, 0
    %p72 = por %p70, %p71
    %p73 = scmp.ne.s32.totalorder %s65, %s67
    %p74 = scmp.eq.s32.totalorder %s15, 1
    %p75 = por %p73, %p74
    %p76 = scmp.ne.s32.totalorder %s67, %s68
    %p77 = scmp.eq.s32.totalorder %s15, 0
    %p78 = por %p76, %p77
    %p79 = scmp.ne.s32.totalorder %s67, %s68
    %p80 = scmp.eq.s32.totalorder %s16, 1
    %p81 = por %p79, %p80
    %p83 = scmp.ne.s32.totalorder %s68, %s82
    %p84 = scmp.eq.s32.totalorder %s16, 0
    %p85 = por %p83, %p84
    %s87 = sadd.s32 %s86, 1
    %p90 = scmp.eq.s32.totalorder %s10, 1
    %p91 = scmp.ne.s32.totalorder %s86, %s88
    %p92 = scmp.eq.s32.totalorder %s10, 0
    %p93 = por %p91, %p92
    %p94 = scmp.ne.s32.totalorder %s86, %s88
    %p95 = scmp.eq.s32.totalorder %s15, 1
    %p96 = por %p94, %p95
    %p97 = scmp.ne.s32.totalorder %s88, %s89
    %p98 = scmp.eq.s32.totalorder %s15, 0
    %p99 = por %p97, %p98
    %p100 = scmp.ne.s32.totalorder %s88, %s89
    %p101 = scmp.eq.s32.totalorder %s16, 1
    %p102 = por %p100, %p101
    %p104 = scmp.ne.s32.totalorder %s89, %s103
    %p105 = scmp.eq.s32.totalorder %s16, 0
    %p106 = por %p104, %p105
    %s107 = ssub.s32 %s10, %s17
    %p108 = scmp.eq.s32.totalorder %s107, 0
    %s110 = sadd.s32 %s109, 1
    %s111 = scalar_select %p108, %s109, %s110
    %p114 = pneg %p108
    %p115 = scmp.eq.s32.totalorder %s10, 1
    %p116 = por %p114, %p115
    %p117 = scmp.ne.s32.totalorder %s109, %s112
    %p118 = scmp.eq.s32.totalorder %s10, 0
    %p119 = por %p117, %p118
    %p120 = scmp.ne.s32.totalorder %s109, %s112
    %p121 = scmp.eq.s32.totalorder %s15, 1
    %p122 = por %p120, %p121
    %p123 = scmp.ne.s32.totalorder %s112, %s113
    %p124 = scmp.eq.s32.totalorder %s15, 0
    %p125 = por %p123, %p124
    %p126 = scmp.ne.s32.totalorder %s112, %s113
    %p127 = scmp.eq.s32.totalorder %s16, 1
    %p128 = por %p126, %p127
    %p130 = scmp.ne.s32.totalorder %s113, %s129
    %p131 = scmp.eq.s32.totalorder %s16, 0
    %p132 = por %p130, %p131
    %p133 = scmp.le.s32.totalorder 1, %s10
    %p134 = scmp.lt.s32.totalorder %s10, 3
    %p135 = pnand %p133, %p134
    %p136 = pneg %p135
    // Predicated region
    $region9: #{bsn_unet_forward.25} parent=5 // pred_check
      _
    $region10: #{bsn_unet_forward.25} parent=5 // pred_check_branch
      %138 = sbr.rel (%p135) target = $region12
    $region11: #{bsn_unet_forward.25} parent=5 // pred_region
      %s139 = ssub.s32 %s10, 1
      // Predicated region
      $region13: #{bsn_unet_forward.25} parent=11 // pred_check
        %p140 = pneg %p57
      $region14: #{bsn_unet_forward.25} parent=11 // pred_check_branch
        %142 = sbr.rel (%p140) target = $region16
      $region15: #{bsn_unet_forward.25} parent=11 // pred_region
        _
      $region16: #{bsn_unet_forward.25} parent=11 // pred_fallthru
        _
      // Predicated region
      $region17: #{bsn_unet_forward.25} parent=11 // pred_check
        %p143 = pneg %p78
      $region18: #{bsn_unet_forward.25} parent=11 // pred_check_branch
        %145 = sbr.rel (%p143) target = $region20
      $region19: #{bsn_unet_forward.25} parent=11 // pred_region
        _
      $region20: #{bsn_unet_forward.25} parent=11 // pred_fallthru
        _
      // Predicated region
      $region21: #{bsn_unet_forward.25} parent=11 // pred_check
        %p146 = pneg %p99
      $region22: #{bsn_unet_forward.25} parent=11 // pred_check_branch
        %148 = sbr.rel (%p146) target = $region24
      $region23: #{bsn_unet_forward.25} parent=11 // pred_region
        _
      $region24: #{bsn_unet_forward.25} parent=11 // pred_fallthru
        _
    $region12: #{bsn_unet_forward.25} parent=5 // pred_fallthru
      _
    %p149 = scmp.lt.s32.totalorder %s10, 2
    // Predicated region
    $region25: #{bsn_unet_forward.25} parent=5 // pred_check
      %p150 = pneg %p149
    $region26: #{bsn_unet_forward.25} parent=5 // pred_check_branch
      %152 = sbr.rel (%p150) target = $region28
    $region27: #{bsn_unet_forward.25} parent=5 // pred_region
      // Predicated region
      $region29: #{bsn_unet_forward.25} parent=27 // pred_check
        %p153 = pneg %p30
      $region30: #{bsn_unet_forward.25} parent=27 // pred_check_branch
        %155 = sbr.rel (%p153) target = $region32
      $region31: #{bsn_unet_forward.25} parent=27 // pred_region
        %p156 = scmp.lt.s32.totalorder %s10, 1
        %s157 = scalar_select %p156, %s10, 1
        %s158 = smul.addr %s157, 2
        %s159 = smul.addr %s158, 4
        %s160 = scalar_lea.vmem %s0, %s159
      $region32: #{bsn_unet_forward.25} parent=27 // pred_fallthru
        _
    $region28: #{bsn_unet_forward.25} parent=5 // pred_fallthru
      _
    %p161 = scmp.le.s32.totalorder 1, %s10
    %p162 = scmp.lt.s32.totalorder %s10, 3
    %p163 = pnand %p161, %p162
    %p164 = pneg %p163
    // Predicated region
    $region33: #{bsn_unet_forward.25} parent=5 // pred_check
      _
    $region34: #{bsn_unet_forward.25} parent=5 // pred_check_branch
      %166 = sbr.rel (%p163) target = $region36
    $region35: #{bsn_unet_forward.25} parent=5 // pred_region
      %s167 = ssub.s32 %s10, 1
      %p168 = scmp.lt.s32.totalorder %s15, 1
      %s169 = scalar_select %p168, %s15, 1
      %s170 = smul.addr %s169, 2
      %s171 = smul.addr %s170, 4
      %s172 = scalar_lea.vmem %s0, %s171
      %p173 = pneg %p36
      %p174 = pneg %p33
      %p175 = pneg %p57
      %p176 = pneg %p54
      %p177 = pneg %p78
      %p178 = pneg %p75
      %p179 = pneg %p99
      %p180 = pneg %p96
      %p181 = pneg %p125
      %p182 = pneg %p122
      %p183 = scmp.lt.s32.totalorder %s15, 1
      %s184 = scalar_select %p183, %s15, 1
      %s185 = smul.addr %s184, 8
      %s186 = smul.addr %s185, 4
      %s187 = scalar_lea.vmem %s4, %s186
      %p188 = scmp.lt.s32.totalorder %s15, 1
      %s189 = scalar_select %p188, %s15, 1
      %s190 = smul.addr %s189, 2
      %s191 = smul.addr %s190, 4
      %s192 = scalar_lea.vmem %s0, %s191
      %p193 = scmp.lt.s32.totalorder %s15, 1
      %s194 = scalar_select %p193, %s15, 1
      %s195 = smul.addr %s194, 8
      %s196 = smul.addr %s195, 4
      %s197 = scalar_lea.vmem %s4, %s196
      %v199 = vld [vmem:[%s1] sm:$0xf]
      %v200 = vld [vmem:[%s1 + $0x4] sm:$0xf]
      %v201 = vld [vmem:[%s1 + $0x8] sm:$0xf]
      %v202 = vld [vmem:[%s1 + $0xc] sm:$0xf]
      %v203 = vld [vmem:[%s1 + $0x10] sm:$0xf]
      %v204 = vld [vmem:[%s1 + $0x14] sm:$0xf]
      %v205 = vld [vmem:[%s1 + $0x18] sm:$0xf]
      %v206 = vld [vmem:[%s1 + $0x1c] sm:$0xf]
      %v207 = vld [vmem:[%s192] sm:$0xf]
      %v208 = vld [vmem:[%s192 + $0x4] sm:$0xf]
      %v209 = vld [vmem:[%s2] sm:$0xff]
      %v210 = vld [vmem:[%s2 + $0x8] sm:$0xff]
      %v211 = vld [vmem:[%s2 + $0x10] sm:$0xff]
      %v212 = vld [vmem:[%s2 + $0x18] sm:$0xff]
      %v213 = vld [vmem:[%s2 + $0x20] sm:$0xff]
      %v214 = vld [vmem:[%s2 + $0x28] sm:$0xff]
      %v215 = vld [vmem:[%s2 + $0x30] sm:$0xff]
      %v216 = vld [vmem:[%s2 + $0x38] sm:$0xff]
      %218 = vset.pattern.permute.xlu0 0
      %219 = vperm.xlu0 %218, %v209
      %v220 = vpop.permute.xlu0 %219
      %223 = vset.pattern.permute.xlu0 0
      %224 = vperm.xlu0 %223, %v210
      %v225 = vpop.permute.xlu0 %224
      %228 = vset.pattern.permute.xlu0 0
      %229 = vperm.xlu0 %228, %v211
      %v230 = vpop.permute.xlu0 %229
      %233 = vset.pattern.permute.xlu0 0
      %234 = vperm.xlu0 %233, %v212
      %v235 = vpop.permute.xlu0 %234
      %238 = vset.pattern.permute.xlu0 0
      %239 = vperm.xlu0 %238, %v213
      %v240 = vpop.permute.xlu0 %239
      %243 = vset.pattern.permute.xlu0 0
      %244 = vperm.xlu0 %243, %v214
      %v245 = vpop.permute.xlu0 %244
      %248 = vset.pattern.permute.xlu0 0
      %249 = vperm.xlu0 %248, %v215
      %v250 = vpop.permute.xlu0 %249
      %253 = vset.pattern.permute.xlu0 0
      %254 = vperm.xlu0 %253, %v216
      %v255 = vpop.permute.xlu0 %254
      %v265 = vunpack.c.l.b16 %v199
      %v266 = vunpack.c.l.b16 %v200
      %v267 = vunpack.c.l.b16 %v201
      %v268 = vunpack.c.l.b16 %v202
      %v269 = vunpack.c.l.b16 %v203
      %v270 = vunpack.c.l.b16 %v204
      %v271 = vunpack.c.l.b16 %v205
      %v272 = vunpack.c.l.b16 %v206
      %v273 = vpack.c.b16 %v266, %v265
      %v274 = vpack.c.b16 %v268, %v267
      %v275 = vpack.c.b16 %v270, %v269
      %v276 = vpack.c.b16 %v272, %v271
      %v279 = vunpack.c.l.b16 %v207
      %v280 = vunpack.c.l.b16 %v208
      %v281 = vpack.c.b16 %v280, %v279
      %vm283 = vcmask 130048
      %v285 = vsel %vm283, %v273, 0
      %v288 = vsel %vm283, %v274, 0
      %v291 = vsel %vm283, %v275, 0
      %v294 = vsel %vm283, %v276, 0
      %296 = vmatpush.bf16.msra.mxu0 0
      %297 = vmatpush.bf16.msra.mxu0 0
      %298 = vmatpush.bf16.msra.mxu0 0
      %299 = vmatpush.bf16.msra.mxu0 0
      %300 = vmatpush.bf16.msra.mxu0 0
      %301 = vmatpush.bf16.msra.mxu0 0
      %302 = vmatpush.bf16.msra.mxu0 0
      %303 = vmatpush.bf16.msra.mxu0 %v281
      %304 = vmatmul.bf16.gmra.mxu0 %v285
      %v305 = vpop.f32.mrf.mxu0
      %v306 = vadd.f32 %v220, %v305
      %v307 = vpop.f32.mrf.mxu0
      %v308 = vadd.f32 %v225, %v307
      %309 = vmatmul.bf16.gmra.mxu0 %v288
      %v310 = vpop.f32.mrf.mxu0
      %v311 = vadd.f32 %v230, %v310
      %v312 = vpop.f32.mrf.mxu0
      %v313 = vadd.f32 %v235, %v312
      %314 = vmatmul.bf16.gmra.mxu0 %v291
      %v315 = vpop.f32.mrf.mxu0
      %v316 = vadd.f32 %v240, %v315
      %v317 = vpop.f32.mrf.mxu0
      %v318 = vadd.f32 %v245, %v317
      %319 = vmatmul.bf16.gmra.mxu0 %v294
      %v320 = vpop.f32.mrf.mxu0
      %v321 = vadd.f32 %v250, %v320
      %v322 = vpop.f32.mrf.mxu0
      %v323 = vadd.f32 %v255, %v322
      %324 = vdwg.mxu0
      %v325 = vld [vmem:[%s3] sm:$0x1]
      %v327 = vperm.slane %v325, 0
      %v329 = vmul.f32 %v306, %v327
      %v330 = vmul.f32 %v308, %v327
      %v331 = vmul.f32 %v311, %v327
      %v332 = vmul.f32 %v313, %v327
      %v333 = vmul.f32 %v316, %v327
      %v334 = vmul.f32 %v318, %v327
      %v335 = vmul.f32 %v321, %v327
      %v336 = vmul.f32 %v323, %v327
      %v337 = vpack.c.bf16 %v329, %v329
      %v338 = vpack.c.bf16 %v330, %v330
      %v339 = vpack.c.bf16 %v331, %v331
      %v340 = vpack.c.bf16 %v332, %v332
      %v341 = vpack.c.bf16 %v333, %v333
      %v342 = vpack.c.bf16 %v334, %v334
      %v343 = vpack.c.bf16 %v335, %v335
      %v344 = vpack.c.bf16 %v336, %v336
      %vm345 = vcmask 896000
      %346 = vst.msk [vmem:[%s197] sm:$0xf] %vm345, %v337
      %347 = vst.msk [vmem:[%s197 + $0x4] sm:$0xf] %vm345, %v338
      %348 = vst.msk [vmem:[%s197 + $0x8] sm:$0xf] %vm345, %v339
      %349 = vst.msk [vmem:[%s197 + $0xc] sm:$0xf] %vm345, %v340
      %350 = vst.msk [vmem:[%s197 + $0x10] sm:$0xf] %vm345, %v341
      %351 = vst.msk [vmem:[%s197 + $0x14] sm:$0xf] %vm345, %v342
      %352 = vst.msk [vmem:[%s197 + $0x18] sm:$0xf] %vm345, %v343
      %353 = vst.msk [vmem:[%s197 + $0x1c] sm:$0xf] %vm345, %v344
      %p354 = scmp.lt.s32.totalorder %s15, 1
      %s355 = scalar_select %p354, %s15, 1
      %s356 = smul.addr %s355, 8
      %s357 = smul.addr %s356, 4
      %s358 = scalar_lea.vmem %s4, %s357
      // Predicated region
      $region37: #{bsn_unet_forward.25} parent=35 // pred_check
        %p359 = pneg %p122
      $region38: #{bsn_unet_forward.25} parent=35 // pred_check_branch
        %361 = sbr.rel (%p359) target = $region40
      $region39: #{bsn_unet_forward.25} parent=35 // pred_region
        _
      $region40: #{bsn_unet_forward.25} parent=35 // pred_fallthru
        _
    $region36: #{bsn_unet_forward.25} parent=5 // pred_fallthru
      _
    %p362 = scmp.le.s32.totalorder 2, %s10
    // Predicated region
    $region41: #{bsn_unet_forward.25} parent=5 // pred_check
      %p363 = pneg %p362
    $region42: #{bsn_unet_forward.25} parent=5 // pred_check_branch
      %365 = sbr.rel (%p363) target = $region44
    $region43: #{bsn_unet_forward.25} parent=5 // pred_region
      %s366 = ssub.s32 %s10, 2
      // Predicated region
      $region45: #{bsn_unet_forward.25} parent=43 // pred_check
        %p367 = pneg %p128
      $region46: #{bsn_unet_forward.25} parent=43 // pred_check_branch
        %369 = sbr.rel (%p367) target = $region48
      $region47: #{bsn_unet_forward.25} parent=43 // pred_region
        %p370 = scmp.lt.s32.totalorder %s16, 1
        %s371 = scalar_select %p370, %s16, 1
        %s372 = smul.addr %s371, 8
        %s373 = smul.addr %s372, 4
        %s374 = scalar_lea.vmem %s4, %s373
      $region48: #{bsn_unet_forward.25} parent=43 // pred_fallthru
        _
    $region44: #{bsn_unet_forward.25} parent=5 // pred_fallthru
      _
  $region6: #{bsn_unet_forward.25} parent=0 // loop_footer
    %s14 = sadd.s32 1, %s10
  $region7: #{bsn_unet_forward.25} parent=0 // loop_footer_branch
    %9 = sbr.rel target = $region3
  $region8: #{bsn_unet_forward.25} parent=0 // loop_exit
    _

// kernel: bsn_unet_forward.24
$region0: #{bsn_unet_forward.24}
  #allocation0 [shape = 'u32[]', space=smem, size = 0x4, offset = 0x4, fixed_abs, tag = 'smem constant byte address 0x4 - core index']
  #allocation1 [shape = 'u32[72,128]{1,0:T(1,128)}', space=vmem, size = 0x9000, scoped, tag = 'internal scratch']
  #allocation2 [shape = 'bf16[144,88]{1,0:T(8,128)(2,1)}', space=vmem, size = 0x9000, scoped, tag = 'scratch operand']
  %s0 = inlined_call_operand.vmem [shape: bf16[2,16,110], index: 0, kind: input, shape index: {}]
  %s1 = inlined_call_operand.vmem [shape: bf16[16,144], index: 1, kind: input, shape index: {}]
  %s2 = inlined_call_operand.vmem [shape: f32[16,1], index: 2, kind: input, shape index: {}]
  %s3 = inlined_call_operand.vmem [shape: f32[1,88], index: 3, kind: input, shape index: {}]
  %s4 = inlined_call_operand.vmem [shape: bf16[2,16,110], index: 4, kind: output, shape index: {}]
  %s5 = sld [smem:[#allocation0]]
  $region49: #{bsn_unet_forward.24} parent=0
    _
  %s7 = ssub.s32 1, %s5
  %s8 = scalar_select 0, %s7, %s5
  loop: start=0, step=1, limit=4
  $region2: #{bsn_unet_forward.24} parent=0 // loop_pre_header
    _
  $region3: #{bsn_unet_forward.24} parent=0 // loop_header
    %s10 = sphi 0, %s14
    %p11 = scmp.ge.s32.totalorder %s10, 4
    %s20 = sphi 0, %s22
    %s23 = sphi 0, %s20
    %s24 = sphi 0, %s23
    %s40 = sphi 0, %s24
    %s44 = sphi 0, %s44
    %s46 = sphi 0, %s44
    %s47 = sphi 0, %s46
    %s61 = sphi 0, %s47
    %s65 = sphi 0, %s65
    %s67 = sphi 0, %s65
    %s68 = sphi 0, %s67
    %s82 = sphi 0, %s68
    %s86 = sphi 0, %s86
    %s88 = sphi 0, %s86
    %s89 = sphi 0, %s88
    %s103 = sphi 0, %s89
    %s109 = sphi 0, %s111
    %s112 = sphi 0, %s109
    %s113 = sphi 0, %s112
    %s129 = sphi 0, %s113
  $region4: #{bsn_unet_forward.24} parent=0 // loop_header_branch
    %13 = sbr.rel (%p11) target = $region8
  $region5: #{bsn_unet_forward.24} parent=0 // loop_body
    %s15 = ssub.s32 %s10, 1
    %s16 = ssub.s32 %s10, 2
    %s17 = sadd.s32 %s10, 1
    %s18 = ssub.s32 %s10, %s17
    %p19 = scmp.eq.s32.totalorder %s18, 0
    %s21 = sadd.s32 %s20, 1
    %s22 = scalar_select %p19, %s20, %s21
    %p25 = pneg %p19
    %p26 = scmp.eq.s32.totalorder %s10, 1
    %p27 = por %p25, %p26
    %p28 = scmp.ne.s32.totalorder %s20, %s23
    %p29 = scmp.eq.s32.totalorder %s10, 0
    %p30 = por %p28, %p29
    %p31 = scmp.ne.s32.totalorder %s20, %s23
    %p32 = scmp.eq.s32.totalorder %s15, 1
    %p33 = por %p31, %p32
    %p34 = scmp.ne.s32.totalorder %s23, %s24
    %p35 = scmp.eq.s32.totalorder %s15, 0
    %p36 = por %p34, %p35
    %p37 = scmp.ne.s32.totalorder %s23, %s24
    %p38 = scmp.eq.s32.totalorder %s16, 1
    %p39 = por %p37, %p38
    %p41 = scmp.ne.s32.totalorder %s24, %s40
    %p42 = scmp.eq.s32.totalorder %s16, 0
    %p43 = por %p41, %p42
    %s45 = sadd.s32 %s44, 1
    %p48 = scmp.eq.s32.totalorder %s10, 1
    %p49 = scmp.ne.s32.totalorder %s44, %s46
    %p50 = scmp.eq.s32.totalorder %s10, 0
    %p51 = por %p49, %p50
    %p52 = scmp.ne.s32.totalorder %s44, %s46
    %p53 = scmp.eq.s32.totalorder %s15, 1
    %p54 = por %p52, %p53
    %p55 = scmp.ne.s32.totalorder %s46, %s47
    %p56 = scmp.eq.s32.totalorder %s15, 0
    %p57 = por %p55, %p56
    %p58 = scmp.ne.s32.totalorder %s46, %s47
    %p59 = scmp.eq.s32.totalorder %s16, 1
    %p60 = por %p58, %p59
    %p62 = scmp.ne.s32.totalorder %s47, %s61
    %p63 = scmp.eq.s32.totalorder %s16, 0
    %p64 = por %p62, %p63
    %s66 = sadd.s32 %s65, 1
    %p69 = scmp.eq.s32.totalorder %s10, 1
    %p70 = scmp.ne.s32.totalorder %s65, %s67
    %p71 = scmp.eq.s32.totalorder %s10, 0
    %p72 = por %p70, %p71
    %p73 = scmp.ne.s32.totalorder %s65, %s67
    %p74 = scmp.eq.s32.totalorder %s15, 1
    %p75 = por %p73, %p74
    %p76 = scmp.ne.s32.totalorder %s67, %s68
    %p77 = scmp.eq.s32.totalorder %s15, 0
    %p78 = por %p76, %p77
    %p79 = scmp.ne.s32.totalorder %s67, %s68
    %p80 = scmp.eq.s32.totalorder %s16, 1
    %p81 = por %p79, %p80
    %p83 = scmp.ne.s32.totalorder %s68, %s82
    %p84 = scmp.eq.s32.totalorder %s16, 0
    %p85 = por %p83, %p84
    %s87 = sadd.s32 %s86, 1
    %p90 = scmp.eq.s32.totalorder %s10, 1
    %p91 = scmp.ne.s32.totalorder %s86, %s88
    %p92 = scmp.eq.s32.totalorder %s10, 0
    %p93 = por %p91, %p92
    %p94 = scmp.ne.s32.totalorder %s86, %s88
    %p95 = scmp.eq.s32.totalorder %s15, 1
    %p96 = por %p94, %p95
    %p97 = scmp.ne.s32.totalorder %s88, %s89
    %p98 = scmp.eq.s32.totalorder %s15, 0
    %p99 = por %p97, %p98
    %p100 = scmp.ne.s32.totalorder %s88, %s89
    %p101 = scmp.eq.s32.totalorder %s16, 1
    %p102 = por %p100, %p101
    %p104 = scmp.ne.s32.totalorder %s89, %s103
    %p105 = scmp.eq.s32.totalorder %s16, 0
    %p106 = por %p104, %p105
    %s107 = ssub.s32 %s10, %s17
    %p108 = scmp.eq.s32.totalorder %s107, 0
    %s110 = sadd.s32 %s109, 1
    %s111 = scalar_select %p108, %s109, %s110
    %p114 = pneg %p108
    %p115 = scmp.eq.s32.totalorder %s10, 1
    %p116 = por %p114, %p115
    %p117 = scmp.ne.s32.totalorder %s109, %s112
    %p118 = scmp.eq.s32.totalorder %s10, 0
    %p119 = por %p117, %p118
    %p120 = scmp.ne.s32.totalorder %s109, %s112
    %p121 = scmp.eq.s32.totalorder %s15, 1
    %p122 = por %p120, %p121
    %p123 = scmp.ne.s32.totalorder %s112, %s113
    %p124 = scmp.eq.s32.totalorder %s15, 0
    %p125 = por %p123, %p124
    %p126 = scmp.ne.s32.totalorder %s112, %s113
    %p127 = scmp.eq.s32.totalorder %s16, 1
    %p128 = por %p126, %p127
    %p130 = scmp.ne.s32.totalorder %s113, %s129
    %p131 = scmp.eq.s32.totalorder %s16, 0
    %p132 = por %p130, %p131
    %p133 = scmp.le.s32.totalorder 1, %s10
    %p134 = scmp.lt.s32.totalorder %s10, 3
    %p135 = pnand %p133, %p134
    %p136 = pneg %p135
    // Predicated region
    $region9: #{bsn_unet_forward.24} parent=5 // pred_check
      _
    $region10: #{bsn_unet_forward.24} parent=5 // pred_check_branch
      %138 = sbr.rel (%p135) target = $region12
    $region11: #{bsn_unet_forward.24} parent=5 // pred_region
      %s139 = ssub.s32 %s10, 1
      // Predicated region
      $region13: #{bsn_unet_forward.24} parent=11 // pred_check
        %p140 = pneg %p57
      $region14: #{bsn_unet_forward.24} parent=11 // pred_check_branch
        %142 = sbr.rel (%p140) target = $region16
      $region15: #{bsn_unet_forward.24} parent=11 // pred_region
        _
      $region16: #{bsn_unet_forward.24} parent=11 // pred_fallthru
        _
      // Predicated region
      $region17: #{bsn_unet_forward.24} parent=11 // pred_check
        %p143 = pneg %p78
      $region18: #{bsn_unet_forward.24} parent=11 // pred_check_branch
        %145 = sbr.rel (%p143) target = $region20
      $region19: #{bsn_unet_forward.24} parent=11 // pred_region
        _
      $region20: #{bsn_unet_forward.24} parent=11 // pred_fallthru
        _
      // Predicated region
      $region21: #{bsn_unet_forward.24} parent=11 // pred_check
        %p146 = pneg %p99
      $region22: #{bsn_unet_forward.24} parent=11 // pred_check_branch
        %148 = sbr.rel (%p146) target = $region24
      $region23: #{bsn_unet_forward.24} parent=11 // pred_region
        _
      $region24: #{bsn_unet_forward.24} parent=11 // pred_fallthru
        _
    $region12: #{bsn_unet_forward.24} parent=5 // pred_fallthru
      _
    %p149 = scmp.lt.s32.totalorder %s10, 2
    // Predicated region
    $region25: #{bsn_unet_forward.24} parent=5 // pred_check
      %p150 = pneg %p149
    $region26: #{bsn_unet_forward.24} parent=5 // pred_check_branch
      %152 = sbr.rel (%p150) target = $region28
    $region27: #{bsn_unet_forward.24} parent=5 // pred_region
      // Predicated region
      $region29: #{bsn_unet_forward.24} parent=27 // pred_check
        %p153 = pneg %p30
      $region30: #{bsn_unet_forward.24} parent=27 // pred_check_branch
        %155 = sbr.rel (%p153) target = $region32
      $region31: #{bsn_unet_forward.24} parent=27 // pred_region
        %p156 = scmp.lt.s32.totalorder %s10, 1
        %s157 = scalar_select %p156, %s10, 1
        %s158 = smul.addr %s157, 2
        %s159 = smul.addr %s158, 4
        %s160 = scalar_lea.vmem %s0, %s159
      $region32: #{bsn_unet_forward.24} parent=27 // pred_fallthru
        _
    $region28: #{bsn_unet_forward.24} parent=5 // pred_fallthru
      _
    %p161 = scmp.le.s32.totalorder 1, %s10
    %p162 = scmp.lt.s32.totalorder %s10, 3
    %p163 = pnand %p161, %p162
    %p164 = pneg %p163
    // Predicated region
    $region33: #{bsn_unet_forward.24} parent=5 // pred_check
      _
    $region34: #{bsn_unet_forward.24} parent=5 // pred_check_branch
      %166 = sbr.rel (%p163) target = $region36
    $region35: #{bsn_unet_forward.24} parent=5 // pred_region
      %s167 = ssub.s32 %s10, 1
      %p168 = scmp.lt.s32.totalorder %s15, 1
      %s169 = scalar_select %p168, %s15, 1
      %s170 = smul.addr %s169, 2
      %s171 = smul.addr %s170, 4
      %s172 = scalar_lea.vmem %s0, %s171
      %p173 = pneg %p36
      %p174 = pneg %p33
      %p175 = pneg %p57
      %p176 = pneg %p54
      %p177 = pneg %p78
      %p178 = pneg %p75
      %p179 = pneg %p99
      %p180 = pneg %p96
      %p181 = pneg %p125
      %p182 = pneg %p122
      %p183 = scmp.lt.s32.totalorder %s15, 1
      %s184 = scalar_select %p183, %s15, 1
      %s185 = smul.addr %s184, 2
      %s186 = smul.addr %s185, 4
      %s187 = scalar_lea.vmem %s4, %s186
      %p188 = scmp.lt.s32.totalorder %s15, 1
      %s189 = scalar_select %p188, %s15, 1
      %s190 = smul.addr %s189, 2
      %s191 = smul.addr %s190, 4
      %s192 = scalar_lea.vmem %s0, %s191
      %p193 = scmp.lt.s32.totalorder %s15, 1
      %s194 = scalar_select %p193, %s15, 1
      %s195 = smul.addr %s194, 2
      %s196 = smul.addr %s195, 4
      %s197 = scalar_lea.vmem %s4, %s196
      %v199 = vld [vmem:[%s192] sm:$0xf]
      %v200 = vld [vmem:[%s192 + $0x4] sm:$0xf]
      %vm201 = vcmask 715776
      %202 = vst.msk [vmem:[#allocation2] sm:$0xf] %vm201, %v199
      %203 = vst.msk [vmem:[#allocation2 + $0x4] sm:$0xf] %vm201, %v200
      %206 = vrot.lane.b32.xlu0 %v199, 127
      %v207 = vpop.permute.xlu0 %206
      %208 = vrot.lane.b32.xlu0 %v200, 127
      %v209 = vpop.permute.xlu0 %208
      %212 = vst.msk [vmem:[#allocation2 + $0x8] sm:$0xf] %vm201, %v207
      %213 = vst.msk [vmem:[#allocation2 + $0xc] sm:$0xf] %vm201, %v209
      %214 = vrot.lane.b32.xlu0 %v199, 126
      %v215 = vpop.permute.xlu0 %214
      %216 = vrot.lane.b32.xlu0 %v200, 126
      %v217 = vpop.permute.xlu0 %216
      %220 = vst.msk [vmem:[#allocation2 + $0x10] sm:$0xf] %vm201, %v215
      %221 = vst.msk [vmem:[#allocation2 + $0x14] sm:$0xf] %vm201, %v217
      %222 = vrot.lane.b32.xlu0 %v199, 118
      %v223 = vpop.permute.xlu0 %222
      %224 = vrot.lane.b32.xlu0 %v200, 118
      %v225 = vpop.permute.xlu0 %224
      %228 = vst.msk [vmem:[#allocation2 + $0x18] sm:$0xf] %vm201, %v223
      %229 = vst.msk [vmem:[#allocation2 + $0x1c] sm:$0xf] %vm201, %v225
      %230 = vrot.lane.b32.xlu0 %v199, 117
      %v231 = vpop.permute.xlu0 %230
      %232 = vrot.lane.b32.xlu0 %v200, 117
      %v233 = vpop.permute.xlu0 %232
      %236 = vst.msk [vmem:[#allocation2 + $0x20] sm:$0xf] %vm201, %v231
      %237 = vst.msk [vmem:[#allocation2 + $0x24] sm:$0xf] %vm201, %v233
      %238 = vrot.lane.b32.xlu0 %v199, 116
      %v239 = vpop.permute.xlu0 %238
      %240 = vrot.lane.b32.xlu0 %v200, 116
      %v241 = vpop.permute.xlu0 %240
      %244 = vst.msk [vmem:[#allocation2 + $0x28] sm:$0xf] %vm201, %v239
      %245 = vst.msk [vmem:[#allocation2 + $0x2c] sm:$0xf] %vm201, %v241
      %246 = vrot.lane.b32.xlu0 %v199, 108
      %v247 = vpop.permute.xlu0 %246
      %248 = vrot.lane.b32.xlu0 %v200, 108
      %v249 = vpop.permute.xlu0 %248
      %252 = vst.msk [vmem:[#allocation2 + $0x30] sm:$0xf] %vm201, %v247
      %253 = vst.msk [vmem:[#allocation2 + $0x34] sm:$0xf] %vm201, %v249
      %254 = vrot.lane.b32.xlu0 %v199, 107
      %v255 = vpop.permute.xlu0 %254
      %256 = vrot.lane.b32.xlu0 %v200, 107
      %v257 = vpop.permute.xlu0 %256
      %260 = vst.msk [vmem:[#allocation2 + $0x38] sm:$0xf] %vm201, %v255
      %261 = vst.msk [vmem:[#allocation2 + $0x3c] sm:$0xf] %vm201, %v257
      %262 = vrot.lane.b32.xlu0 %v199, 106
      %v263 = vpop.permute.xlu0 %262
      %264 = vrot.lane.b32.xlu0 %v200, 106
      %v265 = vpop.permute.xlu0 %264
      %268 = vst.msk [vmem:[#allocation2 + $0x40] sm:$0xf] %vm201, %v263
      %269 = vst.msk [vmem:[#allocation2 + $0x44] sm:$0xf] %vm201, %v265
      %v270 = vld [vmem:[%s1] sm:$0xff]
      %v271 = vld [vmem:[%s1 + $0x8] sm:$0xff]
      %v272 = vld [vmem:[#allocation2] sm:$0xf]
      %v273 = vld [vmem:[#allocation2 + $0x4] sm:$0xf]
      %v274 = vld [vmem:[#allocation2 + $0x8] sm:$0xf]
      %v275 = vld [vmem:[#allocation2 + $0xc] sm:$0xf]
      %v276 = vld [vmem:[#allocation2 + $0x10] sm:$0xf]
      %v277 = vld [vmem:[#allocation2 + $0x14] sm:$0xf]
      %v278 = vld [vmem:[#allocation2 + $0x18] sm:$0xf]
      %v279 = vld [vmem:[#allocation2 + $0x1c] sm:$0xf]
      %v280 = vld [vmem:[#allocation2 + $0x20] sm:$0xf]
      %v281 = vld [vmem:[#allocation2 + $0x24] sm:$0xf]
      %v282 = vld [vmem:[#allocation2 + $0x28] sm:$0xf]
      %v283 = vld [vmem:[#allocation2 + $0x2c] sm:$0xf]
      %v284 = vld [vmem:[#allocation2 + $0x30] sm:$0xf]
      %v285 = vld [vmem:[#allocation2 + $0x34] sm:$0xf]
      %v286 = vld [vmem:[#allocation2 + $0x38] sm:$0xf]
      %v287 = vld [vmem:[#allocation2 + $0x3c] sm:$0xf]
      %v288 = vld [vmem:[#allocation2 + $0x40] sm:$0xf]
      %v289 = vld [vmem:[#allocation2 + $0x44] sm:$0xf]
      %v290 = vld [vmem:[%s2] sm:$0xff]
      %v291 = vld [vmem:[%s2 + $0x8] sm:$0xff]
      %293 = vset.pattern.permute.xlu0 0
      %294 = vperm.xlu0 %293, %v290
      %v295 = vpop.permute.xlu0 %294
      %298 = vset.pattern.permute.xlu0 0
      %299 = vperm.xlu0 %298, %v291
      %v300 = vpop.permute.xlu0 %299
      %v304 = vunpack.c.l.b16 %v270
      %v305 = vunpack.c.h.b16 %v270
      %v306 = vunpack.c.l.b16 %v271
      %v307 = vunpack.c.h.b16 %v271
      %v308 = vpack.c.b16 %v306, %v304
      %v309 = vpack.c.b16 %v307, %v305
      %v329 = vunpack.c.l.b16 %v272
      %v330 = vunpack.c.l.b16 %v273
      %v331 = vunpack.c.l.b16 %v274
      %v332 = vunpack.c.l.b16 %v275
      %v333 = vunpack.c.l.b16 %v276
      %v334 = vunpack.c.l.b16 %v277
      %v335 = vunpack.c.l.b16 %v278
      %v336 = vunpack.c.l.b16 %v279
      %v337 = vunpack.c.l.b16 %v280
      %v338 = vunpack.c.l.b16 %v281
      %v339 = vunpack.c.l.b16 %v282
      %v340 = vunpack.c.l.b16 %v283
      %v341 = vunpack.c.l.b16 %v284
      %v342 = vunpack.c.l.b16 %v285
      %v343 = vunpack.c.l.b16 %v286
      %v344 = vunpack.c.l.b16 %v287
      %v345 = vunpack.c.l.b16 %v288
      %v346 = vunpack.c.l.b16 %v289
      %v347 = vpack.c.b16 %v330, %v329
      %v348 = vpack.c.b16 %v332, %v331
      %v349 = vpack.c.b16 %v334, %v333
      %v350 = vpack.c.b16 %v336, %v335
      %v351 = vpack.c.b16 %v338, %v337
      %v352 = vpack.c.b16 %v340, %v339
      %v353 = vpack.c.b16 %v342, %v341
      %v354 = vpack.c.b16 %v344, %v343
      %v355 = vpack.c.b16 %v346, %v345
      %vm365 = vcmask 130048
      %v367 = vsel %vm365, %v309, 0
      %369 = vmatpush.bf16.msra.mxu0 %v354
      %370 = vmatpush.bf16.msra.mxu0 %v353
      %371 = vmatpush.bf16.msra.mxu0 %v352
      %372 = vmatpush.bf16.msra.mxu0 %v351
      %373 = vmatpush.bf16.msra.mxu0 %v350
      %374 = vmatpush.bf16.msra.mxu0 %v349
      %375 = vmatpush.bf16.msra.mxu0 %v348
      %376 = vmatpush.bf16.msra.mxu0 %v347
      %377 = vmatmul.bf16.gmra.mxu0 %v308
      %v378 = vpop.f32.mrf.mxu0
      %v379 = vadd.f32 %v295, %v378
      %v380 = vpop.f32.mrf.mxu0
      %v381 = vadd.f32 %v300, %v380
      %382 = vdwg.mxu0
      %383 = vmatpush.bf16.msra.mxu0 0
      %384 = vmatpush.bf16.msra.mxu0 0
      %385 = vmatpush.bf16.msra.mxu0 0
      %386 = vmatpush.bf16.msra.mxu0 0
      %387 = vmatpush.bf16.msra.mxu0 0
      %388 = vmatpush.bf16.msra.mxu0 0
      %389 = vmatpush.bf16.msra.mxu0 0
      %390 = vmatpush.bf16.msra.mxu0 %v355
      %391 = vmatmul.bf16.gmra.mxu0 %v367
      %v392 = vpop.f32.mrf.mxu0
      %v393 = vadd.f32 %v379, %v392
      %v394 = vpop.f32.mrf.mxu0
      %v395 = vadd.f32 %v381, %v394
      %396 = vdwg.mxu0
      %v397 = vmul.f32 %v393, 0.1
      %v398 = vmul.f32 %v395, 0.1
      %v399 = vmax.f32 %v393, %v397
      %v400 = vmax.f32 %v395, %v398
      %v401 = vld [vmem:[%s3] sm:$0x1]
      %v403 = vperm.slane %v401, 0
      %v405 = vmul.f32 %v399, %v403
      %v406 = vmul.f32 %v400, %v403
      %vm407 = vcmask 896000
      %408 = vst.msk [vmem:[%s197] sm:$0xf] %vm407, 0
      %409 = vst.msk [vmem:[%s197 + $0x4] sm:$0xf] %vm407, 0
      %v410 = vpack.c.bf16 %v405, %v405
      %v411 = vpack.c.bf16 %v406, %v406
      %414 = vrot.lane.b32.xlu0 %v410, 21
      %v415 = vpop.permute.xlu0 %414
      %416 = vrot.lane.b32.xlu0 %v411, 21
      %v417 = vpop.permute.xlu0 %416
      %vm420 = vcmask 887976
      %421 = vst.msk [vmem:[%s197] sm:$0xf] %vm420, %v415
      %422 = vst.msk [vmem:[%s197 + $0x4] sm:$0xf] %vm420, %v417
      %p423 = scmp.lt.s32.totalorder %s15, 1
      %s424 = scalar_select %p423, %s15, 1
      %s425 = smul.addr %s424, 2
      %s426 = smul.addr %s425, 4
      %s427 = scalar_lea.vmem %s4, %s426
      // Predicated region
      $region37: #{bsn_unet_forward.24} parent=35 // pred_check
        %p428 = pneg %p122
      $region38: #{bsn_unet_forward.24} parent=35 // pred_check_branch
        %430 = sbr.rel (%p428) target = $region40
      $region39: #{bsn_unet_forward.24} parent=35 // pred_region
        _
      $region40: #{bsn_unet_forward.24} parent=35 // pred_fallthru
        _
    $region36: #{bsn_unet_forward.24} parent=5 // pred_fallthru
      _
    %p431 = scmp.le.s32.totalorder 2, %s10
    // Predicated region
    $region41: #{bsn_unet_forward.24} parent=5 // pred_check
      %p432 = pneg %p431
    $region42: #{bsn_unet_forward.24} parent=5 // pred_check_branch
      %434 = sbr.rel (%p432) target = $region44
    $region43: #{bsn_unet_forward.24} parent=5 // pred_region
      %s435 = ssub.s32 %s10, 2
      // Predicated region
      $region45: #{bsn_unet_forward.24} parent=43 // pred_check
        %p436 = pneg %p128
      $region46: #{bsn_unet_forward.24} parent=43 // pred_check_branch
        %438 = sbr.rel (%p436) target = $region48
      $region47: #{bsn_unet_forward.24} parent=43 // pred_region
        %p439 = scmp.lt.s32.totalorder %s16, 1
        %s440 = scalar_select %p439, %s16, 1
        %s441 = smul.addr %s440, 2
        %s442 = smul.addr %s441, 4
        %s443 = scalar_lea.vmem %s4, %s442
      $region48: #{bsn_unet_forward.24} parent=43 // pred_fallthru
        _
    $region44: #{bsn_unet_forward.24} parent=5 // pred_fallthru
      _
  $region6: #{bsn_unet_forward.24} parent=0 // loop_footer
    %s14 = sadd.s32 1, %s10
  $region7: #{bsn_unet_forward.24} parent=0 // loop_footer_branch
    %9 = sbr.rel target = $region3
  $region8: #{bsn_unet_forward.24} parent=0 // loop_exit
    _

// kernel: bsn_unet_forward.23
$region0: #{bsn_unet_forward.23}
  #allocation0 [shape = 'u32[]', space=smem, size = 0x4, offset = 0x4, fixed_abs, tag = 'smem constant byte address 0x4 - core index']
  #allocation1 [shape = 'u32[72,128]{1,0:T(1,128)}', space=vmem, size = 0x9000, scoped, tag = 'internal scratch']
  #allocation2 [shape = 'bf16[216,88]{1,0:T(8,128)(2,1)}', space=vmem, size = 0xd800, scoped, tag = 'scratch operand']
  %s0 = inlined_call_operand.vmem [shape: bf16[2,16,110], index: 0, kind: input, shape index: {}]
  %s1 = inlined_call_operand.vmem [shape: bf16[2,8,110], index: 1, kind: input, shape index: {}]
  %s2 = inlined_call_operand.vmem [shape: bf16[16,216], index: 2, kind: input, shape index: {}]
  %s3 = inlined_call_operand.vmem [shape: f32[16,1], index: 3, kind: input, shape index: {}]
  %s4 = inlined_call_operand.vmem [shape: f32[1,88], index: 4, kind: input, shape index: {}]
  %s5 = inlined_call_operand.vmem [shape: bf16[2,16,110], index: 5, kind: output, shape index: {}]
  %s6 = sld [smem:[#allocation0]]
  $region53: #{bsn_unet_forward.23} parent=0
    _
  %s8 = ssub.s32 1, %s6
  %s9 = scalar_select 0, %s8, %s6
  loop: start=0, step=1, limit=4
  $region2: #{bsn_unet_forward.23} parent=0 // loop_pre_header
    _
  $region3: #{bsn_unet_forward.23} parent=0 // loop_header
    %s11 = sphi 0, %s15
    %p12 = scmp.ge.s32.totalorder %s11, 4
    %s21 = sphi 0, %s23
    %s24 = sphi 0, %s21
    %s25 = sphi 0, %s24
    %s41 = sphi 0, %s25
    %s47 = sphi 0, %s49
    %s50 = sphi 0, %s47
    %s51 = sphi 0, %s50
    %s67 = sphi 0, %s51
    %s71 = sphi 0, %s71
    %s73 = sphi 0, %s71
    %s74 = sphi 0, %s73
    %s88 = sphi 0, %s74
    %s92 = sphi 0, %s92
    %s94 = sphi 0, %s92
    %s95 = sphi 0, %s94
    %s109 = sphi 0, %s95
    %s113 = sphi 0, %s113
    %s115 = sphi 0, %s113
    %s116 = sphi 0, %s115
    %s130 = sphi 0, %s116
    %s136 = sphi 0, %s138
    %s139 = sphi 0, %s136
    %s140 = sphi 0, %s139
    %s156 = sphi 0, %s140
  $region4: #{bsn_unet_forward.23} parent=0 // loop_header_branch
    %14 = sbr.rel (%p12) target = $region8
  $region5: #{bsn_unet_forward.23} parent=0 // loop_body
    %s16 = ssub.s32 %s11, 1
    %s17 = ssub.s32 %s11, 2
    %s18 = sadd.s32 %s11, 1
    %s19 = ssub.s32 %s11, %s18
    %p20 = scmp.eq.s32.totalorder %s19, 0
    %s22 = sadd.s32 %s21, 1
    %s23 = scalar_select %p20, %s21, %s22
    %p26 = pneg %p20
    %p27 = scmp.eq.s32.totalorder %s11, 1
    %p28 = por %p26, %p27
    %p29 = scmp.ne.s32.totalorder %s21, %s24
    %p30 = scmp.eq.s32.totalorder %s11, 0
    %p31 = por %p29, %p30
    %p32 = scmp.ne.s32.totalorder %s21, %s24
    %p33 = scmp.eq.s32.totalorder %s16, 1
    %p34 = por %p32, %p33
    %p35 = scmp.ne.s32.totalorder %s24, %s25
    %p36 = scmp.eq.s32.totalorder %s16, 0
    %p37 = por %p35, %p36
    %p38 = scmp.ne.s32.totalorder %s24, %s25
    %p39 = scmp.eq.s32.totalorder %s17, 1
    %p40 = por %p38, %p39
    %p42 = scmp.ne.s32.totalorder %s25, %s41
    %p43 = scmp.eq.s32.totalorder %s17, 0
    %p44 = por %p42, %p43
    %s45 = ssub.s32 %s11, %s18
    %p46 = scmp.eq.s32.totalorder %s45, 0
    %s48 = sadd.s32 %s47, 1
    %s49 = scalar_select %p46, %s47, %s48
    %p52 = pneg %p46
    %p53 = scmp.eq.s32.totalorder %s11, 1
    %p54 = por %p52, %p53
    %p55 = scmp.ne.s32.totalorder %s47, %s50
    %p56 = scmp.eq.s32.totalorder %s11, 0
    %p57 = por %p55, %p56
    %p58 = scmp.ne.s32.totalorder %s47, %s50
    %p59 = scmp.eq.s32.totalorder %s16, 1
    %p60 = por %p58, %p59
    %p61 = scmp.ne.s32.totalorder %s50, %s51
    %p62 = scmp.eq.s32.totalorder %s16, 0
    %p63 = por %p61, %p62
    %p64 = scmp.ne.s32.totalorder %s50, %s51
    %p65 = scmp.eq.s32.totalorder %s17, 1
    %p66 = por %p64, %p65
    %p68 = scmp.ne.s32.totalorder %s51, %s67
    %p69 = scmp.eq.s32.totalorder %s17, 0
    %p70 = por %p68, %p69
    %s72 = sadd.s32 %s71, 1
    %p75 = scmp.eq.s32.totalorder %s11, 1
    %p76 = scmp.ne.s32.totalorder %s71, %s73
    %p77 = scmp.eq.s32.totalorder %s11, 0
    %p78 = por %p76, %p77
    %p79 = scmp.ne.s32.totalorder %s71, %s73
    %p80 = scmp.eq.s32.totalorder %s16, 1
    %p81 = por %p79, %p80
    %p82 = scmp.ne.s32.totalorder %s73, %s74
    %p83 = scmp.eq.s32.totalorder %s16, 0
    %p84 = por %p82, %p83
    %p85 = scmp.ne.s32.totalorder %s73, %s74
    %p86 = scmp.eq.s32.totalorder %s17, 1
    %p87 = por %p85, %p86
    %p89 = scmp.ne.s32.totalorder %s74, %s88
    %p90 = scmp.eq.s32.totalorder %s17, 0
    %p91 = por %p89, %p90
    %s93 = sadd.s32 %s92, 1
    %p96 = scmp.eq.s32.totalorder %s11, 1
    %p97 = scmp.ne.s32.totalorder %s92, %s94
    %p98 = scmp.eq.s32.totalorder %s11, 0
    %p99 = por %p97, %p98
    %p100 = scmp.ne.s32.totalorder %s92, %s94
    %p101 = scmp.eq.s32.totalorder %s16, 1
    %p102 = por %p100, %p101
    %p103 = scmp.ne.s32.totalorder %s94, %s95
    %p104 = scmp.eq.s32.totalorder %s16, 0
    %p105 = por %p103, %p104
    %p106 = scmp.ne.s32.totalorder %s94, %s95
    %p107 = scmp.eq.s32.totalorder %s17, 1
    %p108 = por %p106, %p107
    %p110 = scmp.ne.s32.totalorder %s95, %s109
    %p111 = scmp.eq.s32.totalorder %s17, 0
    %p112 = por %p110, %p111
    %s114 = sadd.s32 %s113, 1
    %p117 = scmp.eq.s32.totalorder %s11, 1
    %p118 = scmp.ne.s32.totalorder %s113, %s115
    %p119 = scmp.eq.s32.totalorder %s11, 0
    %p120 = por %p118, %p119
    %p121 = scmp.ne.s32.totalorder %s113, %s115
    %p122 = scmp.eq.s32.totalorder %s16, 1
    %p123 = por %p121, %p122
    %p124 = scmp.ne.s32.totalorder %s115, %s116
    %p125 = scmp.eq.s32.totalorder %s16, 0
    %p126 = por %p124, %p125
    %p127 = scmp.ne.s32.totalorder %s115, %s116
    %p128 = scmp.eq.s32.totalorder %s17, 1
    %p129 = por %p127, %p128
    %p131 = scmp.ne.s32.totalorder %s116, %s130
    %p132 = scmp.eq.s32.totalorder %s17, 0
    %p133 = por %p131, %p132
    %s134 = ssub.s32 %s11, %s18
    %p135 = scmp.eq.s32.totalorder %s134, 0
    %s137 = sadd.s32 %s136, 1
    %s138 = scalar_select %p135, %s136, %s137
    %p141 = pneg %p135
    %p142 = scmp.eq.s32.totalorder %s11, 1
    %p143 = por %p141, %p142
    %p144 = scmp.ne.s32.totalorder %s136, %s139
    %p145 = scmp.eq.s32.totalorder %s11, 0
    %p146 = por %p144, %p145
    %p147 = scmp.ne.s32.totalorder %s136, %s139
    %p148 = scmp.eq.s32.totalorder %s16, 1
    %p149 = por %p147, %p148
    %p150 = scmp.ne.s32.totalorder %s139, %s140
    %p151 = scmp.eq.s32.totalorder %s16, 0
    %p152 = por %p150, %p151
    %p153 = scmp.ne.s32.totalorder %s139, %s140
    %p154 = scmp.eq.s32.totalorder %s17, 1
    %p155 = por %p153, %p154
    %p157 = scmp.ne.s32.totalorder %s140, %s156
    %p158 = scmp.eq.s32.totalorder %s17, 0
    %p159 = por %p157, %p158
    %p160 = scmp.le.s32.totalorder 1, %s11
    %p161 = scmp.lt.s32.totalorder %s11, 3
    %p162 = pnand %p160, %p161
    %p163 = pneg %p162
    // Predicated region
    $region9: #{bsn_unet_forward.23} parent=5 // pred_check
      _
    $region10: #{bsn_unet_forward.23} parent=5 // pred_check_branch
      %165 = sbr.rel (%p162) target = $region12
    $region11: #{bsn_unet_forward.23} parent=5 // pred_region
      %s166 = ssub.s32 %s11, 1
      // Predicated region
      $region13: #{bsn_unet_forward.23} parent=11 // pred_check
        %p167 = pneg %p84
      $region14: #{bsn_unet_forward.23} parent=11 // pred_check_branch
        %169 = sbr.rel (%p167) target = $region16
      $region15: #{bsn_unet_forward.23} parent=11 // pred_region
        _
      $region16: #{bsn_unet_forward.23} parent=11 // pred_fallthru
        _
      // Predicated region
      $region17: #{bsn_unet_forward.23} parent=11 // pred_check
        %p170 = pneg %p105
      $region18: #{bsn_unet_forward.23} parent=11 // pred_check_branch
        %172 = sbr.rel (%p170) target = $region20
      $region19: #{bsn_unet_forward.23} parent=11 // pred_region
        _
      $region20: #{bsn_unet_forward.23} parent=11 // pred_fallthru
        _
      // Predicated region
      $region21: #{bsn_unet_forward.23} parent=11 // pred_check
        %p173 = pneg %p126
      $region22: #{bsn_unet_forward.23} parent=11 // pred_check_branch
        %175 = sbr.rel (%p173) target = $region24
      $region23: #{bsn_unet_forward.23} parent=11 // pred_region
        _
      $region24: #{bsn_unet_forward.23} parent=11 // pred_fallthru
        _
    $region12: #{bsn_unet_forward.23} parent=5 // pred_fallthru
      _
    %p176 = scmp.lt.s32.totalorder %s11, 2
    // Predicated region
    $region25: #{bsn_unet_forward.23} parent=5 // pred_check
      %p177 = pneg %p176
    $region26: #{bsn_unet_forward.23} parent=5 // pred_check_branch
      %179 = sbr.rel (%p177) target = $region28
    $region27: #{bsn_unet_forward.23} parent=5 // pred_region
      // Predicated region
      $region29: #{bsn_unet_forward.23} parent=27 // pred_check
        %p180 = pneg %p31
      $region30: #{bsn_unet_forward.23} parent=27 // pred_check_branch
        %182 = sbr.rel (%p180) target = $region32
      $region31: #{bsn_unet_forward.23} parent=27 // pred_region
        %p183 = scmp.lt.s32.totalorder %s11, 1
        %s184 = scalar_select %p183, %s11, 1
        %s185 = smul.addr %s184, 2
        %s186 = smul.addr %s185, 4
        %s187 = scalar_lea.vmem %s0, %s186
      $region32: #{bsn_unet_forward.23} parent=27 // pred_fallthru
        _
      // Predicated region
      $region33: #{bsn_unet_forward.23} parent=27 // pred_check
        %p188 = pneg %p57
      $region34: #{bsn_unet_forward.23} parent=27 // pred_check_branch
        %190 = sbr.rel (%p188) target = $region36
      $region35: #{bsn_unet_forward.23} parent=27 // pred_region
        %p191 = scmp.lt.s32.totalorder %s11, 1
        %s192 = scalar_select %p191, %s11, 1
        %s193 = smul.addr %s192, 4
        %s194 = scalar_lea.vmem %s1, %s193
      $region36: #{bsn_unet_forward.23} parent=27 // pred_fallthru
        _
    $region28: #{bsn_unet_forward.23} parent=5 // pred_fallthru
      _
    %p195 = scmp.le.s32.totalorder 1, %s11
    %p196 = scmp.lt.s32.totalorder %s11, 3
    %p197 = pnand %p195, %p196
    %p198 = pneg %p197
    // Predicated region
    $region37: #{bsn_unet_forward.23} parent=5 // pred_check
      _
    $region38: #{bsn_unet_forward.23} parent=5 // pred_check_branch
      %200 = sbr.rel (%p197) target = $region40
    $region39: #{bsn_unet_forward.23} parent=5 // pred_region
      %s201 = ssub.s32 %s11, 1
      %p202 = scmp.lt.s32.totalorder %s16, 1
      %s203 = scalar_select %p202, %s16, 1
      %s204 = smul.addr %s203, 2
      %s205 = smul.addr %s204, 4
      %s206 = scalar_lea.vmem %s0, %s205
      %p207 = pneg %p37
      %p208 = pneg %p34
      %p209 = scmp.lt.s32.totalorder %s16, 1
      %s210 = scalar_select %p209, %s16, 1
      %s211 = smul.addr %s210, 4
      %s212 = scalar_lea.vmem %s1, %s211
      %p213 = pneg %p63
      %p214 = pneg %p60
      %p215 = pneg %p84
      %p216 = pneg %p81
      %p217 = pneg %p105
      %p218 = pneg %p102
      %p219 = pneg %p126
      %p220 = pneg %p123
      %p221 = pneg %p152
      %p222 = pneg %p149
      %p223 = scmp.lt.s32.totalorder %s16, 1
      %s224 = scalar_select %p223, %s16, 1
      %s225 = smul.addr %s224, 2
      %s226 = smul.addr %s225, 4
      %s227 = scalar_lea.vmem %s5, %s226
      %p228 = scmp.lt.s32.totalorder %s16, 1
      %s229 = scalar_select %p228, %s16, 1
      %s230 = smul.addr %s229, 2
      %s231 = smul.addr %s230, 4
      %s232 = scalar_lea.vmem %s0, %s231
      %p233 = scmp.lt.s32.totalorder %s16, 1
      %s234 = scalar_select %p233, %s16, 1
      %s235 = smul.addr %s234, 4
      %s236 = scalar_lea.vmem %s1, %s235
      %p237 = scmp.lt.s32.totalorder %s16, 1
      %s238 = scalar_select %p237, %s16, 1
      %s239 = smul.addr %s238, 2
      %s240 = smul.addr %s239, 4
      %s241 = scalar_lea.vmem %s5, %s240
      %v243 = vld [vmem:[%s232] sm:$0xf]
      %v244 = vld [vmem:[%s232 + $0x4] sm:$0xf]
      %vm245 = vcmask 715776
      %246 = vst.msk [vmem:[#allocation2] sm:$0xf] %vm245, %v243
      %247 = vst.msk [vmem:[#allocation2 + $0x4] sm:$0xf] %vm245, %v244
      %250 = vrot.lane.b32.xlu0 %v243, 127
      %v251 = vpop.permute.xlu0 %250
      %252 = vrot.lane.b32.xlu0 %v244, 127
      %v253 = vpop.permute.xlu0 %252
      %256 = vst.msk [vmem:[#allocation2 + $0x8] sm:$0xf] %vm245, %v251
      %257 = vst.msk [vmem:[#allocation2 + $0xc] sm:$0xf] %vm245, %v253
      %258 = vrot.lane.b32.xlu0 %v243, 126
      %v259 = vpop.permute.xlu0 %258
      %260 = vrot.lane.b32.xlu0 %v244, 126
      %v261 = vpop.permute.xlu0 %260
      %264 = vst.msk [vmem:[#allocation2 + $0x10] sm:$0xf] %vm245, %v259
      %265 = vst.msk [vmem:[#allocation2 + $0x14] sm:$0xf] %vm245, %v261
      %266 = vrot.lane.b32.xlu0 %v243, 118
      %v267 = vpop.permute.xlu0 %266
      %268 = vrot.lane.b32.xlu0 %v244, 118
      %v269 = vpop.permute.xlu0 %268
      %272 = vst.msk [vmem:[#allocation2 + $0x18] sm:$0xf] %vm245, %v267
      %273 = vst.msk [vmem:[#allocation2 + $0x1c] sm:$0xf] %vm245, %v269
      %274 = vrot.lane.b32.xlu0 %v243, 117
      %v275 = vpop.permute.xlu0 %274
      %276 = vrot.lane.b32.xlu0 %v244, 117
      %v277 = vpop.permute.xlu0 %276
      %280 = vst.msk [vmem:[#allocation2 + $0x20] sm:$0xf] %vm245, %v275
      %281 = vst.msk [vmem:[#allocation2 + $0x24] sm:$0xf] %vm245, %v277
      %282 = vrot.lane.b32.xlu0 %v243, 116
      %v283 = vpop.permute.xlu0 %282
      %284 = vrot.lane.b32.xlu0 %v244, 116
      %v285 = vpop.permute.xlu0 %284
      %288 = vst.msk [vmem:[#allocation2 + $0x28] sm:$0xf] %vm245, %v283
      %289 = vst.msk [vmem:[#allocation2 + $0x2c] sm:$0xf] %vm245, %v285
      %290 = vrot.lane.b32.xlu0 %v243, 108
      %v291 = vpop.permute.xlu0 %290
      %292 = vrot.lane.b32.xlu0 %v244, 108
      %v293 = vpop.permute.xlu0 %292
      %296 = vst.msk [vmem:[#allocation2 + $0x30] sm:$0xf] %vm245, %v291
      %297 = vst.msk [vmem:[#allocation2 + $0x34] sm:$0xf] %vm245, %v293
      %298 = vrot.lane.b32.xlu0 %v243, 107
      %v299 = vpop.permute.xlu0 %298
      %300 = vrot.lane.b32.xlu0 %v244, 107
      %v301 = vpop.permute.xlu0 %300
      %304 = vst.msk [vmem:[#allocation2 + $0x38] sm:$0xf] %vm245, %v299
      %305 = vst.msk [vmem:[#allocation2 + $0x3c] sm:$0xf] %vm245, %v301
      %306 = vrot.lane.b32.xlu0 %v243, 106
      %v307 = vpop.permute.xlu0 %306
      %308 = vrot.lane.b32.xlu0 %v244, 106
      %v309 = vpop.permute.xlu0 %308
      %312 = vst.msk [vmem:[#allocation2 + $0x40] sm:$0xf] %vm245, %v307
      %313 = vst.msk [vmem:[#allocation2 + $0x44] sm:$0xf] %vm245, %v309
      %v314 = vld [vmem:[%s236] sm:$0xf]
      %315 = vst.msk [vmem:[#allocation2 + $0x48] sm:$0xf] %vm245, %v314
      %317 = vrot.lane.b32.xlu0 %v314, 127
      %v318 = vpop.permute.xlu0 %317
      %320 = vst.msk [vmem:[#allocation2 + $0x4c] sm:$0xf] %vm245, %v318
      %321 = vrot.lane.b32.xlu0 %v314, 126
      %v322 = vpop.permute.xlu0 %321
      %324 = vst.msk [vmem:[#allocation2 + $0x50] sm:$0xf] %vm245, %v322
      %325 = vrot.lane.b32.xlu0 %v314, 118
      %v326 = vpop.permute.xlu0 %325
      %328 = vst.msk [vmem:[#allocation2 + $0x54] sm:$0xf] %vm245, %v326
      %329 = vrot.lane.b32.xlu0 %v314, 117
      %v330 = vpop.permute.xlu0 %329
      %332 = vst.msk [vmem:[#allocation2 + $0x58] sm:$0xf] %vm245, %v330
      %333 = vrot.lane.b32.xlu0 %v314, 116
      %v334 = vpop.permute.xlu0 %333
      %336 = vst.msk [vmem:[#allocation2 + $0x5c] sm:$0xf] %vm245, %v334
      %337 = vrot.lane.b32.xlu0 %v314, 108
      %v338 = vpop.permute.xlu0 %337
      %340 = vst.msk [vmem:[#allocation2 + $0x60] sm:$0xf] %vm245, %v338
      %341 = vrot.lane.b32.xlu0 %v314, 107
      %v342 = vpop.permute.xlu0 %341
      %344 = vst.msk [vmem:[#allocation2 + $0x64] sm:$0xf] %vm245, %v342
      %345 = vrot.lane.b32.xlu0 %v314, 106
      %v346 = vpop.permute.xlu0 %345
      %348 = vst.msk [vmem:[#allocation2 + $0x68] sm:$0xf] %vm245, %v346
      %v349 = vld [vmem:[%s2] sm:$0xff]
      %v350 = vld [vmem:[%s2 + $0x8] sm:$0xff]
      %v351 = vld [vmem:[#allocation2] sm:$0xf]
      %v352 = vld [vmem:[#allocation2 + $0x4] sm:$0xf]
      %v353 = vld [vmem:[#allocation2 + $0x8] sm:$0xf]
      %v354 = vld [vmem:[#allocation2 + $0xc] sm:$0xf]
      %v355 = vld [vmem:[#allocation2 + $0x10] sm:$0xf]
      %v356 = vld [vmem:[#allocation2 + $0x14] sm:$0xf]
      %v357 = vld [vmem:[#allocation2 + $0x18] sm:$0xf]
      %v358 = vld [vmem:[#allocation2 + $0x1c] sm:$0xf]
      %v359 = vld [vmem:[#allocation2 + $0x20] sm:$0xf]
      %v360 = vld [vmem:[#allocation2 + $0x24] sm:$0xf]
      %v361 = vld [vmem:[#allocation2 + $0x28] sm:$0xf]
      %v362 = vld [vmem:[#allocation2 + $0x2c] sm:$0xf]
      %v363 = vld [vmem:[#allocation2 + $0x30] sm:$0xf]
      %v364 = vld [vmem:[#allocation2 + $0x34] sm:$0xf]
      %v365 = vld [vmem:[#allocation2 + $0x38] sm:$0xf]
      %v366 = vld [vmem:[#allocation2 + $0x3c] sm:$0xf]
      %v367 = vld [vmem:[#allocation2 + $0x40] sm:$0xf]
      %v368 = vld [vmem:[#allocation2 + $0x44] sm:$0xf]
      %v369 = vld [vmem:[#allocation2 + $0x48] sm:$0xf]
      %v370 = vld [vmem:[#allocation2 + $0x4c] sm:$0xf]
      %v371 = vld [vmem:[#allocation2 + $0x50] sm:$0xf]
      %v372 = vld [vmem:[#allocation2 + $0x54] sm:$0xf]
      %v373 = vld [vmem:[#allocation2 + $0x58] sm:$0xf]
      %v374 = vld [vmem:[#allocation2 + $0x5c] sm:$0xf]
      %v375 = vld [vmem:[#allocation2 + $0x60] sm:$0xf]
      %v376 = vld [vmem:[#allocation2 + $0x64] sm:$0xf]
      %v377 = vld [vmem:[#allocation2 + $0x68] sm:$0xf]
      %v378 = vld [vmem:[%s3] sm:$0xff]
      %v379 = vld [vmem:[%s3 + $0x8] sm:$0xff]
      %381 = vset.pattern.permute.xlu0 0
      %382 = vperm.xlu0 %381, %v378
      %v383 = vpop.permute.xlu0 %382
      %386 = vset.pattern.permute.xlu0 0
      %387 = vperm.xlu0 %386, %v379
      %v388 = vpop.permute.xlu0 %387
      %v392 = vunpack.c.l.b16 %v349
      %v393 = vunpack.c.h.b16 %v349
      %v394 = vunpack.c.l.b16 %v350
      %v395 = vunpack.c.h.b16 %v350
      %v396 = vpack.c.b16 %v394, %v392
      %v397 = vpack.c.b16 %v395, %v393
      %v426 = vunpack.c.l.b16 %v351
      %v427 = vunpack.c.l.b16 %v352
      %v428 = vunpack.c.l.b16 %v353
      %v429 = vunpack.c.l.b16 %v354
      %v430 = vunpack.c.l.b16 %v355
      %v431 = vunpack.c.l.b16 %v356
      %v432 = vunpack.c.l.b16 %v357
      %v433 = vunpack.c.l.b16 %v358
      %v434 = vunpack.c.l.b16 %v359
      %v435 = vunpack.c.l.b16 %v360
      %v436 = vunpack.c.l.b16 %v361
      %v437 = vunpack.c.l.b16 %v362
      %v438 = vunpack.c.l.b16 %v363
      %v439 = vunpack.c.l.b16 %v364
      %v440 = vunpack.c.l.b16 %v365
      %v441 = vunpack.c.l.b16 %v366
      %v442 = vunpack.c.l.b16 %v367
      %v443 = vunpack.c.l.b16 %v368
      %v444 = vunpack.c.l.b16 %v369
      %v445 = vunpack.c.l.b16 %v370
      %v446 = vunpack.c.l.b16 %v371
      %v447 = vunpack.c.l.b16 %v372
      %v448 = vunpack.c.l.b16 %v373
      %v449 = vunpack.c.l.b16 %v374
      %v450 = vunpack.c.l.b16 %v375
      %v451 = vunpack.c.l.b16 %v376
      %v452 = vunpack.c.l.b16 %v377
      %v453 = vpack.c.b16 %v427, %v426
      %v454 = vpack.c.b16 %v429, %v428
      %v455 = vpack.c.b16 %v431, %v430
      %v456 = vpack.c.b16 %v433, %v432
      %v457 = vpack.c.b16 %v435, %v434
      %v458 = vpack.c.b16 %v437, %v436
      %v459 = vpack.c.b16 %v439, %v438
      %v460 = vpack.c.b16 %v441, %v440
      %v461 = vpack.c.b16 %v443, %v442
      %v462 = vpack.c.b16 %v445, %v444
      %v463 = vpack.c.b16 %v447, %v446
      %v464 = vpack.c.b16 %v449, %v448
      %v465 = vpack.c.b16 %v451, %v450
      %v466 = vpack.c.b16 %v452, %v452
      %vm480 = vcmask 719872
      %v482 = vsel %vm480, %v397, 0
      %vm484 = vcmask 1043456
      %v486 = vsel %vm484, %v466, 0
      %488 = vmatpush.bf16.msra.mxu0 %v460
      %489 = vmatpush.bf16.msra.mxu0 %v459
      %490 = vmatpush.bf16.msra.mxu0 %v458
      %491 = vmatpush.bf16.msra.mxu0 %v457
      %492 = vmatpush.bf16.msra.mxu0 %v456
      %493 = vmatpush.bf16.msra.mxu0 %v455
      %494 = vmatpush.bf16.msra.mxu0 %v454
      %495 = vmatpush.bf16.msra.mxu0 %v453
      %496 = vmatmul.bf16.gmra.mxu0 %v396
      %v497 = vpop.f32.mrf.mxu0
      %v498 = vadd.f32 %v383, %v497
      %v499 = vpop.f32.mrf.mxu0
      %v500 = vadd.f32 %v388, %v499
      %501 = vdwg.mxu0
      %502 = vmatpush.bf16.msra.mxu0 0
      %503 = vmatpush.bf16.msra.mxu0 0
      %504 = vmatpush.bf16.msra.mxu0 %v486
      %505 = vmatpush.bf16.msra.mxu0 %v465
      %506 = vmatpush.bf16.msra.mxu0 %v464
      %507 = vmatpush.bf16.msra.mxu0 %v463
      %508 = vmatpush.bf16.msra.mxu0 %v462
      %509 = vmatpush.bf16.msra.mxu0 %v461
      %510 = vmatmul.bf16.gmra.mxu0 %v482
      %v511 = vpop.f32.mrf.mxu0
      %v512 = vadd.f32 %v498, %v511
      %v513 = vpop.f32.mrf.mxu0
      %v514 = vadd.f32 %v500, %v513
      %515 = vdwg.mxu0
      %v516 = vmul.f32 %v512, 0.1
      %v517 = vmul.f32 %v514, 0.1
      %v518 = vmax.f32 %v512, %v516
      %v519 = vmax.f32 %v514, %v517
      %v520 = vld [vmem:[%s4] sm:$0x1]
      %v522 = vperm.slane %v520, 0
      %v524 = vmul.f32 %v518, %v522
      %v525 = vmul.f32 %v519, %v522
      %vm526 = vcmask 896000
      %527 = vst.msk [vmem:[%s241] sm:$0xf] %vm526, 0
      %528 = vst.msk [vmem:[%s241 + $0x4] sm:$0xf] %vm526, 0
      %v529 = vpack.c.bf16 %v524, %v524
      %v530 = vpack.c.bf16 %v525, %v525
      %533 = vrot.lane.b32.xlu0 %v529, 21
      %v534 = vpop.permute.xlu0 %533
      %535 = vrot.lane.b32.xlu0 %v530, 21
      %v536 = vpop.permute.xlu0 %535
      %vm539 = vcmask 887976
      %540 = vst.msk [vmem:[%s241] sm:$0xf] %vm539, %v534
      %541 = vst.msk [vmem:[%s241 + $0x4] sm:$0xf] %vm539, %v536
      %p542 = scmp.lt.s32.totalorder %s16, 1
      %s543 = scalar_select %p542, %s16, 1
      %s544 = smul.addr %s543, 2
      %s545 = smul.addr %s544, 4
      %s546 = scalar_lea.vmem %s5, %s545
      // Predicated region
      $region41: #{bsn_unet_forward.23} parent=39 // pred_check
        %p547 = pneg %p149
      $region42: #{bsn_unet_forward.23} parent=39 // pred_check_branch
        %549 = sbr.rel (%p547) target = $region44
      $region43: #{bsn_unet_forward.23} parent=39 // pred_region
        _
      $region44: #{bsn_unet_forward.23} parent=39 // pred_fallthru
        _
    $region40: #{bsn_unet_forward.23} parent=5 // pred_fallthru
      _
    %p550 = scmp.le.s32.totalorder 2, %s11
    // Predicated region
    $region45: #{bsn_unet_forward.23} parent=5 // pred_check
      %p551 = pneg %p550
    $region46: #{bsn_unet_forward.23} parent=5 // pred_check_branch
      %553 = sbr.rel (%p551) target = $region48
    $region47: #{bsn_unet_forward.23} parent=5 // pred_region
      %s554 = ssub.s32 %s11, 2
      // Predicated region
      $region49: #{bsn_unet_forward.23} parent=47 // pred_check
        %p555 = pneg %p155
      $region50: #{bsn_unet_forward.23} parent=47 // pred_check_branch
        %557 = sbr.rel (%p555) target = $region52
      $region51: #{bsn_unet_forward.23} parent=47 // pred_region
        %p558 = scmp.lt.s32.totalorder %s17, 1
        %s559 = scalar_select %p558, %s17, 1
        %s560 = smul.addr %s559, 2
        %s561 = smul.addr %s560, 4
        %s562 = scalar_lea.vmem %s5, %s561
      $region52: #{bsn_unet_forward.23} parent=47 // pred_fallthru
        _
    $region48: #{bsn_unet_forward.23} parent=5 // pred_fallthru
      _
  $region6: #{bsn_unet_forward.23} parent=0 // loop_footer
    %s15 = sadd.s32 1, %s11
  $region7: #{bsn_unet_forward.23} parent=0 // loop_footer_branch
    %10 = sbr.rel target = $region3
  $region8: #{bsn_unet_forward.23} parent=0 // loop_exit
    _

// kernel: bsn_unet_forward.27
$region0: #{bsn_unet_forward.27}
  #allocation0 [shape = 'u32[]', space=smem, size = 0x4, offset = 0x4, fixed_abs, tag = 'smem constant byte address 0x4 - core index']
  #allocation1 [shape = 'u32[72,128]{1,0:T(1,128)}', space=vmem, size = 0x9000, scoped, tag = 'internal scratch']
  #allocation2 [shape = 'bf16[144,304]{1,0:T(8,128)(2,1)}', space=vmem, size = 0x1b000, scoped, tag = 'scratch operand']
  %s0 = inlined_call_operand.vmem [shape: bf16[2,16,342], index: 0, kind: input, shape index: {}]
  %s1 = inlined_call_operand.vmem [shape: bf16[16,144], index: 1, kind: input, shape index: {}]
  %s2 = inlined_call_operand.vmem [shape: f32[16,1], index: 2, kind: input, shape index: {}]
  %s3 = inlined_call_operand.vmem [shape: f32[1,304], index: 3, kind: input, shape index: {}]
  %s4 = inlined_call_operand.vmem [shape: bf16[2,16,342], index: 4, kind: output, shape index: {}]
  %s5 = sld [smem:[#allocation0]]
  $region49: #{bsn_unet_forward.27} parent=0
    _
  %s7 = ssub.s32 1, %s5
  %s8 = scalar_select 0, %s7, %s5
  loop: start=0, step=1, limit=4
  $region2: #{bsn_unet_forward.27} parent=0 // loop_pre_header
    _
  $region3: #{bsn_unet_forward.27} parent=0 // loop_header
    %s10 = sphi 0, %s14
    %p11 = scmp.ge.s32.totalorder %s10, 4
    %s20 = sphi 0, %s22
    %s23 = sphi 0, %s20
    %s24 = sphi 0, %s23
    %s40 = sphi 0, %s24
    %s44 = sphi 0, %s44
    %s46 = sphi 0, %s44
    %s47 = sphi 0, %s46
    %s61 = sphi 0, %s47
    %s65 = sphi 0, %s65
    %s67 = sphi 0, %s65
    %s68 = sphi 0, %s67
    %s82 = sphi 0, %s68
    %s86 = sphi 0, %s86
    %s88 = sphi 0, %s86
    %s89 = sphi 0, %s88
    %s103 = sphi 0, %s89
    %s109 = sphi 0, %s111
    %s112 = sphi 0, %s109
    %s113 = sphi 0, %s112
    %s129 = sphi 0, %s113
  $region4: #{bsn_unet_forward.27} parent=0 // loop_header_branch
    %13 = sbr.rel (%p11) target = $region8
  $region5: #{bsn_unet_forward.27} parent=0 // loop_body
    %s15 = ssub.s32 %s10, 1
    %s16 = ssub.s32 %s10, 2
    %s17 = sadd.s32 %s10, 1
    %s18 = ssub.s32 %s10, %s17
    %p19 = scmp.eq.s32.totalorder %s18, 0
    %s21 = sadd.s32 %s20, 1
    %s22 = scalar_select %p19, %s20, %s21
    %p25 = pneg %p19
    %p26 = scmp.eq.s32.totalorder %s10, 1
    %p27 = por %p25, %p26
    %p28 = scmp.ne.s32.totalorder %s20, %s23
    %p29 = scmp.eq.s32.totalorder %s10, 0
    %p30 = por %p28, %p29
    %p31 = scmp.ne.s32.totalorder %s20, %s23
    %p32 = scmp.eq.s32.totalorder %s15, 1
    %p33 = por %p31, %p32
    %p34 = scmp.ne.s32.totalorder %s23, %s24
    %p35 = scmp.eq.s32.totalorder %s15, 0
    %p36 = por %p34, %p35
    %p37 = scmp.ne.s32.totalorder %s23, %s24
    %p38 = scmp.eq.s32.totalorder %s16, 1
    %p39 = por %p37, %p38
    %p41 = scmp.ne.s32.totalorder %s24, %s40
    %p42 = scmp.eq.s32.totalorder %s16, 0
    %p43 = por %p41, %p42
    %s45 = sadd.s32 %s44, 1
    %p48 = scmp.eq.s32.totalorder %s10, 1
    %p49 = scmp.ne.s32.totalorder %s44, %s46
    %p50 = scmp.eq.s32.totalorder %s10, 0
    %p51 = por %p49, %p50
    %p52 = scmp.ne.s32.totalorder %s44, %s46
    %p53 = scmp.eq.s32.totalorder %s15, 1
    %p54 = por %p52, %p53
    %p55 = scmp.ne.s32.totalorder %s46, %s47
    %p56 = scmp.eq.s32.totalorder %s15, 0
    %p57 = por %p55, %p56
    %p58 = scmp.ne.s32.totalorder %s46, %s47
    %p59 = scmp.eq.s32.totalorder %s16, 1
    %p60 = por %p58, %p59
    %p62 = scmp.ne.s32.totalorder %s47, %s61
    %p63 = scmp.eq.s32.totalorder %s16, 0
    %p64 = por %p62, %p63
    %s66 = sadd.s32 %s65, 1
    %p69 = scmp.eq.s32.totalorder %s10, 1
    %p70 = scmp.ne.s32.totalorder %s65, %s67
    %p71 = scmp.eq.s32.totalorder %s10, 0
    %p72 = por %p70, %p71
    %p73 = scmp.ne.s32.totalorder %s65, %s67
    %p74 = scmp.eq.s32.totalorder %s15, 1
    %p75 = por %p73, %p74
    %p76 = scmp.ne.s32.totalorder %s67, %s68
    %p77 = scmp.eq.s32.totalorder %s15, 0
    %p78 = por %p76, %p77
    %p79 = scmp.ne.s32.totalorder %s67, %s68
    %p80 = scmp.eq.s32.totalorder %s16, 1
    %p81 = por %p79, %p80
    %p83 = scmp.ne.s32.totalorder %s68, %s82
    %p84 = scmp.eq.s32.totalorder %s16, 0
    %p85 = por %p83, %p84
    %s87 = sadd.s32 %s86, 1
    %p90 = scmp.eq.s32.totalorder %s10, 1
    %p91 = scmp.ne.s32.totalorder %s86, %s88
    %p92 = scmp.eq.s32.totalorder %s10, 0
    %p93 = por %p91, %p92
    %p94 = scmp.ne.s32.totalorder %s86, %s88
    %p95 = scmp.eq.s32.totalorder %s15, 1
    %p96 = por %p94, %p95
    %p97 = scmp.ne.s32.totalorder %s88, %s89
    %p98 = scmp.eq.s32.totalorder %s15, 0
    %p99 = por %p97, %p98
    %p100 = scmp.ne.s32.totalorder %s88, %s89
    %p101 = scmp.eq.s32.totalorder %s16, 1
    %p102 = por %p100, %p101
    %p104 = scmp.ne.s32.totalorder %s89, %s103
    %p105 = scmp.eq.s32.totalorder %s16, 0
    %p106 = por %p104, %p105
    %s107 = ssub.s32 %s10, %s17
    %p108 = scmp.eq.s32.totalorder %s107, 0
    %s110 = sadd.s32 %s109, 1
    %s111 = scalar_select %p108, %s109, %s110
    %p114 = pneg %p108
    %p115 = scmp.eq.s32.totalorder %s10, 1
    %p116 = por %p114, %p115
    %p117 = scmp.ne.s32.totalorder %s109, %s112
    %p118 = scmp.eq.s32.totalorder %s10, 0
    %p119 = por %p117, %p118
    %p120 = scmp.ne.s32.totalorder %s109, %s112
    %p121 = scmp.eq.s32.totalorder %s15, 1
    %p122 = por %p120, %p121
    %p123 = scmp.ne.s32.totalorder %s112, %s113
    %p124 = scmp.eq.s32.totalorder %s15, 0
    %p125 = por %p123, %p124
    %p126 = scmp.ne.s32.totalorder %s112, %s113
    %p127 = scmp.eq.s32.totalorder %s16, 1
    %p128 = por %p126, %p127
    %p130 = scmp.ne.s32.totalorder %s113, %s129
    %p131 = scmp.eq.s32.totalorder %s16, 0
    %p132 = por %p130, %p131
    %p133 = scmp.le.s32.totalorder 1, %s10
    %p134 = scmp.lt.s32.totalorder %s10, 3
    %p135 = pnand %p133, %p134
    %p136 = pneg %p135
    // Predicated region
    $region9: #{bsn_unet_forward.27} parent=5 // pred_check
      _
    $region10: #{bsn_unet_forward.27} parent=5 // pred_check_branch
      %138 = sbr.rel (%p135) target = $region12
    $region11: #{bsn_unet_forward.27} parent=5 // pred_region
      %s139 = ssub.s32 %s10, 1
      // Predicated region
      $region13: #{bsn_unet_forward.27} parent=11 // pred_check
        %p140 = pneg %p57
      $region14: #{bsn_unet_forward.27} parent=11 // pred_check_branch
        %142 = sbr.rel (%p140) target = $region16
      $region15: #{bsn_unet_forward.27} parent=11 // pred_region
        _
      $region16: #{bsn_unet_forward.27} parent=11 // pred_fallthru
        _
      // Predicated region
      $region17: #{bsn_unet_forward.27} parent=11 // pred_check
        %p143 = pneg %p78
      $region18: #{bsn_unet_forward.27} parent=11 // pred_check_branch
        %145 = sbr.rel (%p143) target = $region20
      $region19: #{bsn_unet_forward.27} parent=11 // pred_region
        _
      $region20: #{bsn_unet_forward.27} parent=11 // pred_fallthru
        _
      // Predicated region
      $region21: #{bsn_unet_forward.27} parent=11 // pred_check
        %p146 = pneg %p99
      $region22: #{bsn_unet_forward.27} parent=11 // pred_check_branch
        %148 = sbr.rel (%p146) target = $region24
      $region23: #{bsn_unet_forward.27} parent=11 // pred_region
        _
      $region24: #{bsn_unet_forward.27} parent=11 // pred_fallthru
        _
    $region12: #{bsn_unet_forward.27} parent=5 // pred_fallthru
      _
    %p149 = scmp.lt.s32.totalorder %s10, 2
    // Predicated region
    $region25: #{bsn_unet_forward.27} parent=5 // pred_check
      %p150 = pneg %p149
    $region26: #{bsn_unet_forward.27} parent=5 // pred_check_branch
      %152 = sbr.rel (%p150) target = $region28
    $region27: #{bsn_unet_forward.27} parent=5 // pred_region
      // Predicated region
      $region29: #{bsn_unet_forward.27} parent=27 // pred_check
        %p153 = pneg %p30
      $region30: #{bsn_unet_forward.27} parent=27 // pred_check_branch
        %155 = sbr.rel (%p153) target = $region32
      $region31: #{bsn_unet_forward.27} parent=27 // pred_region
        %p156 = scmp.lt.s32.totalorder %s10, 1
        %s157 = scalar_select %p156, %s10, 1
        %s158 = smul.addr %s157, 6
        %s159 = smul.addr %s158, 4
        %s160 = scalar_lea.vmem %s0, %s159
      $region32: #{bsn_unet_forward.27} parent=27 // pred_fallthru
        _
    $region28: #{bsn_unet_forward.27} parent=5 // pred_fallthru
      _
    %p161 = scmp.le.s32.totalorder 1, %s10
    %p162 = scmp.lt.s32.totalorder %s10, 3
    %p163 = pnand %p161, %p162
    %p164 = pneg %p163
    // Predicated region
    $region33: #{bsn_unet_forward.27} parent=5 // pred_check
      _
    $region34: #{bsn_unet_forward.27} parent=5 // pred_check_branch
      %166 = sbr.rel (%p163) target = $region36
    $region35: #{bsn_unet_forward.27} parent=5 // pred_region
      %s167 = ssub.s32 %s10, 1
      %p168 = scmp.lt.s32.totalorder %s15, 1
      %s169 = scalar_select %p168, %s15, 1
      %s170 = smul.addr %s169, 6
      %s171 = smul.addr %s170, 4
      %s172 = scalar_lea.vmem %s0, %s171
      %p173 = pneg %p36
      %p174 = pneg %p33
      %p175 = pneg %p57
      %p176 = pneg %p54
      %p177 = pneg %p78
      %p178 = pneg %p75
      %p179 = pneg %p99
      %p180 = pneg %p96
      %p181 = pneg %p125
      %p182 = pneg %p122
      %p183 = scmp.lt.s32.totalorder %s15, 1
      %s184 = scalar_select %p183, %s15, 1
      %s185 = smul.addr %s184, 6
      %s186 = smul.addr %s185, 4
      %s187 = scalar_lea.vmem %s4, %s186
      %p188 = scmp.lt.s32.totalorder %s15, 1
      %s189 = scalar_select %p188, %s15, 1
      %s190 = smul.addr %s189, 6
      %s191 = smul.addr %s190, 4
      %s192 = scalar_lea.vmem %s0, %s191
      %p193 = scmp.lt.s32.totalorder %s15, 1
      %s194 = scalar_select %p193, %s15, 1
      %s195 = smul.addr %s194, 6
      %s196 = smul.addr %s195, 4
      %s197 = scalar_lea.vmem %s4, %s196
      %v199 = vld [vmem:[%s192] sm:$0xff]
      %v200 = vld [vmem:[%s192 + $0x8] sm:$0xf]
      %v201 = vld [vmem:[%s192 + $0xc] sm:$0xff]
      %v202 = vld [vmem:[%s192 + $0x14] sm:$0xf]
      %203 = vst [vmem:[#allocation2] sm:$0xff] %v199
      %vm204 = vcmask 388096
      %205 = vst.msk [vmem:[#allocation2 + $0x8] sm:$0xf] %vm204, %v200
      %206 = vst [vmem:[#allocation2 + $0xc] sm:$0xff] %v201
      %207 = vst.msk [vmem:[#allocation2 + $0x14] sm:$0xf] %vm204, %v202
      %212 = vrot.lane.b32.xlu0 %v199, 127
      %v213 = vpop.permute.xlu0 %212
      %214 = vrot.lane.b32.xlu0 %v200, 127
      %v215 = vpop.permute.xlu0 %214
      %216 = vrot.lane.b32.xlu0 %v201, 127
      %v217 = vpop.permute.xlu0 %216
      %218 = vrot.lane.b32.xlu0 %v202, 127
      %v219 = vpop.permute.xlu0 %218
      %v220 = vrot.slane %v213, 4
      %v221 = vrot.slane %v215, 4
      %v222 = vrot.slane %v217, 4
      %v223 = vrot.slane %v219, 4
      %vm224 = vcmask 1043456
      %v225 = vsel %vm224, %v220, %v221
      %vm226 = vcmask 1039360
      %v227 = vsel %vm226, %v213, %v225
      %v228 = vsel %vm224, %v222, %v223
      %v229 = vsel %vm226, %v217, %v228
      %234 = vst [vmem:[#allocation2 + $0x18] sm:$0xff] %v227
      %235 = vst.msk [vmem:[#allocation2 + $0x20] sm:$0xf] %vm204, %v215
      %236 = vst [vmem:[#allocation2 + $0x24] sm:$0xff] %v229
      %237 = vst.msk [vmem:[#allocation2 + $0x2c] sm:$0xf] %vm204, %v219
      %238 = vrot.lane.b32.xlu0 %v199, 126
      %v239 = vpop.permute.xlu0 %238
      %240 = vrot.lane.b32.xlu0 %v200, 126
      %v241 = vpop.permute.xlu0 %240
      %242 = vrot.lane.b32.xlu0 %v201, 126
      %v243 = vpop.permute.xlu0 %242
      %244 = vrot.lane.b32.xlu0 %v202, 126
      %v245 = vpop.permute.xlu0 %244
      %v246 = vrot.slane %v239, 4
      %v247 = vrot.slane %v241, 4
      %v248 = vrot.slane %v243, 4
      %v249 = vrot.slane %v245, 4
      %v250 = vsel %vm224, %v246, %v247
      %vm251 = vcmask 1031168
      %v252 = vsel %vm251, %v239, %v250
      %v253 = vsel %vm224, %v248, %v249
      %v254 = vsel %vm251, %v243, %v253
      %259 = vst [vmem:[#allocation2 + $0x30] sm:$0xff] %v252
      %260 = vst.msk [vmem:[#allocation2 + $0x38] sm:$0xf] %vm204, %v241
      %261 = vst [vmem:[#allocation2 + $0x3c] sm:$0xff] %v254
      %262 = vst.msk [vmem:[#allocation2 + $0x44] sm:$0xf] %vm204, %v245
      %263 = vrot.lane.b32.xlu0 %v199, 110
      %v264 = vpop.permute.xlu0 %263
      %265 = vrot.lane.b32.xlu0 %v200, 110
      %v266 = vpop.permute.xlu0 %265
      %267 = vrot.lane.b32.xlu0 %v201, 110
      %v268 = vpop.permute.xlu0 %267
      %269 = vrot.lane.b32.xlu0 %v202, 110
      %v270 = vpop.permute.xlu0 %269
      %v271 = vrot.slane %v264, 4
      %v272 = vrot.slane %v266, 4
      %v273 = vrot.slane %v268, 4
      %v274 = vrot.slane %v270, 4
      %v275 = vsel %vm224, %v271, %v272
      %vm276 = vcmask 900096
      %v277 = vsel %vm276, %v264, %v275
      %v278 = vsel %vm224, %v273, %v274
      %v279 = vsel %vm276, %v268, %v278
      %284 = vst [vmem:[#allocation2 + $0x48] sm:$0xff] %v277
      %285 = vst.msk [vmem:[#allocation2 + $0x50] sm:$0xf] %vm204, %v266
      %286 = vst [vmem:[#allocation2 + $0x54] sm:$0xff] %v279
      %287 = vst.msk [vmem:[#allocation2 + $0x5c] sm:$0xf] %vm204, %v270
      %288 = vrot.lane.b32.xlu0 %v199, 109
      %v289 = vpop.permute.xlu0 %288
      %290 = vrot.lane.b32.xlu0 %v200, 109
      %v291 = vpop.permute.xlu0 %290
      %292 = vrot.lane.b32.xlu0 %v201, 109
      %v293 = vpop.permute.xlu0 %292
      %294 = vrot.lane.b32.xlu0 %v202, 109
      %v295 = vpop.permute.xlu0 %294
      %v296 = vrot.slane %v289, 4
      %v297 = vrot.slane %v291, 4
      %v298 = vrot.slane %v293, 4
      %v299 = vrot.slane %v295, 4
      %v300 = vsel %vm224, %v296, %v297
      %vm301 = vcmask 891904
      %v302 = vsel %vm301, %v289, %v300
      %v303 = vsel %vm224, %v298, %v299
      %v304 = vsel %vm301, %v293, %v303
      %309 = vst [vmem:[#allocation2 + $0x60] sm:$0xff] %v302
      %310 = vst.msk [vmem:[#allocation2 + $0x68] sm:$0xf] %vm204, %v291
      %311 = vst [vmem:[#allocation2 + $0x6c] sm:$0xff] %v304
      %312 = vst.msk [vmem:[#allocation2 + $0x74] sm:$0xf] %vm204, %v295
      %313 = vrot.lane.b32.xlu0 %v199, 108
      %v314 = vpop.permute.xlu0 %313
      %315 = vrot.lane.b32.xlu0 %v200, 108
      %v316 = vpop.permute.xlu0 %315
      %317 = vrot.lane.b32.xlu0 %v201, 108
      %v318 = vpop.permute.xlu0 %317
      %319 = vrot.lane.b32.xlu0 %v202, 108
      %v320 = vpop.permute.xlu0 %319
      %v321 = vrot.slane %v314, 4
      %v322 = vrot.slane %v316, 4
      %v323 = vrot.slane %v318, 4
      %v324 = vrot.slane %v320, 4
      %v325 = vsel %vm224, %v321, %v322
      %vm326 = vcmask 883712
      %v327 = vsel %vm326, %v314, %v325
      %v328 = vsel %vm224, %v323, %v324
      %v329 = vsel %vm326, %v318, %v328
      %334 = vst [vmem:[#allocation2 + $0x78] sm:$0xff] %v327
      %335 = vst.msk [vmem:[#allocation2 + $0x80] sm:$0xf] %vm204, %v316
      %336 = vst [vmem:[#allocation2 + $0x84] sm:$0xff] %v329
      %337 = vst.msk [vmem:[#allocation2 + $0x8c] sm:$0xf] %vm204, %v320
      %338 = vrot.lane.b32.xlu0 %v199, 92
      %v339 = vpop.permute.xlu0 %338
      %340 = vrot.lane.b32.xlu0 %v200, 92
      %v341 = vpop.permute.xlu0 %340
      %342 = vrot.lane.b32.xlu0 %v201, 92
      %v343 = vpop.permute.xlu0 %342
      %344 = vrot.lane.b32.xlu0 %v202, 92
      %v345 = vpop.permute.xlu0 %344
      %v346 = vrot.slane %v339, 4
      %v347 = vrot.slane %v341, 4
      %v348 = vrot.slane %v343, 4
      %v349 = vrot.slane %v345, 4
      %v350 = vsel %vm224, %v346, %v347
      %vm351 = vcmask 752640
      %v352 = vsel %vm351, %v339, %v350
      %v353 = vsel %vm224, %v348, %v349
      %v354 = vsel %vm351, %v343, %v353
      %359 = vst [vmem:[#allocation2 + $0x90] sm:$0xff] %v352
      %360 = vst.msk [vmem:[#allocation2 + $0x98] sm:$0xf] %vm204, %v341
      %361 = vst [vmem:[#allocation2 + $0x9c] sm:$0xff] %v354
      %362 = vst.msk [vmem:[#allocation2 + $0xa4] sm:$0xf] %vm204, %v345
      %363 = vrot.lane.b32.xlu0 %v199, 91
      %v364 = vpop.permute.xlu0 %363
      %365 = vrot.lane.b32.xlu0 %v200, 91
      %v366 = vpop.permute.xlu0 %365
      %367 = vrot.lane.b32.xlu0 %v201, 91
      %v368 = vpop.permute.xlu0 %367
      %369 = vrot.lane.b32.xlu0 %v202, 91
      %v370 = vpop.permute.xlu0 %369
      %v371 = vrot.slane %v364, 4
      %v372 = vrot.slane %v366, 4
      %v373 = vrot.slane %v368, 4
      %v374 = vrot.slane %v370, 4
      %v375 = vsel %vm224, %v371, %v372
      %vm376 = vcmask 744448
      %v377 = vsel %vm376, %v364, %v375
      %v378 = vsel %vm224, %v373, %v374
      %v379 = vsel %vm376, %v368, %v378
      %384 = vst [vmem:[#allocation2 + $0xa8] sm:$0xff] %v377
      %385 = vst.msk [vmem:[#allocation2 + $0xb0] sm:$0xf] %vm204, %v366
      %386 = vst [vmem:[#allocation2 + $0xb4] sm:$0xff] %v379
      %387 = vst.msk [vmem:[#allocation2 + $0xbc] sm:$0xf] %vm204, %v370
      %388 = vrot.lane.b32.xlu0 %v199, 90
      %v389 = vpop.permute.xlu0 %388
      %390 = vrot.lane.b32.xlu0 %v200, 90
      %v391 = vpop.permute.xlu0 %390
      %392 = vrot.lane.b32.xlu0 %v201, 90
      %v393 = vpop.permute.xlu0 %392
      %394 = vrot.lane.b32.xlu0 %v202, 90
      %v395 = vpop.permute.xlu0 %394
      %v396 = vrot.slane %v389, 4
      %v397 = vrot.slane %v391, 4
      %v398 = vrot.slane %v393, 4
      %v399 = vrot.slane %v395, 4
      %v400 = vsel %vm224, %v396, %v397
      %vm401 = vcmask 736256
      %v402 = vsel %vm401, %v389, %v400
      %v403 = vsel %vm224, %v398, %v399
      %v404 = vsel %vm401, %v393, %v403
      %409 = vst [vmem:[#allocation2 + $0xc0] sm:$0xff] %v402
      %410 = vst.msk [vmem:[#allocation2 + $0xc8] sm:$0xf] %vm204, %v391
      %411 = vst [vmem:[#allocation2 + $0xcc] sm:$0xff] %v404
      %412 = vst.msk [vmem:[#allocation2 + $0xd4] sm:$0xf] %vm204, %v395
      %v413 = vld [vmem:[%s1] sm:$0xff]
      %v414 = vld [vmem:[%s1 + $0x8] sm:$0xff]
      %v415 = vld [vmem:[#allocation2] sm:$0xff]
      %v416 = vld [vmem:[#allocation2 + $0x8] sm:$0xf]
      %v417 = vld [vmem:[#allocation2 + $0xc] sm:$0xff]
      %v418 = vld [vmem:[#allocation2 + $0x14] sm:$0xf]
      %v419 = vld [vmem:[#allocation2 + $0x18] sm:$0xff]
      %v420 = vld [vmem:[#allocation2 + $0x20] sm:$0xf]
      %v421 = vld [vmem:[#allocation2 + $0x24] sm:$0xff]
      %v422 = vld [vmem:[#allocation2 + $0x2c] sm:$0xf]
      %v423 = vld [vmem:[#allocation2 + $0x30] sm:$0xff]
      %v424 = vld [vmem:[#allocation2 + $0x38] sm:$0xf]
      %v425 = vld [vmem:[#allocation2 + $0x3c] sm:$0xff]
      %v426 = vld [vmem:[#allocation2 + $0x44] sm:$0xf]
      %v427 = vld [vmem:[#allocation2 + $0x48] sm:$0xff]
      %v428 = vld [vmem:[#allocation2 + $0x50] sm:$0xf]
      %v429 = vld [vmem:[#allocation2 + $0x54] sm:$0xff]
      %v430 = vld [vmem:[#allocation2 + $0x5c] sm:$0xf]
      %v431 = vld [vmem:[#allocation2 + $0x60] sm:$0xff]
      %v432 = vld [vmem:[#allocation2 + $0x68] sm:$0xf]
      %v433 = vld [vmem:[#allocation2 + $0x6c] sm:$0xff]
      %v434 = vld [vmem:[#allocation2 + $0x74] sm:$0xf]
      %v435 = vld [vmem:[#allocation2 + $0x78] sm:$0xff]
      %v436 = vld [vmem:[#allocation2 + $0x80] sm:$0xf]
      %v437 = vld [vmem:[#allocation2 + $0x84] sm:$0xff]
      %v438 = vld [vmem:[#allocation2 + $0x8c] sm:$0xf]
      %v439 = vld [vmem:[#allocation2 + $0x90] sm:$0xff]
      %v440 = vld [vmem:[#allocation2 + $0x98] sm:$0xf]
      %v441 = vld [vmem:[#allocation2 + $0x9c] sm:$0xff]
      %v442 = vld [vmem:[#allocation2 + $0xa4] sm:$0xf]
      %v443 = vld [vmem:[#allocation2 + $0xa8] sm:$0xff]
      %v444 = vld [vmem:[#allocation2 + $0xb0] sm:$0xf]
      %v445 = vld [vmem:[#allocation2 + $0xb4] sm:$0xff]
      %v446 = vld [vmem:[#allocation2 + $0xbc] sm:$0xf]
      %v447 = vld [vmem:[#allocation2 + $0xc0] sm:$0xff]
      %v448 = vld [vmem:[#allocation2 + $0xc8] sm:$0xf]
      %v449 = vld [vmem:[#allocation2 + $0xcc] sm:$0xff]
      %v450 = vld [vmem:[#allocation2 + $0xd4] sm:$0xf]
      %v451 = vld [vmem:[%s2] sm:$0xff]
      %v452 = vld [vmem:[%s2 + $0x8] sm:$0xff]
      %454 = vset.pattern.permute.xlu0 0
      %455 = vperm.xlu0 %454, %v451
      %v456 = vpop.permute.xlu0 %455
      %459 = vset.pattern.permute.xlu0 0
      %460 = vperm.xlu0 %459, %v452
      %v461 = vpop.permute.xlu0 %460
      %v465 = vunpack.c.l.b16 %v413
      %v466 = vunpack.c.h.b16 %v413
      %v467 = vunpack.c.l.b16 %v414
      %v468 = vunpack.c.h.b16 %v414
      %v469 = vpack.c.b16 %v467, %v465
      %v470 = vpack.c.b16 %v468, %v466
      %v508 = vunpack.c.l.b16 %v415
      %v509 = vunpack.c.h.b16 %v415
      %v510 = vunpack.c.l.b16 %v416
      %v511 = vunpack.c.l.b16 %v417
      %v512 = vunpack.c.h.b16 %v417
      %v513 = vunpack.c.l.b16 %v418
      %v514 = vunpack.c.l.b16 %v419
      %v515 = vunpack.c.h.b16 %v419
      %v516 = vunpack.c.l.b16 %v420
      %v517 = vunpack.c.l.b16 %v421
      %v518 = vunpack.c.h.b16 %v421
      %v519 = vunpack.c.l.b16 %v422
      %v520 = vunpack.c.l.b16 %v423
      %v521 = vunpack.c.h.b16 %v423
      %v522 = vunpack.c.l.b16 %v424
      %v523 = vunpack.c.l.b16 %v425
      %v524 = vunpack.c.h.b16 %v425
      %v525 = vunpack.c.l.b16 %v426
      %v526 = vunpack.c.l.b16 %v427
      %v527 = vunpack.c.h.b16 %v427
      %v528 = vunpack.c.l.b16 %v428
      %v529 = vunpack.c.l.b16 %v429
      %v530 = vunpack.c.h.b16 %v429
      %v531 = vunpack.c.l.b16 %v430
      %v532 = vunpack.c.l.b16 %v431
      %v533 = vunpack.c.h.b16 %v431
      %v534 = vunpack.c.l.b16 %v432
      %v535 = vunpack.c.l.b16 %v433
      %v536 = vunpack.c.h.b16 %v433
      %v537 = vunpack.c.l.b16 %v434
      %v538 = vunpack.c.l.b16 %v435
      %v539 = vunpack.c.h.b16 %v435
      %v540 = vunpack.c.l.b16 %v436
      %v541 = vunpack.c.l.b16 %v437
      %v542 = vunpack.c.h.b16 %v437
      %v543 = vunpack.c.l.b16 %v438
      %v544 = vunpack.c.l.b16 %v439
      %v545 = vunpack.c.h.b16 %v439
      %v546 = vunpack.c.l.b16 %v440
      %v547 = vunpack.c.l.b16 %v441
      %v548 = vunpack.c.h.b16 %v441
      %v549 = vunpack.c.l.b16 %v442
      %v550 = vunpack.c.l.b16 %v443
      %v551 = vunpack.c.h.b16 %v443
      %v552 = vunpack.c.l.b16 %v444
      %v553 = vunpack.c.l.b16 %v445
      %v554 = vunpack.c.h.b16 %v445
      %v555 = vunpack.c.l.b16 %v446
      %v556 = vunpack.c.l.b16 %v447
      %v557 = vunpack.c.h.b16 %v447
      %v558 = vunpack.c.l.b16 %v448
      %v559 = vunpack.c.l.b16 %v449
      %v560 = vunpack.c.h.b16 %v449
      %v561 = vunpack.c.l.b16 %v450
      %v562 = vpack.c.b16 %v511, %v508
      %v563 = vpack.c.b16 %v512, %v509
      %v564 = vpack.c.b16 %v513, %v510
      %v565 = vpack.c.b16 %v517, %v514
      %v566 = vpack.c.b16 %v518, %v515
      %v567 = vpack.c.b16 %v519, %v516
      %v568 = vpack.c.b16 %v523, %v520
      %v569 = vpack.c.b16 %v524, %v521
      %v570 = vpack.c.b16 %v525, %v522
      %v571 = vpack.c.b16 %v529, %v526
      %v572 = vpack.c.b16 %v530, %v527
      %v573 = vpack.c.b16 %v531, %v528
      %v574 = vpack.c.b16 %v535, %v532
      %v575 = vpack.c.b16 %v536, %v533
      %v576 = vpack.c.b16 %v537, %v534
      %v577 = vpack.c.b16 %v541, %v538
      %v578 = vpack.c.b16 %v542, %v539
      %v579 = vpack.c.b16 %v543, %v540
      %v580 = vpack.c.b16 %v547, %v544
      %v581 = vpack.c.b16 %v548, %v545
      %v582 = vpack.c.b16 %v549, %v546
      %v583 = vpack.c.b16 %v553, %v550
      %v584 = vpack.c.b16 %v554, %v551
      %v585 = vpack.c.b16 %v555, %v552
      %v586 = vpack.c.b16 %v559, %v556
      %v587 = vpack.c.b16 %v560, %v557
      %v588 = vpack.c.b16 %v561, %v558
      %vm616 = vcmask 130048
      %v618 = vsel %vm616, %v470, 0
      %620 = vmatpush.bf16.msra.mxu0 %v583
      %621 = vmatpush.bf16.msra.mxu0 %v580
      %622 = vmatpush.bf16.msra.mxu0 %v577
      %623 = vmatpush.bf16.msra.mxu0 %v574
      %624 = vmatpush.bf16.msra.mxu0 %v571
      %625 = vmatpush.bf16.msra.mxu0 %v568
      %626 = vmatpush.bf16.msra.mxu0 %v565
      %627 = vmatpush.bf16.msra.mxu0 %v562
      %628 = vmatmul.bf16.gmra.mxu0 %v469
      %v629 = vpop.f32.mrf.mxu0
      %v630 = vadd.f32 %v456, %v629
      %v631 = vpop.f32.mrf.mxu0
      %v632 = vadd.f32 %v461, %v631
      %633 = vdwg.mxu0
      %634 = vmatpush.bf16.msra.mxu0 0
      %635 = vmatpush.bf16.msra.mxu0 0
      %636 = vmatpush.bf16.msra.mxu0 0
      %637 = vmatpush.bf16.msra.mxu0 0
      %638 = vmatpush.bf16.msra.mxu0 0
      %639 = vmatpush.bf16.msra.mxu0 0
      %640 = vmatpush.bf16.msra.mxu0 0
      %641 = vmatpush.bf16.msra.mxu0 %v586
      %642 = vmatmul.bf16.gmra.mxu0 %v618
      %v643 = vpop.f32.mrf.mxu0
      %v644 = vadd.f32 %v630, %v643
      %v645 = vpop.f32.mrf.mxu0
      %v646 = vadd.f32 %v632, %v645
      %647 = vdwg.mxu0
      %648 = vmatpush.bf16.msra.mxu0 %v584
      %649 = vmatpush.bf16.msra.mxu0 %v581
      %650 = vmatpush.bf16.msra.mxu0 %v578
      %651 = vmatpush.bf16.msra.mxu0 %v575
      %652 = vmatpush.bf16.msra.mxu0 %v572
      %653 = vmatpush.bf16.msra.mxu0 %v569
      %654 = vmatpush.bf16.msra.mxu0 %v566
      %655 = vmatpush.bf16.msra.mxu0 %v563
      %656 = vmatmul.bf16.gmra.mxu0 %v469
      %v657 = vpop.f32.mrf.mxu0
      %v658 = vadd.f32 %v456, %v657
      %v659 = vpop.f32.mrf.mxu0
      %v660 = vadd.f32 %v461, %v659
      %661 = vdwg.mxu0
      %662 = vmatpush.bf16.msra.mxu0 0
      %663 = vmatpush.bf16.msra.mxu0 0
      %664 = vmatpush.bf16.msra.mxu0 0
      %665 = vmatpush.bf16.msra.mxu0 0
      %666 = vmatpush.bf16.msra.mxu0 0
      %667 = vmatpush.bf16.msra.mxu0 0
      %668 = vmatpush.bf16.msra.mxu0 0
      %669 = vmatpush.bf16.msra.mxu0 %v587
      %670 = vmatmul.bf16.gmra.mxu0 %v618
      %v671 = vpop.f32.mrf.mxu0
      %v672 = vadd.f32 %v658, %v671
      %v673 = vpop.f32.mrf.mxu0
      %v674 = vadd.f32 %v660, %v673
      %675 = vdwg.mxu0
      %676 = vmatpush.bf16.msra.mxu0 %v585
      %677 = vmatpush.bf16.msra.mxu0 %v582
      %678 = vmatpush.bf16.msra.mxu0 %v579
      %679 = vmatpush.bf16.msra.mxu0 %v576
      %680 = vmatpush.bf16.msra.mxu0 %v573
      %681 = vmatpush.bf16.msra.mxu0 %v570
      %682 = vmatpush.bf16.msra.mxu0 %v567
      %683 = vmatpush.bf16.msra.mxu0 %v564
      %684 = vmatmul.bf16.gmra.mxu0 %v469
      %v685 = vpop.f32.mrf.mxu0
      %v686 = vadd.f32 %v456, %v685
      %v687 = vpop.f32.mrf.mxu0
      %v688 = vadd.f32 %v461, %v687
      %689 = vdwg.mxu0
      %690 = vmatpush.bf16.msra.mxu0 0
      %691 = vmatpush.bf16.msra.mxu0 0
      %692 = vmatpush.bf16.msra.mxu0 0
      %693 = vmatpush.bf16.msra.mxu0 0
      %694 = vmatpush.bf16.msra.mxu0 0
      %695 = vmatpush.bf16.msra.mxu0 0
      %696 = vmatpush.bf16.msra.mxu0 0
      %697 = vmatpush.bf16.msra.mxu0 %v588
      %698 = vmatmul.bf16.gmra.mxu0 %v618
      %v699 = vpop.f32.mrf.mxu0
      %v700 = vadd.f32 %v686, %v699
      %v701 = vpop.f32.mrf.mxu0
      %v702 = vadd.f32 %v688, %v701
      %703 = vdwg.mxu0
      %v704 = vmul.f32 %v644, 0.1
      %v705 = vmul.f32 %v672, 0.1
      %v706 = vmul.f32 %v700, 0.1
      %v707 = vmul.f32 %v646, 0.1
      %v708 = vmul.f32 %v674, 0.1
      %v709 = vmul.f32 %v702, 0.1
      %v710 = vmax.f32 %v644, %v704
      %v711 = vmax.f32 %v672, %v705
      %v712 = vmax.f32 %v700, %v706
      %v713 = vmax.f32 %v646, %v707
      %v714 = vmax.f32 %v674, %v708
      %v715 = vmax.f32 %v702, %v709
      %v716 = vld [vmem:[%s3] sm:$0x7]
      %v718 = vperm.slane %v716, 0
      %v719 = vperm.slane %v716, 1
      %v720 = vperm.slane %v716, 2
      %v724 = vmul.f32 %v710, %v718
      %v725 = vmul.f32 %v711, %v719
      %v726 = vmul.f32 %v712, %v720
      %v727 = vmul.f32 %v713, %v718
      %v728 = vmul.f32 %v714, %v719
      %v729 = vmul.f32 %v715, %v720
      %730 = vst [vmem:[%s197] sm:$0xff] 0
      %vm731 = vcmask 699392
      %732 = vst.msk [vmem:[%s197 + $0x8] sm:$0xf] %vm731, 0
      %733 = vst [vmem:[%s197 + $0xc] sm:$0xff] 0
      %734 = vst.msk [vmem:[%s197 + $0x14] sm:$0xf] %vm731, 0
      %v735 = vpack.c.bf16 %v725, %v724
      %v736 = vpack.c.bf16 %v726, %v726
      %v737 = vpack.c.bf16 %v728, %v727
      %v738 = vpack.c.bf16 %v729, %v729
      %743 = vrot.lane.b32.xlu0 %v735, 37
      %v744 = vpop.permute.xlu0 %743
      %745 = vrot.lane.b32.xlu0 %v736, 37
      %v746 = vpop.permute.xlu0 %745
      %747 = vrot.lane.b32.xlu0 %v737, 37
      %v748 = vpop.permute.xlu0 %747
      %749 = vrot.lane.b32.xlu0 %v738, 37
      %v750 = vpop.permute.xlu0 %749
      %v751 = vrot.slane %v744, 4
      %v752 = vrot.slane %v748, 4
      %vm753 = vcmask 302080
      %v754 = vsel %vm753, %v751, %v744
      %v755 = vsel %vm753, %v751, %v746
      %v756 = vsel %vm753, %v752, %v748
      %v757 = vsel %vm753, %v752, %v750
      %vm762 = vcmask 1043752
      %vm763 = vcmask 1047556
      %vm764 = vmor %vm763, %vm762
      %765 = vst.msk [vmem:[%s197] sm:$0xff] %vm764, %v754
      %vm766 = vcmask 691200
      %767 = vst.msk [vmem:[%s197 + $0x8] sm:$0xf] %vm766, %v755
      %768 = vst.msk [vmem:[%s197 + $0xc] sm:$0xff] %vm764, %v756
      %769 = vst.msk [vmem:[%s197 + $0x14] sm:$0xf] %vm766, %v757
      %p770 = scmp.lt.s32.totalorder %s15, 1
      %s771 = scalar_select %p770, %s15, 1
      %s772 = smul.addr %s771, 6
      %s773 = smul.addr %s772, 4
      %s774 = scalar_lea.vmem %s4, %s773
      // Predicated region
      $region37: #{bsn_unet_forward.27} parent=35 // pred_check
        %p775 = pneg %p122
      $region38: #{bsn_unet_forward.27} parent=35 // pred_check_branch
        %777 = sbr.rel (%p775) target = $region40
      $region39: #{bsn_unet_forward.27} parent=35 // pred_region
        _
      $region40: #{bsn_unet_forward.27} parent=35 // pred_fallthru
        _
    $region36: #{bsn_unet_forward.27} parent=5 // pred_fallthru
      _
    %p778 = scmp.le.s32.totalorder 2, %s10
    // Predicated region
    $region41: #{bsn_unet_forward.27} parent=5 // pred_check
      %p779 = pneg %p778
    $region42: #{bsn_unet_forward.27} parent=5 // pred_check_branch
      %781 = sbr.rel (%p779) target = $region44
    $region43: #{bsn_unet_forward.27} parent=5 // pred_region
      %s782 = ssub.s32 %s10, 2
      // Predicated region
      $region45: #{bsn_unet_forward.27} parent=43 // pred_check
        %p783 = pneg %p128
      $region46: #{bsn_unet_forward.27} parent=43 // pred_check_branch
        %785 = sbr.rel (%p783) target = $region48
      $region47: #{bsn_unet_forward.27} parent=43 // pred_region
        %p786 = scmp.lt.s32.totalorder %s16, 1
        %s787 = scalar_select %p786, %s16, 1
        %s788 = smul.addr %s787, 6
        %s789 = smul.addr %s788, 4
        %s790 = scalar_lea.vmem %s4, %s789
      $region48: #{bsn_unet_forward.27} parent=43 // pred_fallthru
        _
    $region44: #{bsn_unet_forward.27} parent=5 // pred_fallthru
      _
  $region6: #{bsn_unet_forward.27} parent=0 // loop_footer
    %s14 = sadd.s32 1, %s10
  $region7: #{bsn_unet_forward.27} parent=0 // loop_footer_branch
    %9 = sbr.rel target = $region3
  $region8: #{bsn_unet_forward.27} parent=0 // loop_exit
    _

// kernel: bsn_unet_forward.26
$region0: #{bsn_unet_forward.26}
  #allocation0 [shape = 'u32[]', space=smem, size = 0x4, offset = 0x4, fixed_abs, tag = 'smem constant byte address 0x4 - core index']
  #allocation1 [shape = 'u32[72,128]{1,0:T(1,128)}', space=vmem, size = 0x9000, scoped, tag = 'internal scratch']
  #allocation2 [shape = 'bf16[216,304]{1,0:T(8,128)(2,1)}', space=vmem, size = 0x28800, scoped, tag = 'scratch operand']
  %s0 = inlined_call_operand.vmem [shape: bf16[2,16,342], index: 0, kind: input, shape index: {}]
  %s1 = inlined_call_operand.vmem [shape: bf16[2,8,342], index: 1, kind: input, shape index: {}]
  %s2 = inlined_call_operand.vmem [shape: bf16[16,216], index: 2, kind: input, shape index: {}]
  %s3 = inlined_call_operand.vmem [shape: f32[16,1], index: 3, kind: input, shape index: {}]
  %s4 = inlined_call_operand.vmem [shape: f32[1,304], index: 4, kind: input, shape index: {}]
  %s5 = inlined_call_operand.vmem [shape: bf16[2,16,342], index: 5, kind: output, shape index: {}]
  %s6 = sld [smem:[#allocation0]]
  $region53: #{bsn_unet_forward.26} parent=0
    _
  %s8 = ssub.s32 1, %s6
  %s9 = scalar_select 0, %s8, %s6
  loop: start=0, step=1, limit=4
  $region2: #{bsn_unet_forward.26} parent=0 // loop_pre_header
    _
  $region3: #{bsn_unet_forward.26} parent=0 // loop_header
    %s11 = sphi 0, %s15
    %p12 = scmp.ge.s32.totalorder %s11, 4
    %s21 = sphi 0, %s23
    %s24 = sphi 0, %s21
    %s25 = sphi 0, %s24
    %s41 = sphi 0, %s25
    %s47 = sphi 0, %s49
    %s50 = sphi 0, %s47
    %s51 = sphi 0, %s50
    %s67 = sphi 0, %s51
    %s71 = sphi 0, %s71
    %s73 = sphi 0, %s71
    %s74 = sphi 0, %s73
    %s88 = sphi 0, %s74
    %s92 = sphi 0, %s92
    %s94 = sphi 0, %s92
    %s95 = sphi 0, %s94
    %s109 = sphi 0, %s95
    %s113 = sphi 0, %s113
    %s115 = sphi 0, %s113
    %s116 = sphi 0, %s115
    %s130 = sphi 0, %s116
    %s136 = sphi 0, %s138
    %s139 = sphi 0, %s136
    %s140 = sphi 0, %s139
    %s156 = sphi 0, %s140
  $region4: #{bsn_unet_forward.26} parent=0 // loop_header_branch
    %14 = sbr.rel (%p12) target = $region8
  $region5: #{bsn_unet_forward.26} parent=0 // loop_body
    %s16 = ssub.s32 %s11, 1
    %s17 = ssub.s32 %s11, 2
    %s18 = sadd.s32 %s11, 1
    %s19 = ssub.s32 %s11, %s18
    %p20 = scmp.eq.s32.totalorder %s19, 0
    %s22 = sadd.s32 %s21, 1
    %s23 = scalar_select %p20, %s21, %s22
    %p26 = pneg %p20
    %p27 = scmp.eq.s32.totalorder %s11, 1
    %p28 = por %p26, %p27
    %p29 = scmp.ne.s32.totalorder %s21, %s24
    %p30 = scmp.eq.s32.totalorder %s11, 0
    %p31 = por %p29, %p30
    %p32 = scmp.ne.s32.totalorder %s21, %s24
    %p33 = scmp.eq.s32.totalorder %s16, 1
    %p34 = por %p32, %p33
    %p35 = scmp.ne.s32.totalorder %s24, %s25
    %p36 = scmp.eq.s32.totalorder %s16, 0
    %p37 = por %p35, %p36
    %p38 = scmp.ne.s32.totalorder %s24, %s25
    %p39 = scmp.eq.s32.totalorder %s17, 1
    %p40 = por %p38, %p39
    %p42 = scmp.ne.s32.totalorder %s25, %s41
    %p43 = scmp.eq.s32.totalorder %s17, 0
    %p44 = por %p42, %p43
    %s45 = ssub.s32 %s11, %s18
    %p46 = scmp.eq.s32.totalorder %s45, 0
    %s48 = sadd.s32 %s47, 1
    %s49 = scalar_select %p46, %s47, %s48
    %p52 = pneg %p46
    %p53 = scmp.eq.s32.totalorder %s11, 1
    %p54 = por %p52, %p53
    %p55 = scmp.ne.s32.totalorder %s47, %s50
    %p56 = scmp.eq.s32.totalorder %s11, 0
    %p57 = por %p55, %p56
    %p58 = scmp.ne.s32.totalorder %s47, %s50
    %p59 = scmp.eq.s32.totalorder %s16, 1
    %p60 = por %p58, %p59
    %p61 = scmp.ne.s32.totalorder %s50, %s51
    %p62 = scmp.eq.s32.totalorder %s16, 0
    %p63 = por %p61, %p62
    %p64 = scmp.ne.s32.totalorder %s50, %s51
    %p65 = scmp.eq.s32.totalorder %s17, 1
    %p66 = por %p64, %p65
    %p68 = scmp.ne.s32.totalorder %s51, %s67
    %p69 = scmp.eq.s32.totalorder %s17, 0
    %p70 = por %p68, %p69
    %s72 = sadd.s32 %s71, 1
    %p75 = scmp.eq.s32.totalorder %s11, 1
    %p76 = scmp.ne.s32.totalorder %s71, %s73
    %p77 = scmp.eq.s32.totalorder %s11, 0
    %p78 = por %p76, %p77
    %p79 = scmp.ne.s32.totalorder %s71, %s73
    %p80 = scmp.eq.s32.totalorder %s16, 1
    %p81 = por %p79, %p80
    %p82 = scmp.ne.s32.totalorder %s73, %s74
    %p83 = scmp.eq.s32.totalorder %s16, 0
    %p84 = por %p82, %p83
    %p85 = scmp.ne.s32.totalorder %s73, %s74
    %p86 = scmp.eq.s32.totalorder %s17, 1
    %p87 = por %p85, %p86
    %p89 = scmp.ne.s32.totalorder %s74, %s88
    %p90 = scmp.eq.s32.totalorder %s17, 0
    %p91 = por %p89, %p90
    %s93 = sadd.s32 %s92, 1
    %p96 = scmp.eq.s32.totalorder %s11, 1
    %p97 = scmp.ne.s32.totalorder %s92, %s94
    %p98 = scmp.eq.s32.totalorder %s11, 0
    %p99 = por %p97, %p98
    %p100 = scmp.ne.s32.totalorder %s92, %s94
    %p101 = scmp.eq.s32.totalorder %s16, 1
    %p102 = por %p100, %p101
    %p103 = scmp.ne.s32.totalorder %s94, %s95
    %p104 = scmp.eq.s32.totalorder %s16, 0
    %p105 = por %p103, %p104
    %p106 = scmp.ne.s32.totalorder %s94, %s95
    %p107 = scmp.eq.s32.totalorder %s17, 1
    %p108 = por %p106, %p107
    %p110 = scmp.ne.s32.totalorder %s95, %s109
    %p111 = scmp.eq.s32.totalorder %s17, 0
    %p112 = por %p110, %p111
    %s114 = sadd.s32 %s113, 1
    %p117 = scmp.eq.s32.totalorder %s11, 1
    %p118 = scmp.ne.s32.totalorder %s113, %s115
    %p119 = scmp.eq.s32.totalorder %s11, 0
    %p120 = por %p118, %p119
    %p121 = scmp.ne.s32.totalorder %s113, %s115
    %p122 = scmp.eq.s32.totalorder %s16, 1
    %p123 = por %p121, %p122
    %p124 = scmp.ne.s32.totalorder %s115, %s116
    %p125 = scmp.eq.s32.totalorder %s16, 0
    %p126 = por %p124, %p125
    %p127 = scmp.ne.s32.totalorder %s115, %s116
    %p128 = scmp.eq.s32.totalorder %s17, 1
    %p129 = por %p127, %p128
    %p131 = scmp.ne.s32.totalorder %s116, %s130
    %p132 = scmp.eq.s32.totalorder %s17, 0
    %p133 = por %p131, %p132
    %s134 = ssub.s32 %s11, %s18
    %p135 = scmp.eq.s32.totalorder %s134, 0
    %s137 = sadd.s32 %s136, 1
    %s138 = scalar_select %p135, %s136, %s137
    %p141 = pneg %p135
    %p142 = scmp.eq.s32.totalorder %s11, 1
    %p143 = por %p141, %p142
    %p144 = scmp.ne.s32.totalorder %s136, %s139
    %p145 = scmp.eq.s32.totalorder %s11, 0
    %p146 = por %p144, %p145
    %p147 = scmp.ne.s32.totalorder %s136, %s139
    %p148 = scmp.eq.s32.totalorder %s16, 1
    %p149 = por %p147, %p148
    %p150 = scmp.ne.s32.totalorder %s139, %s140
    %p151 = scmp.eq.s32.totalorder %s16, 0
    %p152 = por %p150, %p151
    %p153 = scmp.ne.s32.totalorder %s139, %s140
    %p154 = scmp.eq.s32.totalorder %s17, 1
    %p155 = por %p153, %p154
    %p157 = scmp.ne.s32.totalorder %s140, %s156
    %p158 = scmp.eq.s32.totalorder %s17, 0
    %p159 = por %p157, %p158
    %p160 = scmp.le.s32.totalorder 1, %s11
    %p161 = scmp.lt.s32.totalorder %s11, 3
    %p162 = pnand %p160, %p161
    %p163 = pneg %p162
    // Predicated region
    $region9: #{bsn_unet_forward.26} parent=5 // pred_check
      _
    $region10: #{bsn_unet_forward.26} parent=5 // pred_check_branch
      %165 = sbr.rel (%p162) target = $region12
    $region11: #{bsn_unet_forward.26} parent=5 // pred_region
      %s166 = ssub.s32 %s11, 1
      // Predicated region
      $region13: #{bsn_unet_forward.26} parent=11 // pred_check
        %p167 = pneg %p84
      $region14: #{bsn_unet_forward.26} parent=11 // pred_check_branch
        %169 = sbr.rel (%p167) target = $region16
      $region15: #{bsn_unet_forward.26} parent=11 // pred_region
        _
      $region16: #{bsn_unet_forward.26} parent=11 // pred_fallthru
        _
      // Predicated region
      $region17: #{bsn_unet_forward.26} parent=11 // pred_check
        %p170 = pneg %p105
      $region18: #{bsn_unet_forward.26} parent=11 // pred_check_branch
        %172 = sbr.rel (%p170) target = $region20
      $region19: #{bsn_unet_forward.26} parent=11 // pred_region
        _
      $region20: #{bsn_unet_forward.26} parent=11 // pred_fallthru
        _
      // Predicated region
      $region21: #{bsn_unet_forward.26} parent=11 // pred_check
        %p173 = pneg %p126
      $region22: #{bsn_unet_forward.26} parent=11 // pred_check_branch
        %175 = sbr.rel (%p173) target = $region24
      $region23: #{bsn_unet_forward.26} parent=11 // pred_region
        _
      $region24: #{bsn_unet_forward.26} parent=11 // pred_fallthru
        _
    $region12: #{bsn_unet_forward.26} parent=5 // pred_fallthru
      _
    %p176 = scmp.lt.s32.totalorder %s11, 2
    // Predicated region
    $region25: #{bsn_unet_forward.26} parent=5 // pred_check
      %p177 = pneg %p176
    $region26: #{bsn_unet_forward.26} parent=5 // pred_check_branch
      %179 = sbr.rel (%p177) target = $region28
    $region27: #{bsn_unet_forward.26} parent=5 // pred_region
      // Predicated region
      $region29: #{bsn_unet_forward.26} parent=27 // pred_check
        %p180 = pneg %p31
      $region30: #{bsn_unet_forward.26} parent=27 // pred_check_branch
        %182 = sbr.rel (%p180) target = $region32
      $region31: #{bsn_unet_forward.26} parent=27 // pred_region
        %p183 = scmp.lt.s32.totalorder %s11, 1
        %s184 = scalar_select %p183, %s11, 1
        %s185 = smul.addr %s184, 6
        %s186 = smul.addr %s185, 4
        %s187 = scalar_lea.vmem %s0, %s186
      $region32: #{bsn_unet_forward.26} parent=27 // pred_fallthru
        _
      // Predicated region
      $region33: #{bsn_unet_forward.26} parent=27 // pred_check
        %p188 = pneg %p57
      $region34: #{bsn_unet_forward.26} parent=27 // pred_check_branch
        %190 = sbr.rel (%p188) target = $region36
      $region35: #{bsn_unet_forward.26} parent=27 // pred_region
        %p191 = scmp.lt.s32.totalorder %s11, 1
        %s192 = scalar_select %p191, %s11, 1
        %s193 = smul.addr %s192, 3
        %s194 = smul.addr %s193, 4
        %s195 = scalar_lea.vmem %s1, %s194
      $region36: #{bsn_unet_forward.26} parent=27 // pred_fallthru
        _
    $region28: #{bsn_unet_forward.26} parent=5 // pred_fallthru
      _
    %p196 = scmp.le.s32.totalorder 1, %s11
    %p197 = scmp.lt.s32.totalorder %s11, 3
    %p198 = pnand %p196, %p197
    %p199 = pneg %p198
    // Predicated region
    $region37: #{bsn_unet_forward.26} parent=5 // pred_check
      _
    $region38: #{bsn_unet_forward.26} parent=5 // pred_check_branch
      %201 = sbr.rel (%p198) target = $region40
    $region39: #{bsn_unet_forward.26} parent=5 // pred_region
      %s202 = ssub.s32 %s11, 1
      %p203 = scmp.lt.s32.totalorder %s16, 1
      %s204 = scalar_select %p203, %s16, 1
      %s205 = smul.addr %s204, 6
      %s206 = smul.addr %s205, 4
      %s207 = scalar_lea.vmem %s0, %s206
      %p208 = pneg %p37
      %p209 = pneg %p34
      %p210 = scmp.lt.s32.totalorder %s16, 1
      %s211 = scalar_select %p210, %s16, 1
      %s212 = smul.addr %s211, 3
      %s213 = smul.addr %s212, 4
      %s214 = scalar_lea.vmem %s1, %s213
      %p215 = pneg %p63
      %p216 = pneg %p60
      %p217 = pneg %p84
      %p218 = pneg %p81
      %p219 = pneg %p105
      %p220 = pneg %p102
      %p221 = pneg %p126
      %p222 = pneg %p123
      %p223 = pneg %p152
      %p224 = pneg %p149
      %p225 = scmp.lt.s32.totalorder %s16, 1
      %s226 = scalar_select %p225, %s16, 1
      %s227 = smul.addr %s226, 6
      %s228 = smul.addr %s227, 4
      %s229 = scalar_lea.vmem %s5, %s228
      %p230 = scmp.lt.s32.totalorder %s16, 1
      %s231 = scalar_select %p230, %s16, 1
      %s232 = smul.addr %s231, 6
      %s233 = smul.addr %s232, 4
      %s234 = scalar_lea.vmem %s0, %s233
      %p235 = scmp.lt.s32.totalorder %s16, 1
      %s236 = scalar_select %p235, %s16, 1
      %s237 = smul.addr %s236, 3
      %s238 = smul.addr %s237, 4
      %s239 = scalar_lea.vmem %s1, %s238
      %p240 = scmp.lt.s32.totalorder %s16, 1
      %s241 = scalar_select %p240, %s16, 1
      %s242 = smul.addr %s241, 6
      %s243 = smul.addr %s242, 4
      %s244 = scalar_lea.vmem %s5, %s243
      %v246 = vld [vmem:[%s234] sm:$0xff]
      %v247 = vld [vmem:[%s234 + $0x8] sm:$0xf]
      %v248 = vld [vmem:[%s234 + $0xc] sm:$0xff]
      %v249 = vld [vmem:[%s234 + $0x14] sm:$0xf]
      %250 = vst [vmem:[#allocation2] sm:$0xff] %v246
      %vm251 = vcmask 388096
      %252 = vst.msk [vmem:[#allocation2 + $0x8] sm:$0xf] %vm251, %v247
      %253 = vst [vmem:[#allocation2 + $0xc] sm:$0xff] %v248
      %254 = vst.msk [vmem:[#allocation2 + $0x14] sm:$0xf] %vm251, %v249
      %259 = vrot.lane.b32.xlu0 %v246, 127
      %v260 = vpop.permute.xlu0 %259
      %261 = vrot.lane.b32.xlu0 %v247, 127
      %v262 = vpop.permute.xlu0 %261
      %263 = vrot.lane.b32.xlu0 %v248, 127
      %v264 = vpop.permute.xlu0 %263
      %265 = vrot.lane.b32.xlu0 %v249, 127
      %v266 = vpop.permute.xlu0 %265
      %v267 = vrot.slane %v260, 4
      %v268 = vrot.slane %v262, 4
      %v269 = vrot.slane %v264, 4
      %v270 = vrot.slane %v266, 4
      %vm271 = vcmask 1043456
      %v272 = vsel %vm271, %v267, %v268
      %vm273 = vcmask 1039360
      %v274 = vsel %vm273, %v260, %v272
      %v275 = vsel %vm271, %v269, %v270
      %v276 = vsel %vm273, %v264, %v275
      %281 = vst [vmem:[#allocation2 + $0x18] sm:$0xff] %v274
      %282 = vst.msk [vmem:[#allocation2 + $0x20] sm:$0xf] %vm251, %v262
      %283 = vst [vmem:[#allocation2 + $0x24] sm:$0xff] %v276
      %284 = vst.msk [vmem:[#allocation2 + $0x2c] sm:$0xf] %vm251, %v266
      %285 = vrot.lane.b32.xlu0 %v246, 126
      %v286 = vpop.permute.xlu0 %285
      %287 = vrot.lane.b32.xlu0 %v247, 126
      %v288 = vpop.permute.xlu0 %287
      %289 = vrot.lane.b32.xlu0 %v248, 126
      %v290 = vpop.permute.xlu0 %289
      %291 = vrot.lane.b32.xlu0 %v249, 126
      %v292 = vpop.permute.xlu0 %291
      %v293 = vrot.slane %v286, 4
      %v294 = vrot.slane %v288, 4
      %v295 = vrot.slane %v290, 4
      %v296 = vrot.slane %v292, 4
      %v297 = vsel %vm271, %v293, %v294
      %vm298 = vcmask 1031168
      %v299 = vsel %vm298, %v286, %v297
      %v300 = vsel %vm271, %v295, %v296
      %v301 = vsel %vm298, %v290, %v300
      %306 = vst [vmem:[#allocation2 + $0x30] sm:$0xff] %v299
      %307 = vst.msk [vmem:[#allocation2 + $0x38] sm:$0xf] %vm251, %v288
      %308 = vst [vmem:[#allocation2 + $0x3c] sm:$0xff] %v301
      %309 = vst.msk [vmem:[#allocation2 + $0x44] sm:$0xf] %vm251, %v292
      %310 = vrot.lane.b32.xlu0 %v246, 110
      %v311 = vpop.permute.xlu0 %310
      %312 = vrot.lane.b32.xlu0 %v247, 110
      %v313 = vpop.permute.xlu0 %312
      %314 = vrot.lane.b32.xlu0 %v248, 110
      %v315 = vpop.permute.xlu0 %314
      %316 = vrot.lane.b32.xlu0 %v249, 110
      %v317 = vpop.permute.xlu0 %316
      %v318 = vrot.slane %v311, 4
      %v319 = vrot.slane %v313, 4
      %v320 = vrot.slane %v315, 4
      %v321 = vrot.slane %v317, 4
      %v322 = vsel %vm271, %v318, %v319
      %vm323 = vcmask 900096
      %v324 = vsel %vm323, %v311, %v322
      %v325 = vsel %vm271, %v320, %v321
      %v326 = vsel %vm323, %v315, %v325
      %331 = vst [vmem:[#allocation2 + $0x48] sm:$0xff] %v324
      %332 = vst.msk [vmem:[#allocation2 + $0x50] sm:$0xf] %vm251, %v313
      %333 = vst [vmem:[#allocation2 + $0x54] sm:$0xff] %v326
      %334 = vst.msk [vmem:[#allocation2 + $0x5c] sm:$0xf] %vm251, %v317
      %335 = vrot.lane.b32.xlu0 %v246, 109
      %v336 = vpop.permute.xlu0 %335
      %337 = vrot.lane.b32.xlu0 %v247, 109
      %v338 = vpop.permute.xlu0 %337
      %339 = vrot.lane.b32.xlu0 %v248, 109
      %v340 = vpop.permute.xlu0 %339
      %341 = vrot.lane.b32.xlu0 %v249, 109
      %v342 = vpop.permute.xlu0 %341
      %v343 = vrot.slane %v336, 4
      %v344 = vrot.slane %v338, 4
      %v345 = vrot.slane %v340, 4
      %v346 = vrot.slane %v342, 4
      %v347 = vsel %vm271, %v343, %v344
      %vm348 = vcmask 891904
      %v349 = vsel %vm348, %v336, %v347
      %v350 = vsel %vm271, %v345, %v346
      %v351 = vsel %vm348, %v340, %v350
      %356 = vst [vmem:[#allocation2 + $0x60] sm:$0xff] %v349
      %357 = vst.msk [vmem:[#allocation2 + $0x68] sm:$0xf] %vm251, %v338
      %358 = vst [vmem:[#allocation2 + $0x6c] sm:$0xff] %v351
      %359 = vst.msk [vmem:[#allocation2 + $0x74] sm:$0xf] %vm251, %v342
      %360 = vrot.lane.b32.xlu0 %v246, 108
      %v361 = vpop.permute.xlu0 %360
      %362 = vrot.lane.b32.xlu0 %v247, 108
      %v363 = vpop.permute.xlu0 %362
      %364 = vrot.lane.b32.xlu0 %v248, 108
      %v365 = vpop.permute.xlu0 %364
      %366 = vrot.lane.b32.xlu0 %v249, 108
      %v367 = vpop.permute.xlu0 %366
      %v368 = vrot.slane %v361, 4
      %v369 = vrot.slane %v363, 4
      %v370 = vrot.slane %v365, 4
      %v371 = vrot.slane %v367, 4
      %v372 = vsel %vm271, %v368, %v369
      %vm373 = vcmask 883712
      %v374 = vsel %vm373, %v361, %v372
      %v375 = vsel %vm271, %v370, %v371
      %v376 = vsel %vm373, %v365, %v375
      %381 = vst [vmem:[#allocation2 + $0x78] sm:$0xff] %v374
      %382 = vst.msk [vmem:[#allocation2 + $0x80] sm:$0xf] %vm251, %v363
      %383 = vst [vmem:[#allocation2 + $0x84] sm:$0xff] %v376
      %384 = vst.msk [vmem:[#allocation2 + $0x8c] sm:$0xf] %vm251, %v367
      %385 = vrot.lane.b32.xlu0 %v246, 92
      %v386 = vpop.permute.xlu0 %385
      %387 = vrot.lane.b32.xlu0 %v247, 92
      %v388 = vpop.permute.xlu0 %387
      %389 = vrot.lane.b32.xlu0 %v248, 92
      %v390 = vpop.permute.xlu0 %389
      %391 = vrot.lane.b32.xlu0 %v249, 92
      %v392 = vpop.permute.xlu0 %391
      %v393 = vrot.slane %v386, 4
      %v394 = vrot.slane %v388, 4
      %v395 = vrot.slane %v390, 4
      %v396 = vrot.slane %v392, 4
      %v397 = vsel %vm271, %v393, %v394
      %vm398 = vcmask 752640
      %v399 = vsel %vm398, %v386, %v397
      %v400 = vsel %vm271, %v395, %v396
      %v401 = vsel %vm398, %v390, %v400
      %406 = vst [vmem:[#allocation2 + $0x90] sm:$0xff] %v399
      %407 = vst.msk [vmem:[#allocation2 + $0x98] sm:$0xf] %vm251, %v388
      %408 = vst [vmem:[#allocation2 + $0x9c] sm:$0xff] %v401
      %409 = vst.msk [vmem:[#allocation2 + $0xa4] sm:$0xf] %vm251, %v392
      %410 = vrot.lane.b32.xlu0 %v246, 91
      %v411 = vpop.permute.xlu0 %410
      %412 = vrot.lane.b32.xlu0 %v247, 91
      %v413 = vpop.permute.xlu0 %412
      %414 = vrot.lane.b32.xlu0 %v248, 91
      %v415 = vpop.permute.xlu0 %414
      %416 = vrot.lane.b32.xlu0 %v249, 91
      %v417 = vpop.permute.xlu0 %416
      %v418 = vrot.slane %v411, 4
      %v419 = vrot.slane %v413, 4
      %v420 = vrot.slane %v415, 4
      %v421 = vrot.slane %v417, 4
      %v422 = vsel %vm271, %v418, %v419
      %vm423 = vcmask 744448
      %v424 = vsel %vm423, %v411, %v422
      %v425 = vsel %vm271, %v420, %v421
      %v426 = vsel %vm423, %v415, %v425
      %431 = vst [vmem:[#allocation2 + $0xa8] sm:$0xff] %v424
      %432 = vst.msk [vmem:[#allocation2 + $0xb0] sm:$0xf] %vm251, %v413
      %433 = vst [vmem:[#allocation2 + $0xb4] sm:$0xff] %v426
      %434 = vst.msk [vmem:[#allocation2 + $0xbc] sm:$0xf] %vm251, %v417
      %435 = vrot.lane.b32.xlu0 %v246, 90
      %v436 = vpop.permute.xlu0 %435
      %437 = vrot.lane.b32.xlu0 %v247, 90
      %v438 = vpop.permute.xlu0 %437
      %439 = vrot.lane.b32.xlu0 %v248, 90
      %v440 = vpop.permute.xlu0 %439
      %441 = vrot.lane.b32.xlu0 %v249, 90
      %v442 = vpop.permute.xlu0 %441
      %v443 = vrot.slane %v436, 4
      %v444 = vrot.slane %v438, 4
      %v445 = vrot.slane %v440, 4
      %v446 = vrot.slane %v442, 4
      %v447 = vsel %vm271, %v443, %v444
      %vm448 = vcmask 736256
      %v449 = vsel %vm448, %v436, %v447
      %v450 = vsel %vm271, %v445, %v446
      %v451 = vsel %vm448, %v440, %v450
      %456 = vst [vmem:[#allocation2 + $0xc0] sm:$0xff] %v449
      %457 = vst.msk [vmem:[#allocation2 + $0xc8] sm:$0xf] %vm251, %v438
      %458 = vst [vmem:[#allocation2 + $0xcc] sm:$0xff] %v451
      %459 = vst.msk [vmem:[#allocation2 + $0xd4] sm:$0xf] %vm251, %v442
      %v460 = vld [vmem:[%s239] sm:$0xff]
      %v461 = vld [vmem:[%s239 + $0x8] sm:$0xf]
      %462 = vst [vmem:[#allocation2 + $0xd8] sm:$0xff] %v460
      %463 = vst.msk [vmem:[#allocation2 + $0xe0] sm:$0xf] %vm251, %v461
      %466 = vrot.lane.b32.xlu0 %v460, 127
      %v467 = vpop.permute.xlu0 %466
      %468 = vrot.lane.b32.xlu0 %v461, 127
      %v469 = vpop.permute.xlu0 %468
      %v470 = vrot.slane %v467, 4
      %v471 = vrot.slane %v469, 4
      %v472 = vsel %vm271, %v470, %v471
      %v473 = vsel %vm273, %v467, %v472
      %476 = vst [vmem:[#allocation2 + $0xe4] sm:$0xff] %v473
      %477 = vst.msk [vmem:[#allocation2 + $0xec] sm:$0xf] %vm251, %v469
      %478 = vrot.lane.b32.xlu0 %v460, 126
      %v479 = vpop.permute.xlu0 %478
      %480 = vrot.lane.b32.xlu0 %v461, 126
      %v481 = vpop.permute.xlu0 %480
      %v482 = vrot.slane %v479, 4
      %v483 = vrot.slane %v481, 4
      %v484 = vsel %vm271, %v482, %v483
      %v485 = vsel %vm298, %v479, %v484
      %488 = vst [vmem:[#allocation2 + $0xf0] sm:$0xff] %v485
      %489 = vst.msk [vmem:[#allocation2 + $0xf8] sm:$0xf] %vm251, %v481
      %490 = vrot.lane.b32.xlu0 %v460, 110
      %v491 = vpop.permute.xlu0 %490
      %492 = vrot.lane.b32.xlu0 %v461, 110
      %v493 = vpop.permute.xlu0 %492
      %v494 = vrot.slane %v491, 4
      %v495 = vrot.slane %v493, 4
      %v496 = vsel %vm271, %v494, %v495
      %v497 = vsel %vm323, %v491, %v496
      %500 = vst [vmem:[#allocation2 + $0xfc] sm:$0xff] %v497
      %501 = vst.msk [vmem:[#allocation2 + $0x104] sm:$0xf] %vm251, %v493
      %502 = vrot.lane.b32.xlu0 %v460, 109
      %v503 = vpop.permute.xlu0 %502
      %504 = vrot.lane.b32.xlu0 %v461, 109
      %v505 = vpop.permute.xlu0 %504
      %v506 = vrot.slane %v503, 4
      %v507 = vrot.slane %v505, 4
      %v508 = vsel %vm271, %v506, %v507
      %v509 = vsel %vm348, %v503, %v508
      %512 = vst [vmem:[#allocation2 + $0x108] sm:$0xff] %v509
      %513 = vst.msk [vmem:[#allocation2 + $0x110] sm:$0xf] %vm251, %v505
      %514 = vrot.lane.b32.xlu0 %v460, 108
      %v515 = vpop.permute.xlu0 %514
      %516 = vrot.lane.b32.xlu0 %v461, 108
      %v517 = vpop.permute.xlu0 %516
      %v518 = vrot.slane %v515, 4
      %v519 = vrot.slane %v517, 4
      %v520 = vsel %vm271, %v518, %v519
      %v521 = vsel %vm373, %v515, %v520
      %524 = vst [vmem:[#allocation2 + $0x114] sm:$0xff] %v521
      %525 = vst.msk [vmem:[#allocation2 + $0x11c] sm:$0xf] %vm251, %v517
      %526 = vrot.lane.b32.xlu0 %v460, 92
      %v527 = vpop.permute.xlu0 %526
      %528 = vrot.lane.b32.xlu0 %v461, 92
      %v529 = vpop.permute.xlu0 %528
      %v530 = vrot.slane %v527, 4
      %v531 = vrot.slane %v529, 4
      %v532 = vsel %vm271, %v530, %v531
      %v533 = vsel %vm398, %v527, %v532
      %536 = vst [vmem:[#allocation2 + $0x120] sm:$0xff] %v533
      %537 = vst.msk [vmem:[#allocation2 + $0x128] sm:$0xf] %vm251, %v529
      %538 = vrot.lane.b32.xlu0 %v460, 91
      %v539 = vpop.permute.xlu0 %538
      %540 = vrot.lane.b32.xlu0 %v461, 91
      %v541 = vpop.permute.xlu0 %540
      %v542 = vrot.slane %v539, 4
      %v543 = vrot.slane %v541, 4
      %v544 = vsel %vm271, %v542, %v543
      %v545 = vsel %vm423, %v539, %v544
      %548 = vst [vmem:[#allocation2 + $0x12c] sm:$0xff] %v545
      %549 = vst.msk [vmem:[#allocation2 + $0x134] sm:$0xf] %vm251, %v541
      %550 = vrot.lane.b32.xlu0 %v460, 90
      %v551 = vpop.permute.xlu0 %550
      %552 = vrot.lane.b32.xlu0 %v461, 90
      %v553 = vpop.permute.xlu0 %552
      %v554 = vrot.slane %v551, 4
      %v555 = vrot.slane %v553, 4
      %v556 = vsel %vm271, %v554, %v555
      %v557 = vsel %vm448, %v551, %v556
      %560 = vst [vmem:[#allocation2 + $0x138] sm:$0xff] %v557
      %561 = vst.msk [vmem:[#allocation2 + $0x140] sm:$0xf] %vm251, %v553
      %v562 = vld [vmem:[%s2] sm:$0xff]
      %v563 = vld [vmem:[%s2 + $0x8] sm:$0xff]
      %v564 = vld [vmem:[#allocation2] sm:$0xff]
      %v565 = vld [vmem:[#allocation2 + $0x8] sm:$0xf]
      %v566 = vld [vmem:[#allocation2 + $0xc] sm:$0xff]
      %v567 = vld [vmem:[#allocation2 + $0x14] sm:$0xf]
      %v568 = vld [vmem:[#allocation2 + $0x18] sm:$0xff]
      %v569 = vld [vmem:[#allocation2 + $0x20] sm:$0xf]
      %v570 = vld [vmem:[#allocation2 + $0x24] sm:$0xff]
      %v571 = vld [vmem:[#allocation2 + $0x2c] sm:$0xf]
      %v572 = vld [vmem:[#allocation2 + $0x30] sm:$0xff]
      %v573 = vld [vmem:[#allocation2 + $0x38] sm:$0xf]
      %v574 = vld [vmem:[#allocation2 + $0x3c] sm:$0xff]
      %v575 = vld [vmem:[#allocation2 + $0x44] sm:$0xf]
      %v576 = vld [vmem:[#allocation2 + $0x48] sm:$0xff]
      %v577 = vld [vmem:[#allocation2 + $0x50] sm:$0xf]
      %v578 = vld [vmem:[#allocation2 + $0x54] sm:$0xff]
      %v579 = vld [vmem:[#allocation2 + $0x5c] sm:$0xf]
      %v580 = vld [vmem:[#allocation2 + $0x60] sm:$0xff]
      %v581 = vld [vmem:[#allocation2 + $0x68] sm:$0xf]
      %v582 = vld [vmem:[#allocation2 + $0x6c] sm:$0xff]
      %v583 = vld [vmem:[#allocation2 + $0x74] sm:$0xf]
      %v584 = vld [vmem:[#allocation2 + $0x78] sm:$0xff]
      %v585 = vld [vmem:[#allocation2 + $0x80] sm:$0xf]
      %v586 = vld [vmem:[#allocation2 + $0x84] sm:$0xff]
      %v587 = vld [vmem:[#allocation2 + $0x8c] sm:$0xf]
      %v588 = vld [vmem:[#allocation2 + $0x90] sm:$0xff]
      %v589 = vld [vmem:[#allocation2 + $0x98] sm:$0xf]
      %v590 = vld [vmem:[#allocation2 + $0x9c] sm:$0xff]
      %v591 = vld [vmem:[#allocation2 + $0xa4] sm:$0xf]
      %v592 = vld [vmem:[#allocation2 + $0xa8] sm:$0xff]
      %v593 = vld [vmem:[#allocation2 + $0xb0] sm:$0xf]
      %v594 = vld [vmem:[#allocation2 + $0xb4] sm:$0xff]
      %v595 = vld [vmem:[#allocation2 + $0xbc] sm:$0xf]
      %v596 = vld [vmem:[#allocation2 + $0xc0] sm:$0xff]
      %v597 = vld [vmem:[#allocation2 + $0xc8] sm:$0xf]
      %v598 = vld [vmem:[#allocation2 + $0xcc] sm:$0xff]
      %v599 = vld [vmem:[#allocation2 + $0xd4] sm:$0xf]
      %v600 = vld [vmem:[#allocation2 + $0xd8] sm:$0xff]
      %v601 = vld [vmem:[#allocation2 + $0xe0] sm:$0xf]
      %v602 = vld [vmem:[#allocation2 + $0xe4] sm:$0xff]
      %v603 = vld [vmem:[#allocation2 + $0xec] sm:$0xf]
      %v604 = vld [vmem:[#allocation2 + $0xf0] sm:$0xff]
      %v605 = vld [vmem:[#allocation2 + $0xf8] sm:$0xf]
      %v606 = vld [vmem:[#allocation2 + $0xfc] sm:$0xff]
      %v607 = vld [vmem:[#allocation2 + $0x104] sm:$0xf]
      %v608 = vld [vmem:[#allocation2 + $0x108] sm:$0xff]
      %v609 = vld [vmem:[#allocation2 + $0x110] sm:$0xf]
      %v610 = vld [vmem:[#allocation2 + $0x114] sm:$0xff]
      %v611 = vld [vmem:[#allocation2 + $0x11c] sm:$0xf]
      %v612 = vld [vmem:[#allocation2 + $0x120] sm:$0xff]
      %v613 = vld [vmem:[#allocation2 + $0x128] sm:$0xf]
      %v614 = vld [vmem:[#allocation2 + $0x12c] sm:$0xff]
      %v615 = vld [vmem:[#allocation2 + $0x134] sm:$0xf]
      %v616 = vld [vmem:[#allocation2 + $0x138] sm:$0xff]
      %v617 = vld [vmem:[#allocation2 + $0x140] sm:$0xf]
      %v618 = vld [vmem:[%s3] sm:$0xff]
      %v619 = vld [vmem:[%s3 + $0x8] sm:$0xff]
      %621 = vset.pattern.permute.xlu0 0
      %622 = vperm.xlu0 %621, %v618
      %v623 = vpop.permute.xlu0 %622
      %626 = vset.pattern.permute.xlu0 0
      %627 = vperm.xlu0 %626, %v619
      %v628 = vpop.permute.xlu0 %627
      %v632 = vunpack.c.l.b16 %v562
      %v633 = vunpack.c.h.b16 %v562
      %v634 = vunpack.c.l.b16 %v563
      %v635 = vunpack.c.h.b16 %v563
      %v636 = vpack.c.b16 %v634, %v632
      %v637 = vpack.c.b16 %v635, %v633
      %v693 = vunpack.c.l.b16 %v564
      %v694 = vunpack.c.h.b16 %v564
      %v695 = vunpack.c.l.b16 %v565
      %v696 = vunpack.c.l.b16 %v566
      %v697 = vunpack.c.h.b16 %v566
      %v698 = vunpack.c.l.b16 %v567
      %v699 = vunpack.c.l.b16 %v568
      %v700 = vunpack.c.h.b16 %v568
      %v701 = vunpack.c.l.b16 %v569
      %v702 = vunpack.c.l.b16 %v570
      %v703 = vunpack.c.h.b16 %v570
      %v704 = vunpack.c.l.b16 %v571
      %v705 = vunpack.c.l.b16 %v572
      %v706 = vunpack.c.h.b16 %v572
      %v707 = vunpack.c.l.b16 %v573
      %v708 = vunpack.c.l.b16 %v574
      %v709 = vunpack.c.h.b16 %v574
      %v710 = vunpack.c.l.b16 %v575
      %v711 = vunpack.c.l.b16 %v576
      %v712 = vunpack.c.h.b16 %v576
      %v713 = vunpack.c.l.b16 %v577
      %v714 = vunpack.c.l.b16 %v578
      %v715 = vunpack.c.h.b16 %v578
      %v716 = vunpack.c.l.b16 %v579
      %v717 = vunpack.c.l.b16 %v580
      %v718 = vunpack.c.h.b16 %v580
      %v719 = vunpack.c.l.b16 %v581
      %v720 = vunpack.c.l.b16 %v582
      %v721 = vunpack.c.h.b16 %v582
      %v722 = vunpack.c.l.b16 %v583
      %v723 = vunpack.c.l.b16 %v584
      %v724 = vunpack.c.h.b16 %v584
      %v725 = vunpack.c.l.b16 %v585
      %v726 = vunpack.c.l.b16 %v586
      %v727 = vunpack.c.h.b16 %v586
      %v728 = vunpack.c.l.b16 %v587
      %v729 = vunpack.c.l.b16 %v588
      %v730 = vunpack.c.h.b16 %v588
      %v731 = vunpack.c.l.b16 %v589
      %v732 = vunpack.c.l.b16 %v590
      %v733 = vunpack.c.h.b16 %v590
      %v734 = vunpack.c.l.b16 %v591
      %v735 = vunpack.c.l.b16 %v592
      %v736 = vunpack.c.h.b16 %v592
      %v737 = vunpack.c.l.b16 %v593
      %v738 = vunpack.c.l.b16 %v594
      %v739 = vunpack.c.h.b16 %v594
      %v740 = vunpack.c.l.b16 %v595
      %v741 = vunpack.c.l.b16 %v596
      %v742 = vunpack.c.h.b16 %v596
      %v743 = vunpack.c.l.b16 %v597
      %v744 = vunpack.c.l.b16 %v598
      %v745 = vunpack.c.h.b16 %v598
      %v746 = vunpack.c.l.b16 %v599
      %v747 = vunpack.c.l.b16 %v600
      %v748 = vunpack.c.h.b16 %v600
      %v749 = vunpack.c.l.b16 %v601
      %v750 = vunpack.c.l.b16 %v602
      %v751 = vunpack.c.h.b16 %v602
      %v752 = vunpack.c.l.b16 %v603
      %v753 = vunpack.c.l.b16 %v604
      %v754 = vunpack.c.h.b16 %v604
      %v755 = vunpack.c.l.b16 %v605
      %v756 = vunpack.c.l.b16 %v606
      %v757 = vunpack.c.h.b16 %v606
      %v758 = vunpack.c.l.b16 %v607
      %v759 = vunpack.c.l.b16 %v608
      %v760 = vunpack.c.h.b16 %v608
      %v761 = vunpack.c.l.b16 %v609
      %v762 = vunpack.c.l.b16 %v610
      %v763 = vunpack.c.h.b16 %v610
      %v764 = vunpack.c.l.b16 %v611
      %v765 = vunpack.c.l.b16 %v612
      %v766 = vunpack.c.h.b16 %v612
      %v767 = vunpack.c.l.b16 %v613
      %v768 = vunpack.c.l.b16 %v614
      %v769 = vunpack.c.h.b16 %v614
      %v770 = vunpack.c.l.b16 %v615
      %v771 = vunpack.c.l.b16 %v616
      %v772 = vunpack.c.h.b16 %v616
      %v773 = vunpack.c.l.b16 %v617
      %v774 = vpack.c.b16 %v696, %v693
      %v775 = vpack.c.b16 %v697, %v694
      %v776 = vpack.c.b16 %v698, %v695
      %v777 = vpack.c.b16 %v702, %v699
      %v778 = vpack.c.b16 %v703, %v700
      %v779 = vpack.c.b16 %v704, %v701
      %v780 = vpack.c.b16 %v708, %v705
      %v781 = vpack.c.b16 %v709, %v706
      %v782 = vpack.c.b16 %v710, %v707
      %v783 = vpack.c.b16 %v714, %v711
      %v784 = vpack.c.b16 %v715, %v712
      %v785 = vpack.c.b16 %v716, %v713
      %v786 = vpack.c.b16 %v720, %v717
      %v787 = vpack.c.b16 %v721, %v718
      %v788 = vpack.c.b16 %v722, %v719
      %v789 = vpack.c.b16 %v726, %v723
      %v790 = vpack.c.b16 %v727, %v724
      %v791 = vpack.c.b16 %v728, %v725
      %v792 = vpack.c.b16 %v732, %v729
      %v793 = vpack.c.b16 %v733, %v730
      %v794 = vpack.c.b16 %v734, %v731
      %v795 = vpack.c.b16 %v738, %v735
      %v796 = vpack.c.b16 %v739, %v736
      %v797 = vpack.c.b16 %v740, %v737
      %v798 = vpack.c.b16 %v744, %v741
      %v799 = vpack.c.b16 %v745, %v742
      %v800 = vpack.c.b16 %v746, %v743
      %v801 = vpack.c.b16 %v750, %v747
      %v802 = vpack.c.b16 %v751, %v748
      %v803 = vpack.c.b16 %v752, %v749
      %v804 = vpack.c.b16 %v756, %v753
      %v805 = vpack.c.b16 %v757, %v754
      %v806 = vpack.c.b16 %v758, %v755
      %v807 = vpack.c.b16 %v762, %v759
      %v808 = vpack.c.b16 %v763, %v760
      %v809 = vpack.c.b16 %v764, %v761
      %v810 = vpack.c.b16 %v768, %v765
      %v811 = vpack.c.b16 %v769, %v766
      %v812 = vpack.c.b16 %v770, %v767
      %v813 = vpack.c.b16 %v771, %v771
      %v814 = vpack.c.b16 %v772, %v772
      %v815 = vpack.c.b16 %v773, %v773
      %vm855 = vcmask 719872
      %v857 = vsel %vm855, %v637, 0
      %vm859 = vcmask 1043456
      %v861 = vsel %vm859, %v813, 0
      %v864 = vsel %vm859, %v814, 0
      %v867 = vsel %vm859, %v815, 0
      %869 = vmatpush.bf16.msra.mxu0 %v795
      %870 = vmatpush.bf16.msra.mxu0 %v792
      %871 = vmatpush.bf16.msra.mxu0 %v789
      %872 = vmatpush.bf16.msra.mxu0 %v786
      %873 = vmatpush.bf16.msra.mxu0 %v783
      %874 = vmatpush.bf16.msra.mxu0 %v780
      %875 = vmatpush.bf16.msra.mxu0 %v777
      %876 = vmatpush.bf16.msra.mxu0 %v774
      %877 = vmatmul.bf16.gmra.mxu0 %v636
      %v878 = vpop.f32.mrf.mxu0
      %v879 = vadd.f32 %v623, %v878
      %v880 = vpop.f32.mrf.mxu0
      %v881 = vadd.f32 %v628, %v880
      %882 = vdwg.mxu0
      %883 = vmatpush.bf16.msra.mxu0 0
      %884 = vmatpush.bf16.msra.mxu0 0
      %885 = vmatpush.bf16.msra.mxu0 %v861
      %886 = vmatpush.bf16.msra.mxu0 %v810
      %887 = vmatpush.bf16.msra.mxu0 %v807
      %888 = vmatpush.bf16.msra.mxu0 %v804
      %889 = vmatpush.bf16.msra.mxu0 %v801
      %890 = vmatpush.bf16.msra.mxu0 %v798
      %891 = vmatmul.bf16.gmra.mxu0 %v857
      %v892 = vpop.f32.mrf.mxu0
      %v893 = vadd.f32 %v879, %v892
      %v894 = vpop.f32.mrf.mxu0
      %v895 = vadd.f32 %v881, %v894
      %896 = vdwg.mxu0
      %897 = vmatpush.bf16.msra.mxu0 %v796
      %898 = vmatpush.bf16.msra.mxu0 %v793
      %899 = vmatpush.bf16.msra.mxu0 %v790
      %900 = vmatpush.bf16.msra.mxu0 %v787
      %901 = vmatpush.bf16.msra.mxu0 %v784
      %902 = vmatpush.bf16.msra.mxu0 %v781
      %903 = vmatpush.bf16.msra.mxu0 %v778
      %904 = vmatpush.bf16.msra.mxu0 %v775
      %905 = vmatmul.bf16.gmra.mxu0 %v636
      %v906 = vpop.f32.mrf.mxu0
      %v907 = vadd.f32 %v623, %v906
      %v908 = vpop.f32.mrf.mxu0
      %v909 = vadd.f32 %v628, %v908
      %910 = vdwg.mxu0
      %911 = vmatpush.bf16.msra.mxu0 0
      %912 = vmatpush.bf16.msra.mxu0 0
      %913 = vmatpush.bf16.msra.mxu0 %v864
      %914 = vmatpush.bf16.msra.mxu0 %v811
      %915 = vmatpush.bf16.msra.mxu0 %v808
      %916 = vmatpush.bf16.msra.mxu0 %v805
      %917 = vmatpush.bf16.msra.mxu0 %v802
      %918 = vmatpush.bf16.msra.mxu0 %v799
      %919 = vmatmul.bf16.gmra.mxu0 %v857
      %v920 = vpop.f32.mrf.mxu0
      %v921 = vadd.f32 %v907, %v920
      %v922 = vpop.f32.mrf.mxu0
      %v923 = vadd.f32 %v909, %v922
      %924 = vdwg.mxu0
      %925 = vmatpush.bf16.msra.mxu0 %v797
      %926 = vmatpush.bf16.msra.mxu0 %v794
      %927 = vmatpush.bf16.msra.mxu0 %v791
      %928 = vmatpush.bf16.msra.mxu0 %v788
      %929 = vmatpush.bf16.msra.mxu0 %v785
      %930 = vmatpush.bf16.msra.mxu0 %v782
      %931 = vmatpush.bf16.msra.mxu0 %v779
      %932 = vmatpush.bf16.msra.mxu0 %v776
      %933 = vmatmul.bf16.gmra.mxu0 %v636
      %v934 = vpop.f32.mrf.mxu0
      %v935 = vadd.f32 %v623, %v934
      %v936 = vpop.f32.mrf.mxu0
      %v937 = vadd.f32 %v628, %v936
      %938 = vdwg.mxu0
      %939 = vmatpush.bf16.msra.mxu0 0
      %940 = vmatpush.bf16.msra.mxu0 0
      %941 = vmatpush.bf16.msra.mxu0 %v867
      %942 = vmatpush.bf16.msra.mxu0 %v812
      %943 = vmatpush.bf16.msra.mxu0 %v809
      %944 = vmatpush.bf16.msra.mxu0 %v806
      %945 = vmatpush.bf16.msra.mxu0 %v803
      %946 = vmatpush.bf16.msra.mxu0 %v800
      %947 = vmatmul.bf16.gmra.mxu0 %v857
      %v948 = vpop.f32.mrf.mxu0
      %v949 = vadd.f32 %v935, %v948
      %v950 = vpop.f32.mrf.mxu0
      %v951 = vadd.f32 %v937, %v950
      %952 = vdwg.mxu0
      %v953 = vmul.f32 %v893, 0.1
      %v954 = vmul.f32 %v921, 0.1
      %v955 = vmul.f32 %v949, 0.1
      %v956 = vmul.f32 %v895, 0.1
      %v957 = vmul.f32 %v923, 0.1
      %v958 = vmul.f32 %v951, 0.1
      %v959 = vmax.f32 %v893, %v953
      %v960 = vmax.f32 %v921, %v954
      %v961 = vmax.f32 %v949, %v955
      %v962 = vmax.f32 %v895, %v956
      %v963 = vmax.f32 %v923, %v957
      %v964 = vmax.f32 %v951, %v958
      %v965 = vld [vmem:[%s4] sm:$0x7]
      %v967 = vperm.slane %v965, 0
      %v968 = vperm.slane %v965, 1
      %v969 = vperm.slane %v965, 2
      %v973 = vmul.f32 %v959, %v967
      %v974 = vmul.f32 %v960, %v968
      %v975 = vmul.f32 %v961, %v969
      %v976 = vmul.f32 %v962, %v967
      %v977 = vmul.f32 %v963, %v968
      %v978 = vmul.f32 %v964, %v969
      %979 = vst [vmem:[%s244] sm:$0xff] 0
      %vm980 = vcmask 699392
      %981 = vst.msk [vmem:[%s244 + $0x8] sm:$0xf] %vm980, 0
      %982 = vst [vmem:[%s244 + $0xc] sm:$0xff] 0
      %983 = vst.msk [vmem:[%s244 + $0x14] sm:$0xf] %vm980, 0
      %v984 = vpack.c.bf16 %v974, %v973
      %v985 = vpack.c.bf16 %v975, %v975
      %v986 = vpack.c.bf16 %v977, %v976
      %v987 = vpack.c.bf16 %v978, %v978
      %992 = vrot.lane.b32.xlu0 %v984, 37
      %v993 = vpop.permute.xlu0 %992
      %994 = vrot.lane.b32.xlu0 %v985, 37
      %v995 = vpop.permute.xlu0 %994
      %996 = vrot.lane.b32.xlu0 %v986, 37
      %v997 = vpop.permute.xlu0 %996
      %998 = vrot.lane.b32.xlu0 %v987, 37
      %v999 = vpop.permute.xlu0 %998
      %v1000 = vrot.slane %v993, 4
      %v1001 = vrot.slane %v997, 4
      %vm1002 = vcmask 302080
      %v1003 = vsel %vm1002, %v1000, %v993
      %v1004 = vsel %vm1002, %v1000, %v995
      %v1005 = vsel %vm1002, %v1001, %v997
      %v1006 = vsel %vm1002, %v1001, %v999
      %vm1011 = vcmask 1043752
      %vm1012 = vcmask 1047556
      %vm1013 = vmor %vm1012, %vm1011
      %1014 = vst.msk [vmem:[%s244] sm:$0xff] %vm1013, %v1003
      %vm1015 = vcmask 691200
      %1016 = vst.msk [vmem:[%s244 + $0x8] sm:$0xf] %vm1015, %v1004
      %1017 = vst.msk [vmem:[%s244 + $0xc] sm:$0xff] %vm1013, %v1005
      %1018 = vst.msk [vmem:[%s244 + $0x14] sm:$0xf] %vm1015, %v1006
      %p1019 = scmp.lt.s32.totalorder %s16, 1
      %s1020 = scalar_select %p1019, %s16, 1
      %s1021 = smul.addr %s1020, 6
      %s1022 = smul.addr %s1021, 4
      %s1023 = scalar_lea.vmem %s5, %s1022
      // Predicated region
      $region41: #{bsn_unet_forward.26} parent=39 // pred_check
        %p1024 = pneg %p149
      $region42: #{bsn_unet_forward.26} parent=39 // pred_check_branch
        %1026 = sbr.rel (%p1024) target = $region44
      $region43: #{bsn_unet_forward.26} parent=39 // pred_region
        _
      $region44: #{bsn_unet_forward.26} parent=39 // pred_fallthru
        _
    $region40: #{bsn_unet_forward.26} parent=5 // pred_fallthru
      _
    %p1027 = scmp.le.s32.totalorder 2, %s11
    // Predicated region
    $region45: #{bsn_unet_forward.26} parent=5 // pred_check
      %p1028 = pneg %p1027
    $region46: #{bsn_unet_forward.26} parent=5 // pred_check_branch
      %1030 = sbr.rel (%p1028) target = $region48
    $region47: #{bsn_unet_forward.26} parent=5 // pred_region
      %s1031 = ssub.s32 %s11, 2
      // Predicated region
      $region49: #{bsn_unet_forward.26} parent=47 // pred_check
        %p1032 = pneg %p155
      $region50: #{bsn_unet_forward.26} parent=47 // pred_check_branch
        %1034 = sbr.rel (%p1032) target = $region52
      $region51: #{bsn_unet_forward.26} parent=47 // pred_region
        %p1035 = scmp.lt.s32.totalorder %s17, 1
        %s1036 = scalar_select %p1035, %s17, 1
        %s1037 = smul.addr %s1036, 6
        %s1038 = smul.addr %s1037, 4
        %s1039 = scalar_lea.vmem %s5, %s1038
      $region52: #{bsn_unet_forward.26} parent=47 // pred_fallthru
        _
    $region48: #{bsn_unet_forward.26} parent=5 // pred_fallthru
      _
  $region6: #{bsn_unet_forward.26} parent=0 // loop_footer
    %s15 = sadd.s32 1, %s11
  $region7: #{bsn_unet_forward.26} parent=0 // loop_footer_branch
    %10 = sbr.rel target = $region3
  $region8: #{bsn_unet_forward.26} parent=0 // loop_exit
    _

</llo_original>
